<compile_context>
chip_gen: v7x
topology: tpu7x:2x2x1
jax: 0.10.0
libtpu: 0.0.40
codegen_flags: <defaults>
</compile_context>

<pallas_src>
import functools

import jax
import jax.numpy as jnp
from jax import lax
from jax.experimental import pallas as pl
from jax.experimental.pallas import tpu as pltpu


# ----------------------------------------------------------------------------
# helpers
# ----------------------------------------------------------------------------
def _round_up(x, m):
    return (x + m - 1) // m * m


def _vmem_capacity_bytes():
    try:
        return int(pltpu.get_tpu_info().vmem_capacity_bytes)
    except Exception:
        return 64 * 1024 * 1024        # conservative fallback (v7x-sized VMEM)


def _pad_gate_mat(w, in_dim_pad, H, H_pad):
    """Pad a PyTorch-style (in_dim, 4H) gate matrix/bias per-gate so gate k starts
    at lane offset k*H_pad in the padded (in_dim_pad, 4*H_pad) layout."""
    # TODO(synk): for tiny H (<128) the 4 gates could be packed into round_up(4H,128)
    #             lanes to avoid 4x MXU/EUP padding work; kept per-gate-aligned here.
    in_dim = w.shape[0]
    w4 = w.reshape(in_dim, 4, H)
    w4 = jnp.pad(w4, ((0, in_dim_pad - in_dim), (0, 0), (0, H_pad - H)))
    return w4.reshape(in_dim_pad, 4 * H_pad)


def _pick_bblk(B_pad):
    """Batch block: as large as possible (MXU M-dim), but prefer >= 2 batch blocks so
    the 'parallel' axis can shard across both v7x TensorCores. Multiple of 16 (bf16)."""
    cands = [c for c in (256, 128, 64, 32, 16) if c <= B_pad and B_pad % c == 0]
    for c in cands:
        if B_pad // c >= 2:
            return c
    return cands[0] if cands else B_pad


def _estimate_vmem(tc, bb, e_pad, h_pad, h2_pad, v_pad, L):
    """Rough per-grid-step VMEM footprint (inputs/outputs double-buffered)."""
    bf, f4 = 2, 4
    blk_in = 2 * tc * bb * e_pad * bf                                   # x block
    w_lstm = 2 * ((e_pad + (L - 1) * h_pad) * 4 * h_pad * bf
                  + L * h_pad * 4 * h_pad * bf + L * 4 * h_pad * f4)    # lstm weights
    w_head = 2 * (h_pad * h2_pad * bf + h2_pad * f4
                  + h2_pad * v_pad * bf + v_pad * f4)                   # head weights
    state_io = 2 * 4 * L * bb * h_pad * f4                              # h0,c0,hT,cT
    blk_out = 2 * tc * bb * v_pad * f4                                  # logits block
    scratch = (tc * bb * h_pad * bf + tc * bb * 4 * h_pad * f4
               + 2 * L * bb * h_pad * f4)
    interm = tc * bb * (4 * h_pad + h2_pad + v_pad) * f4                # temporaries
    return blk_in + w_lstm + w_head + state_io + blk_out + scratch + interm


# ----------------------------------------------------------------------------
# Fused kernel: all LSTM layers + linear1 -> relu -> linear2 head.
# Grid: (batch_blocks [parallel], time_chunks [arbitrary]).
# Gate order follows nn.LSTM: i, f, g, o.  Weights (in_dim_pad, 4*H_pad) bf16;
# bias = b_ih + b_hh, (1, 4*H_pad) f32.
# ----------------------------------------------------------------------------
def char_lstm_kernel(*refs, n_layers, t_chunk, h_pad, t_real, mask_tail, unroll):
    L, Hp, TC = n_layers, h_pad, t_chunk

    x_ref = refs[0]
    w_ih_refs = refs[1:1 + L]
    w_hh_refs = refs[1 + L:1 + 2 * L]
    b_refs = refs[1 + 2 * L:1 + 3 * L]
    h0_ref = refs[1 + 3 * L]
    c0_ref = refs[2 + 3 * L]
    w1_ref, b1_ref, w2_ref, b2_ref = refs[3 + 3 * L:7 + 3 * L]
    o_ref, hT_ref, cT_ref = refs[7 + 3 * L:10 + 3 * L]
    act_ref, xw_ref, h_state, c_state = refs[10 + 3 * L:14 + 3 * L]

    Bblk = h_state.shape[1]
    Vp = o_ref.shape[2]
    ti = pl.program_id(1)

    # At the first time chunk of each batch block, load the initial (h, c) state.
    @pl.when(ti == 0)
    def _init():
        h_state[...] = h0_ref[...]
        c_state[...] = c0_ref[...]

    for layer in range(L):
        # ---- hoisted bf16 input projection for the whole chunk (bias folded) ----
        a_in = x_ref[...] if layer == 0 else act_ref[...]          # bf16
        in_dim = a_in.shape[-1]
        xw = jnp.dot(a_in.reshape(TC * Bblk, in_dim), w_ih_refs[layer][...],
                     preferred_element_type=jnp.float32) + b_refs[layer][...]
        xw_ref[...] = xw.reshape(TC, Bblk, 4 * Hp)

        w_hh_ref = w_hh_refs[layer]

        def step(t, carry, layer=layer, w_hh_ref=w_hh_ref):
            h = h_state[layer]
            c = c_state[layer]
            # TODO(synk): holding w_hh resident in the MXU across the time loop
            #             (pltpu.matmul_push_rhs / matmul_acc_lhs / matmul_pop) would
            #             avoid re-pushing the RHS every step; kept as jnp.dot here.
            gates = xw_ref[t] + jnp.dot(h.astype(jnp.bfloat16), w_hh_ref[...],
                                        preferred_element_type=jnp.float32)
            # H_pad is a multiple of 128 -> each gate slice is lane-aligned.
            i_g = jax.nn.sigmoid(gates[:, 0 * Hp:1 * Hp])
            f_g = jax.nn.sigmoid(gates[:, 1 * Hp:2 * Hp])
            g_g = jnp.tanh(gates[:, 2 * Hp:3 * Hp])
            o_g = jax.nn.sigmoid(gates[:, 3 * Hp:4 * Hp])
            c_new = f_g * c + i_g * g_g
            h_new = o_g * jnp.tanh(c_new)
            if mask_tail:  # static: only traced when T was padded up to T_pad
                valid = (ti * TC + t) < t_real
                c_new = jnp.where(valid, c_new, c)
                h_new = jnp.where(valid, h_new, h)
            h_state[layer] = h_new
            c_state[layer] = c_new
            act_ref[t] = h_new.astype(jnp.bfloat16)
            return carry

        lax.fori_loop(0, TC, step, 0, unroll=unroll)

    # ---- fused MLP head on the resident last-layer hidden slab (no y->HBM trip) ----
    y = act_ref[...].reshape(TC * Bblk, Hp)                          # bf16
    hdn = jnp.dot(y, w1_ref[...], preferred_element_type=jnp.float32) + b1_ref[...]
    hdn = jnp.maximum(hdn, 0.0).astype(jnp.bfloat16)
    logits = jnp.dot(hdn, w2_ref[...],
                     preferred_element_type=jnp.float32) + b2_ref[...]
    o_ref[...] = logits.reshape(TC, Bblk, Vp).astype(o_ref.dtype)

    # Final (h, c) written back only once, on the last time chunk.
    @pl.when(ti == pl.num_programs(1) - 1)
    def _finalize():
        hT_ref[...] = h_state[...]
        cT_ref[...] = c_state[...]


def fused_char_lstm(x, w_ih_list, w_hh_list, b_list, h0, c0, w1, b1, w2, b2):
    """x: (T, B_pad, E_pad) bf16 time-major.  h0/c0: (L, B_pad, H_pad) f32.
    Returns logits (T_pad, B_pad, V_pad) f32 and hT, cT (L, B_pad, H_pad) f32."""
    T, B_pad, E_pad = x.shape
    L, _, H_pad = h0.shape
    H2_pad = w1.shape[1]
    V_pad = w2.shape[1]

    BBLK = _pick_bblk(B_pad)
    n_b = B_pad // BBLK

    # Generation-aware tiling: target ~80% of this chip's physical VMEM.
    capacity = _vmem_capacity_bytes()
    budget = int(capacity * 0.8)
    cands = sorted({min(c, T) for c in (128, 64, 32, 16, 8)}, reverse=True)
    TCHUNK = cands[-1]
    for tc in cands:
        if _estimate_vmem(tc, BBLK, E_pad, H_pad, H2_pad, V_pad, L) <= budget:
            TCHUNK = tc
            break

    T_pad = _round_up(T, TCHUNK)
    n_t = T_pad // TCHUNK
    if T_pad != T:
        x = jnp.pad(x, ((0, T_pad - T), (0, 0), (0, 0)))

    est = _estimate_vmem(TCHUNK, BBLK, E_pad, H_pad, H2_pad, V_pad, L)
    vmem_limit = int(min(capacity - 2 * 1024 * 1024,
                         max(est + (8 << 20), 32 << 20)))

    unroll = 2 if BBLK >= 128 else min(8, TCHUNK)

    kernel = functools.partial(
        char_lstm_kernel, n_layers=L, t_chunk=TCHUNK, h_pad=H_pad,
        t_real=T, mask_tail=(T_pad != T), unroll=unroll)

    # TODO(synk): LSTM/head weights are grid-invariant; single-buffering them
    #             (pipeline_mode=pl.Buffered(1)) would halve their VMEM footprint.
    #             Kept on the default pipelined path and accounted for (2x) above.
    in_specs = [pl.BlockSpec((TCHUNK, BBLK, E_pad), lambda bi, ti: (ti, bi, 0))]
    for wl in w_ih_list:
        in_specs.append(pl.BlockSpec(wl.shape, lambda bi, ti: (0, 0)))
    for wl in w_hh_list:
        in_specs.append(pl.BlockSpec(wl.shape, lambda bi, ti: (0, 0)))
    for bl in b_list:
        in_specs.append(pl.BlockSpec(bl.shape, lambda bi, ti: (0, 0)))
    in_specs.append(pl.BlockSpec((L, BBLK, H_pad), lambda bi, ti: (0, bi, 0)))   # h0
    in_specs.append(pl.BlockSpec((L, BBLK, H_pad), lambda bi, ti: (0, bi, 0)))   # c0
    in_specs.append(pl.BlockSpec(w1.shape, lambda bi, ti: (0, 0)))
    in_specs.append(pl.BlockSpec(b1.shape, lambda bi, ti: (0, 0)))
    in_specs.append(pl.BlockSpec(w2.shape, lambda bi, ti: (0, 0)))
    in_specs.append(pl.BlockSpec(b2.shape, lambda bi, ti: (0, 0)))

    out_specs = (pl.BlockSpec((TCHUNK, BBLK, V_pad), lambda bi, ti: (ti, bi, 0)),
                 pl.BlockSpec((L, BBLK, H_pad), lambda bi, ti: (0, bi, 0)),
                 pl.BlockSpec((L, BBLK, H_pad), lambda bi, ti: (0, bi, 0)))

    out_shape = (jax.ShapeDtypeStruct((T_pad, B_pad, V_pad), jnp.float32),
                 jax.ShapeDtypeStruct((L, B_pad, H_pad), jnp.float32),
                 jax.ShapeDtypeStruct((L, B_pad, H_pad), jnp.float32))

    scratch = [pltpu.VMEM((TCHUNK, BBLK, H_pad), jnp.bfloat16),      # inter-layer act
               pltpu.VMEM((TCHUNK, BBLK, 4 * H_pad), jnp.float32),   # hoisted x@W_ih+b
               pltpu.VMEM((L, BBLK, H_pad), jnp.float32),            # carried h
               pltpu.VMEM((L, BBLK, H_pad), jnp.float32)]            # carried c

    return pl.pallas_call(
        kernel,
        out_shape=out_shape,
        grid=(n_b, n_t),
        in_specs=in_specs,
        out_specs=out_specs,
        scratch_shapes=scratch,
        compiler_params=pltpu.CompilerParams(
            dimension_semantics=("parallel", "arbitrary"),
            vmem_limit_bytes=vmem_limit),
    )(x, *w_ih_list, *w_hh_list, *b_list, h0, c0, w1, b1, w2, b2)


# ----------------------------------------------------------------------------
# Full CharLSTM forward (embedding gather + padding in JAX, hot path in Pallas).
# ----------------------------------------------------------------------------
def char_lstm_forward(params, ids, h0, c0):
    """ids: (B, T) int32.  h0, c0: (L, B, H).  Returns (logits (B*T, V), (h, c))."""
    B, T = ids.shape
    L, _, H = h0.shape
    E = params["emb"].shape[1]
    H2 = params["w1"].shape[1]
    V = params["w2"].shape[1]

    E_pad = _round_up(E, 128)
    H_pad = _round_up(H, 128)
    H2_pad = _round_up(H2, 128)
    V_pad = _round_up(V, 128)
    B_pad = _round_up(B, 16)      # multiple of 16 keeps bf16 (16,128) tiles dense

    # --- embedding, gathered time-major, with max_norm=1 renorm ---
    # TODO(synk): PyTorch renorms the embedding table in place; applying it to the
    #             gathered rows is equivalent for this single forward pass.
    emb = jnp.take(params["emb"], ids.T, axis=0)                     # (T, B, E) f32
    norm = jnp.sqrt(jnp.sum(emb * emb, axis=-1, keepdims=True))
    emb = emb * jnp.where(norm > 1.0, 1.0 / norm, 1.0)
    x = jnp.pad(emb.astype(jnp.bfloat16),
                ((0, 0), (0, B_pad - B), (0, E_pad - E)))            # (T, B_pad, E_pad)

    h0p = jnp.pad(h0, ((0, 0), (0, B_pad - B), (0, H_pad - H)))
    c0p = jnp.pad(c0, ((0, 0), (0, B_pad - B), (0, H_pad - H)))

    # Per-gate padded bf16 weights (gate k starts at lane offset k * H_pad).
    w_ih_p = [_pad_gate_mat(params["w_ih"][l], E_pad if l == 0 else H_pad,
                            H, H_pad).astype(jnp.bfloat16) for l in range(L)]
    w_hh_p = [_pad_gate_mat(params["w_hh"][l], H_pad, H, H_pad).astype(jnp.bfloat16)
              for l in range(L)]
    b_p = [_pad_gate_mat(params["b_lstm"][l], 1, H, H_pad) for l in range(L)]   # f32

    w1p = jnp.pad(params["w1"], ((0, H_pad - H), (0, H2_pad - H2))).astype(jnp.bfloat16)
    b1p = jnp.pad(params["b1"], ((0, 0), (0, H2_pad - H2)))
    w2p = jnp.pad(params["w2"], ((0, H2_pad - H2), (0, V_pad - V))).astype(jnp.bfloat16)
    b2p = jnp.pad(params["b2"], ((0, 0), (0, V_pad - V)))

    # --- fused LSTM stack + dropout(eval: identity) + linear1 -> relu -> linear2 ---
    # TODO(synk): training-mode nn.Dropout masking not implemented (eval = identity).
    logits_p, hT_p, cT_p = fused_char_lstm(x, w_ih_p, w_hh_p, b_p, h0p, c0p,
                                           w1p, b1p, w2p, b2p)

    # Time-major -> PyTorch's batch-major reshape(B*T, V).
    # TODO(synk): this final transpose could also be folded into the kernel with a
    #             batch-major out_spec; kept in XLA for lowering robustness.
    logits = jnp.transpose(logits_p[:T, :B, :V], (1, 0, 2)).reshape(B * T, V)

    return logits, (hT_p[:, :B, :H], cT_p[:, :B, :H])


# ----------------------------------------------------------------------------
# Deterministic parameter construction (synthetic, shapes follow __init__).
# ----------------------------------------------------------------------------
def make_params(key, vocab_size, emb_dim, hidden, n_layers):
    keys = jax.random.split(key, 4 + 3 * n_layers)
    k = iter(keys)
    params = {}
    params["emb"] = jax.random.normal(next(k), (vocab_size, emb_dim), jnp.float32) * 0.5

    w_ih, w_hh, b_lstm = [], [], []
    for layer in range(n_layers):
        in_dim = emb_dim if layer == 0 else hidden
        w_ih.append(jax.random.normal(next(k), (in_dim, 4 * hidden), jnp.float32) * 0.1)
        w_hh.append(jax.random.normal(next(k), (hidden, 4 * hidden), jnp.float32) * 0.1)
        # combined bias b_ih + b_hh, stored as (1, 4H)
        b_lstm.append(jax.random.normal(next(k), (1, 4 * hidden), jnp.float32) * 0.1)
    params["w_ih"], params["w_hh"], params["b_lstm"] = w_ih, w_hh, b_lstm

    params["w1"] = jax.random.normal(next(k), (hidden, 2 * hidden), jnp.float32) * 0.1
    params["b1"] = jnp.zeros((1, 2 * hidden), jnp.float32)
    params["w2"] = jax.random.normal(next(k), (2 * hidden, vocab_size), jnp.float32) * 0.1
    params["b2"] = jnp.zeros((1, vocab_size), jnp.float32)
    return params


if __name__ == "__main__":
    # Small synthetic shapes consistent with the module's forward.
    VOCAB = 64
    EMB = 32
    HIDDEN = 32
    N_LAYERS = 2
    B, T = 2, 8

    key = jax.random.PRNGKey(0)
    k_params, k_ids, k_h, k_c = jax.random.split(key, 4)

    params = make_params(k_params, VOCAB, EMB, HIDDEN, N_LAYERS)
    ids = jax.random.randint(k_ids, (B, T), 0, VOCAB, dtype=jnp.int32)
    h0 = jax.random.normal(k_h, (N_LAYERS, B, HIDDEN), jnp.float32) * 0.1
    c0 = jax.random.normal(k_c, (N_LAYERS, B, HIDDEN), jnp.float32) * 0.1

    fwd = jax.jit(char_lstm_forward)
    logits, (h, c) = fwd(params, ids, h0, c0)
    jax.block_until_ready((logits, h, c))

    assert logits.shape == (B * T, VOCAB)
    assert h.shape == (N_LAYERS, B, HIDDEN)
    assert c.shape == (N_LAYERS, B, HIDDEN)
    assert bool(jnp.all(jnp.isfinite(logits)))
    print("KERNEL_OK")
</pallas_src>

<mosaic_0001>
module attributes {stable_mosaic.version = 11 : i64} {
  func.func @char_lstm_kernel(%arg0: i32, %arg1: i32, %arg2: memref<8x16x128xbf16, #tpu.memory_space<vmem>>, %arg3: memref<128x512xbf16, #tpu.memory_space<vmem>>, %arg4: memref<128x512xbf16, #tpu.memory_space<vmem>>, %arg5: memref<128x512xbf16, #tpu.memory_space<vmem>>, %arg6: memref<128x512xbf16, #tpu.memory_space<vmem>>, %arg7: memref<1x512xf32, #tpu.memory_space<vmem>>, %arg8: memref<1x512xf32, #tpu.memory_space<vmem>>, %arg9: memref<2x16x128xf32, #tpu.memory_space<vmem>>, %arg10: memref<2x16x128xf32, #tpu.memory_space<vmem>>, %arg11: memref<128x128xbf16, #tpu.memory_space<vmem>>, %arg12: memref<1x128xf32, #tpu.memory_space<vmem>>, %arg13: memref<128x128xbf16, #tpu.memory_space<vmem>>, %arg14: memref<1x128xf32, #tpu.memory_space<vmem>>, %arg15: memref<8x16x128xf32, #tpu.memory_space<vmem>>, %arg16: memref<2x16x128xf32, #tpu.memory_space<vmem>>, %arg17: memref<2x16x128xf32, #tpu.memory_space<vmem>>, %arg18: memref<8x16x128xbf16, #tpu.memory_space<vmem>>, %arg19: memref<8x16x512xf32, #tpu.memory_space<vmem>>, %arg20: memref<2x16x128xf32, #tpu.memory_space<vmem>>, %arg21: memref<2x16x128xf32, #tpu.memory_space<vmem>>) attributes {dimension_semantics = [#tpu.dimension_semantics<parallel>, #tpu.dimension_semantics<arbitrary>], iteration_bounds = array<i64: 1, 1>, scalar_prefetch = 0 : i64, scratch_operands = 4 : i64, tpu.core_type = #tpu.core_type<tc>, window_params = [{transform_indices = @transform_0, window_bounds = array<i64: 8, 16, 128>}, {pipeline_mode = #tpu.pipeline_mode<synchronous>, transform_indices = @transform_1, window_bounds = array<i64: 128, 512>}, {pipeline_mode = #tpu.pipeline_mode<synchronous>, transform_indices = @transform_2, window_bounds = array<i64: 128, 512>}, {pipeline_mode = #tpu.pipeline_mode<synchronous>, transform_indices = @transform_3, window_bounds = array<i64: 128, 512>}, {pipeline_mode = #tpu.pipeline_mode<synchronous>, transform_indices = @transform_4, window_bounds = array<i64: 128, 512>}, {pipeline_mode = #tpu.pipeline_mode<synchronous>, transform_indices = @transform_5, window_bounds = array<i64: 1, 512>}, {pipeline_mode = #tpu.pipeline_mode<synchronous>, transform_indices = @transform_6, window_bounds = array<i64: 1, 512>}, {transform_indices = @transform_7, window_bounds = array<i64: 2, 16, 128>}, {transform_indices = @transform_8, window_bounds = array<i64: 2, 16, 128>}, {pipeline_mode = #tpu.pipeline_mode<synchronous>, transform_indices = @transform_9, window_bounds = array<i64: 128, 128>}, {pipeline_mode = #tpu.pipeline_mode<synchronous>, transform_indices = @transform_10, window_bounds = array<i64: 1, 128>}, {pipeline_mode = #tpu.pipeline_mode<synchronous>, transform_indices = @transform_11, window_bounds = array<i64: 128, 128>}, {pipeline_mode = #tpu.pipeline_mode<synchronous>, transform_indices = @transform_12, window_bounds = array<i64: 1, 128>}, {transform_indices = @transform_13, window_bounds = array<i64: 8, 16, 128>}, {transform_indices = @transform_14, window_bounds = array<i64: 2, 16, 128>}, {transform_indices = @transform_15, window_bounds = array<i64: 2, 16, 128>}]} {
    %c0_i32 = arith.constant 0 : i32
    %0 = arith.cmpi eq, %arg1, %c0_i32 : i32
    %1 = arith.extui %0 : i1 to i32
    %c0_i32_0 = arith.constant 0 : i32
    %2 = arith.cmpi ne, %1, %c0_i32_0 : i32
    scf.if %2 {
      %c0_401 = arith.constant 0 : index
      %c0_402 = arith.constant 0 : index
      %c0_403 = arith.constant 0 : index
      %793 = vector.load %arg9[%c0_401, %c0_402, %c0_403] : memref<2x16x128xf32, #tpu.memory_space<vmem>>, vector<2x16x128xf32>
      %c0_404 = arith.constant 0 : index
      %c0_405 = arith.constant 0 : index
      %c0_406 = arith.constant 0 : index
      %794 = vector.load %arg20[%c0_404, %c0_405, %c0_406] : memref<2x16x128xf32, #tpu.memory_space<vmem>>, vector<2x16x128xf32>
      tpu.vector_store %arg20[%c0_404, %c0_405, %c0_406], %793 {strides = array<i32>} : memref<2x16x128xf32, #tpu.memory_space<vmem>>, vector<2x16x128xf32>,
      %c0_407 = arith.constant 0 : index
      %c0_408 = arith.constant 0 : index
      %c0_409 = arith.constant 0 : index
      %795 = vector.load %arg10[%c0_407, %c0_408, %c0_409] : memref<2x16x128xf32, #tpu.memory_space<vmem>>, vector<2x16x128xf32>
      %c0_410 = arith.constant 0 : index
      %c0_411 = arith.constant 0 : index
      %c0_412 = arith.constant 0 : index
      %796 = vector.load %arg21[%c0_410, %c0_411, %c0_412] : memref<2x16x128xf32, #tpu.memory_space<vmem>>, vector<2x16x128xf32>
      tpu.vector_store %arg21[%c0_410, %c0_411, %c0_412], %795 {strides = array<i32>} : memref<2x16x128xf32, #tpu.memory_space<vmem>>, vector<2x16x128xf32>,
    } else {
    }
    %c0 = arith.constant 0 : index
    %c0_1 = arith.constant 0 : index
    %c0_2 = arith.constant 0 : index
    %3 = vector.load %arg2[%c0, %c0_1, %c0_2] : memref<8x16x128xbf16, #tpu.memory_space<vmem>>, vector<8x16x128xbf16>
    %4 = vector.shape_cast %3 : vector<8x16x128xbf16> to vector<128x128xbf16>
    %c0_3 = arith.constant 0 : index
    %c0_4 = arith.constant 0 : index
    %5 = vector.load %arg3[%c0_3, %c0_4] : memref<128x512xbf16, #tpu.memory_space<vmem>>, vector<128x512xbf16>
    %cst = arith.constant dense<0.000000e+00> : vector<128x512xf32>
    %6 = tpu.matmul %4, %5, %cst {dimension_numbers = #tpu.dot_dimension_numbers<[1], [0], [0], [1], [0, 0, 1, 1], [], []>} : vector<128x128xbf16>, vector<128x512xbf16>, vector<128x512xf32> -> vector<128x512xf32>
    %c0_5 = arith.constant 0 : index
    %c0_6 = arith.constant 0 : index
    %7 = vector.load %arg7[%c0_5, %c0_6] : memref<1x512xf32, #tpu.memory_space<vmem>>, vector<1x512xf32>
    %8 = vector.broadcast %7 : vector<1x512xf32> to vector<128x512xf32>
    %9 = arith.addf %6, %8 : vector<128x512xf32>
    %10 = vector.shape_cast %9 : vector<128x512xf32> to vector<8x16x512xf32>
    %c0_7 = arith.constant 0 : index
    %c0_8 = arith.constant 0 : index
    %c0_9 = arith.constant 0 : index
    %11 = vector.load %arg19[%c0_7, %c0_8, %c0_9] : memref<8x16x512xf32, #tpu.memory_space<vmem>>, vector<8x16x512xf32>
    tpu.vector_store %arg19[%c0_7, %c0_8, %c0_9], %10 {strides = array<i32>} : memref<8x16x512xf32, #tpu.memory_space<vmem>>, vector<8x16x512xf32>,
    %c0_i32_10 = arith.constant 0 : i32
    %c0_11 = arith.constant 0 : index
    %c0_12 = arith.constant 0 : index
    %c0_13 = arith.constant 0 : index
    %12 = vector.load %arg20[%c0_11, %c0_12, %c0_13] : memref<2x16x128xf32, #tpu.memory_space<vmem>>, vector<1x16x128xf32>
    %13 = vector.shape_cast %12 : vector<1x16x128xf32> to vector<16x128xf32>
    %c0_14 = arith.constant 0 : index
    %c0_15 = arith.constant 0 : index
    %c0_16 = arith.constant 0 : index
    %14 = vector.load %arg21[%c0_14, %c0_15, %c0_16] : memref<2x16x128xf32, #tpu.memory_space<vmem>>, vector<1x16x128xf32>
    %15 = vector.shape_cast %14 : vector<1x16x128xf32> to vector<16x128xf32>
    %16 = arith.index_cast %c0_i32_10 : i32 to index
    %c0_17 = arith.constant 0 : index
    %c0_18 = arith.constant 0 : index
    %17 = vector.load %arg19[%16, %c0_17, %c0_18] : memref<8x16x512xf32, #tpu.memory_space<vmem>>, vector<1x16x512xf32>
    %18 = vector.shape_cast %17 : vector<1x16x512xf32> to vector<16x512xf32>
    %19 = arith.truncf %13 : vector<16x128xf32> to vector<16x128xbf16>
    %c0_19 = arith.constant 0 : index
    %c0_20 = arith.constant 0 : index
    %20 = vector.load %arg5[%c0_19, %c0_20] : memref<128x512xbf16, #tpu.memory_space<vmem>>, vector<128x512xbf16>
    %cst_21 = arith.constant dense<0.000000e+00> : vector<16x512xf32>
    %21 = tpu.matmul %19, %20, %cst_21 {dimension_numbers = #tpu.dot_dimension_numbers<[1], [0], [0], [1], [0, 0, 1, 1], [], []>} : vector<16x128xbf16>, vector<128x512xbf16>, vector<16x512xf32> -> vector<16x512xf32>
    %22 = arith.addf %18, %21 : vector<16x512xf32>
    %23 = vector.extract_strided_slice %22 {offsets = [0, 0], sizes = [16, 128], strides = [1, 1]} : vector<16x512xf32> to vector<16x128xf32>
    %24 = arith.negf %23 : vector<16x128xf32>
    %25 = math.exp %24 : vector<16x128xf32>
    %cst_22 = arith.constant 1.000000e+00 : f32
    %26 = vector.broadcast %cst_22 : f32 to vector<16x128xf32>
    %27 = arith.addf %26, %25 : vector<16x128xf32>
    %28 = arith.divf %26, %27 : vector<16x128xf32>
    %29 = vector.extract_strided_slice %22 {offsets = [0, 128], sizes = [16, 128], strides = [1, 1]} : vector<16x512xf32> to vector<16x128xf32>
    %30 = arith.negf %29 : vector<16x128xf32>
    %31 = math.exp %30 : vector<16x128xf32>
    %cst_23 = arith.constant 1.000000e+00 : f32
    %32 = vector.broadcast %cst_23 : f32 to vector<16x128xf32>
    %33 = arith.addf %32, %31 : vector<16x128xf32>
    %34 = arith.divf %32, %33 : vector<16x128xf32>
    %35 = vector.extract_strided_slice %22 {offsets = [0, 256], sizes = [16, 128], strides = [1, 1]} : vector<16x512xf32> to vector<16x128xf32>
    %36 = math.tanh %35 : vector<16x128xf32>
    %37 = vector.extract_strided_slice %22 {offsets = [0, 384], sizes = [16, 128], strides = [1, 1]} : vector<16x512xf32> to vector<16x128xf32>
    %38 = arith.negf %37 : vector<16x128xf32>
    %39 = math.exp %38 : vector<16x128xf32>
    %cst_24 = arith.constant 1.000000e+00 : f32
    %40 = vector.broadcast %cst_24 : f32 to vector<16x128xf32>
    %41 = arith.addf %40, %39 : vector<16x128xf32>
    %42 = arith.divf %40, %41 : vector<16x128xf32>
    %43 = arith.mulf %34, %15 : vector<16x128xf32>
    %44 = arith.mulf %28, %36 : vector<16x128xf32>
    %45 = arith.addf %43, %44 : vector<16x128xf32>
    %46 = math.tanh %45 : vector<16x128xf32>
    %47 = arith.mulf %42, %46 : vector<16x128xf32>
    %c0_25 = arith.constant 0 : index
    %c0_26 = arith.constant 0 : index
    %c0_27 = arith.constant 0 : index
    %48 = vector.load %arg20[%c0_25, %c0_26, %c0_27] : memref<2x16x128xf32, #tpu.memory_space<vmem>>, vector<1x16x128xf32>
    %49 = vector.shape_cast %48 : vector<1x16x128xf32> to vector<16x128xf32>
    %50 = vector.shape_cast %47 : vector<16x128xf32> to vector<1x16x128xf32>
    tpu.vector_store %arg20[%c0_25, %c0_26, %c0_27], %50 {strides = array<i32>} : memref<2x16x128xf32, #tpu.memory_space<vmem>>, vector<1x16x128xf32>,
    %c0_28 = arith.constant 0 : index
    %c0_29 = arith.constant 0 : index
    %c0_30 = arith.constant 0 : index
    %51 = vector.load %arg21[%c0_28, %c0_29, %c0_30] : memref<2x16x128xf32, #tpu.memory_space<vmem>>, vector<1x16x128xf32>
    %52 = vector.shape_cast %51 : vector<1x16x128xf32> to vector<16x128xf32>
    %53 = vector.shape_cast %45 : vector<16x128xf32> to vector<1x16x128xf32>
    tpu.vector_store %arg21[%c0_28, %c0_29, %c0_30], %53 {strides = array<i32>} : memref<2x16x128xf32, #tpu.memory_space<vmem>>, vector<1x16x128xf32>,
    %54 = arith.truncf %47 : vector<16x128xf32> to vector<16x128xbf16>
    %55 = arith.index_cast %c0_i32_10 : i32 to index
    %c0_31 = arith.constant 0 : index
    %c0_32 = arith.constant 0 : index
    %56 = vector.load %arg18[%55, %c0_31, %c0_32] : memref<8x16x128xbf16, #tpu.memory_space<vmem>>, vector<1x16x128xbf16>
    %57 = vector.shape_cast %56 : vector<1x16x128xbf16> to vector<16x128xbf16>
    %58 = vector.shape_cast %54 : vector<16x128xbf16> to vector<1x16x128xbf16>
    tpu.vector_store %arg18[%55, %c0_31, %c0_32], %58 {strides = array<i32>} : memref<8x16x128xbf16, #tpu.memory_space<vmem>>, vector<1x16x128xbf16>,
    %c1_i32 = arith.constant 1 : i32
    %c0_33 = arith.constant 0 : index
    %c0_34 = arith.constant 0 : index
    %c0_35 = arith.constant 0 : index
    %59 = vector.load %arg20[%c0_33, %c0_34, %c0_35] : memref<2x16x128xf32, #tpu.memory_space<vmem>>, vector<1x16x128xf32>
    %60 = vector.shape_cast %59 : vector<1x16x128xf32> to vector<16x128xf32>
    %c0_36 = arith.constant 0 : index
    %c0_37 = arith.constant 0 : index
    %c0_38 = arith.constant 0 : index
    %61 = vector.load %arg21[%c0_36, %c0_37, %c0_38] : memref<2x16x128xf32, #tpu.memory_space<vmem>>, vector<1x16x128xf32>
    %62 = vector.shape_cast %61 : vector<1x16x128xf32> to vector<16x128xf32>
    %63 = arith.index_cast %c1_i32 : i32 to index
    %c0_39 = arith.constant 0 : index
    %c0_40 = arith.constant 0 : index
    %64 = vector.load %arg19[%63, %c0_39, %c0_40] : memref<8x16x512xf32, #tpu.memory_space<vmem>>, vector<1x16x512xf32>
    %65 = vector.shape_cast %64 : vector<1x16x512xf32> to vector<16x512xf32>
    %66 = arith.truncf %60 : vector<16x128xf32> to vector<16x128xbf16>
    %c0_41 = arith.constant 0 : index
    %c0_42 = arith.constant 0 : index
    %67 = vector.load %arg5[%c0_41, %c0_42] : memref<128x512xbf16, #tpu.memory_space<vmem>>, vector<128x512xbf16>
    %cst_43 = arith.constant dense<0.000000e+00> : vector<16x512xf32>
    %68 = tpu.matmul %66, %67, %cst_43 {dimension_numbers = #tpu.dot_dimension_numbers<[1], [0], [0], [1], [0, 0, 1, 1], [], []>} : vector<16x128xbf16>, vector<128x512xbf16>, vector<16x512xf32> -> vector<16x512xf32>
    %69 = arith.addf %65, %68 : vector<16x512xf32>
    %70 = vector.extract_strided_slice %69 {offsets = [0, 0], sizes = [16, 128], strides = [1, 1]} : vector<16x512xf32> to vector<16x128xf32>
    %71 = arith.negf %70 : vector<16x128xf32>
    %72 = math.exp %71 : vector<16x128xf32>
    %cst_44 = arith.constant 1.000000e+00 : f32
    %73 = vector.broadcast %cst_44 : f32 to vector<16x128xf32>
    %74 = arith.addf %73, %72 : vector<16x128xf32>
    %75 = arith.divf %73, %74 : vector<16x128xf32>
    %76 = vector.extract_strided_slice %69 {offsets = [0, 128], sizes = [16, 128], strides = [1, 1]} : vector<16x512xf32> to vector<16x128xf32>
    %77 = arith.negf %76 : vector<16x128xf32>
    %78 = math.exp %77 : vector<16x128xf32>
    %cst_45 = arith.constant 1.000000e+00 : f32
    %79 = vector.broadcast %cst_45 : f32 to vector<16x128xf32>
    %80 = arith.addf %79, %78 : vector<16x128xf32>
    %81 = arith.divf %79, %80 : vector<16x128xf32>
    %82 = vector.extract_strided_slice %69 {offsets = [0, 256], sizes = [16, 128], strides = [1, 1]} : vector<16x512xf32> to vector<16x128xf32>
    %83 = math.tanh %82 : vector<16x128xf32>
    %84 = vector.extract_strided_slice %69 {offsets = [0, 384], sizes = [16, 128], strides = [1, 1]} : vector<16x512xf32> to vector<16x128xf32>
    %85 = arith.negf %84 : vector<16x128xf32>
    %86 = math.exp %85 : vector<16x128xf32>
    %cst_46 = arith.constant 1.000000e+00 : f32
    %87 = vector.broadcast %cst_46 : f32 to vector<16x128xf32>
    %88 = arith.addf %87, %86 : vector<16x128xf32>
    %89 = arith.divf %87, %88 : vector<16x128xf32>
    %90 = arith.mulf %81, %62 : vector<16x128xf32>
    %91 = arith.mulf %75, %83 : vector<16x128xf32>
    %92 = arith.addf %90, %91 : vector<16x128xf32>
    %93 = math.tanh %92 : vector<16x128xf32>
    %94 = arith.mulf %89, %93 : vector<16x128xf32>
    %c0_47 = arith.constant 0 : index
    %c0_48 = arith.constant 0 : index
    %c0_49 = arith.constant 0 : index
    %95 = vector.load %arg20[%c0_47, %c0_48, %c0_49] : memref<2x16x128xf32, #tpu.memory_space<vmem>>, vector<1x16x128xf32>
    %96 = vector.shape_cast %95 : vector<1x16x128xf32> to vector<16x128xf32>
    %97 = vector.shape_cast %94 : vector<16x128xf32> to vector<1x16x128xf32>
    tpu.vector_store %arg20[%c0_47, %c0_48, %c0_49], %97 {strides = array<i32>} : memref<2x16x128xf32, #tpu.memory_space<vmem>>, vector<1x16x128xf32>,
    %c0_50 = arith.constant 0 : index
    %c0_51 = arith.constant 0 : index
    %c0_52 = arith.constant 0 : index
    %98 = vector.load %arg21[%c0_50, %c0_51, %c0_52] : memref<2x16x128xf32, #tpu.memory_space<vmem>>, vector<1x16x128xf32>
    %99 = vector.shape_cast %98 : vector<1x16x128xf32> to vector<16x128xf32>
    %100 = vector.shape_cast %92 : vector<16x128xf32> to vector<1x16x128xf32>
    tpu.vector_store %arg21[%c0_50, %c0_51, %c0_52], %100 {strides = array<i32>} : memref<2x16x128xf32, #tpu.memory_space<vmem>>, vector<1x16x128xf32>,
    %101 = arith.truncf %94 : vector<16x128xf32> to vector<16x128xbf16>
    %102 = arith.index_cast %c1_i32 : i32 to index
    %c0_53 = arith.constant 0 : index
    %c0_54 = arith.constant 0 : index
    %103 = vector.load %arg18[%102, %c0_53, %c0_54] : memref<8x16x128xbf16, #tpu.memory_space<vmem>>, vector<1x16x128xbf16>
    %104 = vector.shape_cast %103 : vector<1x16x128xbf16> to vector<16x128xbf16>
    %105 = vector.shape_cast %101 : vector<16x128xbf16> to vector<1x16x128xbf16>
    tpu.vector_store %arg18[%102, %c0_53, %c0_54], %105 {strides = array<i32>} : memref<8x16x128xbf16, #tpu.memory_space<vmem>>, vector<1x16x128xbf16>,
    %c2_i32 = arith.constant 2 : i32
    %c0_55 = arith.constant 0 : index
    %c0_56 = arith.constant 0 : index
    %c0_57 = arith.constant 0 : index
    %106 = vector.load %arg20[%c0_55, %c0_56, %c0_57] : memref<2x16x128xf32, #tpu.memory_space<vmem>>, vector<1x16x128xf32>
    %107 = vector.shape_cast %106 : vector<1x16x128xf32> to vector<16x128xf32>
    %c0_58 = arith.constant 0 : index
    %c0_59 = arith.constant 0 : index
    %c0_60 = arith.constant 0 : index
    %108 = vector.load %arg21[%c0_58, %c0_59, %c0_60] : memref<2x16x128xf32, #tpu.memory_space<vmem>>, vector<1x16x128xf32>
    %109 = vector.shape_cast %108 : vector<1x16x128xf32> to vector<16x128xf32>
    %110 = arith.index_cast %c2_i32 : i32 to index
    %c0_61 = arith.constant 0 : index
    %c0_62 = arith.constant 0 : index
    %111 = vector.load %arg19[%110, %c0_61, %c0_62] : memref<8x16x512xf32, #tpu.memory_space<vmem>>, vector<1x16x512xf32>
    %112 = vector.shape_cast %111 : vector<1x16x512xf32> to vector<16x512xf32>
    %113 = arith.truncf %107 : vector<16x128xf32> to vector<16x128xbf16>
    %c0_63 = arith.constant 0 : index
    %c0_64 = arith.constant 0 : index
    %114 = vector.load %arg5[%c0_63, %c0_64] : memref<128x512xbf16, #tpu.memory_space<vmem>>, vector<128x512xbf16>
    %cst_65 = arith.constant dense<0.000000e+00> : vector<16x512xf32>
    %115 = tpu.matmul %113, %114, %cst_65 {dimension_numbers = #tpu.dot_dimension_numbers<[1], [0], [0], [1], [0, 0, 1, 1], [], []>} : vector<16x128xbf16>, vector<128x512xbf16>, vector<16x512xf32> -> vector<16x512xf32>
    %116 = arith.addf %112, %115 : vector<16x512xf32>
    %117 = vector.extract_strided_slice %116 {offsets = [0, 0], sizes = [16, 128], strides = [1, 1]} : vector<16x512xf32> to vector<16x128xf32>
    %118 = arith.negf %117 : vector<16x128xf32>
    %119 = math.exp %118 : vector<16x128xf32>
    %cst_66 = arith.constant 1.000000e+00 : f32
    %120 = vector.broadcast %cst_66 : f32 to vector<16x128xf32>
    %121 = arith.addf %120, %119 : vector<16x128xf32>
    %122 = arith.divf %120, %121 : vector<16x128xf32>
    %123 = vector.extract_strided_slice %116 {offsets = [0, 128], sizes = [16, 128], strides = [1, 1]} : vector<16x512xf32> to vector<16x128xf32>
    %124 = arith.negf %123 : vector<16x128xf32>
    %125 = math.exp %124 : vector<16x128xf32>
    %cst_67 = arith.constant 1.000000e+00 : f32
    %126 = vector.broadcast %cst_67 : f32 to vector<16x128xf32>
    %127 = arith.addf %126, %125 : vector<16x128xf32>
    %128 = arith.divf %126, %127 : vector<16x128xf32>
    %129 = vector.extract_strided_slice %116 {offsets = [0, 256], sizes = [16, 128], strides = [1, 1]} : vector<16x512xf32> to vector<16x128xf32>
    %130 = math.tanh %129 : vector<16x128xf32>
    %131 = vector.extract_strided_slice %116 {offsets = [0, 384], sizes = [16, 128], strides = [1, 1]} : vector<16x512xf32> to vector<16x128xf32>
    %132 = arith.negf %131 : vector<16x128xf32>
    %133 = math.exp %132 : vector<16x128xf32>
    %cst_68 = arith.constant 1.000000e+00 : f32
    %134 = vector.broadcast %cst_68 : f32 to vector<16x128xf32>
    %135 = arith.addf %134, %133 : vector<16x128xf32>
    %136 = arith.divf %134, %135 : vector<16x128xf32>
    %137 = arith.mulf %128, %109 : vector<16x128xf32>
    %138 = arith.mulf %122, %130 : vector<16x128xf32>
    %139 = arith.addf %137, %138 : vector<16x128xf32>
    %140 = math.tanh %139 : vector<16x128xf32>
    %141 = arith.mulf %136, %140 : vector<16x128xf32>
    %c0_69 = arith.constant 0 : index
    %c0_70 = arith.constant 0 : index
    %c0_71 = arith.constant 0 : index
    %142 = vector.load %arg20[%c0_69, %c0_70, %c0_71] : memref<2x16x128xf32, #tpu.memory_space<vmem>>, vector<1x16x128xf32>
    %143 = vector.shape_cast %142 : vector<1x16x128xf32> to vector<16x128xf32>
    %144 = vector.shape_cast %141 : vector<16x128xf32> to vector<1x16x128xf32>
    tpu.vector_store %arg20[%c0_69, %c0_70, %c0_71], %144 {strides = array<i32>} : memref<2x16x128xf32, #tpu.memory_space<vmem>>, vector<1x16x128xf32>,
    %c0_72 = arith.constant 0 : index
    %c0_73 = arith.constant 0 : index
    %c0_74 = arith.constant 0 : index
    %145 = vector.load %arg21[%c0_72, %c0_73, %c0_74] : memref<2x16x128xf32, #tpu.memory_space<vmem>>, vector<1x16x128xf32>
    %146 = vector.shape_cast %145 : vector<1x16x128xf32> to vector<16x128xf32>
    %147 = vector.shape_cast %139 : vector<16x128xf32> to vector<1x16x128xf32>
    tpu.vector_store %arg21[%c0_72, %c0_73, %c0_74], %147 {strides = array<i32>} : memref<2x16x128xf32, #tpu.memory_space<vmem>>, vector<1x16x128xf32>,
    %148 = arith.truncf %141 : vector<16x128xf32> to vector<16x128xbf16>
    %149 = arith.index_cast %c2_i32 : i32 to index
    %c0_75 = arith.constant 0 : index
    %c0_76 = arith.constant 0 : index
    %150 = vector.load %arg18[%149, %c0_75, %c0_76] : memref<8x16x128xbf16, #tpu.memory_space<vmem>>, vector<1x16x128xbf16>
    %151 = vector.shape_cast %150 : vector<1x16x128xbf16> to vector<16x128xbf16>
    %152 = vector.shape_cast %148 : vector<16x128xbf16> to vector<1x16x128xbf16>
    tpu.vector_store %arg18[%149, %c0_75, %c0_76], %152 {strides = array<i32>} : memref<8x16x128xbf16, #tpu.memory_space<vmem>>, vector<1x16x128xbf16>,
    %c3_i32 = arith.constant 3 : i32
    %c0_77 = arith.constant 0 : index
    %c0_78 = arith.constant 0 : index
    %c0_79 = arith.constant 0 : index
    %153 = vector.load %arg20[%c0_77, %c0_78, %c0_79] : memref<2x16x128xf32, #tpu.memory_space<vmem>>, vector<1x16x128xf32>
    %154 = vector.shape_cast %153 : vector<1x16x128xf32> to vector<16x128xf32>
    %c0_80 = arith.constant 0 : index
    %c0_81 = arith.constant 0 : index
    %c0_82 = arith.constant 0 : index
    %155 = vector.load %arg21[%c0_80, %c0_81, %c0_82] : memref<2x16x128xf32, #tpu.memory_space<vmem>>, vector<1x16x128xf32>
    %156 = vector.shape_cast %155 : vector<1x16x128xf32> to vector<16x128xf32>
    %157 = arith.index_cast %c3_i32 : i32 to index
    %c0_83 = arith.constant 0 : index
    %c0_84 = arith.constant 0 : index
    %158 = vector.load %arg19[%157, %c0_83, %c0_84] : memref<8x16x512xf32, #tpu.memory_space<vmem>>, vector<1x16x512xf32>
    %159 = vector.shape_cast %158 : vector<1x16x512xf32> to vector<16x512xf32>
    %160 = arith.truncf %154 : vector<16x128xf32> to vector<16x128xbf16>
    %c0_85 = arith.constant 0 : index
    %c0_86 = arith.constant 0 : index
    %161 = vector.load %arg5[%c0_85, %c0_86] : memref<128x512xbf16, #tpu.memory_space<vmem>>, vector<128x512xbf16>
    %cst_87 = arith.constant dense<0.000000e+00> : vector<16x512xf32>
    %162 = tpu.matmul %160, %161, %cst_87 {dimension_numbers = #tpu.dot_dimension_numbers<[1], [0], [0], [1], [0, 0, 1, 1], [], []>} : vector<16x128xbf16>, vector<128x512xbf16>, vector<16x512xf32> -> vector<16x512xf32>
    %163 = arith.addf %159, %162 : vector<16x512xf32>
    %164 = vector.extract_strided_slice %163 {offsets = [0, 0], sizes = [16, 128], strides = [1, 1]} : vector<16x512xf32> to vector<16x128xf32>
    %165 = arith.negf %164 : vector<16x128xf32>
    %166 = math.exp %165 : vector<16x128xf32>
    %cst_88 = arith.constant 1.000000e+00 : f32
    %167 = vector.broadcast %cst_88 : f32 to vector<16x128xf32>
    %168 = arith.addf %167, %166 : vector<16x128xf32>
    %169 = arith.divf %167, %168 : vector<16x128xf32>
    %170 = vector.extract_strided_slice %163 {offsets = [0, 128], sizes = [16, 128], strides = [1, 1]} : vector<16x512xf32> to vector<16x128xf32>
    %171 = arith.negf %170 : vector<16x128xf32>
    %172 = math.exp %171 : vector<16x128xf32>
    %cst_89 = arith.constant 1.000000e+00 : f32
    %173 = vector.broadcast %cst_89 : f32 to vector<16x128xf32>
    %174 = arith.addf %173, %172 : vector<16x128xf32>
    %175 = arith.divf %173, %174 : vector<16x128xf32>
    %176 = vector.extract_strided_slice %163 {offsets = [0, 256], sizes = [16, 128], strides = [1, 1]} : vector<16x512xf32> to vector<16x128xf32>
    %177 = math.tanh %176 : vector<16x128xf32>
    %178 = vector.extract_strided_slice %163 {offsets = [0, 384], sizes = [16, 128], strides = [1, 1]} : vector<16x512xf32> to vector<16x128xf32>
    %179 = arith.negf %178 : vector<16x128xf32>
    %180 = math.exp %179 : vector<16x128xf32>
    %cst_90 = arith.constant 1.000000e+00 : f32
    %181 = vector.broadcast %cst_90 : f32 to vector<16x128xf32>
    %182 = arith.addf %181, %180 : vector<16x128xf32>
    %183 = arith.divf %181, %182 : vector<16x128xf32>
    %184 = arith.mulf %175, %156 : vector<16x128xf32>
    %185 = arith.mulf %169, %177 : vector<16x128xf32>
    %186 = arith.addf %184, %185 : vector<16x128xf32>
    %187 = math.tanh %186 : vector<16x128xf32>
    %188 = arith.mulf %183, %187 : vector<16x128xf32>
    %c0_91 = arith.constant 0 : index
    %c0_92 = arith.constant 0 : index
    %c0_93 = arith.constant 0 : index
    %189 = vector.load %arg20[%c0_91, %c0_92, %c0_93] : memref<2x16x128xf32, #tpu.memory_space<vmem>>, vector<1x16x128xf32>
    %190 = vector.shape_cast %189 : vector<1x16x128xf32> to vector<16x128xf32>
    %191 = vector.shape_cast %188 : vector<16x128xf32> to vector<1x16x128xf32>
    tpu.vector_store %arg20[%c0_91, %c0_92, %c0_93], %191 {strides = array<i32>} : memref<2x16x128xf32, #tpu.memory_space<vmem>>, vector<1x16x128xf32>,
    %c0_94 = arith.constant 0 : index
    %c0_95 = arith.constant 0 : index
    %c0_96 = arith.constant 0 : index
    %192 = vector.load %arg21[%c0_94, %c0_95, %c0_96] : memref<2x16x128xf32, #tpu.memory_space<vmem>>, vector<1x16x128xf32>
    %193 = vector.shape_cast %192 : vector<1x16x128xf32> to vector<16x128xf32>
    %194 = vector.shape_cast %186 : vector<16x128xf32> to vector<1x16x128xf32>
    tpu.vector_store %arg21[%c0_94, %c0_95, %c0_96], %194 {strides = array<i32>} : memref<2x16x128xf32, #tpu.memory_space<vmem>>, vector<1x16x128xf32>,
    %195 = arith.truncf %188 : vector<16x128xf32> to vector<16x128xbf16>
    %196 = arith.index_cast %c3_i32 : i32 to index
    %c0_97 = arith.constant 0 : index
    %c0_98 = arith.constant 0 : index
    %197 = vector.load %arg18[%196, %c0_97, %c0_98] : memref<8x16x128xbf16, #tpu.memory_space<vmem>>, vector<1x16x128xbf16>
    %198 = vector.shape_cast %197 : vector<1x16x128xbf16> to vector<16x128xbf16>
    %199 = vector.shape_cast %195 : vector<16x128xbf16> to vector<1x16x128xbf16>
    tpu.vector_store %arg18[%196, %c0_97, %c0_98], %199 {strides = array<i32>} : memref<8x16x128xbf16, #tpu.memory_space<vmem>>, vector<1x16x128xbf16>,
    %c4_i32 = arith.constant 4 : i32
    %c0_99 = arith.constant 0 : index
    %c0_100 = arith.constant 0 : index
    %c0_101 = arith.constant 0 : index
    %200 = vector.load %arg20[%c0_99, %c0_100, %c0_101] : memref<2x16x128xf32, #tpu.memory_space<vmem>>, vector<1x16x128xf32>
    %201 = vector.shape_cast %200 : vector<1x16x128xf32> to vector<16x128xf32>
    %c0_102 = arith.constant 0 : index
    %c0_103 = arith.constant 0 : index
    %c0_104 = arith.constant 0 : index
    %202 = vector.load %arg21[%c0_102, %c0_103, %c0_104] : memref<2x16x128xf32, #tpu.memory_space<vmem>>, vector<1x16x128xf32>
    %203 = vector.shape_cast %202 : vector<1x16x128xf32> to vector<16x128xf32>
    %204 = arith.index_cast %c4_i32 : i32 to index
    %c0_105 = arith.constant 0 : index
    %c0_106 = arith.constant 0 : index
    %205 = vector.load %arg19[%204, %c0_105, %c0_106] : memref<8x16x512xf32, #tpu.memory_space<vmem>>, vector<1x16x512xf32>
    %206 = vector.shape_cast %205 : vector<1x16x512xf32> to vector<16x512xf32>
    %207 = arith.truncf %201 : vector<16x128xf32> to vector<16x128xbf16>
    %c0_107 = arith.constant 0 : index
    %c0_108 = arith.constant 0 : index
    %208 = vector.load %arg5[%c0_107, %c0_108] : memref<128x512xbf16, #tpu.memory_space<vmem>>, vector<128x512xbf16>
    %cst_109 = arith.constant dense<0.000000e+00> : vector<16x512xf32>
    %209 = tpu.matmul %207, %208, %cst_109 {dimension_numbers = #tpu.dot_dimension_numbers<[1], [0], [0], [1], [0, 0, 1, 1], [], []>} : vector<16x128xbf16>, vector<128x512xbf16>, vector<16x512xf32> -> vector<16x512xf32>
    %210 = arith.addf %206, %209 : vector<16x512xf32>
    %211 = vector.extract_strided_slice %210 {offsets = [0, 0], sizes = [16, 128], strides = [1, 1]} : vector<16x512xf32> to vector<16x128xf32>
    %212 = arith.negf %211 : vector<16x128xf32>
    %213 = math.exp %212 : vector<16x128xf32>
    %cst_110 = arith.constant 1.000000e+00 : f32
    %214 = vector.broadcast %cst_110 : f32 to vector<16x128xf32>
    %215 = arith.addf %214, %213 : vector<16x128xf32>
    %216 = arith.divf %214, %215 : vector<16x128xf32>
    %217 = vector.extract_strided_slice %210 {offsets = [0, 128], sizes = [16, 128], strides = [1, 1]} : vector<16x512xf32> to vector<16x128xf32>
    %218 = arith.negf %217 : vector<16x128xf32>
    %219 = math.exp %218 : vector<16x128xf32>
    %cst_111 = arith.constant 1.000000e+00 : f32
    %220 = vector.broadcast %cst_111 : f32 to vector<16x128xf32>
    %221 = arith.addf %220, %219 : vector<16x128xf32>
    %222 = arith.divf %220, %221 : vector<16x128xf32>
    %223 = vector.extract_strided_slice %210 {offsets = [0, 256], sizes = [16, 128], strides = [1, 1]} : vector<16x512xf32> to vector<16x128xf32>
    %224 = math.tanh %223 : vector<16x128xf32>
    %225 = vector.extract_strided_slice %210 {offsets = [0, 384], sizes = [16, 128], strides = [1, 1]} : vector<16x512xf32> to vector<16x128xf32>
    %226 = arith.negf %225 : vector<16x128xf32>
    %227 = math.exp %226 : vector<16x128xf32>
    %cst_112 = arith.constant 1.000000e+00 : f32
    %228 = vector.broadcast %cst_112 : f32 to vector<16x128xf32>
    %229 = arith.addf %228, %227 : vector<16x128xf32>
    %230 = arith.divf %228, %229 : vector<16x128xf32>
    %231 = arith.mulf %222, %203 : vector<16x128xf32>
    %232 = arith.mulf %216, %224 : vector<16x128xf32>
    %233 = arith.addf %231, %232 : vector<16x128xf32>
    %234 = math.tanh %233 : vector<16x128xf32>
    %235 = arith.mulf %230, %234 : vector<16x128xf32>
    %c0_113 = arith.constant 0 : index
    %c0_114 = arith.constant 0 : index
    %c0_115 = arith.constant 0 : index
    %236 = vector.load %arg20[%c0_113, %c0_114, %c0_115] : memref<2x16x128xf32, #tpu.memory_space<vmem>>, vector<1x16x128xf32>
    %237 = vector.shape_cast %236 : vector<1x16x128xf32> to vector<16x128xf32>
    %238 = vector.shape_cast %235 : vector<16x128xf32> to vector<1x16x128xf32>
    tpu.vector_store %arg20[%c0_113, %c0_114, %c0_115], %238 {strides = array<i32>} : memref<2x16x128xf32, #tpu.memory_space<vmem>>, vector<1x16x128xf32>,
    %c0_116 = arith.constant 0 : index
    %c0_117 = arith.constant 0 : index
    %c0_118 = arith.constant 0 : index
    %239 = vector.load %arg21[%c0_116, %c0_117, %c0_118] : memref<2x16x128xf32, #tpu.memory_space<vmem>>, vector<1x16x128xf32>
    %240 = vector.shape_cast %239 : vector<1x16x128xf32> to vector<16x128xf32>
    %241 = vector.shape_cast %233 : vector<16x128xf32> to vector<1x16x128xf32>
    tpu.vector_store %arg21[%c0_116, %c0_117, %c0_118], %241 {strides = array<i32>} : memref<2x16x128xf32, #tpu.memory_space<vmem>>, vector<1x16x128xf32>,
    %242 = arith.truncf %235 : vector<16x128xf32> to vector<16x128xbf16>
    %243 = arith.index_cast %c4_i32 : i32 to index
    %c0_119 = arith.constant 0 : index
    %c0_120 = arith.constant 0 : index
    %244 = vector.load %arg18[%243, %c0_119, %c0_120] : memref<8x16x128xbf16, #tpu.memory_space<vmem>>, vector<1x16x128xbf16>
    %245 = vector.shape_cast %244 : vector<1x16x128xbf16> to vector<16x128xbf16>
    %246 = vector.shape_cast %242 : vector<16x128xbf16> to vector<1x16x128xbf16>
    tpu.vector_store %arg18[%243, %c0_119, %c0_120], %246 {strides = array<i32>} : memref<8x16x128xbf16, #tpu.memory_space<vmem>>, vector<1x16x128xbf16>,
    %c5_i32 = arith.constant 5 : i32
    %c0_121 = arith.constant 0 : index
    %c0_122 = arith.constant 0 : index
    %c0_123 = arith.constant 0 : index
    %247 = vector.load %arg20[%c0_121, %c0_122, %c0_123] : memref<2x16x128xf32, #tpu.memory_space<vmem>>, vector<1x16x128xf32>
    %248 = vector.shape_cast %247 : vector<1x16x128xf32> to vector<16x128xf32>
    %c0_124 = arith.constant 0 : index
    %c0_125 = arith.constant 0 : index
    %c0_126 = arith.constant 0 : index
    %249 = vector.load %arg21[%c0_124, %c0_125, %c0_126] : memref<2x16x128xf32, #tpu.memory_space<vmem>>, vector<1x16x128xf32>
    %250 = vector.shape_cast %249 : vector<1x16x128xf32> to vector<16x128xf32>
    %251 = arith.index_cast %c5_i32 : i32 to index
    %c0_127 = arith.constant 0 : index
    %c0_128 = arith.constant 0 : index
    %252 = vector.load %arg19[%251, %c0_127, %c0_128] : memref<8x16x512xf32, #tpu.memory_space<vmem>>, vector<1x16x512xf32>
    %253 = vector.shape_cast %252 : vector<1x16x512xf32> to vector<16x512xf32>
    %254 = arith.truncf %248 : vector<16x128xf32> to vector<16x128xbf16>
    %c0_129 = arith.constant 0 : index
    %c0_130 = arith.constant 0 : index
    %255 = vector.load %arg5[%c0_129, %c0_130] : memref<128x512xbf16, #tpu.memory_space<vmem>>, vector<128x512xbf16>
    %cst_131 = arith.constant dense<0.000000e+00> : vector<16x512xf32>
    %256 = tpu.matmul %254, %255, %cst_131 {dimension_numbers = #tpu.dot_dimension_numbers<[1], [0], [0], [1], [0, 0, 1, 1], [], []>} : vector<16x128xbf16>, vector<128x512xbf16>, vector<16x512xf32> -> vector<16x512xf32>
    %257 = arith.addf %253, %256 : vector<16x512xf32>
    %258 = vector.extract_strided_slice %257 {offsets = [0, 0], sizes = [16, 128], strides = [1, 1]} : vector<16x512xf32> to vector<16x128xf32>
    %259 = arith.negf %258 : vector<16x128xf32>
    %260 = math.exp %259 : vector<16x128xf32>
    %cst_132 = arith.constant 1.000000e+00 : f32
    %261 = vector.broadcast %cst_132 : f32 to vector<16x128xf32>
    %262 = arith.addf %261, %260 : vector<16x128xf32>
    %263 = arith.divf %261, %262 : vector<16x128xf32>
    %264 = vector.extract_strided_slice %257 {offsets = [0, 128], sizes = [16, 128], strides = [1, 1]} : vector<16x512xf32> to vector<16x128xf32>
    %265 = arith.negf %264 : vector<16x128xf32>
    %266 = math.exp %265 : vector<16x128xf32>
    %cst_133 = arith.constant 1.000000e+00 : f32
    %267 = vector.broadcast %cst_133 : f32 to vector<16x128xf32>
    %268 = arith.addf %267, %266 : vector<16x128xf32>
    %269 = arith.divf %267, %268 : vector<16x128xf32>
    %270 = vector.extract_strided_slice %257 {offsets = [0, 256], sizes = [16, 128], strides = [1, 1]} : vector<16x512xf32> to vector<16x128xf32>
    %271 = math.tanh %270 : vector<16x128xf32>
    %272 = vector.extract_strided_slice %257 {offsets = [0, 384], sizes = [16, 128], strides = [1, 1]} : vector<16x512xf32> to vector<16x128xf32>
    %273 = arith.negf %272 : vector<16x128xf32>
    %274 = math.exp %273 : vector<16x128xf32>
    %cst_134 = arith.constant 1.000000e+00 : f32
    %275 = vector.broadcast %cst_134 : f32 to vector<16x128xf32>
    %276 = arith.addf %275, %274 : vector<16x128xf32>
    %277 = arith.divf %275, %276 : vector<16x128xf32>
    %278 = arith.mulf %269, %250 : vector<16x128xf32>
    %279 = arith.mulf %263, %271 : vector<16x128xf32>
    %280 = arith.addf %278, %279 : vector<16x128xf32>
    %281 = math.tanh %280 : vector<16x128xf32>
    %282 = arith.mulf %277, %281 : vector<16x128xf32>
    %c0_135 = arith.constant 0 : index
    %c0_136 = arith.constant 0 : index
    %c0_137 = arith.constant 0 : index
    %283 = vector.load %arg20[%c0_135, %c0_136, %c0_137] : memref<2x16x128xf32, #tpu.memory_space<vmem>>, vector<1x16x128xf32>
    %284 = vector.shape_cast %283 : vector<1x16x128xf32> to vector<16x128xf32>
    %285 = vector.shape_cast %282 : vector<16x128xf32> to vector<1x16x128xf32>
    tpu.vector_store %arg20[%c0_135, %c0_136, %c0_137], %285 {strides = array<i32>} : memref<2x16x128xf32, #tpu.memory_space<vmem>>, vector<1x16x128xf32>,
    %c0_138 = arith.constant 0 : index
    %c0_139 = arith.constant 0 : index
    %c0_140 = arith.constant 0 : index
    %286 = vector.load %arg21[%c0_138, %c0_139, %c0_140] : memref<2x16x128xf32, #tpu.memory_space<vmem>>, vector<1x16x128xf32>
    %287 = vector.shape_cast %286 : vector<1x16x128xf32> to vector<16x128xf32>
    %288 = vector.shape_cast %280 : vector<16x128xf32> to vector<1x16x128xf32>
    tpu.vector_store %arg21[%c0_138, %c0_139, %c0_140], %288 {strides = array<i32>} : memref<2x16x128xf32, #tpu.memory_space<vmem>>, vector<1x16x128xf32>,
    %289 = arith.truncf %282 : vector<16x128xf32> to vector<16x128xbf16>
    %290 = arith.index_cast %c5_i32 : i32 to index
    %c0_141 = arith.constant 0 : index
    %c0_142 = arith.constant 0 : index
    %291 = vector.load %arg18[%290, %c0_141, %c0_142] : memref<8x16x128xbf16, #tpu.memory_space<vmem>>, vector<1x16x128xbf16>
    %292 = vector.shape_cast %291 : vector<1x16x128xbf16> to vector<16x128xbf16>
    %293 = vector.shape_cast %289 : vector<16x128xbf16> to vector<1x16x128xbf16>
    tpu.vector_store %arg18[%290, %c0_141, %c0_142], %293 {strides = array<i32>} : memref<8x16x128xbf16, #tpu.memory_space<vmem>>, vector<1x16x128xbf16>,
    %c6_i32 = arith.constant 6 : i32
    %c0_143 = arith.constant 0 : index
    %c0_144 = arith.constant 0 : index
    %c0_145 = arith.constant 0 : index
    %294 = vector.load %arg20[%c0_143, %c0_144, %c0_145] : memref<2x16x128xf32, #tpu.memory_space<vmem>>, vector<1x16x128xf32>
    %295 = vector.shape_cast %294 : vector<1x16x128xf32> to vector<16x128xf32>
    %c0_146 = arith.constant 0 : index
    %c0_147 = arith.constant 0 : index
    %c0_148 = arith.constant 0 : index
    %296 = vector.load %arg21[%c0_146, %c0_147, %c0_148] : memref<2x16x128xf32, #tpu.memory_space<vmem>>, vector<1x16x128xf32>
    %297 = vector.shape_cast %296 : vector<1x16x128xf32> to vector<16x128xf32>
    %298 = arith.index_cast %c6_i32 : i32 to index
    %c0_149 = arith.constant 0 : index
    %c0_150 = arith.constant 0 : index
    %299 = vector.load %arg19[%298, %c0_149, %c0_150] : memref<8x16x512xf32, #tpu.memory_space<vmem>>, vector<1x16x512xf32>
    %300 = vector.shape_cast %299 : vector<1x16x512xf32> to vector<16x512xf32>
    %301 = arith.truncf %295 : vector<16x128xf32> to vector<16x128xbf16>
    %c0_151 = arith.constant 0 : index
    %c0_152 = arith.constant 0 : index
    %302 = vector.load %arg5[%c0_151, %c0_152] : memref<128x512xbf16, #tpu.memory_space<vmem>>, vector<128x512xbf16>
    %cst_153 = arith.constant dense<0.000000e+00> : vector<16x512xf32>
    %303 = tpu.matmul %301, %302, %cst_153 {dimension_numbers = #tpu.dot_dimension_numbers<[1], [0], [0], [1], [0, 0, 1, 1], [], []>} : vector<16x128xbf16>, vector<128x512xbf16>, vector<16x512xf32> -> vector<16x512xf32>
    %304 = arith.addf %300, %303 : vector<16x512xf32>
    %305 = vector.extract_strided_slice %304 {offsets = [0, 0], sizes = [16, 128], strides = [1, 1]} : vector<16x512xf32> to vector<16x128xf32>
    %306 = arith.negf %305 : vector<16x128xf32>
    %307 = math.exp %306 : vector<16x128xf32>
    %cst_154 = arith.constant 1.000000e+00 : f32
    %308 = vector.broadcast %cst_154 : f32 to vector<16x128xf32>
    %309 = arith.addf %308, %307 : vector<16x128xf32>
    %310 = arith.divf %308, %309 : vector<16x128xf32>
    %311 = vector.extract_strided_slice %304 {offsets = [0, 128], sizes = [16, 128], strides = [1, 1]} : vector<16x512xf32> to vector<16x128xf32>
    %312 = arith.negf %311 : vector<16x128xf32>
    %313 = math.exp %312 : vector<16x128xf32>
    %cst_155 = arith.constant 1.000000e+00 : f32
    %314 = vector.broadcast %cst_155 : f32 to vector<16x128xf32>
    %315 = arith.addf %314, %313 : vector<16x128xf32>
    %316 = arith.divf %314, %315 : vector<16x128xf32>
    %317 = vector.extract_strided_slice %304 {offsets = [0, 256], sizes = [16, 128], strides = [1, 1]} : vector<16x512xf32> to vector<16x128xf32>
    %318 = math.tanh %317 : vector<16x128xf32>
    %319 = vector.extract_strided_slice %304 {offsets = [0, 384], sizes = [16, 128], strides = [1, 1]} : vector<16x512xf32> to vector<16x128xf32>
    %320 = arith.negf %319 : vector<16x128xf32>
    %321 = math.exp %320 : vector<16x128xf32>
    %cst_156 = arith.constant 1.000000e+00 : f32
    %322 = vector.broadcast %cst_156 : f32 to vector<16x128xf32>
    %323 = arith.addf %322, %321 : vector<16x128xf32>
    %324 = arith.divf %322, %323 : vector<16x128xf32>
    %325 = arith.mulf %316, %297 : vector<16x128xf32>
    %326 = arith.mulf %310, %318 : vector<16x128xf32>
    %327 = arith.addf %325, %326 : vector<16x128xf32>
    %328 = math.tanh %327 : vector<16x128xf32>
    %329 = arith.mulf %324, %328 : vector<16x128xf32>
    %c0_157 = arith.constant 0 : index
    %c0_158 = arith.constant 0 : index
    %c0_159 = arith.constant 0 : index
    %330 = vector.load %arg20[%c0_157, %c0_158, %c0_159] : memref<2x16x128xf32, #tpu.memory_space<vmem>>, vector<1x16x128xf32>
    %331 = vector.shape_cast %330 : vector<1x16x128xf32> to vector<16x128xf32>
    %332 = vector.shape_cast %329 : vector<16x128xf32> to vector<1x16x128xf32>
    tpu.vector_store %arg20[%c0_157, %c0_158, %c0_159], %332 {strides = array<i32>} : memref<2x16x128xf32, #tpu.memory_space<vmem>>, vector<1x16x128xf32>,
    %c0_160 = arith.constant 0 : index
    %c0_161 = arith.constant 0 : index
    %c0_162 = arith.constant 0 : index
    %333 = vector.load %arg21[%c0_160, %c0_161, %c0_162] : memref<2x16x128xf32, #tpu.memory_space<vmem>>, vector<1x16x128xf32>
    %334 = vector.shape_cast %333 : vector<1x16x128xf32> to vector<16x128xf32>
    %335 = vector.shape_cast %327 : vector<16x128xf32> to vector<1x16x128xf32>
    tpu.vector_store %arg21[%c0_160, %c0_161, %c0_162], %335 {strides = array<i32>} : memref<2x16x128xf32, #tpu.memory_space<vmem>>, vector<1x16x128xf32>,
    %336 = arith.truncf %329 : vector<16x128xf32> to vector<16x128xbf16>
    %337 = arith.index_cast %c6_i32 : i32 to index
    %c0_163 = arith.constant 0 : index
    %c0_164 = arith.constant 0 : index
    %338 = vector.load %arg18[%337, %c0_163, %c0_164] : memref<8x16x128xbf16, #tpu.memory_space<vmem>>, vector<1x16x128xbf16>
    %339 = vector.shape_cast %338 : vector<1x16x128xbf16> to vector<16x128xbf16>
    %340 = vector.shape_cast %336 : vector<16x128xbf16> to vector<1x16x128xbf16>
    tpu.vector_store %arg18[%337, %c0_163, %c0_164], %340 {strides = array<i32>} : memref<8x16x128xbf16, #tpu.memory_space<vmem>>, vector<1x16x128xbf16>,
    %c7_i32 = arith.constant 7 : i32
    %c0_165 = arith.constant 0 : index
    %c0_166 = arith.constant 0 : index
    %c0_167 = arith.constant 0 : index
    %341 = vector.load %arg20[%c0_165, %c0_166, %c0_167] : memref<2x16x128xf32, #tpu.memory_space<vmem>>, vector<1x16x128xf32>
    %342 = vector.shape_cast %341 : vector<1x16x128xf32> to vector<16x128xf32>
    %c0_168 = arith.constant 0 : index
    %c0_169 = arith.constant 0 : index
    %c0_170 = arith.constant 0 : index
    %343 = vector.load %arg21[%c0_168, %c0_169, %c0_170] : memref<2x16x128xf32, #tpu.memory_space<vmem>>, vector<1x16x128xf32>
    %344 = vector.shape_cast %343 : vector<1x16x128xf32> to vector<16x128xf32>
    %345 = arith.index_cast %c7_i32 : i32 to index
    %c0_171 = arith.constant 0 : index
    %c0_172 = arith.constant 0 : index
    %346 = vector.load %arg19[%345, %c0_171, %c0_172] : memref<8x16x512xf32, #tpu.memory_space<vmem>>, vector<1x16x512xf32>
    %347 = vector.shape_cast %346 : vector<1x16x512xf32> to vector<16x512xf32>
    %348 = arith.truncf %342 : vector<16x128xf32> to vector<16x128xbf16>
    %c0_173 = arith.constant 0 : index
    %c0_174 = arith.constant 0 : index
    %349 = vector.load %arg5[%c0_173, %c0_174] : memref<128x512xbf16, #tpu.memory_space<vmem>>, vector<128x512xbf16>
    %cst_175 = arith.constant dense<0.000000e+00> : vector<16x512xf32>
    %350 = tpu.matmul %348, %349, %cst_175 {dimension_numbers = #tpu.dot_dimension_numbers<[1], [0], [0], [1], [0, 0, 1, 1], [], []>} : vector<16x128xbf16>, vector<128x512xbf16>, vector<16x512xf32> -> vector<16x512xf32>
    %351 = arith.addf %347, %350 : vector<16x512xf32>
    %352 = vector.extract_strided_slice %351 {offsets = [0, 0], sizes = [16, 128], strides = [1, 1]} : vector<16x512xf32> to vector<16x128xf32>
    %353 = arith.negf %352 : vector<16x128xf32>
    %354 = math.exp %353 : vector<16x128xf32>
    %cst_176 = arith.constant 1.000000e+00 : f32
    %355 = vector.broadcast %cst_176 : f32 to vector<16x128xf32>
    %356 = arith.addf %355, %354 : vector<16x128xf32>
    %357 = arith.divf %355, %356 : vector<16x128xf32>
    %358 = vector.extract_strided_slice %351 {offsets = [0, 128], sizes = [16, 128], strides = [1, 1]} : vector<16x512xf32> to vector<16x128xf32>
    %359 = arith.negf %358 : vector<16x128xf32>
    %360 = math.exp %359 : vector<16x128xf32>
    %cst_177 = arith.constant 1.000000e+00 : f32
    %361 = vector.broadcast %cst_177 : f32 to vector<16x128xf32>
    %362 = arith.addf %361, %360 : vector<16x128xf32>
    %363 = arith.divf %361, %362 : vector<16x128xf32>
    %364 = vector.extract_strided_slice %351 {offsets = [0, 256], sizes = [16, 128], strides = [1, 1]} : vector<16x512xf32> to vector<16x128xf32>
    %365 = math.tanh %364 : vector<16x128xf32>
    %366 = vector.extract_strided_slice %351 {offsets = [0, 384], sizes = [16, 128], strides = [1, 1]} : vector<16x512xf32> to vector<16x128xf32>
    %367 = arith.negf %366 : vector<16x128xf32>
    %368 = math.exp %367 : vector<16x128xf32>
    %cst_178 = arith.constant 1.000000e+00 : f32
    %369 = vector.broadcast %cst_178 : f32 to vector<16x128xf32>
    %370 = arith.addf %369, %368 : vector<16x128xf32>
    %371 = arith.divf %369, %370 : vector<16x128xf32>
    %372 = arith.mulf %363, %344 : vector<16x128xf32>
    %373 = arith.mulf %357, %365 : vector<16x128xf32>
    %374 = arith.addf %372, %373 : vector<16x128xf32>
    %375 = math.tanh %374 : vector<16x128xf32>
    %376 = arith.mulf %371, %375 : vector<16x128xf32>
    %c0_179 = arith.constant 0 : index
    %c0_180 = arith.constant 0 : index
    %c0_181 = arith.constant 0 : index
    %377 = vector.load %arg20[%c0_179, %c0_180, %c0_181] : memref<2x16x128xf32, #tpu.memory_space<vmem>>, vector<1x16x128xf32>
    %378 = vector.shape_cast %377 : vector<1x16x128xf32> to vector<16x128xf32>
    %379 = vector.shape_cast %376 : vector<16x128xf32> to vector<1x16x128xf32>
    tpu.vector_store %arg20[%c0_179, %c0_180, %c0_181], %379 {strides = array<i32>} : memref<2x16x128xf32, #tpu.memory_space<vmem>>, vector<1x16x128xf32>,
    %c0_182 = arith.constant 0 : index
    %c0_183 = arith.constant 0 : index
    %c0_184 = arith.constant 0 : index
    %380 = vector.load %arg21[%c0_182, %c0_183, %c0_184] : memref<2x16x128xf32, #tpu.memory_space<vmem>>, vector<1x16x128xf32>
    %381 = vector.shape_cast %380 : vector<1x16x128xf32> to vector<16x128xf32>
    %382 = vector.shape_cast %374 : vector<16x128xf32> to vector<1x16x128xf32>
    tpu.vector_store %arg21[%c0_182, %c0_183, %c0_184], %382 {strides = array<i32>} : memref<2x16x128xf32, #tpu.memory_space<vmem>>, vector<1x16x128xf32>,
    %383 = arith.truncf %376 : vector<16x128xf32> to vector<16x128xbf16>
    %384 = arith.index_cast %c7_i32 : i32 to index
    %c0_185 = arith.constant 0 : index
    %c0_186 = arith.constant 0 : index
    %385 = vector.load %arg18[%384, %c0_185, %c0_186] : memref<8x16x128xbf16, #tpu.memory_space<vmem>>, vector<1x16x128xbf16>
    %386 = vector.shape_cast %385 : vector<1x16x128xbf16> to vector<16x128xbf16>
    %387 = vector.shape_cast %383 : vector<16x128xbf16> to vector<1x16x128xbf16>
    tpu.vector_store %arg18[%384, %c0_185, %c0_186], %387 {strides = array<i32>} : memref<8x16x128xbf16, #tpu.memory_space<vmem>>, vector<1x16x128xbf16>,
    %c8_i32 = arith.constant 8 : i32
    %c0_187 = arith.constant 0 : index
    %c0_188 = arith.constant 0 : index
    %c0_189 = arith.constant 0 : index
    %388 = vector.load %arg18[%c0_187, %c0_188, %c0_189] : memref<8x16x128xbf16, #tpu.memory_space<vmem>>, vector<8x16x128xbf16>
    %389 = vector.shape_cast %388 : vector<8x16x128xbf16> to vector<128x128xbf16>
    %c0_190 = arith.constant 0 : index
    %c0_191 = arith.constant 0 : index
    %390 = vector.load %arg4[%c0_190, %c0_191] : memref<128x512xbf16, #tpu.memory_space<vmem>>, vector<128x512xbf16>
    %cst_192 = arith.constant dense<0.000000e+00> : vector<128x512xf32>
    %391 = tpu.matmul %389, %390, %cst_192 {dimension_numbers = #tpu.dot_dimension_numbers<[1], [0], [0], [1], [0, 0, 1, 1], [], []>} : vector<128x128xbf16>, vector<128x512xbf16>, vector<128x512xf32> -> vector<128x512xf32>
    %c0_193 = arith.constant 0 : index
    %c0_194 = arith.constant 0 : index
    %392 = vector.load %arg8[%c0_193, %c0_194] : memref<1x512xf32, #tpu.memory_space<vmem>>, vector<1x512xf32>
    %393 = vector.broadcast %392 : vector<1x512xf32> to vector<128x512xf32>
    %394 = arith.addf %391, %393 : vector<128x512xf32>
    %395 = vector.shape_cast %394 : vector<128x512xf32> to vector<8x16x512xf32>
    %c0_195 = arith.constant 0 : index
    %c0_196 = arith.constant 0 : index
    %c0_197 = arith.constant 0 : index
    %396 = vector.load %arg19[%c0_195, %c0_196, %c0_197] : memref<8x16x512xf32, #tpu.memory_space<vmem>>, vector<8x16x512xf32>
    tpu.vector_store %arg19[%c0_195, %c0_196, %c0_197], %395 {strides = array<i32>} : memref<8x16x512xf32, #tpu.memory_space<vmem>>, vector<8x16x512xf32>,
    %c0_i32_198 = arith.constant 0 : i32
    %c1 = arith.constant 1 : index
    %c0_199 = arith.constant 0 : index
    %c0_200 = arith.constant 0 : index
    %397 = vector.load %arg20[%c1, %c0_199, %c0_200] : memref<2x16x128xf32, #tpu.memory_space<vmem>>, vector<1x16x128xf32>
    %398 = vector.shape_cast %397 : vector<1x16x128xf32> to vector<16x128xf32>
    %c1_201 = arith.constant 1 : index
    %c0_202 = arith.constant 0 : index
    %c0_203 = arith.constant 0 : index
    %399 = vector.load %arg21[%c1_201, %c0_202, %c0_203] : memref<2x16x128xf32, #tpu.memory_space<vmem>>, vector<1x16x128xf32>
    %400 = vector.shape_cast %399 : vector<1x16x128xf32> to vector<16x128xf32>
    %401 = arith.index_cast %c0_i32_198 : i32 to index
    %c0_204 = arith.constant 0 : index
    %c0_205 = arith.constant 0 : index
    %402 = vector.load %arg19[%401, %c0_204, %c0_205] : memref<8x16x512xf32, #tpu.memory_space<vmem>>, vector<1x16x512xf32>
    %403 = vector.shape_cast %402 : vector<1x16x512xf32> to vector<16x512xf32>
    %404 = arith.truncf %398 : vector<16x128xf32> to vector<16x128xbf16>
    %c0_206 = arith.constant 0 : index
    %c0_207 = arith.constant 0 : index
    %405 = vector.load %arg6[%c0_206, %c0_207] : memref<128x512xbf16, #tpu.memory_space<vmem>>, vector<128x512xbf16>
    %cst_208 = arith.constant dense<0.000000e+00> : vector<16x512xf32>
    %406 = tpu.matmul %404, %405, %cst_208 {dimension_numbers = #tpu.dot_dimension_numbers<[1], [0], [0], [1], [0, 0, 1, 1], [], []>} : vector<16x128xbf16>, vector<128x512xbf16>, vector<16x512xf32> -> vector<16x512xf32>
    %407 = arith.addf %403, %406 : vector<16x512xf32>
    %408 = vector.extract_strided_slice %407 {offsets = [0, 0], sizes = [16, 128], strides = [1, 1]} : vector<16x512xf32> to vector<16x128xf32>
    %409 = arith.negf %408 : vector<16x128xf32>
    %410 = math.exp %409 : vector<16x128xf32>
    %cst_209 = arith.constant 1.000000e+00 : f32
    %411 = vector.broadcast %cst_209 : f32 to vector<16x128xf32>
    %412 = arith.addf %411, %410 : vector<16x128xf32>
    %413 = arith.divf %411, %412 : vector<16x128xf32>
    %414 = vector.extract_strided_slice %407 {offsets = [0, 128], sizes = [16, 128], strides = [1, 1]} : vector<16x512xf32> to vector<16x128xf32>
    %415 = arith.negf %414 : vector<16x128xf32>
    %416 = math.exp %415 : vector<16x128xf32>
    %cst_210 = arith.constant 1.000000e+00 : f32
    %417 = vector.broadcast %cst_210 : f32 to vector<16x128xf32>
    %418 = arith.addf %417, %416 : vector<16x128xf32>
    %419 = arith.divf %417, %418 : vector<16x128xf32>
    %420 = vector.extract_strided_slice %407 {offsets = [0, 256], sizes = [16, 128], strides = [1, 1]} : vector<16x512xf32> to vector<16x128xf32>
    %421 = math.tanh %420 : vector<16x128xf32>
    %422 = vector.extract_strided_slice %407 {offsets = [0, 384], sizes = [16, 128], strides = [1, 1]} : vector<16x512xf32> to vector<16x128xf32>
    %423 = arith.negf %422 : vector<16x128xf32>
    %424 = math.exp %423 : vector<16x128xf32>
    %cst_211 = arith.constant 1.000000e+00 : f32
    %425 = vector.broadcast %cst_211 : f32 to vector<16x128xf32>
    %426 = arith.addf %425, %424 : vector<16x128xf32>
    %427 = arith.divf %425, %426 : vector<16x128xf32>
    %428 = arith.mulf %419, %400 : vector<16x128xf32>
    %429 = arith.mulf %413, %421 : vector<16x128xf32>
    %430 = arith.addf %428, %429 : vector<16x128xf32>
    %431 = math.tanh %430 : vector<16x128xf32>
    %432 = arith.mulf %427, %431 : vector<16x128xf32>
    %c1_212 = arith.constant 1 : index
    %c0_213 = arith.constant 0 : index
    %c0_214 = arith.constant 0 : index
    %433 = vector.load %arg20[%c1_212, %c0_213, %c0_214] : memref<2x16x128xf32, #tpu.memory_space<vmem>>, vector<1x16x128xf32>
    %434 = vector.shape_cast %433 : vector<1x16x128xf32> to vector<16x128xf32>
    %435 = vector.shape_cast %432 : vector<16x128xf32> to vector<1x16x128xf32>
    tpu.vector_store %arg20[%c1_212, %c0_213, %c0_214], %435 {strides = array<i32>} : memref<2x16x128xf32, #tpu.memory_space<vmem>>, vector<1x16x128xf32>,
    %c1_215 = arith.constant 1 : index
    %c0_216 = arith.constant 0 : index
    %c0_217 = arith.constant 0 : index
    %436 = vector.load %arg21[%c1_215, %c0_216, %c0_217] : memref<2x16x128xf32, #tpu.memory_space<vmem>>, vector<1x16x128xf32>
    %437 = vector.shape_cast %436 : vector<1x16x128xf32> to vector<16x128xf32>
    %438 = vector.shape_cast %430 : vector<16x128xf32> to vector<1x16x128xf32>
    tpu.vector_store %arg21[%c1_215, %c0_216, %c0_217], %438 {strides = array<i32>} : memref<2x16x128xf32, #tpu.memory_space<vmem>>, vector<1x16x128xf32>,
    %439 = arith.truncf %432 : vector<16x128xf32> to vector<16x128xbf16>
    %440 = arith.index_cast %c0_i32_198 : i32 to index
    %c0_218 = arith.constant 0 : index
    %c0_219 = arith.constant 0 : index
    %441 = vector.load %arg18[%440, %c0_218, %c0_219] : memref<8x16x128xbf16, #tpu.memory_space<vmem>>, vector<1x16x128xbf16>
    %442 = vector.shape_cast %441 : vector<1x16x128xbf16> to vector<16x128xbf16>
    %443 = vector.shape_cast %439 : vector<16x128xbf16> to vector<1x16x128xbf16>
    tpu.vector_store %arg18[%440, %c0_218, %c0_219], %443 {strides = array<i32>} : memref<8x16x128xbf16, #tpu.memory_space<vmem>>, vector<1x16x128xbf16>,
    %c1_i32_220 = arith.constant 1 : i32
    %c1_221 = arith.constant 1 : index
    %c0_222 = arith.constant 0 : index
    %c0_223 = arith.constant 0 : index
    %444 = vector.load %arg20[%c1_221, %c0_222, %c0_223] : memref<2x16x128xf32, #tpu.memory_space<vmem>>, vector<1x16x128xf32>
    %445 = vector.shape_cast %444 : vector<1x16x128xf32> to vector<16x128xf32>
    %c1_224 = arith.constant 1 : index
    %c0_225 = arith.constant 0 : index
    %c0_226 = arith.constant 0 : index
    %446 = vector.load %arg21[%c1_224, %c0_225, %c0_226] : memref<2x16x128xf32, #tpu.memory_space<vmem>>, vector<1x16x128xf32>
    %447 = vector.shape_cast %446 : vector<1x16x128xf32> to vector<16x128xf32>
    %448 = arith.index_cast %c1_i32_220 : i32 to index
    %c0_227 = arith.constant 0 : index
    %c0_228 = arith.constant 0 : index
    %449 = vector.load %arg19[%448, %c0_227, %c0_228] : memref<8x16x512xf32, #tpu.memory_space<vmem>>, vector<1x16x512xf32>
    %450 = vector.shape_cast %449 : vector<1x16x512xf32> to vector<16x512xf32>
    %451 = arith.truncf %445 : vector<16x128xf32> to vector<16x128xbf16>
    %c0_229 = arith.constant 0 : index
    %c0_230 = arith.constant 0 : index
    %452 = vector.load %arg6[%c0_229, %c0_230] : memref<128x512xbf16, #tpu.memory_space<vmem>>, vector<128x512xbf16>
    %cst_231 = arith.constant dense<0.000000e+00> : vector<16x512xf32>
    %453 = tpu.matmul %451, %452, %cst_231 {dimension_numbers = #tpu.dot_dimension_numbers<[1], [0], [0], [1], [0, 0, 1, 1], [], []>} : vector<16x128xbf16>, vector<128x512xbf16>, vector<16x512xf32> -> vector<16x512xf32>
    %454 = arith.addf %450, %453 : vector<16x512xf32>
    %455 = vector.extract_strided_slice %454 {offsets = [0, 0], sizes = [16, 128], strides = [1, 1]} : vector<16x512xf32> to vector<16x128xf32>
    %456 = arith.negf %455 : vector<16x128xf32>
    %457 = math.exp %456 : vector<16x128xf32>
    %cst_232 = arith.constant 1.000000e+00 : f32
    %458 = vector.broadcast %cst_232 : f32 to vector<16x128xf32>
    %459 = arith.addf %458, %457 : vector<16x128xf32>
    %460 = arith.divf %458, %459 : vector<16x128xf32>
    %461 = vector.extract_strided_slice %454 {offsets = [0, 128], sizes = [16, 128], strides = [1, 1]} : vector<16x512xf32> to vector<16x128xf32>
    %462 = arith.negf %461 : vector<16x128xf32>
    %463 = math.exp %462 : vector<16x128xf32>
    %cst_233 = arith.constant 1.000000e+00 : f32
    %464 = vector.broadcast %cst_233 : f32 to vector<16x128xf32>
    %465 = arith.addf %464, %463 : vector<16x128xf32>
    %466 = arith.divf %464, %465 : vector<16x128xf32>
    %467 = vector.extract_strided_slice %454 {offsets = [0, 256], sizes = [16, 128], strides = [1, 1]} : vector<16x512xf32> to vector<16x128xf32>
    %468 = math.tanh %467 : vector<16x128xf32>
    %469 = vector.extract_strided_slice %454 {offsets = [0, 384], sizes = [16, 128], strides = [1, 1]} : vector<16x512xf32> to vector<16x128xf32>
    %470 = arith.negf %469 : vector<16x128xf32>
    %471 = math.exp %470 : vector<16x128xf32>
    %cst_234 = arith.constant 1.000000e+00 : f32
    %472 = vector.broadcast %cst_234 : f32 to vector<16x128xf32>
    %473 = arith.addf %472, %471 : vector<16x128xf32>
    %474 = arith.divf %472, %473 : vector<16x128xf32>
    %475 = arith.mulf %466, %447 : vector<16x128xf32>
    %476 = arith.mulf %460, %468 : vector<16x128xf32>
    %477 = arith.addf %475, %476 : vector<16x128xf32>
    %478 = math.tanh %477 : vector<16x128xf32>
    %479 = arith.mulf %474, %478 : vector<16x128xf32>
    %c1_235 = arith.constant 1 : index
    %c0_236 = arith.constant 0 : index
    %c0_237 = arith.constant 0 : index
    %480 = vector.load %arg20[%c1_235, %c0_236, %c0_237] : memref<2x16x128xf32, #tpu.memory_space<vmem>>, vector<1x16x128xf32>
    %481 = vector.shape_cast %480 : vector<1x16x128xf32> to vector<16x128xf32>
    %482 = vector.shape_cast %479 : vector<16x128xf32> to vector<1x16x128xf32>
    tpu.vector_store %arg20[%c1_235, %c0_236, %c0_237], %482 {strides = array<i32>} : memref<2x16x128xf32, #tpu.memory_space<vmem>>, vector<1x16x128xf32>,
    %c1_238 = arith.constant 1 : index
    %c0_239 = arith.constant 0 : index
    %c0_240 = arith.constant 0 : index
    %483 = vector.load %arg21[%c1_238, %c0_239, %c0_240] : memref<2x16x128xf32, #tpu.memory_space<vmem>>, vector<1x16x128xf32>
    %484 = vector.shape_cast %483 : vector<1x16x128xf32> to vector<16x128xf32>
    %485 = vector.shape_cast %477 : vector<16x128xf32> to vector<1x16x128xf32>
    tpu.vector_store %arg21[%c1_238, %c0_239, %c0_240], %485 {strides = array<i32>} : memref<2x16x128xf32, #tpu.memory_space<vmem>>, vector<1x16x128xf32>,
    %486 = arith.truncf %479 : vector<16x128xf32> to vector<16x128xbf16>
    %487 = arith.index_cast %c1_i32_220 : i32 to index
    %c0_241 = arith.constant 0 : index
    %c0_242 = arith.constant 0 : index
    %488 = vector.load %arg18[%487, %c0_241, %c0_242] : memref<8x16x128xbf16, #tpu.memory_space<vmem>>, vector<1x16x128xbf16>
    %489 = vector.shape_cast %488 : vector<1x16x128xbf16> to vector<16x128xbf16>
    %490 = vector.shape_cast %486 : vector<16x128xbf16> to vector<1x16x128xbf16>
    tpu.vector_store %arg18[%487, %c0_241, %c0_242], %490 {strides = array<i32>} : memref<8x16x128xbf16, #tpu.memory_space<vmem>>, vector<1x16x128xbf16>,
    %c2_i32_243 = arith.constant 2 : i32
    %c1_244 = arith.constant 1 : index
    %c0_245 = arith.constant 0 : index
    %c0_246 = arith.constant 0 : index
    %491 = vector.load %arg20[%c1_244, %c0_245, %c0_246] : memref<2x16x128xf32, #tpu.memory_space<vmem>>, vector<1x16x128xf32>
    %492 = vector.shape_cast %491 : vector<1x16x128xf32> to vector<16x128xf32>
    %c1_247 = arith.constant 1 : index
    %c0_248 = arith.constant 0 : index
    %c0_249 = arith.constant 0 : index
    %493 = vector.load %arg21[%c1_247, %c0_248, %c0_249] : memref<2x16x128xf32, #tpu.memory_space<vmem>>, vector<1x16x128xf32>
    %494 = vector.shape_cast %493 : vector<1x16x128xf32> to vector<16x128xf32>
    %495 = arith.index_cast %c2_i32_243 : i32 to index
    %c0_250 = arith.constant 0 : index
    %c0_251 = arith.constant 0 : index
    %496 = vector.load %arg19[%495, %c0_250, %c0_251] : memref<8x16x512xf32, #tpu.memory_space<vmem>>, vector<1x16x512xf32>
    %497 = vector.shape_cast %496 : vector<1x16x512xf32> to vector<16x512xf32>
    %498 = arith.truncf %492 : vector<16x128xf32> to vector<16x128xbf16>
    %c0_252 = arith.constant 0 : index
    %c0_253 = arith.constant 0 : index
    %499 = vector.load %arg6[%c0_252, %c0_253] : memref<128x512xbf16, #tpu.memory_space<vmem>>, vector<128x512xbf16>
    %cst_254 = arith.constant dense<0.000000e+00> : vector<16x512xf32>
    %500 = tpu.matmul %498, %499, %cst_254 {dimension_numbers = #tpu.dot_dimension_numbers<[1], [0], [0], [1], [0, 0, 1, 1], [], []>} : vector<16x128xbf16>, vector<128x512xbf16>, vector<16x512xf32> -> vector<16x512xf32>
    %501 = arith.addf %497, %500 : vector<16x512xf32>
    %502 = vector.extract_strided_slice %501 {offsets = [0, 0], sizes = [16, 128], strides = [1, 1]} : vector<16x512xf32> to vector<16x128xf32>
    %503 = arith.negf %502 : vector<16x128xf32>
    %504 = math.exp %503 : vector<16x128xf32>
    %cst_255 = arith.constant 1.000000e+00 : f32
    %505 = vector.broadcast %cst_255 : f32 to vector<16x128xf32>
    %506 = arith.addf %505, %504 : vector<16x128xf32>
    %507 = arith.divf %505, %506 : vector<16x128xf32>
    %508 = vector.extract_strided_slice %501 {offsets = [0, 128], sizes = [16, 128], strides = [1, 1]} : vector<16x512xf32> to vector<16x128xf32>
    %509 = arith.negf %508 : vector<16x128xf32>
    %510 = math.exp %509 : vector<16x128xf32>
    %cst_256 = arith.constant 1.000000e+00 : f32
    %511 = vector.broadcast %cst_256 : f32 to vector<16x128xf32>
    %512 = arith.addf %511, %510 : vector<16x128xf32>
    %513 = arith.divf %511, %512 : vector<16x128xf32>
    %514 = vector.extract_strided_slice %501 {offsets = [0, 256], sizes = [16, 128], strides = [1, 1]} : vector<16x512xf32> to vector<16x128xf32>
    %515 = math.tanh %514 : vector<16x128xf32>
    %516 = vector.extract_strided_slice %501 {offsets = [0, 384], sizes = [16, 128], strides = [1, 1]} : vector<16x512xf32> to vector<16x128xf32>
    %517 = arith.negf %516 : vector<16x128xf32>
    %518 = math.exp %517 : vector<16x128xf32>
    %cst_257 = arith.constant 1.000000e+00 : f32
    %519 = vector.broadcast %cst_257 : f32 to vector<16x128xf32>
    %520 = arith.addf %519, %518 : vector<16x128xf32>
    %521 = arith.divf %519, %520 : vector<16x128xf32>
    %522 = arith.mulf %513, %494 : vector<16x128xf32>
    %523 = arith.mulf %507, %515 : vector<16x128xf32>
    %524 = arith.addf %522, %523 : vector<16x128xf32>
    %525 = math.tanh %524 : vector<16x128xf32>
    %526 = arith.mulf %521, %525 : vector<16x128xf32>
    %c1_258 = arith.constant 1 : index
    %c0_259 = arith.constant 0 : index
    %c0_260 = arith.constant 0 : index
    %527 = vector.load %arg20[%c1_258, %c0_259, %c0_260] : memref<2x16x128xf32, #tpu.memory_space<vmem>>, vector<1x16x128xf32>
    %528 = vector.shape_cast %527 : vector<1x16x128xf32> to vector<16x128xf32>
    %529 = vector.shape_cast %526 : vector<16x128xf32> to vector<1x16x128xf32>
    tpu.vector_store %arg20[%c1_258, %c0_259, %c0_260], %529 {strides = array<i32>} : memref<2x16x128xf32, #tpu.memory_space<vmem>>, vector<1x16x128xf32>,
    %c1_261 = arith.constant 1 : index
    %c0_262 = arith.constant 0 : index
    %c0_263 = arith.constant 0 : index
    %530 = vector.load %arg21[%c1_261, %c0_262, %c0_263] : memref<2x16x128xf32, #tpu.memory_space<vmem>>, vector<1x16x128xf32>
    %531 = vector.shape_cast %530 : vector<1x16x128xf32> to vector<16x128xf32>
    %532 = vector.shape_cast %524 : vector<16x128xf32> to vector<1x16x128xf32>
    tpu.vector_store %arg21[%c1_261, %c0_262, %c0_263], %532 {strides = array<i32>} : memref<2x16x128xf32, #tpu.memory_space<vmem>>, vector<1x16x128xf32>,
    %533 = arith.truncf %526 : vector<16x128xf32> to vector<16x128xbf16>
    %534 = arith.index_cast %c2_i32_243 : i32 to index
    %c0_264 = arith.constant 0 : index
    %c0_265 = arith.constant 0 : index
    %535 = vector.load %arg18[%534, %c0_264, %c0_265] : memref<8x16x128xbf16, #tpu.memory_space<vmem>>, vector<1x16x128xbf16>
    %536 = vector.shape_cast %535 : vector<1x16x128xbf16> to vector<16x128xbf16>
    %537 = vector.shape_cast %533 : vector<16x128xbf16> to vector<1x16x128xbf16>
    tpu.vector_store %arg18[%534, %c0_264, %c0_265], %537 {strides = array<i32>} : memref<8x16x128xbf16, #tpu.memory_space<vmem>>, vector<1x16x128xbf16>,
    %c3_i32_266 = arith.constant 3 : i32
    %c1_267 = arith.constant 1 : index
    %c0_268 = arith.constant 0 : index
    %c0_269 = arith.constant 0 : index
    %538 = vector.load %arg20[%c1_267, %c0_268, %c0_269] : memref<2x16x128xf32, #tpu.memory_space<vmem>>, vector<1x16x128xf32>
    %539 = vector.shape_cast %538 : vector<1x16x128xf32> to vector<16x128xf32>
    %c1_270 = arith.constant 1 : index
    %c0_271 = arith.constant 0 : index
    %c0_272 = arith.constant 0 : index
    %540 = vector.load %arg21[%c1_270, %c0_271, %c0_272] : memref<2x16x128xf32, #tpu.memory_space<vmem>>, vector<1x16x128xf32>
    %541 = vector.shape_cast %540 : vector<1x16x128xf32> to vector<16x128xf32>
    %542 = arith.index_cast %c3_i32_266 : i32 to index
    %c0_273 = arith.constant 0 : index
    %c0_274 = arith.constant 0 : index
    %543 = vector.load %arg19[%542, %c0_273, %c0_274] : memref<8x16x512xf32, #tpu.memory_space<vmem>>, vector<1x16x512xf32>
    %544 = vector.shape_cast %543 : vector<1x16x512xf32> to vector<16x512xf32>
    %545 = arith.truncf %539 : vector<16x128xf32> to vector<16x128xbf16>
    %c0_275 = arith.constant 0 : index
    %c0_276 = arith.constant 0 : index
    %546 = vector.load %arg6[%c0_275, %c0_276] : memref<128x512xbf16, #tpu.memory_space<vmem>>, vector<128x512xbf16>
    %cst_277 = arith.constant dense<0.000000e+00> : vector<16x512xf32>
    %547 = tpu.matmul %545, %546, %cst_277 {dimension_numbers = #tpu.dot_dimension_numbers<[1], [0], [0], [1], [0, 0, 1, 1], [], []>} : vector<16x128xbf16>, vector<128x512xbf16>, vector<16x512xf32> -> vector<16x512xf32>
    %548 = arith.addf %544, %547 : vector<16x512xf32>
    %549 = vector.extract_strided_slice %548 {offsets = [0, 0], sizes = [16, 128], strides = [1, 1]} : vector<16x512xf32> to vector<16x128xf32>
    %550 = arith.negf %549 : vector<16x128xf32>
    %551 = math.exp %550 : vector<16x128xf32>
    %cst_278 = arith.constant 1.000000e+00 : f32
    %552 = vector.broadcast %cst_278 : f32 to vector<16x128xf32>
    %553 = arith.addf %552, %551 : vector<16x128xf32>
    %554 = arith.divf %552, %553 : vector<16x128xf32>
    %555 = vector.extract_strided_slice %548 {offsets = [0, 128], sizes = [16, 128], strides = [1, 1]} : vector<16x512xf32> to vector<16x128xf32>
    %556 = arith.negf %555 : vector<16x128xf32>
    %557 = math.exp %556 : vector<16x128xf32>
    %cst_279 = arith.constant 1.000000e+00 : f32
    %558 = vector.broadcast %cst_279 : f32 to vector<16x128xf32>
    %559 = arith.addf %558, %557 : vector<16x128xf32>
    %560 = arith.divf %558, %559 : vector<16x128xf32>
    %561 = vector.extract_strided_slice %548 {offsets = [0, 256], sizes = [16, 128], strides = [1, 1]} : vector<16x512xf32> to vector<16x128xf32>
    %562 = math.tanh %561 : vector<16x128xf32>
    %563 = vector.extract_strided_slice %548 {offsets = [0, 384], sizes = [16, 128], strides = [1, 1]} : vector<16x512xf32> to vector<16x128xf32>
    %564 = arith.negf %563 : vector<16x128xf32>
    %565 = math.exp %564 : vector<16x128xf32>
    %cst_280 = arith.constant 1.000000e+00 : f32
    %566 = vector.broadcast %cst_280 : f32 to vector<16x128xf32>
    %567 = arith.addf %566, %565 : vector<16x128xf32>
    %568 = arith.divf %566, %567 : vector<16x128xf32>
    %569 = arith.mulf %560, %541 : vector<16x128xf32>
    %570 = arith.mulf %554, %562 : vector<16x128xf32>
    %571 = arith.addf %569, %570 : vector<16x128xf32>
    %572 = math.tanh %571 : vector<16x128xf32>
    %573 = arith.mulf %568, %572 : vector<16x128xf32>
    %c1_281 = arith.constant 1 : index
    %c0_282 = arith.constant 0 : index
    %c0_283 = arith.constant 0 : index
    %574 = vector.load %arg20[%c1_281, %c0_282, %c0_283] : memref<2x16x128xf32, #tpu.memory_space<vmem>>, vector<1x16x128xf32>
    %575 = vector.shape_cast %574 : vector<1x16x128xf32> to vector<16x128xf32>
    %576 = vector.shape_cast %573 : vector<16x128xf32> to vector<1x16x128xf32>
    tpu.vector_store %arg20[%c1_281, %c0_282, %c0_283], %576 {strides = array<i32>} : memref<2x16x128xf32, #tpu.memory_space<vmem>>, vector<1x16x128xf32>,
    %c1_284 = arith.constant 1 : index
    %c0_285 = arith.constant 0 : index
    %c0_286 = arith.constant 0 : index
    %577 = vector.load %arg21[%c1_284, %c0_285, %c0_286] : memref<2x16x128xf32, #tpu.memory_space<vmem>>, vector<1x16x128xf32>
    %578 = vector.shape_cast %577 : vector<1x16x128xf32> to vector<16x128xf32>
    %579 = vector.shape_cast %571 : vector<16x128xf32> to vector<1x16x128xf32>
    tpu.vector_store %arg21[%c1_284, %c0_285, %c0_286], %579 {strides = array<i32>} : memref<2x16x128xf32, #tpu.memory_space<vmem>>, vector<1x16x128xf32>,
    %580 = arith.truncf %573 : vector<16x128xf32> to vector<16x128xbf16>
    %581 = arith.index_cast %c3_i32_266 : i32 to index
    %c0_287 = arith.constant 0 : index
    %c0_288 = arith.constant 0 : index
    %582 = vector.load %arg18[%581, %c0_287, %c0_288] : memref<8x16x128xbf16, #tpu.memory_space<vmem>>, vector<1x16x128xbf16>
    %583 = vector.shape_cast %582 : vector<1x16x128xbf16> to vector<16x128xbf16>
    %584 = vector.shape_cast %580 : vector<16x128xbf16> to vector<1x16x128xbf16>
    tpu.vector_store %arg18[%581, %c0_287, %c0_288], %584 {strides = array<i32>} : memref<8x16x128xbf16, #tpu.memory_space<vmem>>, vector<1x16x128xbf16>,
    %c4_i32_289 = arith.constant 4 : i32
    %c1_290 = arith.constant 1 : index
    %c0_291 = arith.constant 0 : index
    %c0_292 = arith.constant 0 : index
    %585 = vector.load %arg20[%c1_290, %c0_291, %c0_292] : memref<2x16x128xf32, #tpu.memory_space<vmem>>, vector<1x16x128xf32>
    %586 = vector.shape_cast %585 : vector<1x16x128xf32> to vector<16x128xf32>
    %c1_293 = arith.constant 1 : index
    %c0_294 = arith.constant 0 : index
    %c0_295 = arith.constant 0 : index
    %587 = vector.load %arg21[%c1_293, %c0_294, %c0_295] : memref<2x16x128xf32, #tpu.memory_space<vmem>>, vector<1x16x128xf32>
    %588 = vector.shape_cast %587 : vector<1x16x128xf32> to vector<16x128xf32>
    %589 = arith.index_cast %c4_i32_289 : i32 to index
    %c0_296 = arith.constant 0 : index
    %c0_297 = arith.constant 0 : index
    %590 = vector.load %arg19[%589, %c0_296, %c0_297] : memref<8x16x512xf32, #tpu.memory_space<vmem>>, vector<1x16x512xf32>
    %591 = vector.shape_cast %590 : vector<1x16x512xf32> to vector<16x512xf32>
    %592 = arith.truncf %586 : vector<16x128xf32> to vector<16x128xbf16>
    %c0_298 = arith.constant 0 : index
    %c0_299 = arith.constant 0 : index
    %593 = vector.load %arg6[%c0_298, %c0_299] : memref<128x512xbf16, #tpu.memory_space<vmem>>, vector<128x512xbf16>
    %cst_300 = arith.constant dense<0.000000e+00> : vector<16x512xf32>
    %594 = tpu.matmul %592, %593, %cst_300 {dimension_numbers = #tpu.dot_dimension_numbers<[1], [0], [0], [1], [0, 0, 1, 1], [], []>} : vector<16x128xbf16>, vector<128x512xbf16>, vector<16x512xf32> -> vector<16x512xf32>
    %595 = arith.addf %591, %594 : vector<16x512xf32>
    %596 = vector.extract_strided_slice %595 {offsets = [0, 0], sizes = [16, 128], strides = [1, 1]} : vector<16x512xf32> to vector<16x128xf32>
    %597 = arith.negf %596 : vector<16x128xf32>
    %598 = math.exp %597 : vector<16x128xf32>
    %cst_301 = arith.constant 1.000000e+00 : f32
    %599 = vector.broadcast %cst_301 : f32 to vector<16x128xf32>
    %600 = arith.addf %599, %598 : vector<16x128xf32>
    %601 = arith.divf %599, %600 : vector<16x128xf32>
    %602 = vector.extract_strided_slice %595 {offsets = [0, 128], sizes = [16, 128], strides = [1, 1]} : vector<16x512xf32> to vector<16x128xf32>
    %603 = arith.negf %602 : vector<16x128xf32>
    %604 = math.exp %603 : vector<16x128xf32>
    %cst_302 = arith.constant 1.000000e+00 : f32
    %605 = vector.broadcast %cst_302 : f32 to vector<16x128xf32>
    %606 = arith.addf %605, %604 : vector<16x128xf32>
    %607 = arith.divf %605, %606 : vector<16x128xf32>
    %608 = vector.extract_strided_slice %595 {offsets = [0, 256], sizes = [16, 128], strides = [1, 1]} : vector<16x512xf32> to vector<16x128xf32>
    %609 = math.tanh %608 : vector<16x128xf32>
    %610 = vector.extract_strided_slice %595 {offsets = [0, 384], sizes = [16, 128], strides = [1, 1]} : vector<16x512xf32> to vector<16x128xf32>
    %611 = arith.negf %610 : vector<16x128xf32>
    %612 = math.exp %611 : vector<16x128xf32>
    %cst_303 = arith.constant 1.000000e+00 : f32
    %613 = vector.broadcast %cst_303 : f32 to vector<16x128xf32>
    %614 = arith.addf %613, %612 : vector<16x128xf32>
    %615 = arith.divf %613, %614 : vector<16x128xf32>
    %616 = arith.mulf %607, %588 : vector<16x128xf32>
    %617 = arith.mulf %601, %609 : vector<16x128xf32>
    %618 = arith.addf %616, %617 : vector<16x128xf32>
    %619 = math.tanh %618 : vector<16x128xf32>
    %620 = arith.mulf %615, %619 : vector<16x128xf32>
    %c1_304 = arith.constant 1 : index
    %c0_305 = arith.constant 0 : index
    %c0_306 = arith.constant 0 : index
    %621 = vector.load %arg20[%c1_304, %c0_305, %c0_306] : memref<2x16x128xf32, #tpu.memory_space<vmem>>, vector<1x16x128xf32>
    %622 = vector.shape_cast %621 : vector<1x16x128xf32> to vector<16x128xf32>
    %623 = vector.shape_cast %620 : vector<16x128xf32> to vector<1x16x128xf32>
    tpu.vector_store %arg20[%c1_304, %c0_305, %c0_306], %623 {strides = array<i32>} : memref<2x16x128xf32, #tpu.memory_space<vmem>>, vector<1x16x128xf32>,
    %c1_307 = arith.constant 1 : index
    %c0_308 = arith.constant 0 : index
    %c0_309 = arith.constant 0 : index
    %624 = vector.load %arg21[%c1_307, %c0_308, %c0_309] : memref<2x16x128xf32, #tpu.memory_space<vmem>>, vector<1x16x128xf32>
    %625 = vector.shape_cast %624 : vector<1x16x128xf32> to vector<16x128xf32>
    %626 = vector.shape_cast %618 : vector<16x128xf32> to vector<1x16x128xf32>
    tpu.vector_store %arg21[%c1_307, %c0_308, %c0_309], %626 {strides = array<i32>} : memref<2x16x128xf32, #tpu.memory_space<vmem>>, vector<1x16x128xf32>,
    %627 = arith.truncf %620 : vector<16x128xf32> to vector<16x128xbf16>
    %628 = arith.index_cast %c4_i32_289 : i32 to index
    %c0_310 = arith.constant 0 : index
    %c0_311 = arith.constant 0 : index
    %629 = vector.load %arg18[%628, %c0_310, %c0_311] : memref<8x16x128xbf16, #tpu.memory_space<vmem>>, vector<1x16x128xbf16>
    %630 = vector.shape_cast %629 : vector<1x16x128xbf16> to vector<16x128xbf16>
    %631 = vector.shape_cast %627 : vector<16x128xbf16> to vector<1x16x128xbf16>
    tpu.vector_store %arg18[%628, %c0_310, %c0_311], %631 {strides = array<i32>} : memref<8x16x128xbf16, #tpu.memory_space<vmem>>, vector<1x16x128xbf16>,
    %c5_i32_312 = arith.constant 5 : i32
    %c1_313 = arith.constant 1 : index
    %c0_314 = arith.constant 0 : index
    %c0_315 = arith.constant 0 : index
    %632 = vector.load %arg20[%c1_313, %c0_314, %c0_315] : memref<2x16x128xf32, #tpu.memory_space<vmem>>, vector<1x16x128xf32>
    %633 = vector.shape_cast %632 : vector<1x16x128xf32> to vector<16x128xf32>
    %c1_316 = arith.constant 1 : index
    %c0_317 = arith.constant 0 : index
    %c0_318 = arith.constant 0 : index
    %634 = vector.load %arg21[%c1_316, %c0_317, %c0_318] : memref<2x16x128xf32, #tpu.memory_space<vmem>>, vector<1x16x128xf32>
    %635 = vector.shape_cast %634 : vector<1x16x128xf32> to vector<16x128xf32>
    %636 = arith.index_cast %c5_i32_312 : i32 to index
    %c0_319 = arith.constant 0 : index
    %c0_320 = arith.constant 0 : index
    %637 = vector.load %arg19[%636, %c0_319, %c0_320] : memref<8x16x512xf32, #tpu.memory_space<vmem>>, vector<1x16x512xf32>
    %638 = vector.shape_cast %637 : vector<1x16x512xf32> to vector<16x512xf32>
    %639 = arith.truncf %633 : vector<16x128xf32> to vector<16x128xbf16>
    %c0_321 = arith.constant 0 : index
    %c0_322 = arith.constant 0 : index
    %640 = vector.load %arg6[%c0_321, %c0_322] : memref<128x512xbf16, #tpu.memory_space<vmem>>, vector<128x512xbf16>
    %cst_323 = arith.constant dense<0.000000e+00> : vector<16x512xf32>
    %641 = tpu.matmul %639, %640, %cst_323 {dimension_numbers = #tpu.dot_dimension_numbers<[1], [0], [0], [1], [0, 0, 1, 1], [], []>} : vector<16x128xbf16>, vector<128x512xbf16>, vector<16x512xf32> -> vector<16x512xf32>
    %642 = arith.addf %638, %641 : vector<16x512xf32>
    %643 = vector.extract_strided_slice %642 {offsets = [0, 0], sizes = [16, 128], strides = [1, 1]} : vector<16x512xf32> to vector<16x128xf32>
    %644 = arith.negf %643 : vector<16x128xf32>
    %645 = math.exp %644 : vector<16x128xf32>
    %cst_324 = arith.constant 1.000000e+00 : f32
    %646 = vector.broadcast %cst_324 : f32 to vector<16x128xf32>
    %647 = arith.addf %646, %645 : vector<16x128xf32>
    %648 = arith.divf %646, %647 : vector<16x128xf32>
    %649 = vector.extract_strided_slice %642 {offsets = [0, 128], sizes = [16, 128], strides = [1, 1]} : vector<16x512xf32> to vector<16x128xf32>
    %650 = arith.negf %649 : vector<16x128xf32>
    %651 = math.exp %650 : vector<16x128xf32>
    %cst_325 = arith.constant 1.000000e+00 : f32
    %652 = vector.broadcast %cst_325 : f32 to vector<16x128xf32>
    %653 = arith.addf %652, %651 : vector<16x128xf32>
    %654 = arith.divf %652, %653 : vector<16x128xf32>
    %655 = vector.extract_strided_slice %642 {offsets = [0, 256], sizes = [16, 128], strides = [1, 1]} : vector<16x512xf32> to vector<16x128xf32>
    %656 = math.tanh %655 : vector<16x128xf32>
    %657 = vector.extract_strided_slice %642 {offsets = [0, 384], sizes = [16, 128], strides = [1, 1]} : vector<16x512xf32> to vector<16x128xf32>
    %658 = arith.negf %657 : vector<16x128xf32>
    %659 = math.exp %658 : vector<16x128xf32>
    %cst_326 = arith.constant 1.000000e+00 : f32
    %660 = vector.broadcast %cst_326 : f32 to vector<16x128xf32>
    %661 = arith.addf %660, %659 : vector<16x128xf32>
    %662 = arith.divf %660, %661 : vector<16x128xf32>
    %663 = arith.mulf %654, %635 : vector<16x128xf32>
    %664 = arith.mulf %648, %656 : vector<16x128xf32>
    %665 = arith.addf %663, %664 : vector<16x128xf32>
    %666 = math.tanh %665 : vector<16x128xf32>
    %667 = arith.mulf %662, %666 : vector<16x128xf32>
    %c1_327 = arith.constant 1 : index
    %c0_328 = arith.constant 0 : index
    %c0_329 = arith.constant 0 : index
    %668 = vector.load %arg20[%c1_327, %c0_328, %c0_329] : memref<2x16x128xf32, #tpu.memory_space<vmem>>, vector<1x16x128xf32>
    %669 = vector.shape_cast %668 : vector<1x16x128xf32> to vector<16x128xf32>
    %670 = vector.shape_cast %667 : vector<16x128xf32> to vector<1x16x128xf32>
    tpu.vector_store %arg20[%c1_327, %c0_328, %c0_329], %670 {strides = array<i32>} : memref<2x16x128xf32, #tpu.memory_space<vmem>>, vector<1x16x128xf32>,
    %c1_330 = arith.constant 1 : index
    %c0_331 = arith.constant 0 : index
    %c0_332 = arith.constant 0 : index
    %671 = vector.load %arg21[%c1_330, %c0_331, %c0_332] : memref<2x16x128xf32, #tpu.memory_space<vmem>>, vector<1x16x128xf32>
    %672 = vector.shape_cast %671 : vector<1x16x128xf32> to vector<16x128xf32>
    %673 = vector.shape_cast %665 : vector<16x128xf32> to vector<1x16x128xf32>
    tpu.vector_store %arg21[%c1_330, %c0_331, %c0_332], %673 {strides = array<i32>} : memref<2x16x128xf32, #tpu.memory_space<vmem>>, vector<1x16x128xf32>,
    %674 = arith.truncf %667 : vector<16x128xf32> to vector<16x128xbf16>
    %675 = arith.index_cast %c5_i32_312 : i32 to index
    %c0_333 = arith.constant 0 : index
    %c0_334 = arith.constant 0 : index
    %676 = vector.load %arg18[%675, %c0_333, %c0_334] : memref<8x16x128xbf16, #tpu.memory_space<vmem>>, vector<1x16x128xbf16>
    %677 = vector.shape_cast %676 : vector<1x16x128xbf16> to vector<16x128xbf16>
    %678 = vector.shape_cast %674 : vector<16x128xbf16> to vector<1x16x128xbf16>
    tpu.vector_store %arg18[%675, %c0_333, %c0_334], %678 {strides = array<i32>} : memref<8x16x128xbf16, #tpu.memory_space<vmem>>, vector<1x16x128xbf16>,
    %c6_i32_335 = arith.constant 6 : i32
    %c1_336 = arith.constant 1 : index
    %c0_337 = arith.constant 0 : index
    %c0_338 = arith.constant 0 : index
    %679 = vector.load %arg20[%c1_336, %c0_337, %c0_338] : memref<2x16x128xf32, #tpu.memory_space<vmem>>, vector<1x16x128xf32>
    %680 = vector.shape_cast %679 : vector<1x16x128xf32> to vector<16x128xf32>
    %c1_339 = arith.constant 1 : index
    %c0_340 = arith.constant 0 : index
    %c0_341 = arith.constant 0 : index
    %681 = vector.load %arg21[%c1_339, %c0_340, %c0_341] : memref<2x16x128xf32, #tpu.memory_space<vmem>>, vector<1x16x128xf32>
    %682 = vector.shape_cast %681 : vector<1x16x128xf32> to vector<16x128xf32>
    %683 = arith.index_cast %c6_i32_335 : i32 to index
    %c0_342 = arith.constant 0 : index
    %c0_343 = arith.constant 0 : index
    %684 = vector.load %arg19[%683, %c0_342, %c0_343] : memref<8x16x512xf32, #tpu.memory_space<vmem>>, vector<1x16x512xf32>
    %685 = vector.shape_cast %684 : vector<1x16x512xf32> to vector<16x512xf32>
    %686 = arith.truncf %680 : vector<16x128xf32> to vector<16x128xbf16>
    %c0_344 = arith.constant 0 : index
    %c0_345 = arith.constant 0 : index
    %687 = vector.load %arg6[%c0_344, %c0_345] : memref<128x512xbf16, #tpu.memory_space<vmem>>, vector<128x512xbf16>
    %cst_346 = arith.constant dense<0.000000e+00> : vector<16x512xf32>
    %688 = tpu.matmul %686, %687, %cst_346 {dimension_numbers = #tpu.dot_dimension_numbers<[1], [0], [0], [1], [0, 0, 1, 1], [], []>} : vector<16x128xbf16>, vector<128x512xbf16>, vector<16x512xf32> -> vector<16x512xf32>
    %689 = arith.addf %685, %688 : vector<16x512xf32>
    %690 = vector.extract_strided_slice %689 {offsets = [0, 0], sizes = [16, 128], strides = [1, 1]} : vector<16x512xf32> to vector<16x128xf32>
    %691 = arith.negf %690 : vector<16x128xf32>
    %692 = math.exp %691 : vector<16x128xf32>
    %cst_347 = arith.constant 1.000000e+00 : f32
    %693 = vector.broadcast %cst_347 : f32 to vector<16x128xf32>
    %694 = arith.addf %693, %692 : vector<16x128xf32>
    %695 = arith.divf %693, %694 : vector<16x128xf32>
    %696 = vector.extract_strided_slice %689 {offsets = [0, 128], sizes = [16, 128], strides = [1, 1]} : vector<16x512xf32> to vector<16x128xf32>
    %697 = arith.negf %696 : vector<16x128xf32>
    %698 = math.exp %697 : vector<16x128xf32>
    %cst_348 = arith.constant 1.000000e+00 : f32
    %699 = vector.broadcast %cst_348 : f32 to vector<16x128xf32>
    %700 = arith.addf %699, %698 : vector<16x128xf32>
    %701 = arith.divf %699, %700 : vector<16x128xf32>
    %702 = vector.extract_strided_slice %689 {offsets = [0, 256], sizes = [16, 128], strides = [1, 1]} : vector<16x512xf32> to vector<16x128xf32>
    %703 = math.tanh %702 : vector<16x128xf32>
    %704 = vector.extract_strided_slice %689 {offsets = [0, 384], sizes = [16, 128], strides = [1, 1]} : vector<16x512xf32> to vector<16x128xf32>
    %705 = arith.negf %704 : vector<16x128xf32>
    %706 = math.exp %705 : vector<16x128xf32>
    %cst_349 = arith.constant 1.000000e+00 : f32
    %707 = vector.broadcast %cst_349 : f32 to vector<16x128xf32>
    %708 = arith.addf %707, %706 : vector<16x128xf32>
    %709 = arith.divf %707, %708 : vector<16x128xf32>
    %710 = arith.mulf %701, %682 : vector<16x128xf32>
    %711 = arith.mulf %695, %703 : vector<16x128xf32>
    %712 = arith.addf %710, %711 : vector<16x128xf32>
    %713 = math.tanh %712 : vector<16x128xf32>
    %714 = arith.mulf %709, %713 : vector<16x128xf32>
    %c1_350 = arith.constant 1 : index
    %c0_351 = arith.constant 0 : index
    %c0_352 = arith.constant 0 : index
    %715 = vector.load %arg20[%c1_350, %c0_351, %c0_352] : memref<2x16x128xf32, #tpu.memory_space<vmem>>, vector<1x16x128xf32>
    %716 = vector.shape_cast %715 : vector<1x16x128xf32> to vector<16x128xf32>
    %717 = vector.shape_cast %714 : vector<16x128xf32> to vector<1x16x128xf32>
    tpu.vector_store %arg20[%c1_350, %c0_351, %c0_352], %717 {strides = array<i32>} : memref<2x16x128xf32, #tpu.memory_space<vmem>>, vector<1x16x128xf32>,
    %c1_353 = arith.constant 1 : index
    %c0_354 = arith.constant 0 : index
    %c0_355 = arith.constant 0 : index
    %718 = vector.load %arg21[%c1_353, %c0_354, %c0_355] : memref<2x16x128xf32, #tpu.memory_space<vmem>>, vector<1x16x128xf32>
    %719 = vector.shape_cast %718 : vector<1x16x128xf32> to vector<16x128xf32>
    %720 = vector.shape_cast %712 : vector<16x128xf32> to vector<1x16x128xf32>
    tpu.vector_store %arg21[%c1_353, %c0_354, %c0_355], %720 {strides = array<i32>} : memref<2x16x128xf32, #tpu.memory_space<vmem>>, vector<1x16x128xf32>,
    %721 = arith.truncf %714 : vector<16x128xf32> to vector<16x128xbf16>
    %722 = arith.index_cast %c6_i32_335 : i32 to index
    %c0_356 = arith.constant 0 : index
    %c0_357 = arith.constant 0 : index
    %723 = vector.load %arg18[%722, %c0_356, %c0_357] : memref<8x16x128xbf16, #tpu.memory_space<vmem>>, vector<1x16x128xbf16>
    %724 = vector.shape_cast %723 : vector<1x16x128xbf16> to vector<16x128xbf16>
    %725 = vector.shape_cast %721 : vector<16x128xbf16> to vector<1x16x128xbf16>
    tpu.vector_store %arg18[%722, %c0_356, %c0_357], %725 {strides = array<i32>} : memref<8x16x128xbf16, #tpu.memory_space<vmem>>, vector<1x16x128xbf16>,
    %c7_i32_358 = arith.constant 7 : i32
    %c1_359 = arith.constant 1 : index
    %c0_360 = arith.constant 0 : index
    %c0_361 = arith.constant 0 : index
    %726 = vector.load %arg20[%c1_359, %c0_360, %c0_361] : memref<2x16x128xf32, #tpu.memory_space<vmem>>, vector<1x16x128xf32>
    %727 = vector.shape_cast %726 : vector<1x16x128xf32> to vector<16x128xf32>
    %c1_362 = arith.constant 1 : index
    %c0_363 = arith.constant 0 : index
    %c0_364 = arith.constant 0 : index
    %728 = vector.load %arg21[%c1_362, %c0_363, %c0_364] : memref<2x16x128xf32, #tpu.memory_space<vmem>>, vector<1x16x128xf32>
    %729 = vector.shape_cast %728 : vector<1x16x128xf32> to vector<16x128xf32>
    %730 = arith.index_cast %c7_i32_358 : i32 to index
    %c0_365 = arith.constant 0 : index
    %c0_366 = arith.constant 0 : index
    %731 = vector.load %arg19[%730, %c0_365, %c0_366] : memref<8x16x512xf32, #tpu.memory_space<vmem>>, vector<1x16x512xf32>
    %732 = vector.shape_cast %731 : vector<1x16x512xf32> to vector<16x512xf32>
    %733 = arith.truncf %727 : vector<16x128xf32> to vector<16x128xbf16>
    %c0_367 = arith.constant 0 : index
    %c0_368 = arith.constant 0 : index
    %734 = vector.load %arg6[%c0_367, %c0_368] : memref<128x512xbf16, #tpu.memory_space<vmem>>, vector<128x512xbf16>
    %cst_369 = arith.constant dense<0.000000e+00> : vector<16x512xf32>
    %735 = tpu.matmul %733, %734, %cst_369 {dimension_numbers = #tpu.dot_dimension_numbers<[1], [0], [0], [1], [0, 0, 1, 1], [], []>} : vector<16x128xbf16>, vector<128x512xbf16>, vector<16x512xf32> -> vector<16x512xf32>
    %736 = arith.addf %732, %735 : vector<16x512xf32>
    %737 = vector.extract_strided_slice %736 {offsets = [0, 0], sizes = [16, 128], strides = [1, 1]} : vector<16x512xf32> to vector<16x128xf32>
    %738 = arith.negf %737 : vector<16x128xf32>
    %739 = math.exp %738 : vector<16x128xf32>
    %cst_370 = arith.constant 1.000000e+00 : f32
    %740 = vector.broadcast %cst_370 : f32 to vector<16x128xf32>
    %741 = arith.addf %740, %739 : vector<16x128xf32>
    %742 = arith.divf %740, %741 : vector<16x128xf32>
    %743 = vector.extract_strided_slice %736 {offsets = [0, 128], sizes = [16, 128], strides = [1, 1]} : vector<16x512xf32> to vector<16x128xf32>
    %744 = arith.negf %743 : vector<16x128xf32>
    %745 = math.exp %744 : vector<16x128xf32>
    %cst_371 = arith.constant 1.000000e+00 : f32
    %746 = vector.broadcast %cst_371 : f32 to vector<16x128xf32>
    %747 = arith.addf %746, %745 : vector<16x128xf32>
    %748 = arith.divf %746, %747 : vector<16x128xf32>
    %749 = vector.extract_strided_slice %736 {offsets = [0, 256], sizes = [16, 128], strides = [1, 1]} : vector<16x512xf32> to vector<16x128xf32>
    %750 = math.tanh %749 : vector<16x128xf32>
    %751 = vector.extract_strided_slice %736 {offsets = [0, 384], sizes = [16, 128], strides = [1, 1]} : vector<16x512xf32> to vector<16x128xf32>
    %752 = arith.negf %751 : vector<16x128xf32>
    %753 = math.exp %752 : vector<16x128xf32>
    %cst_372 = arith.constant 1.000000e+00 : f32
    %754 = vector.broadcast %cst_372 : f32 to vector<16x128xf32>
    %755 = arith.addf %754, %753 : vector<16x128xf32>
    %756 = arith.divf %754, %755 : vector<16x128xf32>
    %757 = arith.mulf %748, %729 : vector<16x128xf32>
    %758 = arith.mulf %742, %750 : vector<16x128xf32>
    %759 = arith.addf %757, %758 : vector<16x128xf32>
    %760 = math.tanh %759 : vector<16x128xf32>
    %761 = arith.mulf %756, %760 : vector<16x128xf32>
    %c1_373 = arith.constant 1 : index
    %c0_374 = arith.constant 0 : index
    %c0_375 = arith.constant 0 : index
    %762 = vector.load %arg20[%c1_373, %c0_374, %c0_375] : memref<2x16x128xf32, #tpu.memory_space<vmem>>, vector<1x16x128xf32>
    %763 = vector.shape_cast %762 : vector<1x16x128xf32> to vector<16x128xf32>
    %764 = vector.shape_cast %761 : vector<16x128xf32> to vector<1x16x128xf32>
    tpu.vector_store %arg20[%c1_373, %c0_374, %c0_375], %764 {strides = array<i32>} : memref<2x16x128xf32, #tpu.memory_space<vmem>>, vector<1x16x128xf32>,
    %c1_376 = arith.constant 1 : index
    %c0_377 = arith.constant 0 : index
    %c0_378 = arith.constant 0 : index
    %765 = vector.load %arg21[%c1_376, %c0_377, %c0_378] : memref<2x16x128xf32, #tpu.memory_space<vmem>>, vector<1x16x128xf32>
    %766 = vector.shape_cast %765 : vector<1x16x128xf32> to vector<16x128xf32>
    %767 = vector.shape_cast %759 : vector<16x128xf32> to vector<1x16x128xf32>
    tpu.vector_store %arg21[%c1_376, %c0_377, %c0_378], %767 {strides = array<i32>} : memref<2x16x128xf32, #tpu.memory_space<vmem>>, vector<1x16x128xf32>,
    %768 = arith.truncf %761 : vector<16x128xf32> to vector<16x128xbf16>
    %769 = arith.index_cast %c7_i32_358 : i32 to index
    %c0_379 = arith.constant 0 : index
    %c0_380 = arith.constant 0 : index
    %770 = vector.load %arg18[%769, %c0_379, %c0_380] : memref<8x16x128xbf16, #tpu.memory_space<vmem>>, vector<1x16x128xbf16>
    %771 = vector.shape_cast %770 : vector<1x16x128xbf16> to vector<16x128xbf16>
    %772 = vector.shape_cast %768 : vector<16x128xbf16> to vector<1x16x128xbf16>
    tpu.vector_store %arg18[%769, %c0_379, %c0_380], %772 {strides = array<i32>} : memref<8x16x128xbf16, #tpu.memory_space<vmem>>, vector<1x16x128xbf16>,
    %c8_i32_381 = arith.constant 8 : i32
    %c0_382 = arith.constant 0 : index
    %c0_383 = arith.constant 0 : index
    %c0_384 = arith.constant 0 : index
    %773 = vector.load %arg18[%c0_382, %c0_383, %c0_384] : memref<8x16x128xbf16, #tpu.memory_space<vmem>>, vector<8x16x128xbf16>
    %774 = vector.shape_cast %773 : vector<8x16x128xbf16> to vector<128x128xbf16>
    %c0_385 = arith.constant 0 : index
    %c0_386 = arith.constant 0 : index
    %775 = vector.load %arg11[%c0_385, %c0_386] : memref<128x128xbf16, #tpu.memory_space<vmem>>, vector<128x128xbf16>
    %cst_387 = arith.constant dense<0.000000e+00> : vector<128x128xf32>
    %776 = tpu.matmul %774, %775, %cst_387 {dimension_numbers = #tpu.dot_dimension_numbers<[1], [0], [0], [1], [0, 0, 1, 1], [], []>} : vector<128x128xbf16>, vector<128x128xbf16>, vector<128x128xf32> -> vector<128x128xf32>
    %c0_388 = arith.constant 0 : index
    %c0_389 = arith.constant 0 : index
    %777 = vector.load %arg12[%c0_388, %c0_389] : memref<1x128xf32, #tpu.memory_space<vmem>>, vector<1x128xf32>
    %778 = vector.broadcast %777 : vector<1x128xf32> to vector<128x128xf32>
    %779 = arith.addf %776, %778 : vector<128x128xf32>
    %cst_390 = arith.constant 0.000000e+00 : f32
    %780 = vector.broadcast %cst_390 : f32 to vector<128x128xf32>
    %781 = arith.maximumf %779, %780 : vector<128x128xf32>
    %782 = arith.truncf %781 : vector<128x128xf32> to vector<128x128xbf16>
    %c0_391 = arith.constant 0 : index
    %c0_392 = arith.constant 0 : index
    %783 = vector.load %arg13[%c0_391, %c0_392] : memref<128x128xbf16, #tpu.memory_space<vmem>>, vector<128x128xbf16>
    %cst_393 = arith.constant dense<0.000000e+00> : vector<128x128xf32>
    %784 = tpu.matmul %782, %783, %cst_393 {dimension_numbers = #tpu.dot_dimension_numbers<[1], [0], [0], [1], [0, 0, 1, 1], [], []>} : vector<128x128xbf16>, vector<128x128xbf16>, vector<128x128xf32> -> vector<128x128xf32>
    %c0_394 = arith.constant 0 : index
    %c0_395 = arith.constant 0 : index
    %785 = vector.load %arg14[%c0_394, %c0_395] : memref<1x128xf32, #tpu.memory_space<vmem>>, vector<1x128xf32>
    %786 = vector.broadcast %785 : vector<1x128xf32> to vector<128x128xf32>
    %787 = arith.addf %784, %786 : vector<128x128xf32>
    %788 = vector.shape_cast %787 : vector<128x128xf32> to vector<8x16x128xf32>
    %c0_396 = arith.constant 0 : index
    %c0_397 = arith.constant 0 : index
    %c0_398 = arith.constant 0 : index
    %789 = vector.load %arg15[%c0_396, %c0_397, %c0_398] : memref<8x16x128xf32, #tpu.memory_space<vmem>>, vector<8x16x128xf32>
    tpu.vector_store %arg15[%c0_396, %c0_397, %c0_398], %788 {strides = array<i32>} : memref<8x16x128xf32, #tpu.memory_space<vmem>>, vector<8x16x128xf32>,
    %c0_i32_399 = arith.constant 0 : i32
    %790 = arith.cmpi eq, %arg1, %c0_i32_399 : i32
    %791 = arith.extui %790 : i1 to i32
    %c0_i32_400 = arith.constant 0 : i32
    %792 = arith.cmpi ne, %791, %c0_i32_400 : i32
    scf.if %792 {
      %c0_401 = arith.constant 0 : index
      %c0_402 = arith.constant 0 : index
      %c0_403 = arith.constant 0 : index
      %793 = vector.load %arg20[%c0_401, %c0_402, %c0_403] : memref<2x16x128xf32, #tpu.memory_space<vmem>>, vector<2x16x128xf32>
      %c0_404 = arith.constant 0 : index
      %c0_405 = arith.constant 0 : index
      %c0_406 = arith.constant 0 : index
      %794 = vector.load %arg16[%c0_404, %c0_405, %c0_406] : memref<2x16x128xf32, #tpu.memory_space<vmem>>, vector<2x16x128xf32>
      tpu.vector_store %arg16[%c0_404, %c0_405, %c0_406], %793 {strides = array<i32>} : memref<2x16x128xf32, #tpu.memory_space<vmem>>, vector<2x16x128xf32>,
      %c0_407 = arith.constant 0 : index
      %c0_408 = arith.constant 0 : index
      %c0_409 = arith.constant 0 : index
      %795 = vector.load %arg21[%c0_407, %c0_408, %c0_409] : memref<2x16x128xf32, #tpu.memory_space<vmem>>, vector<2x16x128xf32>
      %c0_410 = arith.constant 0 : index
      %c0_411 = arith.constant 0 : index
      %c0_412 = arith.constant 0 : index
      %796 = vector.load %arg17[%c0_410, %c0_411, %c0_412] : memref<2x16x128xf32, #tpu.memory_space<vmem>>, vector<2x16x128xf32>
      tpu.vector_store %arg17[%c0_410, %c0_411, %c0_412], %795 {strides = array<i32>} : memref<2x16x128xf32, #tpu.memory_space<vmem>>, vector<2x16x128xf32>,
    } else {
    }
    return
  }
  func.func @transform_0(%arg0: i32, %arg1: i32) -> (i32, i32, i32) {
    %c0_i32 = arith.constant 0 : i32
    %c0_i32_0 = arith.constant 0 : i32
    return %arg1, %arg0, %c0_i32 : i32, i32, i32
  }
  func.func @transform_1(%arg0: i32, %arg1: i32) -> (i32, i32) {
    %c0_i32 = arith.constant 0 : i32
    %c0_i32_0 = arith.constant 0 : i32
    %c0_i32_1 = arith.constant 0 : i32
    return %c0_i32, %c0_i32_0 : i32, i32
  }
  func.func @transform_2(%arg0: i32, %arg1: i32) -> (i32, i32) {
    %c0_i32 = arith.constant 0 : i32
    %c0_i32_0 = arith.constant 0 : i32
    %c0_i32_1 = arith.constant 0 : i32
    return %c0_i32, %c0_i32_0 : i32, i32
  }
  func.func @transform_3(%arg0: i32, %arg1: i32) -> (i32, i32) {
    %c0_i32 = arith.constant 0 : i32
    %c0_i32_0 = arith.constant 0 : i32
    %c0_i32_1 = arith.constant 0 : i32
    return %c0_i32, %c0_i32_0 : i32, i32
  }
  func.func @transform_4(%arg0: i32, %arg1: i32) -> (i32, i32) {
    %c0_i32 = arith.constant 0 : i32
    %c0_i32_0 = arith.constant 0 : i32
    %c0_i32_1 = arith.constant 0 : i32
    return %c0_i32, %c0_i32_0 : i32, i32
  }
  func.func @transform_5(%arg0: i32, %arg1: i32) -> (i32, i32) {
    %c0_i32 = arith.constant 0 : i32
    %c0_i32_0 = arith.constant 0 : i32
    %c0_i32_1 = arith.constant 0 : i32
    return %c0_i32, %c0_i32_0 : i32, i32
  }
  func.func @transform_6(%arg0: i32, %arg1: i32) -> (i32, i32) {
    %c0_i32 = arith.constant 0 : i32
    %c0_i32_0 = arith.constant 0 : i32
    %c0_i32_1 = arith.constant 0 : i32
    return %c0_i32, %c0_i32_0 : i32, i32
  }
  func.func @transform_7(%arg0: i32, %arg1: i32) -> (i32, i32, i32) {
    %c0_i32 = arith.constant 0 : i32
    %c0_i32_0 = arith.constant 0 : i32
    %c0_i32_1 = arith.constant 0 : i32
    return %c0_i32, %arg0, %c0_i32_0 : i32, i32, i32
  }
  func.func @transform_8(%arg0: i32, %arg1: i32) -> (i32, i32, i32) {
    %c0_i32 = arith.constant 0 : i32
    %c0_i32_0 = arith.constant 0 : i32
    %c0_i32_1 = arith.constant 0 : i32
    return %c0_i32, %arg0, %c0_i32_0 : i32, i32, i32
  }
  func.func @transform_9(%arg0: i32, %arg1: i32) -> (i32, i32) {
    %c0_i32 = arith.constant 0 : i32
    %c0_i32_0 = arith.constant 0 : i32
    %c0_i32_1 = arith.constant 0 : i32
    return %c0_i32, %c0_i32_0 : i32, i32
  }
  func.func @transform_10(%arg0: i32, %arg1: i32) -> (i32, i32) {
    %c0_i32 = arith.constant 0 : i32
    %c0_i32_0 = arith.constant 0 : i32
    %c0_i32_1 = arith.constant 0 : i32
    return %c0_i32, %c0_i32_0 : i32, i32
  }
  func.func @transform_11(%arg0: i32, %arg1: i32) -> (i32, i32) {
    %c0_i32 = arith.constant 0 : i32
    %c0_i32_0 = arith.constant 0 : i32
    %c0_i32_1 = arith.constant 0 : i32
    return %c0_i32, %c0_i32_0 : i32, i32
  }
  func.func @transform_12(%arg0: i32, %arg1: i32) -> (i32, i32) {
    %c0_i32 = arith.constant 0 : i32
    %c0_i32_0 = arith.constant 0 : i32
    %c0_i32_1 = arith.constant 0 : i32
    return %c0_i32, %c0_i32_0 : i32, i32
  }
  func.func @transform_13(%arg0: i32, %arg1: i32) -> (i32, i32, i32) {
    %c0_i32 = arith.constant 0 : i32
    %c0_i32_0 = arith.constant 0 : i32
    return %arg1, %arg0, %c0_i32 : i32, i32, i32
  }
  func.func @transform_14(%arg0: i32, %arg1: i32) -> (i32, i32, i32) {
    %c0_i32 = arith.constant 0 : i32
    %c0_i32_0 = arith.constant 0 : i32
    %c0_i32_1 = arith.constant 0 : i32
    return %c0_i32, %arg0, %c0_i32_0 : i32, i32, i32
  }
  func.func @transform_15(%arg0: i32, %arg1: i32) -> (i32, i32, i32) {
    %c0_i32 = arith.constant 0 : i32
    %c0_i32_0 = arith.constant 0 : i32
    %c0_i32_1 = arith.constant 0 : i32
    return %c0_i32, %arg0, %c0_i32_0 : i32, i32, i32
  }
}

</mosaic_0001>

<llo_original>
// kernel: char_lstm_forward.1
$region0: #{char_lstm_forward.1}
  #allocation0 [shape = 'u32[]', space=smem, size = 0x4, offset = 0x4, fixed_abs, tag = 'smem constant byte address 0x4 - core index']
  #allocation1 [shape = 'u32[144,128]{1,0:T(1,128)}', space=vmem, size = 0x12000, scoped, tag = 'internal scratch']
  #allocation2 [shape = 'bf16[8,16,128]{2,1,0:T(16,128)(2,1)}', space=vmem, size = 0x8000, scoped, tag = 'scratch operand']
  #allocation3 [shape = 'f32[8,16,512]{2,1,0:T(8,128)}', space=vmem, size = 0x40000, scoped, tag = 'scratch operand']
  #allocation4 [shape = 'f32[2,16,128]{2,1,0:T(8,128)}', space=vmem, size = 0x4000, scoped, tag = 'scratch operand']
  #allocation5 [shape = 'f32[2,16,128]{2,1,0:T(8,128)}', space=vmem, size = 0x4000, scoped, tag = 'scratch operand']
  %s0 = inlined_call_operand.vmem [shape: bf16[8,16,128], index: 0, kind: input, shape index: {}]
  %s1 = inlined_call_operand.vmem [shape: bf16[128,512], index: 1, kind: input, shape index: {}]
  %s2 = inlined_call_operand.vmem [shape: bf16[128,512], index: 2, kind: input, shape index: {}]
  %s3 = inlined_call_operand.vmem [shape: bf16[128,512], index: 3, kind: input, shape index: {}]
  %s4 = inlined_call_operand.vmem [shape: bf16[128,512], index: 4, kind: input, shape index: {}]
  %s5 = inlined_call_operand.vmem [shape: f32[1,512], index: 5, kind: input, shape index: {}]
  %s6 = inlined_call_operand.vmem [shape: f32[1,512], index: 6, kind: input, shape index: {}]
  %s7 = inlined_call_operand.vmem [shape: f32[2,16,128], index: 7, kind: input, shape index: {}]
  %s8 = inlined_call_operand.vmem [shape: f32[2,16,128], index: 8, kind: input, shape index: {}]
  %s9 = inlined_call_operand.vmem [shape: bf16[128,128], index: 9, kind: input, shape index: {}]
  %s10 = inlined_call_operand.vmem [shape: f32[1,128], index: 10, kind: input, shape index: {}]
  %s11 = inlined_call_operand.vmem [shape: bf16[128,128], index: 11, kind: input, shape index: {}]
  %s12 = inlined_call_operand.vmem [shape: f32[1,128], index: 12, kind: input, shape index: {}]
  %s13 = inlined_call_operand.vmem [shape: f32[8,16,128], index: 13, kind: output, shape index: {0}]
  %s14 = inlined_call_operand.vmem [shape: f32[2,16,128], index: 14, kind: output, shape index: {1}]
  %s15 = inlined_call_operand.vmem [shape: f32[2,16,128], index: 15, kind: output, shape index: {2}]
  %16 = xla_tuple %s13, %s14, %s15
  %s17 = sld [smem:[#allocation0]]
  $region86: #{char_lstm_forward.1} parent=0
    _
  %s19 = ssub.s32 1, %s17
  %s20 = scalar_select 0, %s19, %s17
  // Predicated region
  $region2: #{char_lstm_forward.1} parent=0 // pred_check
    _
  $region3: #{char_lstm_forward.1} parent=0 // pred_check_branch
    %22 = sbr.rel (0) target = $region5
  $region4: #{char_lstm_forward.1} parent=0 // pred_region
    _
  $region5: #{char_lstm_forward.1} parent=0 // pred_fallthru
    _
  // Predicated region
  $region6: #{char_lstm_forward.1} parent=0 // pred_check
    _
  $region7: #{char_lstm_forward.1} parent=0 // pred_check_branch
    %24 = sbr.rel (0) target = $region9
  $region8: #{char_lstm_forward.1} parent=0 // pred_region
    _
  $region9: #{char_lstm_forward.1} parent=0 // pred_fallthru
    _
  // Predicated region
  $region10: #{char_lstm_forward.1} parent=0 // pred_check
    _
  $region11: #{char_lstm_forward.1} parent=0 // pred_check_branch
    %26 = sbr.rel (0) target = $region13
  $region12: #{char_lstm_forward.1} parent=0 // pred_region
    _
  $region13: #{char_lstm_forward.1} parent=0 // pred_fallthru
    _
  // Predicated region
  $region14: #{char_lstm_forward.1} parent=0 // pred_check
    _
  $region15: #{char_lstm_forward.1} parent=0 // pred_check_branch
    %28 = sbr.rel (0) target = $region17
  $region16: #{char_lstm_forward.1} parent=0 // pred_region
    _
  $region17: #{char_lstm_forward.1} parent=0 // pred_fallthru
    _
  // Predicated region
  $region18: #{char_lstm_forward.1} parent=0 // pred_check
    _
  $region19: #{char_lstm_forward.1} parent=0 // pred_check_branch
    %30 = sbr.rel (0) target = $region21
  $region20: #{char_lstm_forward.1} parent=0 // pred_region
    _
  $region21: #{char_lstm_forward.1} parent=0 // pred_fallthru
    _
  // Predicated region
  $region22: #{char_lstm_forward.1} parent=0 // pred_check
    _
  $region23: #{char_lstm_forward.1} parent=0 // pred_check_branch
    %32 = sbr.rel (0) target = $region25
  $region24: #{char_lstm_forward.1} parent=0 // pred_region
    _
  $region25: #{char_lstm_forward.1} parent=0 // pred_fallthru
    _
  // Predicated region
  $region26: #{char_lstm_forward.1} parent=0 // pred_check
    _
  $region27: #{char_lstm_forward.1} parent=0 // pred_check_branch
    %34 = sbr.rel (0) target = $region29
  $region28: #{char_lstm_forward.1} parent=0 // pred_region
    _
  $region29: #{char_lstm_forward.1} parent=0 // pred_fallthru
    _
  // Predicated region
  $region30: #{char_lstm_forward.1} parent=0 // pred_check
    _
  $region31: #{char_lstm_forward.1} parent=0 // pred_check_branch
    %36 = sbr.rel (0) target = $region33
  $region32: #{char_lstm_forward.1} parent=0 // pred_region
    _
  $region33: #{char_lstm_forward.1} parent=0 // pred_fallthru
    _
  // Predicated region
  $region34: #{char_lstm_forward.1} parent=0 // pred_check
    _
  $region35: #{char_lstm_forward.1} parent=0 // pred_check_branch
    %38 = sbr.rel (0) target = $region37
  $region36: #{char_lstm_forward.1} parent=0 // pred_region
    _
  $region37: #{char_lstm_forward.1} parent=0 // pred_fallthru
    _
  // Predicated region
  $region38: #{char_lstm_forward.1} parent=0 // pred_check
    _
  $region39: #{char_lstm_forward.1} parent=0 // pred_check_branch
    %40 = sbr.rel (0) target = $region41
  $region40: #{char_lstm_forward.1} parent=0 // pred_region
    _
  $region41: #{char_lstm_forward.1} parent=0 // pred_fallthru
    _
  // Predicated region
  $region42: #{char_lstm_forward.1} parent=0 // pred_check
    _
  $region43: #{char_lstm_forward.1} parent=0 // pred_check_branch
    %42 = sbr.rel (0) target = $region45
  $region44: #{char_lstm_forward.1} parent=0 // pred_region
    _
  $region45: #{char_lstm_forward.1} parent=0 // pred_fallthru
    _
  // Predicated region
  $region46: #{char_lstm_forward.1} parent=0 // pred_check
    _
  $region47: #{char_lstm_forward.1} parent=0 // pred_check_branch
    %44 = sbr.rel (0) target = $region49
  $region48: #{char_lstm_forward.1} parent=0 // pred_region
    _
  $region49: #{char_lstm_forward.1} parent=0 // pred_fallthru
    _
  // Predicated region
  $region50: #{char_lstm_forward.1} parent=0 // pred_check
    _
  $region51: #{char_lstm_forward.1} parent=0 // pred_check_branch
    %46 = sbr.rel (0) target = $region53
  $region52: #{char_lstm_forward.1} parent=0 // pred_region
    _
  $region53: #{char_lstm_forward.1} parent=0 // pred_fallthru
    _
  %p48 = scmp.eq.s32.totalorder 0, 0
  // Predicated region
  $region54: #{char_lstm_forward.1} parent=0 // pred_check
    %p49 = pneg %p48
  $region55: #{char_lstm_forward.1} parent=0 // pred_check_branch
    %51 = sbr.rel (%p49) target = $region57
  $region56: #{char_lstm_forward.1} parent=0 // pred_region
    %v52 = vld [vmem:[%s7] sm:$0xff]
    %v53 = vld [vmem:[%s7 + $0x8] sm:$0xff]
    %v54 = vld [vmem:[%s7 + $0x10] sm:$0xff]
    %v55 = vld [vmem:[%s7 + $0x18] sm:$0xff]
    %56 = vst [vmem:[#allocation4] sm:$0xff] %v52
    %57 = vst [vmem:[#allocation4 + $0x8] sm:$0xff] %v53
    %58 = vst [vmem:[#allocation4 + $0x10] sm:$0xff] %v54
    %59 = vst [vmem:[#allocation4 + $0x18] sm:$0xff] %v55
    %v60 = vld [vmem:[%s8] sm:$0xff]
    %v61 = vld [vmem:[%s8 + $0x8] sm:$0xff]
    %v62 = vld [vmem:[%s8 + $0x10] sm:$0xff]
    %v63 = vld [vmem:[%s8 + $0x18] sm:$0xff]
    %64 = vst [vmem:[#allocation5] sm:$0xff] %v60
    %65 = vst [vmem:[#allocation5 + $0x8] sm:$0xff] %v61
    %66 = vst [vmem:[#allocation5 + $0x10] sm:$0xff] %v62
    %67 = vst [vmem:[#allocation5 + $0x18] sm:$0xff] %v63
  $region57: #{char_lstm_forward.1} parent=0 // pred_fallthru
    _
  %v68 = vld [vmem:[%s0] sm:$0xf]
  %v69 = vld [vmem:[%s0 + $0x4] sm:$0xf]
  %v70 = vld [vmem:[%s0 + $0x8] sm:$0xf]
  %v71 = vld [vmem:[%s0 + $0xc] sm:$0xf]
  %v72 = vld [vmem:[%s0 + $0x10] sm:$0xf]
  %v73 = vld [vmem:[%s0 + $0x14] sm:$0xf]
  %v74 = vld [vmem:[%s0 + $0x18] sm:$0xf]
  %v75 = vld [vmem:[%s0 + $0x1c] sm:$0xf]
  %v76 = vld [vmem:[%s0 + $0x20] sm:$0xf]
  %v77 = vld [vmem:[%s0 + $0x24] sm:$0xf]
  %v78 = vld [vmem:[%s0 + $0x28] sm:$0xf]
  %v79 = vld [vmem:[%s0 + $0x2c] sm:$0xf]
  %v80 = vld [vmem:[%s0 + $0x30] sm:$0xf]
  %v81 = vld [vmem:[%s0 + $0x34] sm:$0xf]
  %v82 = vld [vmem:[%s0 + $0x38] sm:$0xf]
  %v83 = vld [vmem:[%s0 + $0x3c] sm:$0xf]
  %v84 = vld [vmem:[%s1] sm:$0xff]
  %v85 = vld [vmem:[%s1 + $0x8] sm:$0xff]
  %v86 = vld [vmem:[%s1 + $0x10] sm:$0xff]
  %v87 = vld [vmem:[%s1 + $0x18] sm:$0xff]
  %v88 = vld [vmem:[%s1 + $0x20] sm:$0xff]
  %v89 = vld [vmem:[%s1 + $0x28] sm:$0xff]
  %v90 = vld [vmem:[%s1 + $0x30] sm:$0xff]
  %v91 = vld [vmem:[%s1 + $0x38] sm:$0xff]
  %v92 = vld [vmem:[%s1 + $0x40] sm:$0xff]
  %v93 = vld [vmem:[%s1 + $0x48] sm:$0xff]
  %v94 = vld [vmem:[%s1 + $0x50] sm:$0xff]
  %v95 = vld [vmem:[%s1 + $0x58] sm:$0xff]
  %v96 = vld [vmem:[%s1 + $0x60] sm:$0xff]
  %v97 = vld [vmem:[%s1 + $0x68] sm:$0xff]
  %v98 = vld [vmem:[%s1 + $0x70] sm:$0xff]
  %v99 = vld [vmem:[%s1 + $0x78] sm:$0xff]
  %v100 = vld [vmem:[%s1 + $0x80] sm:$0xff]
  %v101 = vld [vmem:[%s1 + $0x88] sm:$0xff]
  %v102 = vld [vmem:[%s1 + $0x90] sm:$0xff]
  %v103 = vld [vmem:[%s1 + $0x98] sm:$0xff]
  %v104 = vld [vmem:[%s1 + $0xa0] sm:$0xff]
  %v105 = vld [vmem:[%s1 + $0xa8] sm:$0xff]
  %v106 = vld [vmem:[%s1 + $0xb0] sm:$0xff]
  %v107 = vld [vmem:[%s1 + $0xb8] sm:$0xff]
  %v108 = vld [vmem:[%s1 + $0xc0] sm:$0xff]
  %v109 = vld [vmem:[%s1 + $0xc8] sm:$0xff]
  %v110 = vld [vmem:[%s1 + $0xd0] sm:$0xff]
  %v111 = vld [vmem:[%s1 + $0xd8] sm:$0xff]
  %v112 = vld [vmem:[%s1 + $0xe0] sm:$0xff]
  %v113 = vld [vmem:[%s1 + $0xe8] sm:$0xff]
  %v114 = vld [vmem:[%s1 + $0xf0] sm:$0xff]
  %v115 = vld [vmem:[%s1 + $0xf8] sm:$0xff]
  %v116 = vld [vmem:[%s5] sm:$0xf]
  %v118 = vlaneseq
  %v119 = vshrl.u32 %v118, 7
  %v120 = vsub.s32 0, %v119
  %v121 = vrot.slane %v116, %v120
  %v122 = vlaneseq
  %v123 = vshrl.u32 %v122, 7
  %v124 = vsub.s32 1, %v123
  %v125 = vrot.slane %v116, %v124
  %v126 = vlaneseq
  %v127 = vshrl.u32 %v126, 7
  %v128 = vsub.s32 2, %v127
  %v129 = vrot.slane %v116, %v128
  %v130 = vlaneseq
  %v131 = vshrl.u32 %v130, 7
  %v132 = vsub.s32 3, %v131
  %v133 = vrot.slane %v116, %v132
  %v154 = vunpack.c.l.b16 %v68
  %v155 = vunpack.c.l.b16 %v69
  %v156 = vunpack.c.l.b16 %v70
  %v157 = vunpack.c.l.b16 %v71
  %v158 = vunpack.c.l.b16 %v72
  %v159 = vunpack.c.l.b16 %v73
  %v160 = vunpack.c.l.b16 %v74
  %v161 = vunpack.c.l.b16 %v75
  %v162 = vunpack.c.l.b16 %v76
  %v163 = vunpack.c.l.b16 %v77
  %v164 = vunpack.c.l.b16 %v78
  %v165 = vunpack.c.l.b16 %v79
  %v166 = vunpack.c.l.b16 %v80
  %v167 = vunpack.c.l.b16 %v81
  %v168 = vunpack.c.l.b16 %v82
  %v169 = vunpack.c.l.b16 %v83
  %v170 = vpack.c.b16 %v155, %v154
  %v171 = vpack.c.b16 %v157, %v156
  %v172 = vpack.c.b16 %v159, %v158
  %v173 = vpack.c.b16 %v161, %v160
  %v174 = vpack.c.b16 %v163, %v162
  %v175 = vpack.c.b16 %v165, %v164
  %v176 = vpack.c.b16 %v167, %v166
  %v177 = vpack.c.b16 %v169, %v168
  %v218 = vunpack.c.l.b16 %v84
  %v219 = vunpack.c.h.b16 %v84
  %v220 = vunpack.c.l.b16 %v85
  %v221 = vunpack.c.h.b16 %v85
  %v222 = vunpack.c.l.b16 %v86
  %v223 = vunpack.c.h.b16 %v86
  %v224 = vunpack.c.l.b16 %v87
  %v225 = vunpack.c.h.b16 %v87
  %v226 = vunpack.c.l.b16 %v88
  %v227 = vunpack.c.h.b16 %v88
  %v228 = vunpack.c.l.b16 %v89
  %v229 = vunpack.c.h.b16 %v89
  %v230 = vunpack.c.l.b16 %v90
  %v231 = vunpack.c.h.b16 %v90
  %v232 = vunpack.c.l.b16 %v91
  %v233 = vunpack.c.h.b16 %v91
  %v234 = vunpack.c.l.b16 %v92
  %v235 = vunpack.c.h.b16 %v92
  %v236 = vunpack.c.l.b16 %v93
  %v237 = vunpack.c.h.b16 %v93
  %v238 = vunpack.c.l.b16 %v94
  %v239 = vunpack.c.h.b16 %v94
  %v240 = vunpack.c.l.b16 %v95
  %v241 = vunpack.c.h.b16 %v95
  %v242 = vunpack.c.l.b16 %v96
  %v243 = vunpack.c.h.b16 %v96
  %v244 = vunpack.c.l.b16 %v97
  %v245 = vunpack.c.h.b16 %v97
  %v246 = vunpack.c.l.b16 %v98
  %v247 = vunpack.c.h.b16 %v98
  %v248 = vunpack.c.l.b16 %v99
  %v249 = vunpack.c.h.b16 %v99
  %v250 = vunpack.c.l.b16 %v100
  %v251 = vunpack.c.h.b16 %v100
  %v252 = vunpack.c.l.b16 %v101
  %v253 = vunpack.c.h.b16 %v101
  %v254 = vunpack.c.l.b16 %v102
  %v255 = vunpack.c.h.b16 %v102
  %v256 = vunpack.c.l.b16 %v103
  %v257 = vunpack.c.h.b16 %v103
  %v258 = vunpack.c.l.b16 %v104
  %v259 = vunpack.c.h.b16 %v104
  %v260 = vunpack.c.l.b16 %v105
  %v261 = vunpack.c.h.b16 %v105
  %v262 = vunpack.c.l.b16 %v106
  %v263 = vunpack.c.h.b16 %v106
  %v264 = vunpack.c.l.b16 %v107
  %v265 = vunpack.c.h.b16 %v107
  %v266 = vunpack.c.l.b16 %v108
  %v267 = vunpack.c.h.b16 %v108
  %v268 = vunpack.c.l.b16 %v109
  %v269 = vunpack.c.h.b16 %v109
  %v270 = vunpack.c.l.b16 %v110
  %v271 = vunpack.c.h.b16 %v110
  %v272 = vunpack.c.l.b16 %v111
  %v273 = vunpack.c.h.b16 %v111
  %v274 = vunpack.c.l.b16 %v112
  %v275 = vunpack.c.h.b16 %v112
  %v276 = vunpack.c.l.b16 %v113
  %v277 = vunpack.c.h.b16 %v113
  %v278 = vunpack.c.l.b16 %v114
  %v279 = vunpack.c.h.b16 %v114
  %v280 = vunpack.c.l.b16 %v115
  %v281 = vunpack.c.h.b16 %v115
  %v282 = vpack.c.b16 %v222, %v218
  %v283 = vpack.c.b16 %v223, %v219
  %v284 = vpack.c.b16 %v224, %v220
  %v285 = vpack.c.b16 %v225, %v221
  %v286 = vpack.c.b16 %v230, %v226
  %v287 = vpack.c.b16 %v231, %v227
  %v288 = vpack.c.b16 %v232, %v228
  %v289 = vpack.c.b16 %v233, %v229
  %v290 = vpack.c.b16 %v238, %v234
  %v291 = vpack.c.b16 %v239, %v235
  %v292 = vpack.c.b16 %v240, %v236
  %v293 = vpack.c.b16 %v241, %v237
  %v294 = vpack.c.b16 %v246, %v242
  %v295 = vpack.c.b16 %v247, %v243
  %v296 = vpack.c.b16 %v248, %v244
  %v297 = vpack.c.b16 %v249, %v245
  %v298 = vpack.c.b16 %v254, %v250
  %v299 = vpack.c.b16 %v255, %v251
  %v300 = vpack.c.b16 %v256, %v252
  %v301 = vpack.c.b16 %v257, %v253
  %v302 = vpack.c.b16 %v262, %v258
  %v303 = vpack.c.b16 %v263, %v259
  %v304 = vpack.c.b16 %v264, %v260
  %v305 = vpack.c.b16 %v265, %v261
  %v306 = vpack.c.b16 %v270, %v266
  %v307 = vpack.c.b16 %v271, %v267
  %v308 = vpack.c.b16 %v272, %v268
  %v309 = vpack.c.b16 %v273, %v269
  %v310 = vpack.c.b16 %v278, %v274
  %v311 = vpack.c.b16 %v279, %v275
  %v312 = vpack.c.b16 %v280, %v276
  %v313 = vpack.c.b16 %v281, %v277
  %346 = vmatprep.subr.bf16.mxu0 %v283
  %347 = vmatpush1.bf16.msra.mxu0 %v282
  %348 = vmatprep.subr.bf16.mxu0 %v287
  %349 = vmatpush1.bf16.msra.mxu0 %v286
  %350 = vmatprep.subr.bf16.mxu0 %v291
  %351 = vmatpush1.bf16.msra.mxu0 %v290
  %352 = vmatprep.subr.bf16.mxu0 %v295
  %353 = vmatpush1.bf16.msra.mxu0 %v294
  %354 = vmatprep.subr.bf16.mxu0 %v299
  %355 = vmatpush1.bf16.msra.mxu0 %v298
  %356 = vmatprep.subr.bf16.mxu0 %v303
  %357 = vmatpush1.bf16.msra.mxu0 %v302
  %358 = vmatprep.subr.bf16.mxu0 %v307
  %359 = vmatpush1.bf16.msra.mxu0 %v306
  %360 = vmatprep.subr.bf16.mxu0 %v311
  %361 = vmatpush1.bf16.msra.mxu0 %v310
  %362 = vmatprep.subr.bf16.mxu0 0
  %363 = vmatpush1.bf16.msra.mxu0 0
  %364 = vmatprep.subr.bf16.mxu0 0
  %365 = vmatpush1.bf16.msra.mxu0 0
  %366 = vmatprep.subr.bf16.mxu0 0
  %367 = vmatpush1.bf16.msra.mxu0 0
  %368 = vmatprep.subr.bf16.mxu0 0
  %369 = vmatpush1.bf16.msra.mxu0 0
  %370 = vmatprep.subr.bf16.mxu0 0
  %371 = vmatpush1.bf16.msra.mxu0 0
  %372 = vmatprep.subr.bf16.mxu0 0
  %373 = vmatpush1.bf16.msra.mxu0 0
  %374 = vmatprep.subr.bf16.mxu0 0
  %375 = vmatpush1.bf16.msra.mxu0 0
  %376 = vmatprep.subr.bf16.mxu0 0
  %377 = vmatpush1.bf16.msra.mxu0 0
  %378 = vmatprep.mubr.bf16.mxu0 0
  %379 = vmatmul.mubr.bf16.gmra.mrb[0].mxu0 %v170
  %v380 = vpop.f32.mrb[0].mxu0
  %v381 = vadd.f32 %v121, %v380
  %v382 = vpop.f32.mrb[0].mxu0
  %v383 = vadd.f32 %v125, %v382
  %v384 = vpop.f32.mrb[0].mxu0
  %v385 = vadd.f32 %v121, %v384
  %v386 = vpop.f32.mrb[0].mxu0
  %v387 = vadd.f32 %v125, %v386
  %388 = vmatprep.mubr.bf16.mxu0 0
  %389 = vmatmul.mubr.bf16.gmra.mrb[0].mxu0 %v171
  %v390 = vpop.f32.mrb[0].mxu0
  %v391 = vadd.f32 %v121, %v390
  %v392 = vpop.f32.mrb[0].mxu0
  %v393 = vadd.f32 %v125, %v392
  %v394 = vpop.f32.mrb[0].mxu0
  %v395 = vadd.f32 %v121, %v394
  %v396 = vpop.f32.mrb[0].mxu0
  %v397 = vadd.f32 %v125, %v396
  %398 = vmatprep.mubr.bf16.mxu0 0
  %399 = vmatmul.mubr.bf16.gmra.mrb[0].mxu0 %v172
  %v400 = vpop.f32.mrb[0].mxu0
  %v401 = vadd.f32 %v121, %v400
  %v402 = vpop.f32.mrb[0].mxu0
  %v403 = vadd.f32 %v125, %v402
  %v404 = vpop.f32.mrb[0].mxu0
  %v405 = vadd.f32 %v121, %v404
  %v406 = vpop.f32.mrb[0].mxu0
  %v407 = vadd.f32 %v125, %v406
  %408 = vmatprep.mubr.bf16.mxu0 0
  %409 = vmatmul.mubr.bf16.gmra.mrb[0].mxu0 %v173
  %v410 = vpop.f32.mrb[0].mxu0
  %v411 = vadd.f32 %v121, %v410
  %v412 = vpop.f32.mrb[0].mxu0
  %v413 = vadd.f32 %v125, %v412
  %v414 = vpop.f32.mrb[0].mxu0
  %v415 = vadd.f32 %v121, %v414
  %v416 = vpop.f32.mrb[0].mxu0
  %v417 = vadd.f32 %v125, %v416
  %418 = vmatprep.mubr.bf16.mxu0 0
  %419 = vmatmul.mubr.bf16.gmra.mrb[0].mxu0 %v174
  %v420 = vpop.f32.mrb[0].mxu0
  %v421 = vadd.f32 %v121, %v420
  %v422 = vpop.f32.mrb[0].mxu0
  %v423 = vadd.f32 %v125, %v422
  %v424 = vpop.f32.mrb[0].mxu0
  %v425 = vadd.f32 %v121, %v424
  %v426 = vpop.f32.mrb[0].mxu0
  %v427 = vadd.f32 %v125, %v426
  %428 = vmatprep.mubr.bf16.mxu0 0
  %429 = vmatmul.mubr.bf16.gmra.mrb[0].mxu0 %v175
  %v430 = vpop.f32.mrb[0].mxu0
  %v431 = vadd.f32 %v121, %v430
  %v432 = vpop.f32.mrb[0].mxu0
  %v433 = vadd.f32 %v125, %v432
  %v434 = vpop.f32.mrb[0].mxu0
  %v435 = vadd.f32 %v121, %v434
  %v436 = vpop.f32.mrb[0].mxu0
  %v437 = vadd.f32 %v125, %v436
  %438 = vmatprep.mubr.bf16.mxu0 0
  %439 = vmatmul.mubr.bf16.gmra.mrb[0].mxu0 %v176
  %v440 = vpop.f32.mrb[0].mxu0
  %v441 = vadd.f32 %v121, %v440
  %v442 = vpop.f32.mrb[0].mxu0
  %v443 = vadd.f32 %v125, %v442
  %v444 = vpop.f32.mrb[0].mxu0
  %v445 = vadd.f32 %v121, %v444
  %v446 = vpop.f32.mrb[0].mxu0
  %v447 = vadd.f32 %v125, %v446
  %448 = vmatprep.mubr.bf16.mxu0 0
  %449 = vmatmul.mubr.bf16.gmra.mrb[0].mxu0 %v177
  %v450 = vpop.f32.mrb[0].mxu0
  %v451 = vadd.f32 %v121, %v450
  %v452 = vpop.f32.mrb[0].mxu0
  %v453 = vadd.f32 %v125, %v452
  %v454 = vpop.f32.mrb[0].mxu0
  %v455 = vadd.f32 %v121, %v454
  %v456 = vpop.f32.mrb[0].mxu0
  %v457 = vadd.f32 %v125, %v456
  %458 = vdwg.mxu0
  %459 = vmatprep.subr.bf16.mxu0 %v285
  %460 = vmatpush1.bf16.msra.mxu0 %v284
  %461 = vmatprep.subr.bf16.mxu0 %v289
  %462 = vmatpush1.bf16.msra.mxu0 %v288
  %463 = vmatprep.subr.bf16.mxu0 %v293
  %464 = vmatpush1.bf16.msra.mxu0 %v292
  %465 = vmatprep.subr.bf16.mxu0 %v297
  %466 = vmatpush1.bf16.msra.mxu0 %v296
  %467 = vmatprep.subr.bf16.mxu0 %v301
  %468 = vmatpush1.bf16.msra.mxu0 %v300
  %469 = vmatprep.subr.bf16.mxu0 %v305
  %470 = vmatpush1.bf16.msra.mxu0 %v304
  %471 = vmatprep.subr.bf16.mxu0 %v309
  %472 = vmatpush1.bf16.msra.mxu0 %v308
  %473 = vmatprep.subr.bf16.mxu0 %v313
  %474 = vmatpush1.bf16.msra.mxu0 %v312
  %475 = vmatprep.subr.bf16.mxu0 0
  %476 = vmatpush1.bf16.msra.mxu0 0
  %477 = vmatprep.subr.bf16.mxu0 0
  %478 = vmatpush1.bf16.msra.mxu0 0
  %479 = vmatprep.subr.bf16.mxu0 0
  %480 = vmatpush1.bf16.msra.mxu0 0
  %481 = vmatprep.subr.bf16.mxu0 0
  %482 = vmatpush1.bf16.msra.mxu0 0
  %483 = vmatprep.subr.bf16.mxu0 0
  %484 = vmatpush1.bf16.msra.mxu0 0
  %485 = vmatprep.subr.bf16.mxu0 0
  %486 = vmatpush1.bf16.msra.mxu0 0
  %487 = vmatprep.subr.bf16.mxu0 0
  %488 = vmatpush1.bf16.msra.mxu0 0
  %489 = vmatprep.subr.bf16.mxu0 0
  %490 = vmatpush1.bf16.msra.mxu0 0
  %491 = vmatprep.mubr.bf16.mxu0 0
  %492 = vmatmul.mubr.bf16.gmra.mrb[0].mxu0 %v170
  %v493 = vpop.f32.mrb[0].mxu0
  %v494 = vadd.f32 %v129, %v493
  %v495 = vpop.f32.mrb[0].mxu0
  %v496 = vadd.f32 %v133, %v495
  %v497 = vpop.f32.mrb[0].mxu0
  %v498 = vadd.f32 %v129, %v497
  %v499 = vpop.f32.mrb[0].mxu0
  %v500 = vadd.f32 %v133, %v499
  %501 = vmatprep.mubr.bf16.mxu0 0
  %502 = vmatmul.mubr.bf16.gmra.mrb[0].mxu0 %v171
  %v503 = vpop.f32.mrb[0].mxu0
  %v504 = vadd.f32 %v129, %v503
  %v505 = vpop.f32.mrb[0].mxu0
  %v506 = vadd.f32 %v133, %v505
  %v507 = vpop.f32.mrb[0].mxu0
  %v508 = vadd.f32 %v129, %v507
  %v509 = vpop.f32.mrb[0].mxu0
  %v510 = vadd.f32 %v133, %v509
  %511 = vmatprep.mubr.bf16.mxu0 0
  %512 = vmatmul.mubr.bf16.gmra.mrb[0].mxu0 %v172
  %v513 = vpop.f32.mrb[0].mxu0
  %v514 = vadd.f32 %v129, %v513
  %v515 = vpop.f32.mrb[0].mxu0
  %v516 = vadd.f32 %v133, %v515
  %v517 = vpop.f32.mrb[0].mxu0
  %v518 = vadd.f32 %v129, %v517
  %v519 = vpop.f32.mrb[0].mxu0
  %v520 = vadd.f32 %v133, %v519
  %521 = vmatprep.mubr.bf16.mxu0 0
  %522 = vmatmul.mubr.bf16.gmra.mrb[0].mxu0 %v173
  %v523 = vpop.f32.mrb[0].mxu0
  %v524 = vadd.f32 %v129, %v523
  %v525 = vpop.f32.mrb[0].mxu0
  %v526 = vadd.f32 %v133, %v525
  %v527 = vpop.f32.mrb[0].mxu0
  %v528 = vadd.f32 %v129, %v527
  %v529 = vpop.f32.mrb[0].mxu0
  %v530 = vadd.f32 %v133, %v529
  %531 = vmatprep.mubr.bf16.mxu0 0
  %532 = vmatmul.mubr.bf16.gmra.mrb[0].mxu0 %v174
  %v533 = vpop.f32.mrb[0].mxu0
  %v534 = vadd.f32 %v129, %v533
  %v535 = vpop.f32.mrb[0].mxu0
  %v536 = vadd.f32 %v133, %v535
  %v537 = vpop.f32.mrb[0].mxu0
  %v538 = vadd.f32 %v129, %v537
  %v539 = vpop.f32.mrb[0].mxu0
  %v540 = vadd.f32 %v133, %v539
  %541 = vmatprep.mubr.bf16.mxu0 0
  %542 = vmatmul.mubr.bf16.gmra.mrb[0].mxu0 %v175
  %v543 = vpop.f32.mrb[0].mxu0
  %v544 = vadd.f32 %v129, %v543
  %v545 = vpop.f32.mrb[0].mxu0
  %v546 = vadd.f32 %v133, %v545
  %v547 = vpop.f32.mrb[0].mxu0
  %v548 = vadd.f32 %v129, %v547
  %v549 = vpop.f32.mrb[0].mxu0
  %v550 = vadd.f32 %v133, %v549
  %551 = vmatprep.mubr.bf16.mxu0 0
  %552 = vmatmul.mubr.bf16.gmra.mrb[0].mxu0 %v176
  %v553 = vpop.f32.mrb[0].mxu0
  %v554 = vadd.f32 %v129, %v553
  %v555 = vpop.f32.mrb[0].mxu0
  %v556 = vadd.f32 %v133, %v555
  %v557 = vpop.f32.mrb[0].mxu0
  %v558 = vadd.f32 %v129, %v557
  %v559 = vpop.f32.mrb[0].mxu0
  %v560 = vadd.f32 %v133, %v559
  %561 = vmatprep.mubr.bf16.mxu0 0
  %562 = vmatmul.mubr.bf16.gmra.mrb[0].mxu0 %v177
  %v563 = vpop.f32.mrb[0].mxu0
  %v564 = vadd.f32 %v129, %v563
  %v565 = vpop.f32.mrb[0].mxu0
  %v566 = vadd.f32 %v133, %v565
  %v567 = vpop.f32.mrb[0].mxu0
  %v568 = vadd.f32 %v129, %v567
  %v569 = vpop.f32.mrb[0].mxu0
  %v570 = vadd.f32 %v133, %v569
  %571 = vdwg.mxu0
  %572 = vst [vmem:[#allocation3] sm:$0xff] %v381
  %573 = vst [vmem:[#allocation3 + $0x8] sm:$0xff] %v383
  %574 = vst [vmem:[#allocation3 + $0x10] sm:$0xff] %v494
  %575 = vst [vmem:[#allocation3 + $0x18] sm:$0xff] %v496
  %576 = vst [vmem:[#allocation3 + $0x20] sm:$0xff] %v385
  %577 = vst [vmem:[#allocation3 + $0x28] sm:$0xff] %v387
  %578 = vst [vmem:[#allocation3 + $0x30] sm:$0xff] %v498
  %579 = vst [vmem:[#allocation3 + $0x38] sm:$0xff] %v500
  %580 = vst [vmem:[#allocation3 + $0x40] sm:$0xff] %v391
  %581 = vst [vmem:[#allocation3 + $0x48] sm:$0xff] %v393
  %582 = vst [vmem:[#allocation3 + $0x50] sm:$0xff] %v504
  %583 = vst [vmem:[#allocation3 + $0x58] sm:$0xff] %v506
  %584 = vst [vmem:[#allocation3 + $0x60] sm:$0xff] %v395
  %585 = vst [vmem:[#allocation3 + $0x68] sm:$0xff] %v397
  %586 = vst [vmem:[#allocation3 + $0x70] sm:$0xff] %v508
  %587 = vst [vmem:[#allocation3 + $0x78] sm:$0xff] %v510
  %588 = vst [vmem:[#allocation3 + $0x80] sm:$0xff] %v401
  %589 = vst [vmem:[#allocation3 + $0x88] sm:$0xff] %v403
  %590 = vst [vmem:[#allocation3 + $0x90] sm:$0xff] %v514
  %591 = vst [vmem:[#allocation3 + $0x98] sm:$0xff] %v516
  %592 = vst [vmem:[#allocation3 + $0xa0] sm:$0xff] %v405
  %593 = vst [vmem:[#allocation3 + $0xa8] sm:$0xff] %v407
  %594 = vst [vmem:[#allocation3 + $0xb0] sm:$0xff] %v518
  %595 = vst [vmem:[#allocation3 + $0xb8] sm:$0xff] %v520
  %596 = vst [vmem:[#allocation3 + $0xc0] sm:$0xff] %v411
  %597 = vst [vmem:[#allocation3 + $0xc8] sm:$0xff] %v413
  %598 = vst [vmem:[#allocation3 + $0xd0] sm:$0xff] %v524
  %599 = vst [vmem:[#allocation3 + $0xd8] sm:$0xff] %v526
  %600 = vst [vmem:[#allocation3 + $0xe0] sm:$0xff] %v415
  %601 = vst [vmem:[#allocation3 + $0xe8] sm:$0xff] %v417
  %602 = vst [vmem:[#allocation3 + $0xf0] sm:$0xff] %v528
  %603 = vst [vmem:[#allocation3 + $0xf8] sm:$0xff] %v530
  %604 = vst [vmem:[#allocation3 + $0x100] sm:$0xff] %v421
  %605 = vst [vmem:[#allocation3 + $0x108] sm:$0xff] %v423
  %606 = vst [vmem:[#allocation3 + $0x110] sm:$0xff] %v534
  %607 = vst [vmem:[#allocation3 + $0x118] sm:$0xff] %v536
  %608 = vst [vmem:[#allocation3 + $0x120] sm:$0xff] %v425
  %609 = vst [vmem:[#allocation3 + $0x128] sm:$0xff] %v427
  %610 = vst [vmem:[#allocation3 + $0x130] sm:$0xff] %v538
  %611 = vst [vmem:[#allocation3 + $0x138] sm:$0xff] %v540
  %612 = vst [vmem:[#allocation3 + $0x140] sm:$0xff] %v431
  %613 = vst [vmem:[#allocation3 + $0x148] sm:$0xff] %v433
  %614 = vst [vmem:[#allocation3 + $0x150] sm:$0xff] %v544
  %615 = vst [vmem:[#allocation3 + $0x158] sm:$0xff] %v546
  %616 = vst [vmem:[#allocation3 + $0x160] sm:$0xff] %v435
  %617 = vst [vmem:[#allocation3 + $0x168] sm:$0xff] %v437
  %618 = vst [vmem:[#allocation3 + $0x170] sm:$0xff] %v548
  %619 = vst [vmem:[#allocation3 + $0x178] sm:$0xff] %v550
  %620 = vst [vmem:[#allocation3 + $0x180] sm:$0xff] %v441
  %621 = vst [vmem:[#allocation3 + $0x188] sm:$0xff] %v443
  %622 = vst [vmem:[#allocation3 + $0x190] sm:$0xff] %v554
  %623 = vst [vmem:[#allocation3 + $0x198] sm:$0xff] %v556
  %624 = vst [vmem:[#allocation3 + $0x1a0] sm:$0xff] %v445
  %625 = vst [vmem:[#allocation3 + $0x1a8] sm:$0xff] %v447
  %626 = vst [vmem:[#allocation3 + $0x1b0] sm:$0xff] %v558
  %627 = vst [vmem:[#allocation3 + $0x1b8] sm:$0xff] %v560
  %628 = vst [vmem:[#allocation3 + $0x1c0] sm:$0xff] %v451
  %629 = vst [vmem:[#allocation3 + $0x1c8] sm:$0xff] %v453
  %630 = vst [vmem:[#allocation3 + $0x1d0] sm:$0xff] %v564
  %631 = vst [vmem:[#allocation3 + $0x1d8] sm:$0xff] %v566
  %632 = vst [vmem:[#allocation3 + $0x1e0] sm:$0xff] %v455
  %633 = vst [vmem:[#allocation3 + $0x1e8] sm:$0xff] %v457
  %634 = vst [vmem:[#allocation3 + $0x1f0] sm:$0xff] %v568
  %635 = vst [vmem:[#allocation3 + $0x1f8] sm:$0xff] %v570
  %v636 = vld [vmem:[#allocation4] sm:$0xff]
  %v637 = vld [vmem:[#allocation4 + $0x8] sm:$0xff]
  %v638 = vld [vmem:[#allocation5] sm:$0xff]
  %v639 = vld [vmem:[#allocation5 + $0x8] sm:$0xff]
  %v640 = vld [vmem:[#allocation3] sm:$0xff]
  %v641 = vld [vmem:[#allocation3 + $0x8] sm:$0xff]
  %v642 = vld [vmem:[#allocation3 + $0x10] sm:$0xff]
  %v643 = vld [vmem:[#allocation3 + $0x18] sm:$0xff]
  %v644 = vld [vmem:[#allocation3 + $0x20] sm:$0xff]
  %v645 = vld [vmem:[#allocation3 + $0x28] sm:$0xff]
  %v646 = vld [vmem:[#allocation3 + $0x30] sm:$0xff]
  %v647 = vld [vmem:[#allocation3 + $0x38] sm:$0xff]
  %v648 = vpack.c.bf16 %v637, %v636
  %v649 = vld [vmem:[%s3] sm:$0xff]
  %v650 = vld [vmem:[%s3 + $0x8] sm:$0xff]
  %v651 = vld [vmem:[%s3 + $0x10] sm:$0xff]
  %v652 = vld [vmem:[%s3 + $0x18] sm:$0xff]
  %v653 = vld [vmem:[%s3 + $0x20] sm:$0xff]
  %v654 = vld [vmem:[%s3 + $0x28] sm:$0xff]
  %v655 = vld [vmem:[%s3 + $0x30] sm:$0xff]
  %v656 = vld [vmem:[%s3 + $0x38] sm:$0xff]
  %v657 = vld [vmem:[%s3 + $0x40] sm:$0xff]
  %v658 = vld [vmem:[%s3 + $0x48] sm:$0xff]
  %v659 = vld [vmem:[%s3 + $0x50] sm:$0xff]
  %v660 = vld [vmem:[%s3 + $0x58] sm:$0xff]
  %v661 = vld [vmem:[%s3 + $0x60] sm:$0xff]
  %v662 = vld [vmem:[%s3 + $0x68] sm:$0xff]
  %v663 = vld [vmem:[%s3 + $0x70] sm:$0xff]
  %v664 = vld [vmem:[%s3 + $0x78] sm:$0xff]
  %v665 = vld [vmem:[%s3 + $0x80] sm:$0xff]
  %v666 = vld [vmem:[%s3 + $0x88] sm:$0xff]
  %v667 = vld [vmem:[%s3 + $0x90] sm:$0xff]
  %v668 = vld [vmem:[%s3 + $0x98] sm:$0xff]
  %v669 = vld [vmem:[%s3 + $0xa0] sm:$0xff]
  %v670 = vld [vmem:[%s3 + $0xa8] sm:$0xff]
  %v671 = vld [vmem:[%s3 + $0xb0] sm:$0xff]
  %v672 = vld [vmem:[%s3 + $0xb8] sm:$0xff]
  %v673 = vld [vmem:[%s3 + $0xc0] sm:$0xff]
  %v674 = vld [vmem:[%s3 + $0xc8] sm:$0xff]
  %v675 = vld [vmem:[%s3 + $0xd0] sm:$0xff]
  %v676 = vld [vmem:[%s3 + $0xd8] sm:$0xff]
  %v677 = vld [vmem:[%s3 + $0xe0] sm:$0xff]
  %v678 = vld [vmem:[%s3 + $0xe8] sm:$0xff]
  %v679 = vld [vmem:[%s3 + $0xf0] sm:$0xff]
  %v680 = vld [vmem:[%s3 + $0xf8] sm:$0xff]
  %v713 = vunpack.c.l.b16 %v649
  %v714 = vunpack.c.h.b16 %v649
  %v715 = vunpack.c.l.b16 %v650
  %v716 = vunpack.c.h.b16 %v650
  %v717 = vunpack.c.l.b16 %v651
  %v718 = vunpack.c.h.b16 %v651
  %v719 = vunpack.c.l.b16 %v652
  %v720 = vunpack.c.h.b16 %v652
  %v721 = vunpack.c.l.b16 %v653
  %v722 = vunpack.c.h.b16 %v653
  %v723 = vunpack.c.l.b16 %v654
  %v724 = vunpack.c.h.b16 %v654
  %v725 = vunpack.c.l.b16 %v655
  %v726 = vunpack.c.h.b16 %v655
  %v727 = vunpack.c.l.b16 %v656
  %v728 = vunpack.c.h.b16 %v656
  %v729 = vunpack.c.l.b16 %v657
  %v730 = vunpack.c.h.b16 %v657
  %v731 = vunpack.c.l.b16 %v658
  %v732 = vunpack.c.h.b16 %v658
  %v733 = vunpack.c.l.b16 %v659
  %v734 = vunpack.c.h.b16 %v659
  %v735 = vunpack.c.l.b16 %v660
  %v736 = vunpack.c.h.b16 %v660
  %v737 = vunpack.c.l.b16 %v661
  %v738 = vunpack.c.h.b16 %v661
  %v739 = vunpack.c.l.b16 %v662
  %v740 = vunpack.c.h.b16 %v662
  %v741 = vunpack.c.l.b16 %v663
  %v742 = vunpack.c.h.b16 %v663
  %v743 = vunpack.c.l.b16 %v664
  %v744 = vunpack.c.h.b16 %v664
  %v745 = vunpack.c.l.b16 %v665
  %v746 = vunpack.c.h.b16 %v665
  %v747 = vunpack.c.l.b16 %v666
  %v748 = vunpack.c.h.b16 %v666
  %v749 = vunpack.c.l.b16 %v667
  %v750 = vunpack.c.h.b16 %v667
  %v751 = vunpack.c.l.b16 %v668
  %v752 = vunpack.c.h.b16 %v668
  %v753 = vunpack.c.l.b16 %v669
  %v754 = vunpack.c.h.b16 %v669
  %v755 = vunpack.c.l.b16 %v670
  %v756 = vunpack.c.h.b16 %v670
  %v757 = vunpack.c.l.b16 %v671
  %v758 = vunpack.c.h.b16 %v671
  %v759 = vunpack.c.l.b16 %v672
  %v760 = vunpack.c.h.b16 %v672
  %v761 = vunpack.c.l.b16 %v673
  %v762 = vunpack.c.h.b16 %v673
  %v763 = vunpack.c.l.b16 %v674
  %v764 = vunpack.c.h.b16 %v674
  %v765 = vunpack.c.l.b16 %v675
  %v766 = vunpack.c.h.b16 %v675
  %v767 = vunpack.c.l.b16 %v676
  %v768 = vunpack.c.h.b16 %v676
  %v769 = vunpack.c.l.b16 %v677
  %v770 = vunpack.c.h.b16 %v677
  %v771 = vunpack.c.l.b16 %v678
  %v772 = vunpack.c.h.b16 %v678
  %v773 = vunpack.c.l.b16 %v679
  %v774 = vunpack.c.h.b16 %v679
  %v775 = vunpack.c.l.b16 %v680
  %v776 = vunpack.c.h.b16 %v680
  %v777 = vpack.c.b16 %v717, %v713
  %v778 = vpack.c.b16 %v718, %v714
  %v779 = vpack.c.b16 %v719, %v715
  %v780 = vpack.c.b16 %v720, %v716
  %v781 = vpack.c.b16 %v725, %v721
  %v782 = vpack.c.b16 %v726, %v722
  %v783 = vpack.c.b16 %v727, %v723
  %v784 = vpack.c.b16 %v728, %v724
  %v785 = vpack.c.b16 %v733, %v729
  %v786 = vpack.c.b16 %v734, %v730
  %v787 = vpack.c.b16 %v735, %v731
  %v788 = vpack.c.b16 %v736, %v732
  %v789 = vpack.c.b16 %v741, %v737
  %v790 = vpack.c.b16 %v742, %v738
  %v791 = vpack.c.b16 %v743, %v739
  %v792 = vpack.c.b16 %v744, %v740
  %v793 = vpack.c.b16 %v749, %v745
  %v794 = vpack.c.b16 %v750, %v746
  %v795 = vpack.c.b16 %v751, %v747
  %v796 = vpack.c.b16 %v752, %v748
  %v797 = vpack.c.b16 %v757, %v753
  %v798 = vpack.c.b16 %v758, %v754
  %v799 = vpack.c.b16 %v759, %v755
  %v800 = vpack.c.b16 %v760, %v756
  %v801 = vpack.c.b16 %v765, %v761
  %v802 = vpack.c.b16 %v766, %v762
  %v803 = vpack.c.b16 %v767, %v763
  %v804 = vpack.c.b16 %v768, %v764
  %v805 = vpack.c.b16 %v773, %v769
  %v806 = vpack.c.b16 %v774, %v770
  %v807 = vpack.c.b16 %v775, %v771
  %v808 = vpack.c.b16 %v776, %v772
  %841 = vmatprep.subr.bf16.mxu0 %v778
  %842 = vmatpush1.bf16.msra.mxu0 %v777
  %843 = vmatprep.subr.bf16.mxu0 %v782
  %844 = vmatpush1.bf16.msra.mxu0 %v781
  %845 = vmatprep.subr.bf16.mxu0 %v786
  %846 = vmatpush1.bf16.msra.mxu0 %v785
  %847 = vmatprep.subr.bf16.mxu0 %v790
  %848 = vmatpush1.bf16.msra.mxu0 %v789
  %849 = vmatprep.subr.bf16.mxu0 %v794
  %850 = vmatpush1.bf16.msra.mxu0 %v793
  %851 = vmatprep.subr.bf16.mxu0 %v798
  %852 = vmatpush1.bf16.msra.mxu0 %v797
  %853 = vmatprep.subr.bf16.mxu0 %v802
  %854 = vmatpush1.bf16.msra.mxu0 %v801
  %855 = vmatprep.subr.bf16.mxu0 %v806
  %856 = vmatpush1.bf16.msra.mxu0 %v805
  %857 = vmatprep.subr.bf16.mxu0 0
  %858 = vmatpush1.bf16.msra.mxu0 0
  %859 = vmatprep.subr.bf16.mxu0 0
  %860 = vmatpush1.bf16.msra.mxu0 0
  %861 = vmatprep.subr.bf16.mxu0 0
  %862 = vmatpush1.bf16.msra.mxu0 0
  %863 = vmatprep.subr.bf16.mxu0 0
  %864 = vmatpush1.bf16.msra.mxu0 0
  %865 = vmatprep.subr.bf16.mxu0 0
  %866 = vmatpush1.bf16.msra.mxu0 0
  %867 = vmatprep.subr.bf16.mxu0 0
  %868 = vmatpush1.bf16.msra.mxu0 0
  %869 = vmatprep.subr.bf16.mxu0 0
  %870 = vmatpush1.bf16.msra.mxu0 0
  %871 = vmatprep.subr.bf16.mxu0 0
  %872 = vmatpush1.bf16.msra.mxu0 0
  %873 = vmatprep.mubr.bf16.mxu0 0
  %874 = vmatmul.mubr.bf16.gmra.mrb[0].mxu0 %v648
  %v875 = vpop.f32.mrb[0].mxu0
  %v876 = vadd.f32 0.0, %v875
  %v877 = vpop.f32.mrb[0].mxu0
  %v878 = vadd.f32 0.0, %v877
  %v879 = vpop.f32.mrb[0].mxu0
  %v880 = vadd.f32 0.0, %v879
  %v881 = vpop.f32.mrb[0].mxu0
  %v882 = vadd.f32 0.0, %v881
  %883 = vdwg.mxu0
  %884 = vmatprep.subr.bf16.mxu0 %v780
  %885 = vmatpush1.bf16.msra.mxu0 %v779
  %886 = vmatprep.subr.bf16.mxu0 %v784
  %887 = vmatpush1.bf16.msra.mxu0 %v783
  %888 = vmatprep.subr.bf16.mxu0 %v788
  %889 = vmatpush1.bf16.msra.mxu0 %v787
  %890 = vmatprep.subr.bf16.mxu0 %v792
  %891 = vmatpush1.bf16.msra.mxu0 %v791
  %892 = vmatprep.subr.bf16.mxu0 %v796
  %893 = vmatpush1.bf16.msra.mxu0 %v795
  %894 = vmatprep.subr.bf16.mxu0 %v800
  %895 = vmatpush1.bf16.msra.mxu0 %v799
  %896 = vmatprep.subr.bf16.mxu0 %v804
  %897 = vmatpush1.bf16.msra.mxu0 %v803
  %898 = vmatprep.subr.bf16.mxu0 %v808
  %899 = vmatpush1.bf16.msra.mxu0 %v807
  %900 = vmatprep.subr.bf16.mxu0 0
  %901 = vmatpush1.bf16.msra.mxu0 0
  %902 = vmatprep.subr.bf16.mxu0 0
  %903 = vmatpush1.bf16.msra.mxu0 0
  %904 = vmatprep.subr.bf16.mxu0 0
  %905 = vmatpush1.bf16.msra.mxu0 0
  %906 = vmatprep.subr.bf16.mxu0 0
  %907 = vmatpush1.bf16.msra.mxu0 0
  %908 = vmatprep.subr.bf16.mxu0 0
  %909 = vmatpush1.bf16.msra.mxu0 0
  %910 = vmatprep.subr.bf16.mxu0 0
  %911 = vmatpush1.bf16.msra.mxu0 0
  %912 = vmatprep.subr.bf16.mxu0 0
  %913 = vmatpush1.bf16.msra.mxu0 0
  %914 = vmatprep.subr.bf16.mxu0 0
  %915 = vmatpush1.bf16.msra.mxu0 0
  %916 = vmatprep.mubr.bf16.mxu0 0
  %917 = vmatmul.mubr.bf16.gmra.mrb[0].mxu0 %v648
  %v918 = vpop.f32.mrb[0].mxu0
  %v919 = vadd.f32 0.0, %v918
  %v920 = vpop.f32.mrb[0].mxu0
  %v921 = vadd.f32 0.0, %v920
  %v922 = vpop.f32.mrb[0].mxu0
  %v923 = vadd.f32 0.0, %v922
  %v924 = vpop.f32.mrb[0].mxu0
  %v925 = vadd.f32 0.0, %v924
  %926 = vdwg.mxu0
  %v927 = vadd.f32 %v640, %v876
  %v928 = vadd.f32 %v641, %v878
  %v929 = vadd.f32 %v642, %v919
  %v930 = vadd.f32 %v643, %v921
  %v931 = vadd.f32 %v644, %v880
  %v932 = vadd.f32 %v645, %v882
  %v933 = vadd.f32 %v646, %v923
  %v934 = vadd.f32 %v647, %v925
  %v935 = vxor.u32 %v927, 2147483648
  %v936 = vxor.u32 %v931, 2147483648
  %v937 = vmul.f32 %v935, 1.442695
  %v938 = vpow.pop %v937
  %v939 = vmul.f32 %v936, 1.442695
  %v940 = vpow.pop %v939
  %v941 = vadd.f32 %v938, 1.0
  %v942 = vadd.f32 %v940, 1.0
  %v943 = vrcp.pop %v941
  %v944 = vmul.f32 1.0, %v943
  %v945 = vrcp.pop %v942
  %v946 = vmul.f32 1.0, %v945
  %v947 = vxor.u32 %v928, 2147483648
  %v948 = vxor.u32 %v932, 2147483648
  %v949 = vmul.f32 %v947, 1.442695
  %v950 = vpow.pop %v949
  %v951 = vmul.f32 %v948, 1.442695
  %v952 = vpow.pop %v951
  %v953 = vadd.f32 %v950, 1.0
  %v954 = vadd.f32 %v952, 1.0
  %v955 = vrcp.pop %v953
  %v956 = vmul.f32 1.0, %v955
  %v957 = vrcp.pop %v954
  %v958 = vmul.f32 1.0, %v957
  %v959 = vtanh.pop %v929
  %v960 = vtanh.pop %v933
  %v961 = vxor.u32 %v930, 2147483648
  %v962 = vxor.u32 %v934, 2147483648
  %v963 = vmul.f32 %v961, 1.442695
  %v964 = vpow.pop %v963
  %v965 = vmul.f32 %v962, 1.442695
  %v966 = vpow.pop %v965
  %v967 = vadd.f32 %v964, 1.0
  %v968 = vadd.f32 %v966, 1.0
  %v969 = vrcp.pop %v967
  %v970 = vmul.f32 1.0, %v969
  %v971 = vrcp.pop %v968
  %v972 = vmul.f32 1.0, %v971
  %v973 = vmul.f32 %v956, %v638
  %v974 = vmul.f32 %v958, %v639
  %v975 = vmul.f32 %v944, %v959
  %v976 = vmul.f32 %v946, %v960
  %v977 = vadd.f32 %v973, %v975
  %v978 = vadd.f32 %v974, %v976
  %v979 = vtanh.pop %v977
  %v980 = vtanh.pop %v978
  %v981 = vmul.f32 %v970, %v979
  %v982 = vmul.f32 %v972, %v980
  %983 = vst [vmem:[#allocation4] sm:$0xff] %v981
  %984 = vst [vmem:[#allocation4 + $0x8] sm:$0xff] %v982
  %985 = vst [vmem:[#allocation5] sm:$0xff] %v977
  %986 = vst [vmem:[#allocation5 + $0x8] sm:$0xff] %v978
  %v987 = vpack.c.bf16 %v982, %v981
  %988 = vst [vmem:[#allocation2] sm:$0xff] %v987
  %v989 = vld [vmem:[#allocation4] sm:$0xff]
  %v990 = vld [vmem:[#allocation4 + $0x8] sm:$0xff]
  %v991 = vld [vmem:[#allocation5] sm:$0xff]
  %v992 = vld [vmem:[#allocation5 + $0x8] sm:$0xff]
  %s993 = scalar_lea.vmem [#allocation3], 64
  %v994 = vld [vmem:[%s993] sm:$0xff]
  %v995 = vld [vmem:[%s993 + $0x8] sm:$0xff]
  %v996 = vld [vmem:[%s993 + $0x10] sm:$0xff]
  %v997 = vld [vmem:[%s993 + $0x18] sm:$0xff]
  %v998 = vld [vmem:[%s993 + $0x20] sm:$0xff]
  %v999 = vld [vmem:[%s993 + $0x28] sm:$0xff]
  %v1000 = vld [vmem:[%s993 + $0x30] sm:$0xff]
  %v1001 = vld [vmem:[%s993 + $0x38] sm:$0xff]
  %v1002 = vpack.c.bf16 %v990, %v989
  %v1003 = vld [vmem:[%s3] sm:$0xff]
  %v1004 = vld [vmem:[%s3 + $0x8] sm:$0xff]
  %v1005 = vld [vmem:[%s3 + $0x10] sm:$0xff]
  %v1006 = vld [vmem:[%s3 + $0x18] sm:$0xff]
  %v1007 = vld [vmem:[%s3 + $0x20] sm:$0xff]
  %v1008 = vld [vmem:[%s3 + $0x28] sm:$0xff]
  %v1009 = vld [vmem:[%s3 + $0x30] sm:$0xff]
  %v1010 = vld [vmem:[%s3 + $0x38] sm:$0xff]
  %v1011 = vld [vmem:[%s3 + $0x40] sm:$0xff]
  %v1012 = vld [vmem:[%s3 + $0x48] sm:$0xff]
  %v1013 = vld [vmem:[%s3 + $0x50] sm:$0xff]
  %v1014 = vld [vmem:[%s3 + $0x58] sm:$0xff]
  %v1015 = vld [vmem:[%s3 + $0x60] sm:$0xff]
  %v1016 = vld [vmem:[%s3 + $0x68] sm:$0xff]
  %v1017 = vld [vmem:[%s3 + $0x70] sm:$0xff]
  %v1018 = vld [vmem:[%s3 + $0x78] sm:$0xff]
  %v1019 = vld [vmem:[%s3 + $0x80] sm:$0xff]
  %v1020 = vld [vmem:[%s3 + $0x88] sm:$0xff]
  %v1021 = vld [vmem:[%s3 + $0x90] sm:$0xff]
  %v1022 = vld [vmem:[%s3 + $0x98] sm:$0xff]
  %v1023 = vld [vmem:[%s3 + $0xa0] sm:$0xff]
  %v1024 = vld [vmem:[%s3 + $0xa8] sm:$0xff]
  %v1025 = vld [vmem:[%s3 + $0xb0] sm:$0xff]
  %v1026 = vld [vmem:[%s3 + $0xb8] sm:$0xff]
  %v1027 = vld [vmem:[%s3 + $0xc0] sm:$0xff]
  %v1028 = vld [vmem:[%s3 + $0xc8] sm:$0xff]
  %v1029 = vld [vmem:[%s3 + $0xd0] sm:$0xff]
  %v1030 = vld [vmem:[%s3 + $0xd8] sm:$0xff]
  %v1031 = vld [vmem:[%s3 + $0xe0] sm:$0xff]
  %v1032 = vld [vmem:[%s3 + $0xe8] sm:$0xff]
  %v1033 = vld [vmem:[%s3 + $0xf0] sm:$0xff]
  %v1034 = vld [vmem:[%s3 + $0xf8] sm:$0xff]
  %v1067 = vunpack.c.l.b16 %v1003
  %v1068 = vunpack.c.h.b16 %v1003
  %v1069 = vunpack.c.l.b16 %v1004
  %v1070 = vunpack.c.h.b16 %v1004
  %v1071 = vunpack.c.l.b16 %v1005
  %v1072 = vunpack.c.h.b16 %v1005
  %v1073 = vunpack.c.l.b16 %v1006
  %v1074 = vunpack.c.h.b16 %v1006
  %v1075 = vunpack.c.l.b16 %v1007
  %v1076 = vunpack.c.h.b16 %v1007
  %v1077 = vunpack.c.l.b16 %v1008
  %v1078 = vunpack.c.h.b16 %v1008
  %v1079 = vunpack.c.l.b16 %v1009
  %v1080 = vunpack.c.h.b16 %v1009
  %v1081 = vunpack.c.l.b16 %v1010
  %v1082 = vunpack.c.h.b16 %v1010
  %v1083 = vunpack.c.l.b16 %v1011
  %v1084 = vunpack.c.h.b16 %v1011
  %v1085 = vunpack.c.l.b16 %v1012
  %v1086 = vunpack.c.h.b16 %v1012
  %v1087 = vunpack.c.l.b16 %v1013
  %v1088 = vunpack.c.h.b16 %v1013
  %v1089 = vunpack.c.l.b16 %v1014
  %v1090 = vunpack.c.h.b16 %v1014
  %v1091 = vunpack.c.l.b16 %v1015
  %v1092 = vunpack.c.h.b16 %v1015
  %v1093 = vunpack.c.l.b16 %v1016
  %v1094 = vunpack.c.h.b16 %v1016
  %v1095 = vunpack.c.l.b16 %v1017
  %v1096 = vunpack.c.h.b16 %v1017
  %v1097 = vunpack.c.l.b16 %v1018
  %v1098 = vunpack.c.h.b16 %v1018
  %v1099 = vunpack.c.l.b16 %v1019
  %v1100 = vunpack.c.h.b16 %v1019
  %v1101 = vunpack.c.l.b16 %v1020
  %v1102 = vunpack.c.h.b16 %v1020
  %v1103 = vunpack.c.l.b16 %v1021
  %v1104 = vunpack.c.h.b16 %v1021
  %v1105 = vunpack.c.l.b16 %v1022
  %v1106 = vunpack.c.h.b16 %v1022
  %v1107 = vunpack.c.l.b16 %v1023
  %v1108 = vunpack.c.h.b16 %v1023
  %v1109 = vunpack.c.l.b16 %v1024
  %v1110 = vunpack.c.h.b16 %v1024
  %v1111 = vunpack.c.l.b16 %v1025
  %v1112 = vunpack.c.h.b16 %v1025
  %v1113 = vunpack.c.l.b16 %v1026
  %v1114 = vunpack.c.h.b16 %v1026
  %v1115 = vunpack.c.l.b16 %v1027
  %v1116 = vunpack.c.h.b16 %v1027
  %v1117 = vunpack.c.l.b16 %v1028
  %v1118 = vunpack.c.h.b16 %v1028
  %v1119 = vunpack.c.l.b16 %v1029
  %v1120 = vunpack.c.h.b16 %v1029
  %v1121 = vunpack.c.l.b16 %v1030
  %v1122 = vunpack.c.h.b16 %v1030
  %v1123 = vunpack.c.l.b16 %v1031
  %v1124 = vunpack.c.h.b16 %v1031
  %v1125 = vunpack.c.l.b16 %v1032
  %v1126 = vunpack.c.h.b16 %v1032
  %v1127 = vunpack.c.l.b16 %v1033
  %v1128 = vunpack.c.h.b16 %v1033
  %v1129 = vunpack.c.l.b16 %v1034
  %v1130 = vunpack.c.h.b16 %v1034
  %v1131 = vpack.c.b16 %v1071, %v1067
  %v1132 = vpack.c.b16 %v1072, %v1068
  %v1133 = vpack.c.b16 %v1073, %v1069
  %v1134 = vpack.c.b16 %v1074, %v1070
  %v1135 = vpack.c.b16 %v1079, %v1075
  %v1136 = vpack.c.b16 %v1080, %v1076
  %v1137 = vpack.c.b16 %v1081, %v1077
  %v1138 = vpack.c.b16 %v1082, %v1078
  %v1139 = vpack.c.b16 %v1087, %v1083
  %v1140 = vpack.c.b16 %v1088, %v1084
  %v1141 = vpack.c.b16 %v1089, %v1085
  %v1142 = vpack.c.b16 %v1090, %v1086
  %v1143 = vpack.c.b16 %v1095, %v1091
  %v1144 = vpack.c.b16 %v1096, %v1092
  %v1145 = vpack.c.b16 %v1097, %v1093
  %v1146 = vpack.c.b16 %v1098, %v1094
  %v1147 = vpack.c.b16 %v1103, %v1099
  %v1148 = vpack.c.b16 %v1104, %v1100
  %v1149 = vpack.c.b16 %v1105, %v1101
  %v1150 = vpack.c.b16 %v1106, %v1102
  %v1151 = vpack.c.b16 %v1111, %v1107
  %v1152 = vpack.c.b16 %v1112, %v1108
  %v1153 = vpack.c.b16 %v1113, %v1109
  %v1154 = vpack.c.b16 %v1114, %v1110
  %v1155 = vpack.c.b16 %v1119, %v1115
  %v1156 = vpack.c.b16 %v1120, %v1116
  %v1157 = vpack.c.b16 %v1121, %v1117
  %v1158 = vpack.c.b16 %v1122, %v1118
  %v1159 = vpack.c.b16 %v1127, %v1123
  %v1160 = vpack.c.b16 %v1128, %v1124
  %v1161 = vpack.c.b16 %v1129, %v1125
  %v1162 = vpack.c.b16 %v1130, %v1126
  %1195 = vmatprep.subr.bf16.mxu0 %v1132
  %1196 = vmatpush1.bf16.msra.mxu0 %v1131
  %1197 = vmatprep.subr.bf16.mxu0 %v1136
  %1198 = vmatpush1.bf16.msra.mxu0 %v1135
  %1199 = vmatprep.subr.bf16.mxu0 %v1140
  %1200 = vmatpush1.bf16.msra.mxu0 %v1139
  %1201 = vmatprep.subr.bf16.mxu0 %v1144
  %1202 = vmatpush1.bf16.msra.mxu0 %v1143
  %1203 = vmatprep.subr.bf16.mxu0 %v1148
  %1204 = vmatpush1.bf16.msra.mxu0 %v1147
  %1205 = vmatprep.subr.bf16.mxu0 %v1152
  %1206 = vmatpush1.bf16.msra.mxu0 %v1151
  %1207 = vmatprep.subr.bf16.mxu0 %v1156
  %1208 = vmatpush1.bf16.msra.mxu0 %v1155
  %1209 = vmatprep.subr.bf16.mxu0 %v1160
  %1210 = vmatpush1.bf16.msra.mxu0 %v1159
  %1211 = vmatprep.subr.bf16.mxu0 0
  %1212 = vmatpush1.bf16.msra.mxu0 0
  %1213 = vmatprep.subr.bf16.mxu0 0
  %1214 = vmatpush1.bf16.msra.mxu0 0
  %1215 = vmatprep.subr.bf16.mxu0 0
  %1216 = vmatpush1.bf16.msra.mxu0 0
  %1217 = vmatprep.subr.bf16.mxu0 0
  %1218 = vmatpush1.bf16.msra.mxu0 0
  %1219 = vmatprep.subr.bf16.mxu0 0
  %1220 = vmatpush1.bf16.msra.mxu0 0
  %1221 = vmatprep.subr.bf16.mxu0 0
  %1222 = vmatpush1.bf16.msra.mxu0 0
  %1223 = vmatprep.subr.bf16.mxu0 0
  %1224 = vmatpush1.bf16.msra.mxu0 0
  %1225 = vmatprep.subr.bf16.mxu0 0
  %1226 = vmatpush1.bf16.msra.mxu0 0
  %1227 = vmatprep.mubr.bf16.mxu0 0
  %1228 = vmatmul.mubr.bf16.gmra.mrb[0].mxu0 %v1002
  %v1229 = vpop.f32.mrb[0].mxu0
  %v1230 = vadd.f32 0.0, %v1229
  %v1231 = vpop.f32.mrb[0].mxu0
  %v1232 = vadd.f32 0.0, %v1231
  %v1233 = vpop.f32.mrb[0].mxu0
  %v1234 = vadd.f32 0.0, %v1233
  %v1235 = vpop.f32.mrb[0].mxu0
  %v1236 = vadd.f32 0.0, %v1235
  %1237 = vdwg.mxu0
  %1238 = vmatprep.subr.bf16.mxu0 %v1134
  %1239 = vmatpush1.bf16.msra.mxu0 %v1133
  %1240 = vmatprep.subr.bf16.mxu0 %v1138
  %1241 = vmatpush1.bf16.msra.mxu0 %v1137
  %1242 = vmatprep.subr.bf16.mxu0 %v1142
  %1243 = vmatpush1.bf16.msra.mxu0 %v1141
  %1244 = vmatprep.subr.bf16.mxu0 %v1146
  %1245 = vmatpush1.bf16.msra.mxu0 %v1145
  %1246 = vmatprep.subr.bf16.mxu0 %v1150
  %1247 = vmatpush1.bf16.msra.mxu0 %v1149
  %1248 = vmatprep.subr.bf16.mxu0 %v1154
  %1249 = vmatpush1.bf16.msra.mxu0 %v1153
  %1250 = vmatprep.subr.bf16.mxu0 %v1158
  %1251 = vmatpush1.bf16.msra.mxu0 %v1157
  %1252 = vmatprep.subr.bf16.mxu0 %v1162
  %1253 = vmatpush1.bf16.msra.mxu0 %v1161
  %1254 = vmatprep.subr.bf16.mxu0 0
  %1255 = vmatpush1.bf16.msra.mxu0 0
  %1256 = vmatprep.subr.bf16.mxu0 0
  %1257 = vmatpush1.bf16.msra.mxu0 0
  %1258 = vmatprep.subr.bf16.mxu0 0
  %1259 = vmatpush1.bf16.msra.mxu0 0
  %1260 = vmatprep.subr.bf16.mxu0 0
  %1261 = vmatpush1.bf16.msra.mxu0 0
  %1262 = vmatprep.subr.bf16.mxu0 0
  %1263 = vmatpush1.bf16.msra.mxu0 0
  %1264 = vmatprep.subr.bf16.mxu0 0
  %1265 = vmatpush1.bf16.msra.mxu0 0
  %1266 = vmatprep.subr.bf16.mxu0 0
  %1267 = vmatpush1.bf16.msra.mxu0 0
  %1268 = vmatprep.subr.bf16.mxu0 0
  %1269 = vmatpush1.bf16.msra.mxu0 0
  %1270 = vmatprep.mubr.bf16.mxu0 0
  %1271 = vmatmul.mubr.bf16.gmra.mrb[0].mxu0 %v1002
  %v1272 = vpop.f32.mrb[0].mxu0
  %v1273 = vadd.f32 0.0, %v1272
  %v1274 = vpop.f32.mrb[0].mxu0
  %v1275 = vadd.f32 0.0, %v1274
  %v1276 = vpop.f32.mrb[0].mxu0
  %v1277 = vadd.f32 0.0, %v1276
  %v1278 = vpop.f32.mrb[0].mxu0
  %v1279 = vadd.f32 0.0, %v1278
  %1280 = vdwg.mxu0
  %v1281 = vadd.f32 %v994, %v1230
  %v1282 = vadd.f32 %v995, %v1232
  %v1283 = vadd.f32 %v996, %v1273
  %v1284 = vadd.f32 %v997, %v1275
  %v1285 = vadd.f32 %v998, %v1234
  %v1286 = vadd.f32 %v999, %v1236
  %v1287 = vadd.f32 %v1000, %v1277
  %v1288 = vadd.f32 %v1001, %v1279
  %v1289 = vxor.u32 %v1281, 2147483648
  %v1290 = vxor.u32 %v1285, 2147483648
  %v1291 = vmul.f32 %v1289, 1.442695
  %v1292 = vpow.pop %v1291
  %v1293 = vmul.f32 %v1290, 1.442695
  %v1294 = vpow.pop %v1293
  %v1295 = vadd.f32 %v1292, 1.0
  %v1296 = vadd.f32 %v1294, 1.0
  %v1297 = vrcp.pop %v1295
  %v1298 = vmul.f32 1.0, %v1297
  %v1299 = vrcp.pop %v1296
  %v1300 = vmul.f32 1.0, %v1299
  %v1301 = vxor.u32 %v1282, 2147483648
  %v1302 = vxor.u32 %v1286, 2147483648
  %v1303 = vmul.f32 %v1301, 1.442695
  %v1304 = vpow.pop %v1303
  %v1305 = vmul.f32 %v1302, 1.442695
  %v1306 = vpow.pop %v1305
  %v1307 = vadd.f32 %v1304, 1.0
  %v1308 = vadd.f32 %v1306, 1.0
  %v1309 = vrcp.pop %v1307
  %v1310 = vmul.f32 1.0, %v1309
  %v1311 = vrcp.pop %v1308
  %v1312 = vmul.f32 1.0, %v1311
  %v1313 = vtanh.pop %v1283
  %v1314 = vtanh.pop %v1287
  %v1315 = vxor.u32 %v1284, 2147483648
  %v1316 = vxor.u32 %v1288, 2147483648
  %v1317 = vmul.f32 %v1315, 1.442695
  %v1318 = vpow.pop %v1317
  %v1319 = vmul.f32 %v1316, 1.442695
  %v1320 = vpow.pop %v1319
  %v1321 = vadd.f32 %v1318, 1.0
  %v1322 = vadd.f32 %v1320, 1.0
  %v1323 = vrcp.pop %v1321
  %v1324 = vmul.f32 1.0, %v1323
  %v1325 = vrcp.pop %v1322
  %v1326 = vmul.f32 1.0, %v1325
  %v1327 = vmul.f32 %v1310, %v991
  %v1328 = vmul.f32 %v1312, %v992
  %v1329 = vmul.f32 %v1298, %v1313
  %v1330 = vmul.f32 %v1300, %v1314
  %v1331 = vadd.f32 %v1327, %v1329
  %v1332 = vadd.f32 %v1328, %v1330
  %v1333 = vtanh.pop %v1331
  %v1334 = vtanh.pop %v1332
  %v1335 = vmul.f32 %v1324, %v1333
  %v1336 = vmul.f32 %v1326, %v1334
  %1337 = vst [vmem:[#allocation4] sm:$0xff] %v1335
  %1338 = vst [vmem:[#allocation4 + $0x8] sm:$0xff] %v1336
  %1339 = vst [vmem:[#allocation5] sm:$0xff] %v1331
  %1340 = vst [vmem:[#allocation5 + $0x8] sm:$0xff] %v1332
  %v1341 = vpack.c.bf16 %v1336, %v1335
  %s1342 = scalar_lea.vmem [#allocation2], 8
  %1343 = vst [vmem:[%s1342] sm:$0xff] %v1341
  %v1344 = vld [vmem:[#allocation4] sm:$0xff]
  %v1345 = vld [vmem:[#allocation4 + $0x8] sm:$0xff]
  %v1346 = vld [vmem:[#allocation5] sm:$0xff]
  %v1347 = vld [vmem:[#allocation5 + $0x8] sm:$0xff]
  %s1348 = scalar_lea.vmem [#allocation3], 128
  %v1349 = vld [vmem:[%s1348] sm:$0xff]
  %v1350 = vld [vmem:[%s1348 + $0x8] sm:$0xff]
  %v1351 = vld [vmem:[%s1348 + $0x10] sm:$0xff]
  %v1352 = vld [vmem:[%s1348 + $0x18] sm:$0xff]
  %v1353 = vld [vmem:[%s1348 + $0x20] sm:$0xff]
  %v1354 = vld [vmem:[%s1348 + $0x28] sm:$0xff]
  %v1355 = vld [vmem:[%s1348 + $0x30] sm:$0xff]
  %v1356 = vld [vmem:[%s1348 + $0x38] sm:$0xff]
  %v1357 = vpack.c.bf16 %v1345, %v1344
  %v1358 = vld [vmem:[%s3] sm:$0xff]
  %v1359 = vld [vmem:[%s3 + $0x8] sm:$0xff]
  %v1360 = vld [vmem:[%s3 + $0x10] sm:$0xff]
  %v1361 = vld [vmem:[%s3 + $0x18] sm:$0xff]
  %v1362 = vld [vmem:[%s3 + $0x20] sm:$0xff]
  %v1363 = vld [vmem:[%s3 + $0x28] sm:$0xff]
  %v1364 = vld [vmem:[%s3 + $0x30] sm:$0xff]
  %v1365 = vld [vmem:[%s3 + $0x38] sm:$0xff]
  %v1366 = vld [vmem:[%s3 + $0x40] sm:$0xff]
  %v1367 = vld [vmem:[%s3 + $0x48] sm:$0xff]
  %v1368 = vld [vmem:[%s3 + $0x50] sm:$0xff]
  %v1369 = vld [vmem:[%s3 + $0x58] sm:$0xff]
  %v1370 = vld [vmem:[%s3 + $0x60] sm:$0xff]
  %v1371 = vld [vmem:[%s3 + $0x68] sm:$0xff]
  %v1372 = vld [vmem:[%s3 + $0x70] sm:$0xff]
  %v1373 = vld [vmem:[%s3 + $0x78] sm:$0xff]
  %v1374 = vld [vmem:[%s3 + $0x80] sm:$0xff]
  %v1375 = vld [vmem:[%s3 + $0x88] sm:$0xff]
  %v1376 = vld [vmem:[%s3 + $0x90] sm:$0xff]
  %v1377 = vld [vmem:[%s3 + $0x98] sm:$0xff]
  %v1378 = vld [vmem:[%s3 + $0xa0] sm:$0xff]
  %v1379 = vld [vmem:[%s3 + $0xa8] sm:$0xff]
  %v1380 = vld [vmem:[%s3 + $0xb0] sm:$0xff]
  %v1381 = vld [vmem:[%s3 + $0xb8] sm:$0xff]
  %v1382 = vld [vmem:[%s3 + $0xc0] sm:$0xff]
  %v1383 = vld [vmem:[%s3 + $0xc8] sm:$0xff]
  %v1384 = vld [vmem:[%s3 + $0xd0] sm:$0xff]
  %v1385 = vld [vmem:[%s3 + $0xd8] sm:$0xff]
  %v1386 = vld [vmem:[%s3 + $0xe0] sm:$0xff]
  %v1387 = vld [vmem:[%s3 + $0xe8] sm:$0xff]
  %v1388 = vld [vmem:[%s3 + $0xf0] sm:$0xff]
  %v1389 = vld [vmem:[%s3 + $0xf8] sm:$0xff]
  %v1422 = vunpack.c.l.b16 %v1358
  %v1423 = vunpack.c.h.b16 %v1358
  %v1424 = vunpack.c.l.b16 %v1359
  %v1425 = vunpack.c.h.b16 %v1359
  %v1426 = vunpack.c.l.b16 %v1360
  %v1427 = vunpack.c.h.b16 %v1360
  %v1428 = vunpack.c.l.b16 %v1361
  %v1429 = vunpack.c.h.b16 %v1361
  %v1430 = vunpack.c.l.b16 %v1362
  %v1431 = vunpack.c.h.b16 %v1362
  %v1432 = vunpack.c.l.b16 %v1363
  %v1433 = vunpack.c.h.b16 %v1363
  %v1434 = vunpack.c.l.b16 %v1364
  %v1435 = vunpack.c.h.b16 %v1364
  %v1436 = vunpack.c.l.b16 %v1365
  %v1437 = vunpack.c.h.b16 %v1365
  %v1438 = vunpack.c.l.b16 %v1366
  %v1439 = vunpack.c.h.b16 %v1366
  %v1440 = vunpack.c.l.b16 %v1367
  %v1441 = vunpack.c.h.b16 %v1367
  %v1442 = vunpack.c.l.b16 %v1368
  %v1443 = vunpack.c.h.b16 %v1368
  %v1444 = vunpack.c.l.b16 %v1369
  %v1445 = vunpack.c.h.b16 %v1369
  %v1446 = vunpack.c.l.b16 %v1370
  %v1447 = vunpack.c.h.b16 %v1370
  %v1448 = vunpack.c.l.b16 %v1371
  %v1449 = vunpack.c.h.b16 %v1371
  %v1450 = vunpack.c.l.b16 %v1372
  %v1451 = vunpack.c.h.b16 %v1372
  %v1452 = vunpack.c.l.b16 %v1373
  %v1453 = vunpack.c.h.b16 %v1373
  %v1454 = vunpack.c.l.b16 %v1374
  %v1455 = vunpack.c.h.b16 %v1374
  %v1456 = vunpack.c.l.b16 %v1375
  %v1457 = vunpack.c.h.b16 %v1375
  %v1458 = vunpack.c.l.b16 %v1376
  %v1459 = vunpack.c.h.b16 %v1376
  %v1460 = vunpack.c.l.b16 %v1377
  %v1461 = vunpack.c.h.b16 %v1377
  %v1462 = vunpack.c.l.b16 %v1378
  %v1463 = vunpack.c.h.b16 %v1378
  %v1464 = vunpack.c.l.b16 %v1379
  %v1465 = vunpack.c.h.b16 %v1379
  %v1466 = vunpack.c.l.b16 %v1380
  %v1467 = vunpack.c.h.b16 %v1380
  %v1468 = vunpack.c.l.b16 %v1381
  %v1469 = vunpack.c.h.b16 %v1381
  %v1470 = vunpack.c.l.b16 %v1382
  %v1471 = vunpack.c.h.b16 %v1382
  %v1472 = vunpack.c.l.b16 %v1383
  %v1473 = vunpack.c.h.b16 %v1383
  %v1474 = vunpack.c.l.b16 %v1384
  %v1475 = vunpack.c.h.b16 %v1384
  %v1476 = vunpack.c.l.b16 %v1385
  %v1477 = vunpack.c.h.b16 %v1385
  %v1478 = vunpack.c.l.b16 %v1386
  %v1479 = vunpack.c.h.b16 %v1386
  %v1480 = vunpack.c.l.b16 %v1387
  %v1481 = vunpack.c.h.b16 %v1387
  %v1482 = vunpack.c.l.b16 %v1388
  %v1483 = vunpack.c.h.b16 %v1388
  %v1484 = vunpack.c.l.b16 %v1389
  %v1485 = vunpack.c.h.b16 %v1389
  %v1486 = vpack.c.b16 %v1426, %v1422
  %v1487 = vpack.c.b16 %v1427, %v1423
  %v1488 = vpack.c.b16 %v1428, %v1424
  %v1489 = vpack.c.b16 %v1429, %v1425
  %v1490 = vpack.c.b16 %v1434, %v1430
  %v1491 = vpack.c.b16 %v1435, %v1431
  %v1492 = vpack.c.b16 %v1436, %v1432
  %v1493 = vpack.c.b16 %v1437, %v1433
  %v1494 = vpack.c.b16 %v1442, %v1438
  %v1495 = vpack.c.b16 %v1443, %v1439
  %v1496 = vpack.c.b16 %v1444, %v1440
  %v1497 = vpack.c.b16 %v1445, %v1441
  %v1498 = vpack.c.b16 %v1450, %v1446
  %v1499 = vpack.c.b16 %v1451, %v1447
  %v1500 = vpack.c.b16 %v1452, %v1448
  %v1501 = vpack.c.b16 %v1453, %v1449
  %v1502 = vpack.c.b16 %v1458, %v1454
  %v1503 = vpack.c.b16 %v1459, %v1455
  %v1504 = vpack.c.b16 %v1460, %v1456
  %v1505 = vpack.c.b16 %v1461, %v1457
  %v1506 = vpack.c.b16 %v1466, %v1462
  %v1507 = vpack.c.b16 %v1467, %v1463
  %v1508 = vpack.c.b16 %v1468, %v1464
  %v1509 = vpack.c.b16 %v1469, %v1465
  %v1510 = vpack.c.b16 %v1474, %v1470
  %v1511 = vpack.c.b16 %v1475, %v1471
  %v1512 = vpack.c.b16 %v1476, %v1472
  %v1513 = vpack.c.b16 %v1477, %v1473
  %v1514 = vpack.c.b16 %v1482, %v1478
  %v1515 = vpack.c.b16 %v1483, %v1479
  %v1516 = vpack.c.b16 %v1484, %v1480
  %v1517 = vpack.c.b16 %v1485, %v1481
  %1550 = vmatprep.subr.bf16.mxu0 %v1487
  %1551 = vmatpush1.bf16.msra.mxu0 %v1486
  %1552 = vmatprep.subr.bf16.mxu0 %v1491
  %1553 = vmatpush1.bf16.msra.mxu0 %v1490
  %1554 = vmatprep.subr.bf16.mxu0 %v1495
  %1555 = vmatpush1.bf16.msra.mxu0 %v1494
  %1556 = vmatprep.subr.bf16.mxu0 %v1499
  %1557 = vmatpush1.bf16.msra.mxu0 %v1498
  %1558 = vmatprep.subr.bf16.mxu0 %v1503
  %1559 = vmatpush1.bf16.msra.mxu0 %v1502
  %1560 = vmatprep.subr.bf16.mxu0 %v1507
  %1561 = vmatpush1.bf16.msra.mxu0 %v1506
  %1562 = vmatprep.subr.bf16.mxu0 %v1511
  %1563 = vmatpush1.bf16.msra.mxu0 %v1510
  %1564 = vmatprep.subr.bf16.mxu0 %v1515
  %1565 = vmatpush1.bf16.msra.mxu0 %v1514
  %1566 = vmatprep.subr.bf16.mxu0 0
  %1567 = vmatpush1.bf16.msra.mxu0 0
  %1568 = vmatprep.subr.bf16.mxu0 0
  %1569 = vmatpush1.bf16.msra.mxu0 0
  %1570 = vmatprep.subr.bf16.mxu0 0
  %1571 = vmatpush1.bf16.msra.mxu0 0
  %1572 = vmatprep.subr.bf16.mxu0 0
  %1573 = vmatpush1.bf16.msra.mxu0 0
  %1574 = vmatprep.subr.bf16.mxu0 0
  %1575 = vmatpush1.bf16.msra.mxu0 0
  %1576 = vmatprep.subr.bf16.mxu0 0
  %1577 = vmatpush1.bf16.msra.mxu0 0
  %1578 = vmatprep.subr.bf16.mxu0 0
  %1579 = vmatpush1.bf16.msra.mxu0 0
  %1580 = vmatprep.subr.bf16.mxu0 0
  %1581 = vmatpush1.bf16.msra.mxu0 0
  %1582 = vmatprep.mubr.bf16.mxu0 0
  %1583 = vmatmul.mubr.bf16.gmra.mrb[0].mxu0 %v1357
  %v1584 = vpop.f32.mrb[0].mxu0
  %v1585 = vadd.f32 0.0, %v1584
  %v1586 = vpop.f32.mrb[0].mxu0
  %v1587 = vadd.f32 0.0, %v1586
  %v1588 = vpop.f32.mrb[0].mxu0
  %v1589 = vadd.f32 0.0, %v1588
  %v1590 = vpop.f32.mrb[0].mxu0
  %v1591 = vadd.f32 0.0, %v1590
  %1592 = vdwg.mxu0
  %1593 = vmatprep.subr.bf16.mxu0 %v1489
  %1594 = vmatpush1.bf16.msra.mxu0 %v1488
  %1595 = vmatprep.subr.bf16.mxu0 %v1493
  %1596 = vmatpush1.bf16.msra.mxu0 %v1492
  %1597 = vmatprep.subr.bf16.mxu0 %v1497
  %1598 = vmatpush1.bf16.msra.mxu0 %v1496
  %1599 = vmatprep.subr.bf16.mxu0 %v1501
  %1600 = vmatpush1.bf16.msra.mxu0 %v1500
  %1601 = vmatprep.subr.bf16.mxu0 %v1505
  %1602 = vmatpush1.bf16.msra.mxu0 %v1504
  %1603 = vmatprep.subr.bf16.mxu0 %v1509
  %1604 = vmatpush1.bf16.msra.mxu0 %v1508
  %1605 = vmatprep.subr.bf16.mxu0 %v1513
  %1606 = vmatpush1.bf16.msra.mxu0 %v1512
  %1607 = vmatprep.subr.bf16.mxu0 %v1517
  %1608 = vmatpush1.bf16.msra.mxu0 %v1516
  %1609 = vmatprep.subr.bf16.mxu0 0
  %1610 = vmatpush1.bf16.msra.mxu0 0
  %1611 = vmatprep.subr.bf16.mxu0 0
  %1612 = vmatpush1.bf16.msra.mxu0 0
  %1613 = vmatprep.subr.bf16.mxu0 0
  %1614 = vmatpush1.bf16.msra.mxu0 0
  %1615 = vmatprep.subr.bf16.mxu0 0
  %1616 = vmatpush1.bf16.msra.mxu0 0
  %1617 = vmatprep.subr.bf16.mxu0 0
  %1618 = vmatpush1.bf16.msra.mxu0 0
  %1619 = vmatprep.subr.bf16.mxu0 0
  %1620 = vmatpush1.bf16.msra.mxu0 0
  %1621 = vmatprep.subr.bf16.mxu0 0
  %1622 = vmatpush1.bf16.msra.mxu0 0
  %1623 = vmatprep.subr.bf16.mxu0 0
  %1624 = vmatpush1.bf16.msra.mxu0 0
  %1625 = vmatprep.mubr.bf16.mxu0 0
  %1626 = vmatmul.mubr.bf16.gmra.mrb[0].mxu0 %v1357
  %v1627 = vpop.f32.mrb[0].mxu0
  %v1628 = vadd.f32 0.0, %v1627
  %v1629 = vpop.f32.mrb[0].mxu0
  %v1630 = vadd.f32 0.0, %v1629
  %v1631 = vpop.f32.mrb[0].mxu0
  %v1632 = vadd.f32 0.0, %v1631
  %v1633 = vpop.f32.mrb[0].mxu0
  %v1634 = vadd.f32 0.0, %v1633
  %1635 = vdwg.mxu0
  %v1636 = vadd.f32 %v1349, %v1585
  %v1637 = vadd.f32 %v1350, %v1587
  %v1638 = vadd.f32 %v1351, %v1628
  %v1639 = vadd.f32 %v1352, %v1630
  %v1640 = vadd.f32 %v1353, %v1589
  %v1641 = vadd.f32 %v1354, %v1591
  %v1642 = vadd.f32 %v1355, %v1632
  %v1643 = vadd.f32 %v1356, %v1634
  %v1644 = vxor.u32 %v1636, 2147483648
  %v1645 = vxor.u32 %v1640, 2147483648
  %v1646 = vmul.f32 %v1644, 1.442695
  %v1647 = vpow.pop %v1646
  %v1648 = vmul.f32 %v1645, 1.442695
  %v1649 = vpow.pop %v1648
  %v1650 = vadd.f32 %v1647, 1.0
  %v1651 = vadd.f32 %v1649, 1.0
  %v1652 = vrcp.pop %v1650
  %v1653 = vmul.f32 1.0, %v1652
  %v1654 = vrcp.pop %v1651
  %v1655 = vmul.f32 1.0, %v1654
  %v1656 = vxor.u32 %v1637, 2147483648
  %v1657 = vxor.u32 %v1641, 2147483648
  %v1658 = vmul.f32 %v1656, 1.442695
  %v1659 = vpow.pop %v1658
  %v1660 = vmul.f32 %v1657, 1.442695
  %v1661 = vpow.pop %v1660
  %v1662 = vadd.f32 %v1659, 1.0
  %v1663 = vadd.f32 %v1661, 1.0
  %v1664 = vrcp.pop %v1662
  %v1665 = vmul.f32 1.0, %v1664
  %v1666 = vrcp.pop %v1663
  %v1667 = vmul.f32 1.0, %v1666
  %v1668 = vtanh.pop %v1638
  %v1669 = vtanh.pop %v1642
  %v1670 = vxor.u32 %v1639, 2147483648
  %v1671 = vxor.u32 %v1643, 2147483648
  %v1672 = vmul.f32 %v1670, 1.442695
  %v1673 = vpow.pop %v1672
  %v1674 = vmul.f32 %v1671, 1.442695
  %v1675 = vpow.pop %v1674
  %v1676 = vadd.f32 %v1673, 1.0
  %v1677 = vadd.f32 %v1675, 1.0
  %v1678 = vrcp.pop %v1676
  %v1679 = vmul.f32 1.0, %v1678
  %v1680 = vrcp.pop %v1677
  %v1681 = vmul.f32 1.0, %v1680
  %v1682 = vmul.f32 %v1665, %v1346
  %v1683 = vmul.f32 %v1667, %v1347
  %v1684 = vmul.f32 %v1653, %v1668
  %v1685 = vmul.f32 %v1655, %v1669
  %v1686 = vadd.f32 %v1682, %v1684
  %v1687 = vadd.f32 %v1683, %v1685
  %v1688 = vtanh.pop %v1686
  %v1689 = vtanh.pop %v1687
  %v1690 = vmul.f32 %v1679, %v1688
  %v1691 = vmul.f32 %v1681, %v1689
  %1692 = vst [vmem:[#allocation4] sm:$0xff] %v1690
  %1693 = vst [vmem:[#allocation4 + $0x8] sm:$0xff] %v1691
  %1694 = vst [vmem:[#allocation5] sm:$0xff] %v1686
  %1695 = vst [vmem:[#allocation5 + $0x8] sm:$0xff] %v1687
  %v1696 = vpack.c.bf16 %v1691, %v1690
  %s1697 = scalar_lea.vmem [#allocation2], 16
  %1698 = vst [vmem:[%s1697] sm:$0xff] %v1696
  %v1699 = vld [vmem:[#allocation4] sm:$0xff]
  %v1700 = vld [vmem:[#allocation4 + $0x8] sm:$0xff]
  %v1701 = vld [vmem:[#allocation5] sm:$0xff]
  %v1702 = vld [vmem:[#allocation5 + $0x8] sm:$0xff]
  %s1703 = scalar_lea.vmem [#allocation3], 192
  %v1704 = vld [vmem:[%s1703] sm:$0xff]
  %v1705 = vld [vmem:[%s1703 + $0x8] sm:$0xff]
  %v1706 = vld [vmem:[%s1703 + $0x10] sm:$0xff]
  %v1707 = vld [vmem:[%s1703 + $0x18] sm:$0xff]
  %v1708 = vld [vmem:[%s1703 + $0x20] sm:$0xff]
  %v1709 = vld [vmem:[%s1703 + $0x28] sm:$0xff]
  %v1710 = vld [vmem:[%s1703 + $0x30] sm:$0xff]
  %v1711 = vld [vmem:[%s1703 + $0x38] sm:$0xff]
  %v1712 = vpack.c.bf16 %v1700, %v1699
  %v1713 = vld [vmem:[%s3] sm:$0xff]
  %v1714 = vld [vmem:[%s3 + $0x8] sm:$0xff]
  %v1715 = vld [vmem:[%s3 + $0x10] sm:$0xff]
  %v1716 = vld [vmem:[%s3 + $0x18] sm:$0xff]
  %v1717 = vld [vmem:[%s3 + $0x20] sm:$0xff]
  %v1718 = vld [vmem:[%s3 + $0x28] sm:$0xff]
  %v1719 = vld [vmem:[%s3 + $0x30] sm:$0xff]
  %v1720 = vld [vmem:[%s3 + $0x38] sm:$0xff]
  %v1721 = vld [vmem:[%s3 + $0x40] sm:$0xff]
  %v1722 = vld [vmem:[%s3 + $0x48] sm:$0xff]
  %v1723 = vld [vmem:[%s3 + $0x50] sm:$0xff]
  %v1724 = vld [vmem:[%s3 + $0x58] sm:$0xff]
  %v1725 = vld [vmem:[%s3 + $0x60] sm:$0xff]
  %v1726 = vld [vmem:[%s3 + $0x68] sm:$0xff]
  %v1727 = vld [vmem:[%s3 + $0x70] sm:$0xff]
  %v1728 = vld [vmem:[%s3 + $0x78] sm:$0xff]
  %v1729 = vld [vmem:[%s3 + $0x80] sm:$0xff]
  %v1730 = vld [vmem:[%s3 + $0x88] sm:$0xff]
  %v1731 = vld [vmem:[%s3 + $0x90] sm:$0xff]
  %v1732 = vld [vmem:[%s3 + $0x98] sm:$0xff]
  %v1733 = vld [vmem:[%s3 + $0xa0] sm:$0xff]
  %v1734 = vld [vmem:[%s3 + $0xa8] sm:$0xff]
  %v1735 = vld [vmem:[%s3 + $0xb0] sm:$0xff]
  %v1736 = vld [vmem:[%s3 + $0xb8] sm:$0xff]
  %v1737 = vld [vmem:[%s3 + $0xc0] sm:$0xff]
  %v1738 = vld [vmem:[%s3 + $0xc8] sm:$0xff]
  %v1739 = vld [vmem:[%s3 + $0xd0] sm:$0xff]
  %v1740 = vld [vmem:[%s3 + $0xd8] sm:$0xff]
  %v1741 = vld [vmem:[%s3 + $0xe0] sm:$0xff]
  %v1742 = vld [vmem:[%s3 + $0xe8] sm:$0xff]
  %v1743 = vld [vmem:[%s3 + $0xf0] sm:$0xff]
  %v1744 = vld [vmem:[%s3 + $0xf8] sm:$0xff]
  %v1777 = vunpack.c.l.b16 %v1713
  %v1778 = vunpack.c.h.b16 %v1713
  %v1779 = vunpack.c.l.b16 %v1714
  %v1780 = vunpack.c.h.b16 %v1714
  %v1781 = vunpack.c.l.b16 %v1715
  %v1782 = vunpack.c.h.b16 %v1715
  %v1783 = vunpack.c.l.b16 %v1716
  %v1784 = vunpack.c.h.b16 %v1716
  %v1785 = vunpack.c.l.b16 %v1717
  %v1786 = vunpack.c.h.b16 %v1717
  %v1787 = vunpack.c.l.b16 %v1718
  %v1788 = vunpack.c.h.b16 %v1718
  %v1789 = vunpack.c.l.b16 %v1719
  %v1790 = vunpack.c.h.b16 %v1719
  %v1791 = vunpack.c.l.b16 %v1720
  %v1792 = vunpack.c.h.b16 %v1720
  %v1793 = vunpack.c.l.b16 %v1721
  %v1794 = vunpack.c.h.b16 %v1721
  %v1795 = vunpack.c.l.b16 %v1722
  %v1796 = vunpack.c.h.b16 %v1722
  %v1797 = vunpack.c.l.b16 %v1723
  %v1798 = vunpack.c.h.b16 %v1723
  %v1799 = vunpack.c.l.b16 %v1724
  %v1800 = vunpack.c.h.b16 %v1724
  %v1801 = vunpack.c.l.b16 %v1725
  %v1802 = vunpack.c.h.b16 %v1725
  %v1803 = vunpack.c.l.b16 %v1726
  %v1804 = vunpack.c.h.b16 %v1726
  %v1805 = vunpack.c.l.b16 %v1727
  %v1806 = vunpack.c.h.b16 %v1727
  %v1807 = vunpack.c.l.b16 %v1728
  %v1808 = vunpack.c.h.b16 %v1728
  %v1809 = vunpack.c.l.b16 %v1729
  %v1810 = vunpack.c.h.b16 %v1729
  %v1811 = vunpack.c.l.b16 %v1730
  %v1812 = vunpack.c.h.b16 %v1730
  %v1813 = vunpack.c.l.b16 %v1731
  %v1814 = vunpack.c.h.b16 %v1731
  %v1815 = vunpack.c.l.b16 %v1732
  %v1816 = vunpack.c.h.b16 %v1732
  %v1817 = vunpack.c.l.b16 %v1733
  %v1818 = vunpack.c.h.b16 %v1733
  %v1819 = vunpack.c.l.b16 %v1734
  %v1820 = vunpack.c.h.b16 %v1734
  %v1821 = vunpack.c.l.b16 %v1735
  %v1822 = vunpack.c.h.b16 %v1735
  %v1823 = vunpack.c.l.b16 %v1736
  %v1824 = vunpack.c.h.b16 %v1736
  %v1825 = vunpack.c.l.b16 %v1737
  %v1826 = vunpack.c.h.b16 %v1737
  %v1827 = vunpack.c.l.b16 %v1738
  %v1828 = vunpack.c.h.b16 %v1738
  %v1829 = vunpack.c.l.b16 %v1739
  %v1830 = vunpack.c.h.b16 %v1739
  %v1831 = vunpack.c.l.b16 %v1740
  %v1832 = vunpack.c.h.b16 %v1740
  %v1833 = vunpack.c.l.b16 %v1741
  %v1834 = vunpack.c.h.b16 %v1741
  %v1835 = vunpack.c.l.b16 %v1742
  %v1836 = vunpack.c.h.b16 %v1742
  %v1837 = vunpack.c.l.b16 %v1743
  %v1838 = vunpack.c.h.b16 %v1743
  %v1839 = vunpack.c.l.b16 %v1744
  %v1840 = vunpack.c.h.b16 %v1744
  %v1841 = vpack.c.b16 %v1781, %v1777
  %v1842 = vpack.c.b16 %v1782, %v1778
  %v1843 = vpack.c.b16 %v1783, %v1779
  %v1844 = vpack.c.b16 %v1784, %v1780
  %v1845 = vpack.c.b16 %v1789, %v1785
  %v1846 = vpack.c.b16 %v1790, %v1786
  %v1847 = vpack.c.b16 %v1791, %v1787
  %v1848 = vpack.c.b16 %v1792, %v1788
  %v1849 = vpack.c.b16 %v1797, %v1793
  %v1850 = vpack.c.b16 %v1798, %v1794
  %v1851 = vpack.c.b16 %v1799, %v1795
  %v1852 = vpack.c.b16 %v1800, %v1796
  %v1853 = vpack.c.b16 %v1805, %v1801
  %v1854 = vpack.c.b16 %v1806, %v1802
  %v1855 = vpack.c.b16 %v1807, %v1803
  %v1856 = vpack.c.b16 %v1808, %v1804
  %v1857 = vpack.c.b16 %v1813, %v1809
  %v1858 = vpack.c.b16 %v1814, %v1810
  %v1859 = vpack.c.b16 %v1815, %v1811
  %v1860 = vpack.c.b16 %v1816, %v1812
  %v1861 = vpack.c.b16 %v1821, %v1817
  %v1862 = vpack.c.b16 %v1822, %v1818
  %v1863 = vpack.c.b16 %v1823, %v1819
  %v1864 = vpack.c.b16 %v1824, %v1820
  %v1865 = vpack.c.b16 %v1829, %v1825
  %v1866 = vpack.c.b16 %v1830, %v1826
  %v1867 = vpack.c.b16 %v1831, %v1827
  %v1868 = vpack.c.b16 %v1832, %v1828
  %v1869 = vpack.c.b16 %v1837, %v1833
  %v1870 = vpack.c.b16 %v1838, %v1834
  %v1871 = vpack.c.b16 %v1839, %v1835
  %v1872 = vpack.c.b16 %v1840, %v1836
  %1905 = vmatprep.subr.bf16.mxu0 %v1842
  %1906 = vmatpush1.bf16.msra.mxu0 %v1841
  %1907 = vmatprep.subr.bf16.mxu0 %v1846
  %1908 = vmatpush1.bf16.msra.mxu0 %v1845
  %1909 = vmatprep.subr.bf16.mxu0 %v1850
  %1910 = vmatpush1.bf16.msra.mxu0 %v1849
  %1911 = vmatprep.subr.bf16.mxu0 %v1854
  %1912 = vmatpush1.bf16.msra.mxu0 %v1853
  %1913 = vmatprep.subr.bf16.mxu0 %v1858
  %1914 = vmatpush1.bf16.msra.mxu0 %v1857
  %1915 = vmatprep.subr.bf16.mxu0 %v1862
  %1916 = vmatpush1.bf16.msra.mxu0 %v1861
  %1917 = vmatprep.subr.bf16.mxu0 %v1866
  %1918 = vmatpush1.bf16.msra.mxu0 %v1865
  %1919 = vmatprep.subr.bf16.mxu0 %v1870
  %1920 = vmatpush1.bf16.msra.mxu0 %v1869
  %1921 = vmatprep.subr.bf16.mxu0 0
  %1922 = vmatpush1.bf16.msra.mxu0 0
  %1923 = vmatprep.subr.bf16.mxu0 0
  %1924 = vmatpush1.bf16.msra.mxu0 0
  %1925 = vmatprep.subr.bf16.mxu0 0
  %1926 = vmatpush1.bf16.msra.mxu0 0
  %1927 = vmatprep.subr.bf16.mxu0 0
  %1928 = vmatpush1.bf16.msra.mxu0 0
  %1929 = vmatprep.subr.bf16.mxu0 0
  %1930 = vmatpush1.bf16.msra.mxu0 0
  %1931 = vmatprep.subr.bf16.mxu0 0
  %1932 = vmatpush1.bf16.msra.mxu0 0
  %1933 = vmatprep.subr.bf16.mxu0 0
  %1934 = vmatpush1.bf16.msra.mxu0 0
  %1935 = vmatprep.subr.bf16.mxu0 0
  %1936 = vmatpush1.bf16.msra.mxu0 0
  %1937 = vmatprep.mubr.bf16.mxu0 0
  %1938 = vmatmul.mubr.bf16.gmra.mrb[0].mxu0 %v1712
  %v1939 = vpop.f32.mrb[0].mxu0
  %v1940 = vadd.f32 0.0, %v1939
  %v1941 = vpop.f32.mrb[0].mxu0
  %v1942 = vadd.f32 0.0, %v1941
  %v1943 = vpop.f32.mrb[0].mxu0
  %v1944 = vadd.f32 0.0, %v1943
  %v1945 = vpop.f32.mrb[0].mxu0
  %v1946 = vadd.f32 0.0, %v1945
  %1947 = vdwg.mxu0
  %1948 = vmatprep.subr.bf16.mxu0 %v1844
  %1949 = vmatpush1.bf16.msra.mxu0 %v1843
  %1950 = vmatprep.subr.bf16.mxu0 %v1848
  %1951 = vmatpush1.bf16.msra.mxu0 %v1847
  %1952 = vmatprep.subr.bf16.mxu0 %v1852
  %1953 = vmatpush1.bf16.msra.mxu0 %v1851
  %1954 = vmatprep.subr.bf16.mxu0 %v1856
  %1955 = vmatpush1.bf16.msra.mxu0 %v1855
  %1956 = vmatprep.subr.bf16.mxu0 %v1860
  %1957 = vmatpush1.bf16.msra.mxu0 %v1859
  %1958 = vmatprep.subr.bf16.mxu0 %v1864
  %1959 = vmatpush1.bf16.msra.mxu0 %v1863
  %1960 = vmatprep.subr.bf16.mxu0 %v1868
  %1961 = vmatpush1.bf16.msra.mxu0 %v1867
  %1962 = vmatprep.subr.bf16.mxu0 %v1872
  %1963 = vmatpush1.bf16.msra.mxu0 %v1871
  %1964 = vmatprep.subr.bf16.mxu0 0
  %1965 = vmatpush1.bf16.msra.mxu0 0
  %1966 = vmatprep.subr.bf16.mxu0 0
  %1967 = vmatpush1.bf16.msra.mxu0 0
  %1968 = vmatprep.subr.bf16.mxu0 0
  %1969 = vmatpush1.bf16.msra.mxu0 0
  %1970 = vmatprep.subr.bf16.mxu0 0
  %1971 = vmatpush1.bf16.msra.mxu0 0
  %1972 = vmatprep.subr.bf16.mxu0 0
  %1973 = vmatpush1.bf16.msra.mxu0 0
  %1974 = vmatprep.subr.bf16.mxu0 0
  %1975 = vmatpush1.bf16.msra.mxu0 0
  %1976 = vmatprep.subr.bf16.mxu0 0
  %1977 = vmatpush1.bf16.msra.mxu0 0
  %1978 = vmatprep.subr.bf16.mxu0 0
  %1979 = vmatpush1.bf16.msra.mxu0 0
  %1980 = vmatprep.mubr.bf16.mxu0 0
  %1981 = vmatmul.mubr.bf16.gmra.mrb[0].mxu0 %v1712
  %v1982 = vpop.f32.mrb[0].mxu0
  %v1983 = vadd.f32 0.0, %v1982
  %v1984 = vpop.f32.mrb[0].mxu0
  %v1985 = vadd.f32 0.0, %v1984
  %v1986 = vpop.f32.mrb[0].mxu0
  %v1987 = vadd.f32 0.0, %v1986
  %v1988 = vpop.f32.mrb[0].mxu0
  %v1989 = vadd.f32 0.0, %v1988
  %1990 = vdwg.mxu0
  %v1991 = vadd.f32 %v1704, %v1940
  %v1992 = vadd.f32 %v1705, %v1942
  %v1993 = vadd.f32 %v1706, %v1983
  %v1994 = vadd.f32 %v1707, %v1985
  %v1995 = vadd.f32 %v1708, %v1944
  %v1996 = vadd.f32 %v1709, %v1946
  %v1997 = vadd.f32 %v1710, %v1987
  %v1998 = vadd.f32 %v1711, %v1989
  %v1999 = vxor.u32 %v1991, 2147483648
  %v2000 = vxor.u32 %v1995, 2147483648
  %v2001 = vmul.f32 %v1999, 1.442695
  %v2002 = vpow.pop %v2001
  %v2003 = vmul.f32 %v2000, 1.442695
  %v2004 = vpow.pop %v2003
  %v2005 = vadd.f32 %v2002, 1.0
  %v2006 = vadd.f32 %v2004, 1.0
  %v2007 = vrcp.pop %v2005
  %v2008 = vmul.f32 1.0, %v2007
  %v2009 = vrcp.pop %v2006
  %v2010 = vmul.f32 1.0, %v2009
  %v2011 = vxor.u32 %v1992, 2147483648
  %v2012 = vxor.u32 %v1996, 2147483648
  %v2013 = vmul.f32 %v2011, 1.442695
  %v2014 = vpow.pop %v2013
  %v2015 = vmul.f32 %v2012, 1.442695
  %v2016 = vpow.pop %v2015
  %v2017 = vadd.f32 %v2014, 1.0
  %v2018 = vadd.f32 %v2016, 1.0
  %v2019 = vrcp.pop %v2017
  %v2020 = vmul.f32 1.0, %v2019
  %v2021 = vrcp.pop %v2018
  %v2022 = vmul.f32 1.0, %v2021
  %v2023 = vtanh.pop %v1993
  %v2024 = vtanh.pop %v1997
  %v2025 = vxor.u32 %v1994, 2147483648
  %v2026 = vxor.u32 %v1998, 2147483648
  %v2027 = vmul.f32 %v2025, 1.442695
  %v2028 = vpow.pop %v2027
  %v2029 = vmul.f32 %v2026, 1.442695
  %v2030 = vpow.pop %v2029
  %v2031 = vadd.f32 %v2028, 1.0
  %v2032 = vadd.f32 %v2030, 1.0
  %v2033 = vrcp.pop %v2031
  %v2034 = vmul.f32 1.0, %v2033
  %v2035 = vrcp.pop %v2032
  %v2036 = vmul.f32 1.0, %v2035
  %v2037 = vmul.f32 %v2020, %v1701
  %v2038 = vmul.f32 %v2022, %v1702
  %v2039 = vmul.f32 %v2008, %v2023
  %v2040 = vmul.f32 %v2010, %v2024
  %v2041 = vadd.f32 %v2037, %v2039
  %v2042 = vadd.f32 %v2038, %v2040
  %v2043 = vtanh.pop %v2041
  %v2044 = vtanh.pop %v2042
  %v2045 = vmul.f32 %v2034, %v2043
  %v2046 = vmul.f32 %v2036, %v2044
  %2047 = vst [vmem:[#allocation4] sm:$0xff] %v2045
  %2048 = vst [vmem:[#allocation4 + $0x8] sm:$0xff] %v2046
  %2049 = vst [vmem:[#allocation5] sm:$0xff] %v2041
  %2050 = vst [vmem:[#allocation5 + $0x8] sm:$0xff] %v2042
  %v2051 = vpack.c.bf16 %v2046, %v2045
  %s2052 = scalar_lea.vmem [#allocation2], 24
  %2053 = vst [vmem:[%s2052] sm:$0xff] %v2051
  %v2054 = vld [vmem:[#allocation4] sm:$0xff]
  %v2055 = vld [vmem:[#allocation4 + $0x8] sm:$0xff]
  %v2056 = vld [vmem:[#allocation5] sm:$0xff]
  %v2057 = vld [vmem:[#allocation5 + $0x8] sm:$0xff]
  %s2058 = scalar_lea.vmem [#allocation3], 256
  %v2059 = vld [vmem:[%s2058] sm:$0xff]
  %v2060 = vld [vmem:[%s2058 + $0x8] sm:$0xff]
  %v2061 = vld [vmem:[%s2058 + $0x10] sm:$0xff]
  %v2062 = vld [vmem:[%s2058 + $0x18] sm:$0xff]
  %v2063 = vld [vmem:[%s2058 + $0x20] sm:$0xff]
  %v2064 = vld [vmem:[%s2058 + $0x28] sm:$0xff]
  %v2065 = vld [vmem:[%s2058 + $0x30] sm:$0xff]
  %v2066 = vld [vmem:[%s2058 + $0x38] sm:$0xff]
  %v2067 = vpack.c.bf16 %v2055, %v2054
  %v2068 = vld [vmem:[%s3] sm:$0xff]
  %v2069 = vld [vmem:[%s3 + $0x8] sm:$0xff]
  %v2070 = vld [vmem:[%s3 + $0x10] sm:$0xff]
  %v2071 = vld [vmem:[%s3 + $0x18] sm:$0xff]
  %v2072 = vld [vmem:[%s3 + $0x20] sm:$0xff]
  %v2073 = vld [vmem:[%s3 + $0x28] sm:$0xff]
  %v2074 = vld [vmem:[%s3 + $0x30] sm:$0xff]
  %v2075 = vld [vmem:[%s3 + $0x38] sm:$0xff]
  %v2076 = vld [vmem:[%s3 + $0x40] sm:$0xff]
  %v2077 = vld [vmem:[%s3 + $0x48] sm:$0xff]
  %v2078 = vld [vmem:[%s3 + $0x50] sm:$0xff]
  %v2079 = vld [vmem:[%s3 + $0x58] sm:$0xff]
  %v2080 = vld [vmem:[%s3 + $0x60] sm:$0xff]
  %v2081 = vld [vmem:[%s3 + $0x68] sm:$0xff]
  %v2082 = vld [vmem:[%s3 + $0x70] sm:$0xff]
  %v2083 = vld [vmem:[%s3 + $0x78] sm:$0xff]
  %v2084 = vld [vmem:[%s3 + $0x80] sm:$0xff]
  %v2085 = vld [vmem:[%s3 + $0x88] sm:$0xff]
  %v2086 = vld [vmem:[%s3 + $0x90] sm:$0xff]
  %v2087 = vld [vmem:[%s3 + $0x98] sm:$0xff]
  %v2088 = vld [vmem:[%s3 + $0xa0] sm:$0xff]
  %v2089 = vld [vmem:[%s3 + $0xa8] sm:$0xff]
  %v2090 = vld [vmem:[%s3 + $0xb0] sm:$0xff]
  %v2091 = vld [vmem:[%s3 + $0xb8] sm:$0xff]
  %v2092 = vld [vmem:[%s3 + $0xc0] sm:$0xff]
  %v2093 = vld [vmem:[%s3 + $0xc8] sm:$0xff]
  %v2094 = vld [vmem:[%s3 + $0xd0] sm:$0xff]
  %v2095 = vld [vmem:[%s3 + $0xd8] sm:$0xff]
  %v2096 = vld [vmem:[%s3 + $0xe0] sm:$0xff]
  %v2097 = vld [vmem:[%s3 + $0xe8] sm:$0xff]
  %v2098 = vld [vmem:[%s3 + $0xf0] sm:$0xff]
  %v2099 = vld [vmem:[%s3 + $0xf8] sm:$0xff]
  %v2132 = vunpack.c.l.b16 %v2068
  %v2133 = vunpack.c.h.b16 %v2068
  %v2134 = vunpack.c.l.b16 %v2069
  %v2135 = vunpack.c.h.b16 %v2069
  %v2136 = vunpack.c.l.b16 %v2070
  %v2137 = vunpack.c.h.b16 %v2070
  %v2138 = vunpack.c.l.b16 %v2071
  %v2139 = vunpack.c.h.b16 %v2071
  %v2140 = vunpack.c.l.b16 %v2072
  %v2141 = vunpack.c.h.b16 %v2072
  %v2142 = vunpack.c.l.b16 %v2073
  %v2143 = vunpack.c.h.b16 %v2073
  %v2144 = vunpack.c.l.b16 %v2074
  %v2145 = vunpack.c.h.b16 %v2074
  %v2146 = vunpack.c.l.b16 %v2075
  %v2147 = vunpack.c.h.b16 %v2075
  %v2148 = vunpack.c.l.b16 %v2076
  %v2149 = vunpack.c.h.b16 %v2076
  %v2150 = vunpack.c.l.b16 %v2077
  %v2151 = vunpack.c.h.b16 %v2077
  %v2152 = vunpack.c.l.b16 %v2078
  %v2153 = vunpack.c.h.b16 %v2078
  %v2154 = vunpack.c.l.b16 %v2079
  %v2155 = vunpack.c.h.b16 %v2079
  %v2156 = vunpack.c.l.b16 %v2080
  %v2157 = vunpack.c.h.b16 %v2080
  %v2158 = vunpack.c.l.b16 %v2081
  %v2159 = vunpack.c.h.b16 %v2081
  %v2160 = vunpack.c.l.b16 %v2082
  %v2161 = vunpack.c.h.b16 %v2082
  %v2162 = vunpack.c.l.b16 %v2083
  %v2163 = vunpack.c.h.b16 %v2083
  %v2164 = vunpack.c.l.b16 %v2084
  %v2165 = vunpack.c.h.b16 %v2084
  %v2166 = vunpack.c.l.b16 %v2085
  %v2167 = vunpack.c.h.b16 %v2085
  %v2168 = vunpack.c.l.b16 %v2086
  %v2169 = vunpack.c.h.b16 %v2086
  %v2170 = vunpack.c.l.b16 %v2087
  %v2171 = vunpack.c.h.b16 %v2087
  %v2172 = vunpack.c.l.b16 %v2088
  %v2173 = vunpack.c.h.b16 %v2088
  %v2174 = vunpack.c.l.b16 %v2089
  %v2175 = vunpack.c.h.b16 %v2089
  %v2176 = vunpack.c.l.b16 %v2090
  %v2177 = vunpack.c.h.b16 %v2090
  %v2178 = vunpack.c.l.b16 %v2091
  %v2179 = vunpack.c.h.b16 %v2091
  %v2180 = vunpack.c.l.b16 %v2092
  %v2181 = vunpack.c.h.b16 %v2092
  %v2182 = vunpack.c.l.b16 %v2093
  %v2183 = vunpack.c.h.b16 %v2093
  %v2184 = vunpack.c.l.b16 %v2094
  %v2185 = vunpack.c.h.b16 %v2094
  %v2186 = vunpack.c.l.b16 %v2095
  %v2187 = vunpack.c.h.b16 %v2095
  %v2188 = vunpack.c.l.b16 %v2096
  %v2189 = vunpack.c.h.b16 %v2096
  %v2190 = vunpack.c.l.b16 %v2097
  %v2191 = vunpack.c.h.b16 %v2097
  %v2192 = vunpack.c.l.b16 %v2098
  %v2193 = vunpack.c.h.b16 %v2098
  %v2194 = vunpack.c.l.b16 %v2099
  %v2195 = vunpack.c.h.b16 %v2099
  %v2196 = vpack.c.b16 %v2136, %v2132
  %v2197 = vpack.c.b16 %v2137, %v2133
  %v2198 = vpack.c.b16 %v2138, %v2134
  %v2199 = vpack.c.b16 %v2139, %v2135
  %v2200 = vpack.c.b16 %v2144, %v2140
  %v2201 = vpack.c.b16 %v2145, %v2141
  %v2202 = vpack.c.b16 %v2146, %v2142
  %v2203 = vpack.c.b16 %v2147, %v2143
  %v2204 = vpack.c.b16 %v2152, %v2148
  %v2205 = vpack.c.b16 %v2153, %v2149
  %v2206 = vpack.c.b16 %v2154, %v2150
  %v2207 = vpack.c.b16 %v2155, %v2151
  %v2208 = vpack.c.b16 %v2160, %v2156
  %v2209 = vpack.c.b16 %v2161, %v2157
  %v2210 = vpack.c.b16 %v2162, %v2158
  %v2211 = vpack.c.b16 %v2163, %v2159
  %v2212 = vpack.c.b16 %v2168, %v2164
  %v2213 = vpack.c.b16 %v2169, %v2165
  %v2214 = vpack.c.b16 %v2170, %v2166
  %v2215 = vpack.c.b16 %v2171, %v2167
  %v2216 = vpack.c.b16 %v2176, %v2172
  %v2217 = vpack.c.b16 %v2177, %v2173
  %v2218 = vpack.c.b16 %v2178, %v2174
  %v2219 = vpack.c.b16 %v2179, %v2175
  %v2220 = vpack.c.b16 %v2184, %v2180
  %v2221 = vpack.c.b16 %v2185, %v2181
  %v2222 = vpack.c.b16 %v2186, %v2182
  %v2223 = vpack.c.b16 %v2187, %v2183
  %v2224 = vpack.c.b16 %v2192, %v2188
  %v2225 = vpack.c.b16 %v2193, %v2189
  %v2226 = vpack.c.b16 %v2194, %v2190
  %v2227 = vpack.c.b16 %v2195, %v2191
  %2260 = vmatprep.subr.bf16.mxu0 %v2197
  %2261 = vmatpush1.bf16.msra.mxu0 %v2196
  %2262 = vmatprep.subr.bf16.mxu0 %v2201
  %2263 = vmatpush1.bf16.msra.mxu0 %v2200
  %2264 = vmatprep.subr.bf16.mxu0 %v2205
  %2265 = vmatpush1.bf16.msra.mxu0 %v2204
  %2266 = vmatprep.subr.bf16.mxu0 %v2209
  %2267 = vmatpush1.bf16.msra.mxu0 %v2208
  %2268 = vmatprep.subr.bf16.mxu0 %v2213
  %2269 = vmatpush1.bf16.msra.mxu0 %v2212
  %2270 = vmatprep.subr.bf16.mxu0 %v2217
  %2271 = vmatpush1.bf16.msra.mxu0 %v2216
  %2272 = vmatprep.subr.bf16.mxu0 %v2221
  %2273 = vmatpush1.bf16.msra.mxu0 %v2220
  %2274 = vmatprep.subr.bf16.mxu0 %v2225
  %2275 = vmatpush1.bf16.msra.mxu0 %v2224
  %2276 = vmatprep.subr.bf16.mxu0 0
  %2277 = vmatpush1.bf16.msra.mxu0 0
  %2278 = vmatprep.subr.bf16.mxu0 0
  %2279 = vmatpush1.bf16.msra.mxu0 0
  %2280 = vmatprep.subr.bf16.mxu0 0
  %2281 = vmatpush1.bf16.msra.mxu0 0
  %2282 = vmatprep.subr.bf16.mxu0 0
  %2283 = vmatpush1.bf16.msra.mxu0 0
  %2284 = vmatprep.subr.bf16.mxu0 0
  %2285 = vmatpush1.bf16.msra.mxu0 0
  %2286 = vmatprep.subr.bf16.mxu0 0
  %2287 = vmatpush1.bf16.msra.mxu0 0
  %2288 = vmatprep.subr.bf16.mxu0 0
  %2289 = vmatpush1.bf16.msra.mxu0 0
  %2290 = vmatprep.subr.bf16.mxu0 0
  %2291 = vmatpush1.bf16.msra.mxu0 0
  %2292 = vmatprep.mubr.bf16.mxu0 0
  %2293 = vmatmul.mubr.bf16.gmra.mrb[0].mxu0 %v2067
  %v2294 = vpop.f32.mrb[0].mxu0
  %v2295 = vadd.f32 0.0, %v2294
  %v2296 = vpop.f32.mrb[0].mxu0
  %v2297 = vadd.f32 0.0, %v2296
  %v2298 = vpop.f32.mrb[0].mxu0
  %v2299 = vadd.f32 0.0, %v2298
  %v2300 = vpop.f32.mrb[0].mxu0
  %v2301 = vadd.f32 0.0, %v2300
  %2302 = vdwg.mxu0
  %2303 = vmatprep.subr.bf16.mxu0 %v2199
  %2304 = vmatpush1.bf16.msra.mxu0 %v2198
  %2305 = vmatprep.subr.bf16.mxu0 %v2203
  %2306 = vmatpush1.bf16.msra.mxu0 %v2202
  %2307 = vmatprep.subr.bf16.mxu0 %v2207
  %2308 = vmatpush1.bf16.msra.mxu0 %v2206
  %2309 = vmatprep.subr.bf16.mxu0 %v2211
  %2310 = vmatpush1.bf16.msra.mxu0 %v2210
  %2311 = vmatprep.subr.bf16.mxu0 %v2215
  %2312 = vmatpush1.bf16.msra.mxu0 %v2214
  %2313 = vmatprep.subr.bf16.mxu0 %v2219
  %2314 = vmatpush1.bf16.msra.mxu0 %v2218
  %2315 = vmatprep.subr.bf16.mxu0 %v2223
  %2316 = vmatpush1.bf16.msra.mxu0 %v2222
  %2317 = vmatprep.subr.bf16.mxu0 %v2227
  %2318 = vmatpush1.bf16.msra.mxu0 %v2226
  %2319 = vmatprep.subr.bf16.mxu0 0
  %2320 = vmatpush1.bf16.msra.mxu0 0
  %2321 = vmatprep.subr.bf16.mxu0 0
  %2322 = vmatpush1.bf16.msra.mxu0 0
  %2323 = vmatprep.subr.bf16.mxu0 0
  %2324 = vmatpush1.bf16.msra.mxu0 0
  %2325 = vmatprep.subr.bf16.mxu0 0
  %2326 = vmatpush1.bf16.msra.mxu0 0
  %2327 = vmatprep.subr.bf16.mxu0 0
  %2328 = vmatpush1.bf16.msra.mxu0 0
  %2329 = vmatprep.subr.bf16.mxu0 0
  %2330 = vmatpush1.bf16.msra.mxu0 0
  %2331 = vmatprep.subr.bf16.mxu0 0
  %2332 = vmatpush1.bf16.msra.mxu0 0
  %2333 = vmatprep.subr.bf16.mxu0 0
  %2334 = vmatpush1.bf16.msra.mxu0 0
  %2335 = vmatprep.mubr.bf16.mxu0 0
  %2336 = vmatmul.mubr.bf16.gmra.mrb[0].mxu0 %v2067
  %v2337 = vpop.f32.mrb[0].mxu0
  %v2338 = vadd.f32 0.0, %v2337
  %v2339 = vpop.f32.mrb[0].mxu0
  %v2340 = vadd.f32 0.0, %v2339
  %v2341 = vpop.f32.mrb[0].mxu0
  %v2342 = vadd.f32 0.0, %v2341
  %v2343 = vpop.f32.mrb[0].mxu0
  %v2344 = vadd.f32 0.0, %v2343
  %2345 = vdwg.mxu0
  %v2346 = vadd.f32 %v2059, %v2295
  %v2347 = vadd.f32 %v2060, %v2297
  %v2348 = vadd.f32 %v2061, %v2338
  %v2349 = vadd.f32 %v2062, %v2340
  %v2350 = vadd.f32 %v2063, %v2299
  %v2351 = vadd.f32 %v2064, %v2301
  %v2352 = vadd.f32 %v2065, %v2342
  %v2353 = vadd.f32 %v2066, %v2344
  %v2354 = vxor.u32 %v2346, 2147483648
  %v2355 = vxor.u32 %v2350, 2147483648
  %v2356 = vmul.f32 %v2354, 1.442695
  %v2357 = vpow.pop %v2356
  %v2358 = vmul.f32 %v2355, 1.442695
  %v2359 = vpow.pop %v2358
  %v2360 = vadd.f32 %v2357, 1.0
  %v2361 = vadd.f32 %v2359, 1.0
  %v2362 = vrcp.pop %v2360
  %v2363 = vmul.f32 1.0, %v2362
  %v2364 = vrcp.pop %v2361
  %v2365 = vmul.f32 1.0, %v2364
  %v2366 = vxor.u32 %v2347, 2147483648
  %v2367 = vxor.u32 %v2351, 2147483648
  %v2368 = vmul.f32 %v2366, 1.442695
  %v2369 = vpow.pop %v2368
  %v2370 = vmul.f32 %v2367, 1.442695
  %v2371 = vpow.pop %v2370
  %v2372 = vadd.f32 %v2369, 1.0
  %v2373 = vadd.f32 %v2371, 1.0
  %v2374 = vrcp.pop %v2372
  %v2375 = vmul.f32 1.0, %v2374
  %v2376 = vrcp.pop %v2373
  %v2377 = vmul.f32 1.0, %v2376
  %v2378 = vtanh.pop %v2348
  %v2379 = vtanh.pop %v2352
  %v2380 = vxor.u32 %v2349, 2147483648
  %v2381 = vxor.u32 %v2353, 2147483648
  %v2382 = vmul.f32 %v2380, 1.442695
  %v2383 = vpow.pop %v2382
  %v2384 = vmul.f32 %v2381, 1.442695
  %v2385 = vpow.pop %v2384
  %v2386 = vadd.f32 %v2383, 1.0
  %v2387 = vadd.f32 %v2385, 1.0
  %v2388 = vrcp.pop %v2386
  %v2389 = vmul.f32 1.0, %v2388
  %v2390 = vrcp.pop %v2387
  %v2391 = vmul.f32 1.0, %v2390
  %v2392 = vmul.f32 %v2375, %v2056
  %v2393 = vmul.f32 %v2377, %v2057
  %v2394 = vmul.f32 %v2363, %v2378
  %v2395 = vmul.f32 %v2365, %v2379
  %v2396 = vadd.f32 %v2392, %v2394
  %v2397 = vadd.f32 %v2393, %v2395
  %v2398 = vtanh.pop %v2396
  %v2399 = vtanh.pop %v2397
  %v2400 = vmul.f32 %v2389, %v2398
  %v2401 = vmul.f32 %v2391, %v2399
  %2402 = vst [vmem:[#allocation4] sm:$0xff] %v2400
  %2403 = vst [vmem:[#allocation4 + $0x8] sm:$0xff] %v2401
  %2404 = vst [vmem:[#allocation5] sm:$0xff] %v2396
  %2405 = vst [vmem:[#allocation5 + $0x8] sm:$0xff] %v2397
  %v2406 = vpack.c.bf16 %v2401, %v2400
  %s2407 = scalar_lea.vmem [#allocation2], 32
  %2408 = vst [vmem:[%s2407] sm:$0xff] %v2406
  %v2409 = vld [vmem:[#allocation4] sm:$0xff]
  %v2410 = vld [vmem:[#allocation4 + $0x8] sm:$0xff]
  %v2411 = vld [vmem:[#allocation5] sm:$0xff]
  %v2412 = vld [vmem:[#allocation5 + $0x8] sm:$0xff]
  %s2413 = scalar_lea.vmem [#allocation3], 320
  %v2414 = vld [vmem:[%s2413] sm:$0xff]
  %v2415 = vld [vmem:[%s2413 + $0x8] sm:$0xff]
  %v2416 = vld [vmem:[%s2413 + $0x10] sm:$0xff]
  %v2417 = vld [vmem:[%s2413 + $0x18] sm:$0xff]
  %v2418 = vld [vmem:[%s2413 + $0x20] sm:$0xff]
  %v2419 = vld [vmem:[%s2413 + $0x28] sm:$0xff]
  %v2420 = vld [vmem:[%s2413 + $0x30] sm:$0xff]
  %v2421 = vld [vmem:[%s2413 + $0x38] sm:$0xff]
  %v2422 = vpack.c.bf16 %v2410, %v2409
  %v2423 = vld [vmem:[%s3] sm:$0xff]
  %v2424 = vld [vmem:[%s3 + $0x8] sm:$0xff]
  %v2425 = vld [vmem:[%s3 + $0x10] sm:$0xff]
  %v2426 = vld [vmem:[%s3 + $0x18] sm:$0xff]
  %v2427 = vld [vmem:[%s3 + $0x20] sm:$0xff]
  %v2428 = vld [vmem:[%s3 + $0x28] sm:$0xff]
  %v2429 = vld [vmem:[%s3 + $0x30] sm:$0xff]
  %v2430 = vld [vmem:[%s3 + $0x38] sm:$0xff]
  %v2431 = vld [vmem:[%s3 + $0x40] sm:$0xff]
  %v2432 = vld [vmem:[%s3 + $0x48] sm:$0xff]
  %v2433 = vld [vmem:[%s3 + $0x50] sm:$0xff]
  %v2434 = vld [vmem:[%s3 + $0x58] sm:$0xff]
  %v2435 = vld [vmem:[%s3 + $0x60] sm:$0xff]
  %v2436 = vld [vmem:[%s3 + $0x68] sm:$0xff]
  %v2437 = vld [vmem:[%s3 + $0x70] sm:$0xff]
  %v2438 = vld [vmem:[%s3 + $0x78] sm:$0xff]
  %v2439 = vld [vmem:[%s3 + $0x80] sm:$0xff]
  %v2440 = vld [vmem:[%s3 + $0x88] sm:$0xff]
  %v2441 = vld [vmem:[%s3 + $0x90] sm:$0xff]
  %v2442 = vld [vmem:[%s3 + $0x98] sm:$0xff]
  %v2443 = vld [vmem:[%s3 + $0xa0] sm:$0xff]
  %v2444 = vld [vmem:[%s3 + $0xa8] sm:$0xff]
  %v2445 = vld [vmem:[%s3 + $0xb0] sm:$0xff]
  %v2446 = vld [vmem:[%s3 + $0xb8] sm:$0xff]
  %v2447 = vld [vmem:[%s3 + $0xc0] sm:$0xff]
  %v2448 = vld [vmem:[%s3 + $0xc8] sm:$0xff]
  %v2449 = vld [vmem:[%s3 + $0xd0] sm:$0xff]
  %v2450 = vld [vmem:[%s3 + $0xd8] sm:$0xff]
  %v2451 = vld [vmem:[%s3 + $0xe0] sm:$0xff]
  %v2452 = vld [vmem:[%s3 + $0xe8] sm:$0xff]
  %v2453 = vld [vmem:[%s3 + $0xf0] sm:$0xff]
  %v2454 = vld [vmem:[%s3 + $0xf8] sm:$0xff]
  %v2487 = vunpack.c.l.b16 %v2423
  %v2488 = vunpack.c.h.b16 %v2423
  %v2489 = vunpack.c.l.b16 %v2424
  %v2490 = vunpack.c.h.b16 %v2424
  %v2491 = vunpack.c.l.b16 %v2425
  %v2492 = vunpack.c.h.b16 %v2425
  %v2493 = vunpack.c.l.b16 %v2426
  %v2494 = vunpack.c.h.b16 %v2426
  %v2495 = vunpack.c.l.b16 %v2427
  %v2496 = vunpack.c.h.b16 %v2427
  %v2497 = vunpack.c.l.b16 %v2428
  %v2498 = vunpack.c.h.b16 %v2428
  %v2499 = vunpack.c.l.b16 %v2429
  %v2500 = vunpack.c.h.b16 %v2429
  %v2501 = vunpack.c.l.b16 %v2430
  %v2502 = vunpack.c.h.b16 %v2430
  %v2503 = vunpack.c.l.b16 %v2431
  %v2504 = vunpack.c.h.b16 %v2431
  %v2505 = vunpack.c.l.b16 %v2432
  %v2506 = vunpack.c.h.b16 %v2432
  %v2507 = vunpack.c.l.b16 %v2433
  %v2508 = vunpack.c.h.b16 %v2433
  %v2509 = vunpack.c.l.b16 %v2434
  %v2510 = vunpack.c.h.b16 %v2434
  %v2511 = vunpack.c.l.b16 %v2435
  %v2512 = vunpack.c.h.b16 %v2435
  %v2513 = vunpack.c.l.b16 %v2436
  %v2514 = vunpack.c.h.b16 %v2436
  %v2515 = vunpack.c.l.b16 %v2437
  %v2516 = vunpack.c.h.b16 %v2437
  %v2517 = vunpack.c.l.b16 %v2438
  %v2518 = vunpack.c.h.b16 %v2438
  %v2519 = vunpack.c.l.b16 %v2439
  %v2520 = vunpack.c.h.b16 %v2439
  %v2521 = vunpack.c.l.b16 %v2440
  %v2522 = vunpack.c.h.b16 %v2440
  %v2523 = vunpack.c.l.b16 %v2441
  %v2524 = vunpack.c.h.b16 %v2441
  %v2525 = vunpack.c.l.b16 %v2442
  %v2526 = vunpack.c.h.b16 %v2442
  %v2527 = vunpack.c.l.b16 %v2443
  %v2528 = vunpack.c.h.b16 %v2443
  %v2529 = vunpack.c.l.b16 %v2444
  %v2530 = vunpack.c.h.b16 %v2444
  %v2531 = vunpack.c.l.b16 %v2445
  %v2532 = vunpack.c.h.b16 %v2445
  %v2533 = vunpack.c.l.b16 %v2446
  %v2534 = vunpack.c.h.b16 %v2446
  %v2535 = vunpack.c.l.b16 %v2447
  %v2536 = vunpack.c.h.b16 %v2447
  %v2537 = vunpack.c.l.b16 %v2448
  %v2538 = vunpack.c.h.b16 %v2448
  %v2539 = vunpack.c.l.b16 %v2449
  %v2540 = vunpack.c.h.b16 %v2449
  %v2541 = vunpack.c.l.b16 %v2450
  %v2542 = vunpack.c.h.b16 %v2450
  %v2543 = vunpack.c.l.b16 %v2451
  %v2544 = vunpack.c.h.b16 %v2451
  %v2545 = vunpack.c.l.b16 %v2452
  %v2546 = vunpack.c.h.b16 %v2452
  %v2547 = vunpack.c.l.b16 %v2453
  %v2548 = vunpack.c.h.b16 %v2453
  %v2549 = vunpack.c.l.b16 %v2454
  %v2550 = vunpack.c.h.b16 %v2454
  %v2551 = vpack.c.b16 %v2491, %v2487
  %v2552 = vpack.c.b16 %v2492, %v2488
  %v2553 = vpack.c.b16 %v2493, %v2489
  %v2554 = vpack.c.b16 %v2494, %v2490
  %v2555 = vpack.c.b16 %v2499, %v2495
  %v2556 = vpack.c.b16 %v2500, %v2496
  %v2557 = vpack.c.b16 %v2501, %v2497
  %v2558 = vpack.c.b16 %v2502, %v2498
  %v2559 = vpack.c.b16 %v2507, %v2503
  %v2560 = vpack.c.b16 %v2508, %v2504
  %v2561 = vpack.c.b16 %v2509, %v2505
  %v2562 = vpack.c.b16 %v2510, %v2506
  %v2563 = vpack.c.b16 %v2515, %v2511
  %v2564 = vpack.c.b16 %v2516, %v2512
  %v2565 = vpack.c.b16 %v2517, %v2513
  %v2566 = vpack.c.b16 %v2518, %v2514
  %v2567 = vpack.c.b16 %v2523, %v2519
  %v2568 = vpack.c.b16 %v2524, %v2520
  %v2569 = vpack.c.b16 %v2525, %v2521
  %v2570 = vpack.c.b16 %v2526, %v2522
  %v2571 = vpack.c.b16 %v2531, %v2527
  %v2572 = vpack.c.b16 %v2532, %v2528
  %v2573 = vpack.c.b16 %v2533, %v2529
  %v2574 = vpack.c.b16 %v2534, %v2530
  %v2575 = vpack.c.b16 %v2539, %v2535
  %v2576 = vpack.c.b16 %v2540, %v2536
  %v2577 = vpack.c.b16 %v2541, %v2537
  %v2578 = vpack.c.b16 %v2542, %v2538
  %v2579 = vpack.c.b16 %v2547, %v2543
  %v2580 = vpack.c.b16 %v2548, %v2544
  %v2581 = vpack.c.b16 %v2549, %v2545
  %v2582 = vpack.c.b16 %v2550, %v2546
  %2615 = vmatprep.subr.bf16.mxu0 %v2552
  %2616 = vmatpush1.bf16.msra.mxu0 %v2551
  %2617 = vmatprep.subr.bf16.mxu0 %v2556
  %2618 = vmatpush1.bf16.msra.mxu0 %v2555
  %2619 = vmatprep.subr.bf16.mxu0 %v2560
  %2620 = vmatpush1.bf16.msra.mxu0 %v2559
  %2621 = vmatprep.subr.bf16.mxu0 %v2564
  %2622 = vmatpush1.bf16.msra.mxu0 %v2563
  %2623 = vmatprep.subr.bf16.mxu0 %v2568
  %2624 = vmatpush1.bf16.msra.mxu0 %v2567
  %2625 = vmatprep.subr.bf16.mxu0 %v2572
  %2626 = vmatpush1.bf16.msra.mxu0 %v2571
  %2627 = vmatprep.subr.bf16.mxu0 %v2576
  %2628 = vmatpush1.bf16.msra.mxu0 %v2575
  %2629 = vmatprep.subr.bf16.mxu0 %v2580
  %2630 = vmatpush1.bf16.msra.mxu0 %v2579
  %2631 = vmatprep.subr.bf16.mxu0 0
  %2632 = vmatpush1.bf16.msra.mxu0 0
  %2633 = vmatprep.subr.bf16.mxu0 0
  %2634 = vmatpush1.bf16.msra.mxu0 0
  %2635 = vmatprep.subr.bf16.mxu0 0
  %2636 = vmatpush1.bf16.msra.mxu0 0
  %2637 = vmatprep.subr.bf16.mxu0 0
  %2638 = vmatpush1.bf16.msra.mxu0 0
  %2639 = vmatprep.subr.bf16.mxu0 0
  %2640 = vmatpush1.bf16.msra.mxu0 0
  %2641 = vmatprep.subr.bf16.mxu0 0
  %2642 = vmatpush1.bf16.msra.mxu0 0
  %2643 = vmatprep.subr.bf16.mxu0 0
  %2644 = vmatpush1.bf16.msra.mxu0 0
  %2645 = vmatprep.subr.bf16.mxu0 0
  %2646 = vmatpush1.bf16.msra.mxu0 0
  %2647 = vmatprep.mubr.bf16.mxu0 0
  %2648 = vmatmul.mubr.bf16.gmra.mrb[0].mxu0 %v2422
  %v2649 = vpop.f32.mrb[0].mxu0
  %v2650 = vadd.f32 0.0, %v2649
  %v2651 = vpop.f32.mrb[0].mxu0
  %v2652 = vadd.f32 0.0, %v2651
  %v2653 = vpop.f32.mrb[0].mxu0
  %v2654 = vadd.f32 0.0, %v2653
  %v2655 = vpop.f32.mrb[0].mxu0
  %v2656 = vadd.f32 0.0, %v2655
  %2657 = vdwg.mxu0
  %2658 = vmatprep.subr.bf16.mxu0 %v2554
  %2659 = vmatpush1.bf16.msra.mxu0 %v2553
  %2660 = vmatprep.subr.bf16.mxu0 %v2558
  %2661 = vmatpush1.bf16.msra.mxu0 %v2557
  %2662 = vmatprep.subr.bf16.mxu0 %v2562
  %2663 = vmatpush1.bf16.msra.mxu0 %v2561
  %2664 = vmatprep.subr.bf16.mxu0 %v2566
  %2665 = vmatpush1.bf16.msra.mxu0 %v2565
  %2666 = vmatprep.subr.bf16.mxu0 %v2570
  %2667 = vmatpush1.bf16.msra.mxu0 %v2569
  %2668 = vmatprep.subr.bf16.mxu0 %v2574
  %2669 = vmatpush1.bf16.msra.mxu0 %v2573
  %2670 = vmatprep.subr.bf16.mxu0 %v2578
  %2671 = vmatpush1.bf16.msra.mxu0 %v2577
  %2672 = vmatprep.subr.bf16.mxu0 %v2582
  %2673 = vmatpush1.bf16.msra.mxu0 %v2581
  %2674 = vmatprep.subr.bf16.mxu0 0
  %2675 = vmatpush1.bf16.msra.mxu0 0
  %2676 = vmatprep.subr.bf16.mxu0 0
  %2677 = vmatpush1.bf16.msra.mxu0 0
  %2678 = vmatprep.subr.bf16.mxu0 0
  %2679 = vmatpush1.bf16.msra.mxu0 0
  %2680 = vmatprep.subr.bf16.mxu0 0
  %2681 = vmatpush1.bf16.msra.mxu0 0
  %2682 = vmatprep.subr.bf16.mxu0 0
  %2683 = vmatpush1.bf16.msra.mxu0 0
  %2684 = vmatprep.subr.bf16.mxu0 0
  %2685 = vmatpush1.bf16.msra.mxu0 0
  %2686 = vmatprep.subr.bf16.mxu0 0
  %2687 = vmatpush1.bf16.msra.mxu0 0
  %2688 = vmatprep.subr.bf16.mxu0 0
  %2689 = vmatpush1.bf16.msra.mxu0 0
  %2690 = vmatprep.mubr.bf16.mxu0 0
  %2691 = vmatmul.mubr.bf16.gmra.mrb[0].mxu0 %v2422
  %v2692 = vpop.f32.mrb[0].mxu0
  %v2693 = vadd.f32 0.0, %v2692
  %v2694 = vpop.f32.mrb[0].mxu0
  %v2695 = vadd.f32 0.0, %v2694
  %v2696 = vpop.f32.mrb[0].mxu0
  %v2697 = vadd.f32 0.0, %v2696
  %v2698 = vpop.f32.mrb[0].mxu0
  %v2699 = vadd.f32 0.0, %v2698
  %2700 = vdwg.mxu0
  %v2701 = vadd.f32 %v2414, %v2650
  %v2702 = vadd.f32 %v2415, %v2652
  %v2703 = vadd.f32 %v2416, %v2693
  %v2704 = vadd.f32 %v2417, %v2695
  %v2705 = vadd.f32 %v2418, %v2654
  %v2706 = vadd.f32 %v2419, %v2656
  %v2707 = vadd.f32 %v2420, %v2697
  %v2708 = vadd.f32 %v2421, %v2699
  %v2709 = vxor.u32 %v2701, 2147483648
  %v2710 = vxor.u32 %v2705, 2147483648
  %v2711 = vmul.f32 %v2709, 1.442695
  %v2712 = vpow.pop %v2711
  %v2713 = vmul.f32 %v2710, 1.442695
  %v2714 = vpow.pop %v2713
  %v2715 = vadd.f32 %v2712, 1.0
  %v2716 = vadd.f32 %v2714, 1.0
  %v2717 = vrcp.pop %v2715
  %v2718 = vmul.f32 1.0, %v2717
  %v2719 = vrcp.pop %v2716
  %v2720 = vmul.f32 1.0, %v2719
  %v2721 = vxor.u32 %v2702, 2147483648
  %v2722 = vxor.u32 %v2706, 2147483648
  %v2723 = vmul.f32 %v2721, 1.442695
  %v2724 = vpow.pop %v2723
  %v2725 = vmul.f32 %v2722, 1.442695
  %v2726 = vpow.pop %v2725
  %v2727 = vadd.f32 %v2724, 1.0
  %v2728 = vadd.f32 %v2726, 1.0
  %v2729 = vrcp.pop %v2727
  %v2730 = vmul.f32 1.0, %v2729
  %v2731 = vrcp.pop %v2728
  %v2732 = vmul.f32 1.0, %v2731
  %v2733 = vtanh.pop %v2703
  %v2734 = vtanh.pop %v2707
  %v2735 = vxor.u32 %v2704, 2147483648
  %v2736 = vxor.u32 %v2708, 2147483648
  %v2737 = vmul.f32 %v2735, 1.442695
  %v2738 = vpow.pop %v2737
  %v2739 = vmul.f32 %v2736, 1.442695
  %v2740 = vpow.pop %v2739
  %v2741 = vadd.f32 %v2738, 1.0
  %v2742 = vadd.f32 %v2740, 1.0
  %v2743 = vrcp.pop %v2741
  %v2744 = vmul.f32 1.0, %v2743
  %v2745 = vrcp.pop %v2742
  %v2746 = vmul.f32 1.0, %v2745
  %v2747 = vmul.f32 %v2730, %v2411
  %v2748 = vmul.f32 %v2732, %v2412
  %v2749 = vmul.f32 %v2718, %v2733
  %v2750 = vmul.f32 %v2720, %v2734
  %v2751 = vadd.f32 %v2747, %v2749
  %v2752 = vadd.f32 %v2748, %v2750
  %v2753 = vtanh.pop %v2751
  %v2754 = vtanh.pop %v2752
  %v2755 = vmul.f32 %v2744, %v2753
  %v2756 = vmul.f32 %v2746, %v2754
  %2757 = vst [vmem:[#allocation4] sm:$0xff] %v2755
  %2758 = vst [vmem:[#allocation4 + $0x8] sm:$0xff] %v2756
  %2759 = vst [vmem:[#allocation5] sm:$0xff] %v2751
  %2760 = vst [vmem:[#allocation5 + $0x8] sm:$0xff] %v2752
  %v2761 = vpack.c.bf16 %v2756, %v2755
  %s2762 = scalar_lea.vmem [#allocation2], 40
  %2763 = vst [vmem:[%s2762] sm:$0xff] %v2761
  %v2764 = vld [vmem:[#allocation4] sm:$0xff]
  %v2765 = vld [vmem:[#allocation4 + $0x8] sm:$0xff]
  %v2766 = vld [vmem:[#allocation5] sm:$0xff]
  %v2767 = vld [vmem:[#allocation5 + $0x8] sm:$0xff]
  %s2768 = scalar_lea.vmem [#allocation3], 384
  %v2769 = vld [vmem:[%s2768] sm:$0xff]
  %v2770 = vld [vmem:[%s2768 + $0x8] sm:$0xff]
  %v2771 = vld [vmem:[%s2768 + $0x10] sm:$0xff]
  %v2772 = vld [vmem:[%s2768 + $0x18] sm:$0xff]
  %v2773 = vld [vmem:[%s2768 + $0x20] sm:$0xff]
  %v2774 = vld [vmem:[%s2768 + $0x28] sm:$0xff]
  %v2775 = vld [vmem:[%s2768 + $0x30] sm:$0xff]
  %v2776 = vld [vmem:[%s2768 + $0x38] sm:$0xff]
  %v2777 = vpack.c.bf16 %v2765, %v2764
  %v2778 = vld [vmem:[%s3] sm:$0xff]
  %v2779 = vld [vmem:[%s3 + $0x8] sm:$0xff]
  %v2780 = vld [vmem:[%s3 + $0x10] sm:$0xff]
  %v2781 = vld [vmem:[%s3 + $0x18] sm:$0xff]
  %v2782 = vld [vmem:[%s3 + $0x20] sm:$0xff]
  %v2783 = vld [vmem:[%s3 + $0x28] sm:$0xff]
  %v2784 = vld [vmem:[%s3 + $0x30] sm:$0xff]
  %v2785 = vld [vmem:[%s3 + $0x38] sm:$0xff]
  %v2786 = vld [vmem:[%s3 + $0x40] sm:$0xff]
  %v2787 = vld [vmem:[%s3 + $0x48] sm:$0xff]
  %v2788 = vld [vmem:[%s3 + $0x50] sm:$0xff]
  %v2789 = vld [vmem:[%s3 + $0x58] sm:$0xff]
  %v2790 = vld [vmem:[%s3 + $0x60] sm:$0xff]
  %v2791 = vld [vmem:[%s3 + $0x68] sm:$0xff]
  %v2792 = vld [vmem:[%s3 + $0x70] sm:$0xff]
  %v2793 = vld [vmem:[%s3 + $0x78] sm:$0xff]
  %v2794 = vld [vmem:[%s3 + $0x80] sm:$0xff]
  %v2795 = vld [vmem:[%s3 + $0x88] sm:$0xff]
  %v2796 = vld [vmem:[%s3 + $0x90] sm:$0xff]
  %v2797 = vld [vmem:[%s3 + $0x98] sm:$0xff]
  %v2798 = vld [vmem:[%s3 + $0xa0] sm:$0xff]
  %v2799 = vld [vmem:[%s3 + $0xa8] sm:$0xff]
  %v2800 = vld [vmem:[%s3 + $0xb0] sm:$0xff]
  %v2801 = vld [vmem:[%s3 + $0xb8] sm:$0xff]
  %v2802 = vld [vmem:[%s3 + $0xc0] sm:$0xff]
  %v2803 = vld [vmem:[%s3 + $0xc8] sm:$0xff]
  %v2804 = vld [vmem:[%s3 + $0xd0] sm:$0xff]
  %v2805 = vld [vmem:[%s3 + $0xd8] sm:$0xff]
  %v2806 = vld [vmem:[%s3 + $0xe0] sm:$0xff]
  %v2807 = vld [vmem:[%s3 + $0xe8] sm:$0xff]
  %v2808 = vld [vmem:[%s3 + $0xf0] sm:$0xff]
  %v2809 = vld [vmem:[%s3 + $0xf8] sm:$0xff]
  %v2842 = vunpack.c.l.b16 %v2778
  %v2843 = vunpack.c.h.b16 %v2778
  %v2844 = vunpack.c.l.b16 %v2779
  %v2845 = vunpack.c.h.b16 %v2779
  %v2846 = vunpack.c.l.b16 %v2780
  %v2847 = vunpack.c.h.b16 %v2780
  %v2848 = vunpack.c.l.b16 %v2781
  %v2849 = vunpack.c.h.b16 %v2781
  %v2850 = vunpack.c.l.b16 %v2782
  %v2851 = vunpack.c.h.b16 %v2782
  %v2852 = vunpack.c.l.b16 %v2783
  %v2853 = vunpack.c.h.b16 %v2783
  %v2854 = vunpack.c.l.b16 %v2784
  %v2855 = vunpack.c.h.b16 %v2784
  %v2856 = vunpack.c.l.b16 %v2785
  %v2857 = vunpack.c.h.b16 %v2785
  %v2858 = vunpack.c.l.b16 %v2786
  %v2859 = vunpack.c.h.b16 %v2786
  %v2860 = vunpack.c.l.b16 %v2787
  %v2861 = vunpack.c.h.b16 %v2787
  %v2862 = vunpack.c.l.b16 %v2788
  %v2863 = vunpack.c.h.b16 %v2788
  %v2864 = vunpack.c.l.b16 %v2789
  %v2865 = vunpack.c.h.b16 %v2789
  %v2866 = vunpack.c.l.b16 %v2790
  %v2867 = vunpack.c.h.b16 %v2790
  %v2868 = vunpack.c.l.b16 %v2791
  %v2869 = vunpack.c.h.b16 %v2791
  %v2870 = vunpack.c.l.b16 %v2792
  %v2871 = vunpack.c.h.b16 %v2792
  %v2872 = vunpack.c.l.b16 %v2793
  %v2873 = vunpack.c.h.b16 %v2793
  %v2874 = vunpack.c.l.b16 %v2794
  %v2875 = vunpack.c.h.b16 %v2794
  %v2876 = vunpack.c.l.b16 %v2795
  %v2877 = vunpack.c.h.b16 %v2795
  %v2878 = vunpack.c.l.b16 %v2796
  %v2879 = vunpack.c.h.b16 %v2796
  %v2880 = vunpack.c.l.b16 %v2797
  %v2881 = vunpack.c.h.b16 %v2797
  %v2882 = vunpack.c.l.b16 %v2798
  %v2883 = vunpack.c.h.b16 %v2798
  %v2884 = vunpack.c.l.b16 %v2799
  %v2885 = vunpack.c.h.b16 %v2799
  %v2886 = vunpack.c.l.b16 %v2800
  %v2887 = vunpack.c.h.b16 %v2800
  %v2888 = vunpack.c.l.b16 %v2801
  %v2889 = vunpack.c.h.b16 %v2801
  %v2890 = vunpack.c.l.b16 %v2802
  %v2891 = vunpack.c.h.b16 %v2802
  %v2892 = vunpack.c.l.b16 %v2803
  %v2893 = vunpack.c.h.b16 %v2803
  %v2894 = vunpack.c.l.b16 %v2804
  %v2895 = vunpack.c.h.b16 %v2804
  %v2896 = vunpack.c.l.b16 %v2805
  %v2897 = vunpack.c.h.b16 %v2805
  %v2898 = vunpack.c.l.b16 %v2806
  %v2899 = vunpack.c.h.b16 %v2806
  %v2900 = vunpack.c.l.b16 %v2807
  %v2901 = vunpack.c.h.b16 %v2807
  %v2902 = vunpack.c.l.b16 %v2808
  %v2903 = vunpack.c.h.b16 %v2808
  %v2904 = vunpack.c.l.b16 %v2809
  %v2905 = vunpack.c.h.b16 %v2809
  %v2906 = vpack.c.b16 %v2846, %v2842
  %v2907 = vpack.c.b16 %v2847, %v2843
  %v2908 = vpack.c.b16 %v2848, %v2844
  %v2909 = vpack.c.b16 %v2849, %v2845
  %v2910 = vpack.c.b16 %v2854, %v2850
  %v2911 = vpack.c.b16 %v2855, %v2851
  %v2912 = vpack.c.b16 %v2856, %v2852
  %v2913 = vpack.c.b16 %v2857, %v2853
  %v2914 = vpack.c.b16 %v2862, %v2858
  %v2915 = vpack.c.b16 %v2863, %v2859
  %v2916 = vpack.c.b16 %v2864, %v2860
  %v2917 = vpack.c.b16 %v2865, %v2861
  %v2918 = vpack.c.b16 %v2870, %v2866
  %v2919 = vpack.c.b16 %v2871, %v2867
  %v2920 = vpack.c.b16 %v2872, %v2868
  %v2921 = vpack.c.b16 %v2873, %v2869
  %v2922 = vpack.c.b16 %v2878, %v2874
  %v2923 = vpack.c.b16 %v2879, %v2875
  %v2924 = vpack.c.b16 %v2880, %v2876
  %v2925 = vpack.c.b16 %v2881, %v2877
  %v2926 = vpack.c.b16 %v2886, %v2882
  %v2927 = vpack.c.b16 %v2887, %v2883
  %v2928 = vpack.c.b16 %v2888, %v2884
  %v2929 = vpack.c.b16 %v2889, %v2885
  %v2930 = vpack.c.b16 %v2894, %v2890
  %v2931 = vpack.c.b16 %v2895, %v2891
  %v2932 = vpack.c.b16 %v2896, %v2892
  %v2933 = vpack.c.b16 %v2897, %v2893
  %v2934 = vpack.c.b16 %v2902, %v2898
  %v2935 = vpack.c.b16 %v2903, %v2899
  %v2936 = vpack.c.b16 %v2904, %v2900
  %v2937 = vpack.c.b16 %v2905, %v2901
  %2970 = vmatprep.subr.bf16.mxu0 %v2907
  %2971 = vmatpush1.bf16.msra.mxu0 %v2906
  %2972 = vmatprep.subr.bf16.mxu0 %v2911
  %2973 = vmatpush1.bf16.msra.mxu0 %v2910
  %2974 = vmatprep.subr.bf16.mxu0 %v2915
  %2975 = vmatpush1.bf16.msra.mxu0 %v2914
  %2976 = vmatprep.subr.bf16.mxu0 %v2919
  %2977 = vmatpush1.bf16.msra.mxu0 %v2918
  %2978 = vmatprep.subr.bf16.mxu0 %v2923
  %2979 = vmatpush1.bf16.msra.mxu0 %v2922
  %2980 = vmatprep.subr.bf16.mxu0 %v2927
  %2981 = vmatpush1.bf16.msra.mxu0 %v2926
  %2982 = vmatprep.subr.bf16.mxu0 %v2931
  %2983 = vmatpush1.bf16.msra.mxu0 %v2930
  %2984 = vmatprep.subr.bf16.mxu0 %v2935
  %2985 = vmatpush1.bf16.msra.mxu0 %v2934
  %2986 = vmatprep.subr.bf16.mxu0 0
  %2987 = vmatpush1.bf16.msra.mxu0 0
  %2988 = vmatprep.subr.bf16.mxu0 0
  %2989 = vmatpush1.bf16.msra.mxu0 0
  %2990 = vmatprep.subr.bf16.mxu0 0
  %2991 = vmatpush1.bf16.msra.mxu0 0
  %2992 = vmatprep.subr.bf16.mxu0 0
  %2993 = vmatpush1.bf16.msra.mxu0 0
  %2994 = vmatprep.subr.bf16.mxu0 0
  %2995 = vmatpush1.bf16.msra.mxu0 0
  %2996 = vmatprep.subr.bf16.mxu0 0
  %2997 = vmatpush1.bf16.msra.mxu0 0
  %2998 = vmatprep.subr.bf16.mxu0 0
  %2999 = vmatpush1.bf16.msra.mxu0 0
  %3000 = vmatprep.subr.bf16.mxu0 0
  %3001 = vmatpush1.bf16.msra.mxu0 0
  %3002 = vmatprep.mubr.bf16.mxu0 0
  %3003 = vmatmul.mubr.bf16.gmra.mrb[0].mxu0 %v2777
  %v3004 = vpop.f32.mrb[0].mxu0
  %v3005 = vadd.f32 0.0, %v3004
  %v3006 = vpop.f32.mrb[0].mxu0
  %v3007 = vadd.f32 0.0, %v3006
  %v3008 = vpop.f32.mrb[0].mxu0
  %v3009 = vadd.f32 0.0, %v3008
  %v3010 = vpop.f32.mrb[0].mxu0
  %v3011 = vadd.f32 0.0, %v3010
  %3012 = vdwg.mxu0
  %3013 = vmatprep.subr.bf16.mxu0 %v2909
  %3014 = vmatpush1.bf16.msra.mxu0 %v2908
  %3015 = vmatprep.subr.bf16.mxu0 %v2913
  %3016 = vmatpush1.bf16.msra.mxu0 %v2912
  %3017 = vmatprep.subr.bf16.mxu0 %v2917
  %3018 = vmatpush1.bf16.msra.mxu0 %v2916
  %3019 = vmatprep.subr.bf16.mxu0 %v2921
  %3020 = vmatpush1.bf16.msra.mxu0 %v2920
  %3021 = vmatprep.subr.bf16.mxu0 %v2925
  %3022 = vmatpush1.bf16.msra.mxu0 %v2924
  %3023 = vmatprep.subr.bf16.mxu0 %v2929
  %3024 = vmatpush1.bf16.msra.mxu0 %v2928
  %3025 = vmatprep.subr.bf16.mxu0 %v2933
  %3026 = vmatpush1.bf16.msra.mxu0 %v2932
  %3027 = vmatprep.subr.bf16.mxu0 %v2937
  %3028 = vmatpush1.bf16.msra.mxu0 %v2936
  %3029 = vmatprep.subr.bf16.mxu0 0
  %3030 = vmatpush1.bf16.msra.mxu0 0
  %3031 = vmatprep.subr.bf16.mxu0 0
  %3032 = vmatpush1.bf16.msra.mxu0 0
  %3033 = vmatprep.subr.bf16.mxu0 0
  %3034 = vmatpush1.bf16.msra.mxu0 0
  %3035 = vmatprep.subr.bf16.mxu0 0
  %3036 = vmatpush1.bf16.msra.mxu0 0
  %3037 = vmatprep.subr.bf16.mxu0 0
  %3038 = vmatpush1.bf16.msra.mxu0 0
  %3039 = vmatprep.subr.bf16.mxu0 0
  %3040 = vmatpush1.bf16.msra.mxu0 0
  %3041 = vmatprep.subr.bf16.mxu0 0
  %3042 = vmatpush1.bf16.msra.mxu0 0
  %3043 = vmatprep.subr.bf16.mxu0 0
  %3044 = vmatpush1.bf16.msra.mxu0 0
  %3045 = vmatprep.mubr.bf16.mxu0 0
  %3046 = vmatmul.mubr.bf16.gmra.mrb[0].mxu0 %v2777
  %v3047 = vpop.f32.mrb[0].mxu0
  %v3048 = vadd.f32 0.0, %v3047
  %v3049 = vpop.f32.mrb[0].mxu0
  %v3050 = vadd.f32 0.0, %v3049
  %v3051 = vpop.f32.mrb[0].mxu0
  %v3052 = vadd.f32 0.0, %v3051
  %v3053 = vpop.f32.mrb[0].mxu0
  %v3054 = vadd.f32 0.0, %v3053
  %3055 = vdwg.mxu0
  %v3056 = vadd.f32 %v2769, %v3005
  %v3057 = vadd.f32 %v2770, %v3007
  %v3058 = vadd.f32 %v2771, %v3048
  %v3059 = vadd.f32 %v2772, %v3050
  %v3060 = vadd.f32 %v2773, %v3009
  %v3061 = vadd.f32 %v2774, %v3011
  %v3062 = vadd.f32 %v2775, %v3052
  %v3063 = vadd.f32 %v2776, %v3054
  %v3064 = vxor.u32 %v3056, 2147483648
  %v3065 = vxor.u32 %v3060, 2147483648
  %v3066 = vmul.f32 %v3064, 1.442695
  %v3067 = vpow.pop %v3066
  %v3068 = vmul.f32 %v3065, 1.442695
  %v3069 = vpow.pop %v3068
  %v3070 = vadd.f32 %v3067, 1.0
  %v3071 = vadd.f32 %v3069, 1.0
  %v3072 = vrcp.pop %v3070
  %v3073 = vmul.f32 1.0, %v3072
  %v3074 = vrcp.pop %v3071
  %v3075 = vmul.f32 1.0, %v3074
  %v3076 = vxor.u32 %v3057, 2147483648
  %v3077 = vxor.u32 %v3061, 2147483648
  %v3078 = vmul.f32 %v3076, 1.442695
  %v3079 = vpow.pop %v3078
  %v3080 = vmul.f32 %v3077, 1.442695
  %v3081 = vpow.pop %v3080
  %v3082 = vadd.f32 %v3079, 1.0
  %v3083 = vadd.f32 %v3081, 1.0
  %v3084 = vrcp.pop %v3082
  %v3085 = vmul.f32 1.0, %v3084
  %v3086 = vrcp.pop %v3083
  %v3087 = vmul.f32 1.0, %v3086
  %v3088 = vtanh.pop %v3058
  %v3089 = vtanh.pop %v3062
  %v3090 = vxor.u32 %v3059, 2147483648
  %v3091 = vxor.u32 %v3063, 2147483648
  %v3092 = vmul.f32 %v3090, 1.442695
  %v3093 = vpow.pop %v3092
  %v3094 = vmul.f32 %v3091, 1.442695
  %v3095 = vpow.pop %v3094
  %v3096 = vadd.f32 %v3093, 1.0
  %v3097 = vadd.f32 %v3095, 1.0
  %v3098 = vrcp.pop %v3096
  %v3099 = vmul.f32 1.0, %v3098
  %v3100 = vrcp.pop %v3097
  %v3101 = vmul.f32 1.0, %v3100
  %v3102 = vmul.f32 %v3085, %v2766
  %v3103 = vmul.f32 %v3087, %v2767
  %v3104 = vmul.f32 %v3073, %v3088
  %v3105 = vmul.f32 %v3075, %v3089
  %v3106 = vadd.f32 %v3102, %v3104
  %v3107 = vadd.f32 %v3103, %v3105
  %v3108 = vtanh.pop %v3106
  %v3109 = vtanh.pop %v3107
  %v3110 = vmul.f32 %v3099, %v3108
  %v3111 = vmul.f32 %v3101, %v3109
  %3112 = vst [vmem:[#allocation4] sm:$0xff] %v3110
  %3113 = vst [vmem:[#allocation4 + $0x8] sm:$0xff] %v3111
  %3114 = vst [vmem:[#allocation5] sm:$0xff] %v3106
  %3115 = vst [vmem:[#allocation5 + $0x8] sm:$0xff] %v3107
  %v3116 = vpack.c.bf16 %v3111, %v3110
  %s3117 = scalar_lea.vmem [#allocation2], 48
  %3118 = vst [vmem:[%s3117] sm:$0xff] %v3116
  %v3119 = vld [vmem:[#allocation4] sm:$0xff]
  %v3120 = vld [vmem:[#allocation4 + $0x8] sm:$0xff]
  %v3121 = vld [vmem:[#allocation5] sm:$0xff]
  %v3122 = vld [vmem:[#allocation5 + $0x8] sm:$0xff]
  %s3123 = scalar_lea.vmem [#allocation3], 448
  %v3124 = vld [vmem:[%s3123] sm:$0xff]
  %v3125 = vld [vmem:[%s3123 + $0x8] sm:$0xff]
  %v3126 = vld [vmem:[%s3123 + $0x10] sm:$0xff]
  %v3127 = vld [vmem:[%s3123 + $0x18] sm:$0xff]
  %v3128 = vld [vmem:[%s3123 + $0x20] sm:$0xff]
  %v3129 = vld [vmem:[%s3123 + $0x28] sm:$0xff]
  %v3130 = vld [vmem:[%s3123 + $0x30] sm:$0xff]
  %v3131 = vld [vmem:[%s3123 + $0x38] sm:$0xff]
  %v3132 = vpack.c.bf16 %v3120, %v3119
  %v3133 = vld [vmem:[%s3] sm:$0xff]
  %v3134 = vld [vmem:[%s3 + $0x8] sm:$0xff]
  %v3135 = vld [vmem:[%s3 + $0x10] sm:$0xff]
  %v3136 = vld [vmem:[%s3 + $0x18] sm:$0xff]
  %v3137 = vld [vmem:[%s3 + $0x20] sm:$0xff]
  %v3138 = vld [vmem:[%s3 + $0x28] sm:$0xff]
  %v3139 = vld [vmem:[%s3 + $0x30] sm:$0xff]
  %v3140 = vld [vmem:[%s3 + $0x38] sm:$0xff]
  %v3141 = vld [vmem:[%s3 + $0x40] sm:$0xff]
  %v3142 = vld [vmem:[%s3 + $0x48] sm:$0xff]
  %v3143 = vld [vmem:[%s3 + $0x50] sm:$0xff]
  %v3144 = vld [vmem:[%s3 + $0x58] sm:$0xff]
  %v3145 = vld [vmem:[%s3 + $0x60] sm:$0xff]
  %v3146 = vld [vmem:[%s3 + $0x68] sm:$0xff]
  %v3147 = vld [vmem:[%s3 + $0x70] sm:$0xff]
  %v3148 = vld [vmem:[%s3 + $0x78] sm:$0xff]
  %v3149 = vld [vmem:[%s3 + $0x80] sm:$0xff]
  %v3150 = vld [vmem:[%s3 + $0x88] sm:$0xff]
  %v3151 = vld [vmem:[%s3 + $0x90] sm:$0xff]
  %v3152 = vld [vmem:[%s3 + $0x98] sm:$0xff]
  %v3153 = vld [vmem:[%s3 + $0xa0] sm:$0xff]
  %v3154 = vld [vmem:[%s3 + $0xa8] sm:$0xff]
  %v3155 = vld [vmem:[%s3 + $0xb0] sm:$0xff]
  %v3156 = vld [vmem:[%s3 + $0xb8] sm:$0xff]
  %v3157 = vld [vmem:[%s3 + $0xc0] sm:$0xff]
  %v3158 = vld [vmem:[%s3 + $0xc8] sm:$0xff]
  %v3159 = vld [vmem:[%s3 + $0xd0] sm:$0xff]
  %v3160 = vld [vmem:[%s3 + $0xd8] sm:$0xff]
  %v3161 = vld [vmem:[%s3 + $0xe0] sm:$0xff]
  %v3162 = vld [vmem:[%s3 + $0xe8] sm:$0xff]
  %v3163 = vld [vmem:[%s3 + $0xf0] sm:$0xff]
  %v3164 = vld [vmem:[%s3 + $0xf8] sm:$0xff]
  %v3197 = vunpack.c.l.b16 %v3133
  %v3198 = vunpack.c.h.b16 %v3133
  %v3199 = vunpack.c.l.b16 %v3134
  %v3200 = vunpack.c.h.b16 %v3134
  %v3201 = vunpack.c.l.b16 %v3135
  %v3202 = vunpack.c.h.b16 %v3135
  %v3203 = vunpack.c.l.b16 %v3136
  %v3204 = vunpack.c.h.b16 %v3136
  %v3205 = vunpack.c.l.b16 %v3137
  %v3206 = vunpack.c.h.b16 %v3137
  %v3207 = vunpack.c.l.b16 %v3138
  %v3208 = vunpack.c.h.b16 %v3138
  %v3209 = vunpack.c.l.b16 %v3139
  %v3210 = vunpack.c.h.b16 %v3139
  %v3211 = vunpack.c.l.b16 %v3140
  %v3212 = vunpack.c.h.b16 %v3140
  %v3213 = vunpack.c.l.b16 %v3141
  %v3214 = vunpack.c.h.b16 %v3141
  %v3215 = vunpack.c.l.b16 %v3142
  %v3216 = vunpack.c.h.b16 %v3142
  %v3217 = vunpack.c.l.b16 %v3143
  %v3218 = vunpack.c.h.b16 %v3143
  %v3219 = vunpack.c.l.b16 %v3144
  %v3220 = vunpack.c.h.b16 %v3144
  %v3221 = vunpack.c.l.b16 %v3145
  %v3222 = vunpack.c.h.b16 %v3145
  %v3223 = vunpack.c.l.b16 %v3146
  %v3224 = vunpack.c.h.b16 %v3146
  %v3225 = vunpack.c.l.b16 %v3147
  %v3226 = vunpack.c.h.b16 %v3147
  %v3227 = vunpack.c.l.b16 %v3148
  %v3228 = vunpack.c.h.b16 %v3148
  %v3229 = vunpack.c.l.b16 %v3149
  %v3230 = vunpack.c.h.b16 %v3149
  %v3231 = vunpack.c.l.b16 %v3150
  %v3232 = vunpack.c.h.b16 %v3150
  %v3233 = vunpack.c.l.b16 %v3151
  %v3234 = vunpack.c.h.b16 %v3151
  %v3235 = vunpack.c.l.b16 %v3152
  %v3236 = vunpack.c.h.b16 %v3152
  %v3237 = vunpack.c.l.b16 %v3153
  %v3238 = vunpack.c.h.b16 %v3153
  %v3239 = vunpack.c.l.b16 %v3154
  %v3240 = vunpack.c.h.b16 %v3154
  %v3241 = vunpack.c.l.b16 %v3155
  %v3242 = vunpack.c.h.b16 %v3155
  %v3243 = vunpack.c.l.b16 %v3156
  %v3244 = vunpack.c.h.b16 %v3156
  %v3245 = vunpack.c.l.b16 %v3157
  %v3246 = vunpack.c.h.b16 %v3157
  %v3247 = vunpack.c.l.b16 %v3158
  %v3248 = vunpack.c.h.b16 %v3158
  %v3249 = vunpack.c.l.b16 %v3159
  %v3250 = vunpack.c.h.b16 %v3159
  %v3251 = vunpack.c.l.b16 %v3160
  %v3252 = vunpack.c.h.b16 %v3160
  %v3253 = vunpack.c.l.b16 %v3161
  %v3254 = vunpack.c.h.b16 %v3161
  %v3255 = vunpack.c.l.b16 %v3162
  %v3256 = vunpack.c.h.b16 %v3162
  %v3257 = vunpack.c.l.b16 %v3163
  %v3258 = vunpack.c.h.b16 %v3163
  %v3259 = vunpack.c.l.b16 %v3164
  %v3260 = vunpack.c.h.b16 %v3164
  %v3261 = vpack.c.b16 %v3201, %v3197
  %v3262 = vpack.c.b16 %v3202, %v3198
  %v3263 = vpack.c.b16 %v3203, %v3199
  %v3264 = vpack.c.b16 %v3204, %v3200
  %v3265 = vpack.c.b16 %v3209, %v3205
  %v3266 = vpack.c.b16 %v3210, %v3206
  %v3267 = vpack.c.b16 %v3211, %v3207
  %v3268 = vpack.c.b16 %v3212, %v3208
  %v3269 = vpack.c.b16 %v3217, %v3213
  %v3270 = vpack.c.b16 %v3218, %v3214
  %v3271 = vpack.c.b16 %v3219, %v3215
  %v3272 = vpack.c.b16 %v3220, %v3216
  %v3273 = vpack.c.b16 %v3225, %v3221
  %v3274 = vpack.c.b16 %v3226, %v3222
  %v3275 = vpack.c.b16 %v3227, %v3223
  %v3276 = vpack.c.b16 %v3228, %v3224
  %v3277 = vpack.c.b16 %v3233, %v3229
  %v3278 = vpack.c.b16 %v3234, %v3230
  %v3279 = vpack.c.b16 %v3235, %v3231
  %v3280 = vpack.c.b16 %v3236, %v3232
  %v3281 = vpack.c.b16 %v3241, %v3237
  %v3282 = vpack.c.b16 %v3242, %v3238
  %v3283 = vpack.c.b16 %v3243, %v3239
  %v3284 = vpack.c.b16 %v3244, %v3240
  %v3285 = vpack.c.b16 %v3249, %v3245
  %v3286 = vpack.c.b16 %v3250, %v3246
  %v3287 = vpack.c.b16 %v3251, %v3247
  %v3288 = vpack.c.b16 %v3252, %v3248
  %v3289 = vpack.c.b16 %v3257, %v3253
  %v3290 = vpack.c.b16 %v3258, %v3254
  %v3291 = vpack.c.b16 %v3259, %v3255
  %v3292 = vpack.c.b16 %v3260, %v3256
  %3325 = vmatprep.subr.bf16.mxu0 %v3262
  %3326 = vmatpush1.bf16.msra.mxu0 %v3261
  %3327 = vmatprep.subr.bf16.mxu0 %v3266
  %3328 = vmatpush1.bf16.msra.mxu0 %v3265
  %3329 = vmatprep.subr.bf16.mxu0 %v3270
  %3330 = vmatpush1.bf16.msra.mxu0 %v3269
  %3331 = vmatprep.subr.bf16.mxu0 %v3274
  %3332 = vmatpush1.bf16.msra.mxu0 %v3273
  %3333 = vmatprep.subr.bf16.mxu0 %v3278
  %3334 = vmatpush1.bf16.msra.mxu0 %v3277
  %3335 = vmatprep.subr.bf16.mxu0 %v3282
  %3336 = vmatpush1.bf16.msra.mxu0 %v3281
  %3337 = vmatprep.subr.bf16.mxu0 %v3286
  %3338 = vmatpush1.bf16.msra.mxu0 %v3285
  %3339 = vmatprep.subr.bf16.mxu0 %v3290
  %3340 = vmatpush1.bf16.msra.mxu0 %v3289
  %3341 = vmatprep.subr.bf16.mxu0 0
  %3342 = vmatpush1.bf16.msra.mxu0 0
  %3343 = vmatprep.subr.bf16.mxu0 0
  %3344 = vmatpush1.bf16.msra.mxu0 0
  %3345 = vmatprep.subr.bf16.mxu0 0
  %3346 = vmatpush1.bf16.msra.mxu0 0
  %3347 = vmatprep.subr.bf16.mxu0 0
  %3348 = vmatpush1.bf16.msra.mxu0 0
  %3349 = vmatprep.subr.bf16.mxu0 0
  %3350 = vmatpush1.bf16.msra.mxu0 0
  %3351 = vmatprep.subr.bf16.mxu0 0
  %3352 = vmatpush1.bf16.msra.mxu0 0
  %3353 = vmatprep.subr.bf16.mxu0 0
  %3354 = vmatpush1.bf16.msra.mxu0 0
  %3355 = vmatprep.subr.bf16.mxu0 0
  %3356 = vmatpush1.bf16.msra.mxu0 0
  %3357 = vmatprep.mubr.bf16.mxu0 0
  %3358 = vmatmul.mubr.bf16.gmra.mrb[0].mxu0 %v3132
  %v3359 = vpop.f32.mrb[0].mxu0
  %v3360 = vadd.f32 0.0, %v3359
  %v3361 = vpop.f32.mrb[0].mxu0
  %v3362 = vadd.f32 0.0, %v3361
  %v3363 = vpop.f32.mrb[0].mxu0
  %v3364 = vadd.f32 0.0, %v3363
  %v3365 = vpop.f32.mrb[0].mxu0
  %v3366 = vadd.f32 0.0, %v3365
  %3367 = vdwg.mxu0
  %3368 = vmatprep.subr.bf16.mxu0 %v3264
  %3369 = vmatpush1.bf16.msra.mxu0 %v3263
  %3370 = vmatprep.subr.bf16.mxu0 %v3268
  %3371 = vmatpush1.bf16.msra.mxu0 %v3267
  %3372 = vmatprep.subr.bf16.mxu0 %v3272
  %3373 = vmatpush1.bf16.msra.mxu0 %v3271
  %3374 = vmatprep.subr.bf16.mxu0 %v3276
  %3375 = vmatpush1.bf16.msra.mxu0 %v3275
  %3376 = vmatprep.subr.bf16.mxu0 %v3280
  %3377 = vmatpush1.bf16.msra.mxu0 %v3279
  %3378 = vmatprep.subr.bf16.mxu0 %v3284
  %3379 = vmatpush1.bf16.msra.mxu0 %v3283
  %3380 = vmatprep.subr.bf16.mxu0 %v3288
  %3381 = vmatpush1.bf16.msra.mxu0 %v3287
  %3382 = vmatprep.subr.bf16.mxu0 %v3292
  %3383 = vmatpush1.bf16.msra.mxu0 %v3291
  %3384 = vmatprep.subr.bf16.mxu0 0
  %3385 = vmatpush1.bf16.msra.mxu0 0
  %3386 = vmatprep.subr.bf16.mxu0 0
  %3387 = vmatpush1.bf16.msra.mxu0 0
  %3388 = vmatprep.subr.bf16.mxu0 0
  %3389 = vmatpush1.bf16.msra.mxu0 0
  %3390 = vmatprep.subr.bf16.mxu0 0
  %3391 = vmatpush1.bf16.msra.mxu0 0
  %3392 = vmatprep.subr.bf16.mxu0 0
  %3393 = vmatpush1.bf16.msra.mxu0 0
  %3394 = vmatprep.subr.bf16.mxu0 0
  %3395 = vmatpush1.bf16.msra.mxu0 0
  %3396 = vmatprep.subr.bf16.mxu0 0
  %3397 = vmatpush1.bf16.msra.mxu0 0
  %3398 = vmatprep.subr.bf16.mxu0 0
  %3399 = vmatpush1.bf16.msra.mxu0 0
  %3400 = vmatprep.mubr.bf16.mxu0 0
  %3401 = vmatmul.mubr.bf16.gmra.mrb[0].mxu0 %v3132
  %v3402 = vpop.f32.mrb[0].mxu0
  %v3403 = vadd.f32 0.0, %v3402
  %v3404 = vpop.f32.mrb[0].mxu0
  %v3405 = vadd.f32 0.0, %v3404
  %v3406 = vpop.f32.mrb[0].mxu0
  %v3407 = vadd.f32 0.0, %v3406
  %v3408 = vpop.f32.mrb[0].mxu0
  %v3409 = vadd.f32 0.0, %v3408
  %3410 = vdwg.mxu0
  %v3411 = vadd.f32 %v3124, %v3360
  %v3412 = vadd.f32 %v3125, %v3362
  %v3413 = vadd.f32 %v3126, %v3403
  %v3414 = vadd.f32 %v3127, %v3405
  %v3415 = vadd.f32 %v3128, %v3364
  %v3416 = vadd.f32 %v3129, %v3366
  %v3417 = vadd.f32 %v3130, %v3407
  %v3418 = vadd.f32 %v3131, %v3409
  %v3419 = vxor.u32 %v3411, 2147483648
  %v3420 = vxor.u32 %v3415, 2147483648
  %v3421 = vmul.f32 %v3419, 1.442695
  %v3422 = vpow.pop %v3421
  %v3423 = vmul.f32 %v3420, 1.442695
  %v3424 = vpow.pop %v3423
  %v3425 = vadd.f32 %v3422, 1.0
  %v3426 = vadd.f32 %v3424, 1.0
  %v3427 = vrcp.pop %v3425
  %v3428 = vmul.f32 1.0, %v3427
  %v3429 = vrcp.pop %v3426
  %v3430 = vmul.f32 1.0, %v3429
  %v3431 = vxor.u32 %v3412, 2147483648
  %v3432 = vxor.u32 %v3416, 2147483648
  %v3433 = vmul.f32 %v3431, 1.442695
  %v3434 = vpow.pop %v3433
  %v3435 = vmul.f32 %v3432, 1.442695
  %v3436 = vpow.pop %v3435
  %v3437 = vadd.f32 %v3434, 1.0
  %v3438 = vadd.f32 %v3436, 1.0
  %v3439 = vrcp.pop %v3437
  %v3440 = vmul.f32 1.0, %v3439
  %v3441 = vrcp.pop %v3438
  %v3442 = vmul.f32 1.0, %v3441
  %v3443 = vtanh.pop %v3413
  %v3444 = vtanh.pop %v3417
  %v3445 = vxor.u32 %v3414, 2147483648
  %v3446 = vxor.u32 %v3418, 2147483648
  %v3447 = vmul.f32 %v3445, 1.442695
  %v3448 = vpow.pop %v3447
  %v3449 = vmul.f32 %v3446, 1.442695
  %v3450 = vpow.pop %v3449
  %v3451 = vadd.f32 %v3448, 1.0
  %v3452 = vadd.f32 %v3450, 1.0
  %v3453 = vrcp.pop %v3451
  %v3454 = vmul.f32 1.0, %v3453
  %v3455 = vrcp.pop %v3452
  %v3456 = vmul.f32 1.0, %v3455
  %v3457 = vmul.f32 %v3440, %v3121
  %v3458 = vmul.f32 %v3442, %v3122
  %v3459 = vmul.f32 %v3428, %v3443
  %v3460 = vmul.f32 %v3430, %v3444
  %v3461 = vadd.f32 %v3457, %v3459
  %v3462 = vadd.f32 %v3458, %v3460
  %v3463 = vtanh.pop %v3461
  %v3464 = vtanh.pop %v3462
  %v3465 = vmul.f32 %v3454, %v3463
  %v3466 = vmul.f32 %v3456, %v3464
  %3467 = vst [vmem:[#allocation4] sm:$0xff] %v3465
  %3468 = vst [vmem:[#allocation4 + $0x8] sm:$0xff] %v3466
  %3469 = vst [vmem:[#allocation5] sm:$0xff] %v3461
  %3470 = vst [vmem:[#allocation5 + $0x8] sm:$0xff] %v3462
  %v3471 = vpack.c.bf16 %v3466, %v3465
  %s3472 = scalar_lea.vmem [#allocation2], 56
  %3473 = vst [vmem:[%s3472] sm:$0xff] %v3471
  %v3474 = vld [vmem:[#allocation2] sm:$0xff]
  %v3475 = vld [vmem:[#allocation2 + $0x8] sm:$0xff]
  %v3476 = vld [vmem:[#allocation2 + $0x10] sm:$0xff]
  %v3477 = vld [vmem:[#allocation2 + $0x18] sm:$0xff]
  %v3478 = vld [vmem:[#allocation2 + $0x20] sm:$0xff]
  %v3479 = vld [vmem:[#allocation2 + $0x28] sm:$0xff]
  %v3480 = vld [vmem:[#allocation2 + $0x30] sm:$0xff]
  %v3481 = vld [vmem:[#allocation2 + $0x38] sm:$0xff]
  %v3482 = vld [vmem:[%s2] sm:$0xff]
  %v3483 = vld [vmem:[%s2 + $0x8] sm:$0xff]
  %v3484 = vld [vmem:[%s2 + $0x10] sm:$0xff]
  %v3485 = vld [vmem:[%s2 + $0x18] sm:$0xff]
  %v3486 = vld [vmem:[%s2 + $0x20] sm:$0xff]
  %v3487 = vld [vmem:[%s2 + $0x28] sm:$0xff]
  %v3488 = vld [vmem:[%s2 + $0x30] sm:$0xff]
  %v3489 = vld [vmem:[%s2 + $0x38] sm:$0xff]
  %v3490 = vld [vmem:[%s2 + $0x40] sm:$0xff]
  %v3491 = vld [vmem:[%s2 + $0x48] sm:$0xff]
  %v3492 = vld [vmem:[%s2 + $0x50] sm:$0xff]
  %v3493 = vld [vmem:[%s2 + $0x58] sm:$0xff]
  %v3494 = vld [vmem:[%s2 + $0x60] sm:$0xff]
  %v3495 = vld [vmem:[%s2 + $0x68] sm:$0xff]
  %v3496 = vld [vmem:[%s2 + $0x70] sm:$0xff]
  %v3497 = vld [vmem:[%s2 + $0x78] sm:$0xff]
  %v3498 = vld [vmem:[%s2 + $0x80] sm:$0xff]
  %v3499 = vld [vmem:[%s2 + $0x88] sm:$0xff]
  %v3500 = vld [vmem:[%s2 + $0x90] sm:$0xff]
  %v3501 = vld [vmem:[%s2 + $0x98] sm:$0xff]
  %v3502 = vld [vmem:[%s2 + $0xa0] sm:$0xff]
  %v3503 = vld [vmem:[%s2 + $0xa8] sm:$0xff]
  %v3504 = vld [vmem:[%s2 + $0xb0] sm:$0xff]
  %v3505 = vld [vmem:[%s2 + $0xb8] sm:$0xff]
  %v3506 = vld [vmem:[%s2 + $0xc0] sm:$0xff]
  %v3507 = vld [vmem:[%s2 + $0xc8] sm:$0xff]
  %v3508 = vld [vmem:[%s2 + $0xd0] sm:$0xff]
  %v3509 = vld [vmem:[%s2 + $0xd8] sm:$0xff]
  %v3510 = vld [vmem:[%s2 + $0xe0] sm:$0xff]
  %v3511 = vld [vmem:[%s2 + $0xe8] sm:$0xff]
  %v3512 = vld [vmem:[%s2 + $0xf0] sm:$0xff]
  %v3513 = vld [vmem:[%s2 + $0xf8] sm:$0xff]
  %v3514 = vld [vmem:[%s6] sm:$0xf]
  %v3516 = vlaneseq
  %v3517 = vshrl.u32 %v3516, 7
  %v3518 = vsub.s32 0, %v3517
  %v3519 = vrot.slane %v3514, %v3518
  %v3520 = vlaneseq
  %v3521 = vshrl.u32 %v3520, 7
  %v3522 = vsub.s32 1, %v3521
  %v3523 = vrot.slane %v3514, %v3522
  %v3524 = vlaneseq
  %v3525 = vshrl.u32 %v3524, 7
  %v3526 = vsub.s32 2, %v3525
  %v3527 = vrot.slane %v3514, %v3526
  %v3528 = vlaneseq
  %v3529 = vshrl.u32 %v3528, 7
  %v3530 = vsub.s32 3, %v3529
  %v3531 = vrot.slane %v3514, %v3530
  %v3568 = vunpack.c.l.b16 %v3482
  %v3569 = vunpack.c.h.b16 %v3482
  %v3570 = vunpack.c.l.b16 %v3483
  %v3571 = vunpack.c.h.b16 %v3483
  %v3572 = vunpack.c.l.b16 %v3484
  %v3573 = vunpack.c.h.b16 %v3484
  %v3574 = vunpack.c.l.b16 %v3485
  %v3575 = vunpack.c.h.b16 %v3485
  %v3576 = vunpack.c.l.b16 %v3486
  %v3577 = vunpack.c.h.b16 %v3486
  %v3578 = vunpack.c.l.b16 %v3487
  %v3579 = vunpack.c.h.b16 %v3487
  %v3580 = vunpack.c.l.b16 %v3488
  %v3581 = vunpack.c.h.b16 %v3488
  %v3582 = vunpack.c.l.b16 %v3489
  %v3583 = vunpack.c.h.b16 %v3489
  %v3584 = vunpack.c.l.b16 %v3490
  %v3585 = vunpack.c.h.b16 %v3490
  %v3586 = vunpack.c.l.b16 %v3491
  %v3587 = vunpack.c.h.b16 %v3491
  %v3588 = vunpack.c.l.b16 %v3492
  %v3589 = vunpack.c.h.b16 %v3492
  %v3590 = vunpack.c.l.b16 %v3493
  %v3591 = vunpack.c.h.b16 %v3493
  %v3592 = vunpack.c.l.b16 %v3494
  %v3593 = vunpack.c.h.b16 %v3494
  %v3594 = vunpack.c.l.b16 %v3495
  %v3595 = vunpack.c.h.b16 %v3495
  %v3596 = vunpack.c.l.b16 %v3496
  %v3597 = vunpack.c.h.b16 %v3496
  %v3598 = vunpack.c.l.b16 %v3497
  %v3599 = vunpack.c.h.b16 %v3497
  %v3600 = vunpack.c.l.b16 %v3498
  %v3601 = vunpack.c.h.b16 %v3498
  %v3602 = vunpack.c.l.b16 %v3499
  %v3603 = vunpack.c.h.b16 %v3499
  %v3604 = vunpack.c.l.b16 %v3500
  %v3605 = vunpack.c.h.b16 %v3500
  %v3606 = vunpack.c.l.b16 %v3501
  %v3607 = vunpack.c.h.b16 %v3501
  %v3608 = vunpack.c.l.b16 %v3502
  %v3609 = vunpack.c.h.b16 %v3502
  %v3610 = vunpack.c.l.b16 %v3503
  %v3611 = vunpack.c.h.b16 %v3503
  %v3612 = vunpack.c.l.b16 %v3504
  %v3613 = vunpack.c.h.b16 %v3504
  %v3614 = vunpack.c.l.b16 %v3505
  %v3615 = vunpack.c.h.b16 %v3505
  %v3616 = vunpack.c.l.b16 %v3506
  %v3617 = vunpack.c.h.b16 %v3506
  %v3618 = vunpack.c.l.b16 %v3507
  %v3619 = vunpack.c.h.b16 %v3507
  %v3620 = vunpack.c.l.b16 %v3508
  %v3621 = vunpack.c.h.b16 %v3508
  %v3622 = vunpack.c.l.b16 %v3509
  %v3623 = vunpack.c.h.b16 %v3509
  %v3624 = vunpack.c.l.b16 %v3510
  %v3625 = vunpack.c.h.b16 %v3510
  %v3626 = vunpack.c.l.b16 %v3511
  %v3627 = vunpack.c.h.b16 %v3511
  %v3628 = vunpack.c.l.b16 %v3512
  %v3629 = vunpack.c.h.b16 %v3512
  %v3630 = vunpack.c.l.b16 %v3513
  %v3631 = vunpack.c.h.b16 %v3513
  %v3632 = vpack.c.b16 %v3572, %v3568
  %v3633 = vpack.c.b16 %v3573, %v3569
  %v3634 = vpack.c.b16 %v3574, %v3570
  %v3635 = vpack.c.b16 %v3575, %v3571
  %v3636 = vpack.c.b16 %v3580, %v3576
  %v3637 = vpack.c.b16 %v3581, %v3577
  %v3638 = vpack.c.b16 %v3582, %v3578
  %v3639 = vpack.c.b16 %v3583, %v3579
  %v3640 = vpack.c.b16 %v3588, %v3584
  %v3641 = vpack.c.b16 %v3589, %v3585
  %v3642 = vpack.c.b16 %v3590, %v3586
  %v3643 = vpack.c.b16 %v3591, %v3587
  %v3644 = vpack.c.b16 %v3596, %v3592
  %v3645 = vpack.c.b16 %v3597, %v3593
  %v3646 = vpack.c.b16 %v3598, %v3594
  %v3647 = vpack.c.b16 %v3599, %v3595
  %v3648 = vpack.c.b16 %v3604, %v3600
  %v3649 = vpack.c.b16 %v3605, %v3601
  %v3650 = vpack.c.b16 %v3606, %v3602
  %v3651 = vpack.c.b16 %v3607, %v3603
  %v3652 = vpack.c.b16 %v3612, %v3608
  %v3653 = vpack.c.b16 %v3613, %v3609
  %v3654 = vpack.c.b16 %v3614, %v3610
  %v3655 = vpack.c.b16 %v3615, %v3611
  %v3656 = vpack.c.b16 %v3620, %v3616
  %v3657 = vpack.c.b16 %v3621, %v3617
  %v3658 = vpack.c.b16 %v3622, %v3618
  %v3659 = vpack.c.b16 %v3623, %v3619
  %v3660 = vpack.c.b16 %v3628, %v3624
  %v3661 = vpack.c.b16 %v3629, %v3625
  %v3662 = vpack.c.b16 %v3630, %v3626
  %v3663 = vpack.c.b16 %v3631, %v3627
  %3696 = vmatprep.subr.bf16.mxu0 %v3633
  %3697 = vmatpush1.bf16.msra.mxu0 %v3632
  %3698 = vmatprep.subr.bf16.mxu0 %v3637
  %3699 = vmatpush1.bf16.msra.mxu0 %v3636
  %3700 = vmatprep.subr.bf16.mxu0 %v3641
  %3701 = vmatpush1.bf16.msra.mxu0 %v3640
  %3702 = vmatprep.subr.bf16.mxu0 %v3645
  %3703 = vmatpush1.bf16.msra.mxu0 %v3644
  %3704 = vmatprep.subr.bf16.mxu0 %v3649
  %3705 = vmatpush1.bf16.msra.mxu0 %v3648
  %3706 = vmatprep.subr.bf16.mxu0 %v3653
  %3707 = vmatpush1.bf16.msra.mxu0 %v3652
  %3708 = vmatprep.subr.bf16.mxu0 %v3657
  %3709 = vmatpush1.bf16.msra.mxu0 %v3656
  %3710 = vmatprep.subr.bf16.mxu0 %v3661
  %3711 = vmatpush1.bf16.msra.mxu0 %v3660
  %3712 = vmatprep.subr.bf16.mxu0 0
  %3713 = vmatpush1.bf16.msra.mxu0 0
  %3714 = vmatprep.subr.bf16.mxu0 0
  %3715 = vmatpush1.bf16.msra.mxu0 0
  %3716 = vmatprep.subr.bf16.mxu0 0
  %3717 = vmatpush1.bf16.msra.mxu0 0
  %3718 = vmatprep.subr.bf16.mxu0 0
  %3719 = vmatpush1.bf16.msra.mxu0 0
  %3720 = vmatprep.subr.bf16.mxu0 0
  %3721 = vmatpush1.bf16.msra.mxu0 0
  %3722 = vmatprep.subr.bf16.mxu0 0
  %3723 = vmatpush1.bf16.msra.mxu0 0
  %3724 = vmatprep.subr.bf16.mxu0 0
  %3725 = vmatpush1.bf16.msra.mxu0 0
  %3726 = vmatprep.subr.bf16.mxu0 0
  %3727 = vmatpush1.bf16.msra.mxu0 0
  %3728 = vmatprep.mubr.bf16.mxu0 0
  %3729 = vmatmul.mubr.bf16.gmra.mrb[0].mxu0 %v3474
  %v3730 = vpop.f32.mrb[0].mxu0
  %v3731 = vadd.f32 %v3519, %v3730
  %v3732 = vpop.f32.mrb[0].mxu0
  %v3733 = vadd.f32 %v3523, %v3732
  %v3734 = vpop.f32.mrb[0].mxu0
  %v3735 = vadd.f32 %v3519, %v3734
  %v3736 = vpop.f32.mrb[0].mxu0
  %v3737 = vadd.f32 %v3523, %v3736
  %3738 = vmatprep.mubr.bf16.mxu0 0
  %3739 = vmatmul.mubr.bf16.gmra.mrb[0].mxu0 %v3475
  %v3740 = vpop.f32.mrb[0].mxu0
  %v3741 = vadd.f32 %v3519, %v3740
  %v3742 = vpop.f32.mrb[0].mxu0
  %v3743 = vadd.f32 %v3523, %v3742
  %v3744 = vpop.f32.mrb[0].mxu0
  %v3745 = vadd.f32 %v3519, %v3744
  %v3746 = vpop.f32.mrb[0].mxu0
  %v3747 = vadd.f32 %v3523, %v3746
  %3748 = vmatprep.mubr.bf16.mxu0 0
  %3749 = vmatmul.mubr.bf16.gmra.mrb[0].mxu0 %v3476
  %v3750 = vpop.f32.mrb[0].mxu0
  %v3751 = vadd.f32 %v3519, %v3750
  %v3752 = vpop.f32.mrb[0].mxu0
  %v3753 = vadd.f32 %v3523, %v3752
  %v3754 = vpop.f32.mrb[0].mxu0
  %v3755 = vadd.f32 %v3519, %v3754
  %v3756 = vpop.f32.mrb[0].mxu0
  %v3757 = vadd.f32 %v3523, %v3756
  %3758 = vmatprep.mubr.bf16.mxu0 0
  %3759 = vmatmul.mubr.bf16.gmra.mrb[0].mxu0 %v3477
  %v3760 = vpop.f32.mrb[0].mxu0
  %v3761 = vadd.f32 %v3519, %v3760
  %v3762 = vpop.f32.mrb[0].mxu0
  %v3763 = vadd.f32 %v3523, %v3762
  %v3764 = vpop.f32.mrb[0].mxu0
  %v3765 = vadd.f32 %v3519, %v3764
  %v3766 = vpop.f32.mrb[0].mxu0
  %v3767 = vadd.f32 %v3523, %v3766
  %3768 = vmatprep.mubr.bf16.mxu0 0
  %3769 = vmatmul.mubr.bf16.gmra.mrb[0].mxu0 %v3478
  %v3770 = vpop.f32.mrb[0].mxu0
  %v3771 = vadd.f32 %v3519, %v3770
  %v3772 = vpop.f32.mrb[0].mxu0
  %v3773 = vadd.f32 %v3523, %v3772
  %v3774 = vpop.f32.mrb[0].mxu0
  %v3775 = vadd.f32 %v3519, %v3774
  %v3776 = vpop.f32.mrb[0].mxu0
  %v3777 = vadd.f32 %v3523, %v3776
  %3778 = vmatprep.mubr.bf16.mxu0 0
  %3779 = vmatmul.mubr.bf16.gmra.mrb[0].mxu0 %v3479
  %v3780 = vpop.f32.mrb[0].mxu0
  %v3781 = vadd.f32 %v3519, %v3780
  %v3782 = vpop.f32.mrb[0].mxu0
  %v3783 = vadd.f32 %v3523, %v3782
  %v3784 = vpop.f32.mrb[0].mxu0
  %v3785 = vadd.f32 %v3519, %v3784
  %v3786 = vpop.f32.mrb[0].mxu0
  %v3787 = vadd.f32 %v3523, %v3786
  %3788 = vmatprep.mubr.bf16.mxu0 0
  %3789 = vmatmul.mubr.bf16.gmra.mrb[0].mxu0 %v3480
  %v3790 = vpop.f32.mrb[0].mxu0
  %v3791 = vadd.f32 %v3519, %v3790
  %v3792 = vpop.f32.mrb[0].mxu0
  %v3793 = vadd.f32 %v3523, %v3792
  %v3794 = vpop.f32.mrb[0].mxu0
  %v3795 = vadd.f32 %v3519, %v3794
  %v3796 = vpop.f32.mrb[0].mxu0
  %v3797 = vadd.f32 %v3523, %v3796
  %3798 = vmatprep.mubr.bf16.mxu0 0
  %3799 = vmatmul.mubr.bf16.gmra.mrb[0].mxu0 %v3481
  %v3800 = vpop.f32.mrb[0].mxu0
  %v3801 = vadd.f32 %v3519, %v3800
  %v3802 = vpop.f32.mrb[0].mxu0
  %v3803 = vadd.f32 %v3523, %v3802
  %v3804 = vpop.f32.mrb[0].mxu0
  %v3805 = vadd.f32 %v3519, %v3804
  %v3806 = vpop.f32.mrb[0].mxu0
  %v3807 = vadd.f32 %v3523, %v3806
  %3808 = vdwg.mxu0
  %3809 = vmatprep.subr.bf16.mxu0 %v3635
  %3810 = vmatpush1.bf16.msra.mxu0 %v3634
  %3811 = vmatprep.subr.bf16.mxu0 %v3639
  %3812 = vmatpush1.bf16.msra.mxu0 %v3638
  %3813 = vmatprep.subr.bf16.mxu0 %v3643
  %3814 = vmatpush1.bf16.msra.mxu0 %v3642
  %3815 = vmatprep.subr.bf16.mxu0 %v3647
  %3816 = vmatpush1.bf16.msra.mxu0 %v3646
  %3817 = vmatprep.subr.bf16.mxu0 %v3651
  %3818 = vmatpush1.bf16.msra.mxu0 %v3650
  %3819 = vmatprep.subr.bf16.mxu0 %v3655
  %3820 = vmatpush1.bf16.msra.mxu0 %v3654
  %3821 = vmatprep.subr.bf16.mxu0 %v3659
  %3822 = vmatpush1.bf16.msra.mxu0 %v3658
  %3823 = vmatprep.subr.bf16.mxu0 %v3663
  %3824 = vmatpush1.bf16.msra.mxu0 %v3662
  %3825 = vmatprep.subr.bf16.mxu0 0
  %3826 = vmatpush1.bf16.msra.mxu0 0
  %3827 = vmatprep.subr.bf16.mxu0 0
  %3828 = vmatpush1.bf16.msra.mxu0 0
  %3829 = vmatprep.subr.bf16.mxu0 0
  %3830 = vmatpush1.bf16.msra.mxu0 0
  %3831 = vmatprep.subr.bf16.mxu0 0
  %3832 = vmatpush1.bf16.msra.mxu0 0
  %3833 = vmatprep.subr.bf16.mxu0 0
  %3834 = vmatpush1.bf16.msra.mxu0 0
  %3835 = vmatprep.subr.bf16.mxu0 0
  %3836 = vmatpush1.bf16.msra.mxu0 0
  %3837 = vmatprep.subr.bf16.mxu0 0
  %3838 = vmatpush1.bf16.msra.mxu0 0
  %3839 = vmatprep.subr.bf16.mxu0 0
  %3840 = vmatpush1.bf16.msra.mxu0 0
  %3841 = vmatprep.mubr.bf16.mxu0 0
  %3842 = vmatmul.mubr.bf16.gmra.mrb[0].mxu0 %v3474
  %v3843 = vpop.f32.mrb[0].mxu0
  %v3844 = vadd.f32 %v3527, %v3843
  %v3845 = vpop.f32.mrb[0].mxu0
  %v3846 = vadd.f32 %v3531, %v3845
  %v3847 = vpop.f32.mrb[0].mxu0
  %v3848 = vadd.f32 %v3527, %v3847
  %v3849 = vpop.f32.mrb[0].mxu0
  %v3850 = vadd.f32 %v3531, %v3849
  %3851 = vmatprep.mubr.bf16.mxu0 0
  %3852 = vmatmul.mubr.bf16.gmra.mrb[0].mxu0 %v3475
  %v3853 = vpop.f32.mrb[0].mxu0
  %v3854 = vadd.f32 %v3527, %v3853
  %v3855 = vpop.f32.mrb[0].mxu0
  %v3856 = vadd.f32 %v3531, %v3855
  %v3857 = vpop.f32.mrb[0].mxu0
  %v3858 = vadd.f32 %v3527, %v3857
  %v3859 = vpop.f32.mrb[0].mxu0
  %v3860 = vadd.f32 %v3531, %v3859
  %3861 = vmatprep.mubr.bf16.mxu0 0
  %3862 = vmatmul.mubr.bf16.gmra.mrb[0].mxu0 %v3476
  %v3863 = vpop.f32.mrb[0].mxu0
  %v3864 = vadd.f32 %v3527, %v3863
  %v3865 = vpop.f32.mrb[0].mxu0
  %v3866 = vadd.f32 %v3531, %v3865
  %v3867 = vpop.f32.mrb[0].mxu0
  %v3868 = vadd.f32 %v3527, %v3867
  %v3869 = vpop.f32.mrb[0].mxu0
  %v3870 = vadd.f32 %v3531, %v3869
  %3871 = vmatprep.mubr.bf16.mxu0 0
  %3872 = vmatmul.mubr.bf16.gmra.mrb[0].mxu0 %v3477
  %v3873 = vpop.f32.mrb[0].mxu0
  %v3874 = vadd.f32 %v3527, %v3873
  %v3875 = vpop.f32.mrb[0].mxu0
  %v3876 = vadd.f32 %v3531, %v3875
  %v3877 = vpop.f32.mrb[0].mxu0
  %v3878 = vadd.f32 %v3527, %v3877
  %v3879 = vpop.f32.mrb[0].mxu0
  %v3880 = vadd.f32 %v3531, %v3879
  %3881 = vmatprep.mubr.bf16.mxu0 0
  %3882 = vmatmul.mubr.bf16.gmra.mrb[0].mxu0 %v3478
  %v3883 = vpop.f32.mrb[0].mxu0
  %v3884 = vadd.f32 %v3527, %v3883
  %v3885 = vpop.f32.mrb[0].mxu0
  %v3886 = vadd.f32 %v3531, %v3885
  %v3887 = vpop.f32.mrb[0].mxu0
  %v3888 = vadd.f32 %v3527, %v3887
  %v3889 = vpop.f32.mrb[0].mxu0
  %v3890 = vadd.f32 %v3531, %v3889
  %3891 = vmatprep.mubr.bf16.mxu0 0
  %3892 = vmatmul.mubr.bf16.gmra.mrb[0].mxu0 %v3479
  %v3893 = vpop.f32.mrb[0].mxu0
  %v3894 = vadd.f32 %v3527, %v3893
  %v3895 = vpop.f32.mrb[0].mxu0
  %v3896 = vadd.f32 %v3531, %v3895
  %v3897 = vpop.f32.mrb[0].mxu0
  %v3898 = vadd.f32 %v3527, %v3897
  %v3899 = vpop.f32.mrb[0].mxu0
  %v3900 = vadd.f32 %v3531, %v3899
  %3901 = vmatprep.mubr.bf16.mxu0 0
  %3902 = vmatmul.mubr.bf16.gmra.mrb[0].mxu0 %v3480
  %v3903 = vpop.f32.mrb[0].mxu0
  %v3904 = vadd.f32 %v3527, %v3903
  %v3905 = vpop.f32.mrb[0].mxu0
  %v3906 = vadd.f32 %v3531, %v3905
  %v3907 = vpop.f32.mrb[0].mxu0
  %v3908 = vadd.f32 %v3527, %v3907
  %v3909 = vpop.f32.mrb[0].mxu0
  %v3910 = vadd.f32 %v3531, %v3909
  %3911 = vmatprep.mubr.bf16.mxu0 0
  %3912 = vmatmul.mubr.bf16.gmra.mrb[0].mxu0 %v3481
  %v3913 = vpop.f32.mrb[0].mxu0
  %v3914 = vadd.f32 %v3527, %v3913
  %v3915 = vpop.f32.mrb[0].mxu0
  %v3916 = vadd.f32 %v3531, %v3915
  %v3917 = vpop.f32.mrb[0].mxu0
  %v3918 = vadd.f32 %v3527, %v3917
  %v3919 = vpop.f32.mrb[0].mxu0
  %v3920 = vadd.f32 %v3531, %v3919
  %3921 = vdwg.mxu0
  %3922 = vst [vmem:[#allocation3] sm:$0xff] %v3731
  %3923 = vst [vmem:[#allocation3 + $0x8] sm:$0xff] %v3733
  %3924 = vst [vmem:[#allocation3 + $0x10] sm:$0xff] %v3844
  %3925 = vst [vmem:[#allocation3 + $0x18] sm:$0xff] %v3846
  %3926 = vst [vmem:[#allocation3 + $0x20] sm:$0xff] %v3735
  %3927 = vst [vmem:[#allocation3 + $0x28] sm:$0xff] %v3737
  %3928 = vst [vmem:[#allocation3 + $0x30] sm:$0xff] %v3848
  %3929 = vst [vmem:[#allocation3 + $0x38] sm:$0xff] %v3850
  %3930 = vst [vmem:[#allocation3 + $0x40] sm:$0xff] %v3741
  %3931 = vst [vmem:[#allocation3 + $0x48] sm:$0xff] %v3743
  %3932 = vst [vmem:[#allocation3 + $0x50] sm:$0xff] %v3854
  %3933 = vst [vmem:[#allocation3 + $0x58] sm:$0xff] %v3856
  %3934 = vst [vmem:[#allocation3 + $0x60] sm:$0xff] %v3745
  %3935 = vst [vmem:[#allocation3 + $0x68] sm:$0xff] %v3747
  %3936 = vst [vmem:[#allocation3 + $0x70] sm:$0xff] %v3858
  %3937 = vst [vmem:[#allocation3 + $0x78] sm:$0xff] %v3860
  %3938 = vst [vmem:[#allocation3 + $0x80] sm:$0xff] %v3751
  %3939 = vst [vmem:[#allocation3 + $0x88] sm:$0xff] %v3753
  %3940 = vst [vmem:[#allocation3 + $0x90] sm:$0xff] %v3864
  %3941 = vst [vmem:[#allocation3 + $0x98] sm:$0xff] %v3866
  %3942 = vst [vmem:[#allocation3 + $0xa0] sm:$0xff] %v3755
  %3943 = vst [vmem:[#allocation3 + $0xa8] sm:$0xff] %v3757
  %3944 = vst [vmem:[#allocation3 + $0xb0] sm:$0xff] %v3868
  %3945 = vst [vmem:[#allocation3 + $0xb8] sm:$0xff] %v3870
  %3946 = vst [vmem:[#allocation3 + $0xc0] sm:$0xff] %v3761
  %3947 = vst [vmem:[#allocation3 + $0xc8] sm:$0xff] %v3763
  %3948 = vst [vmem:[#allocation3 + $0xd0] sm:$0xff] %v3874
  %3949 = vst [vmem:[#allocation3 + $0xd8] sm:$0xff] %v3876
  %3950 = vst [vmem:[#allocation3 + $0xe0] sm:$0xff] %v3765
  %3951 = vst [vmem:[#allocation3 + $0xe8] sm:$0xff] %v3767
  %3952 = vst [vmem:[#allocation3 + $0xf0] sm:$0xff] %v3878
  %3953 = vst [vmem:[#allocation3 + $0xf8] sm:$0xff] %v3880
  %3954 = vst [vmem:[#allocation3 + $0x100] sm:$0xff] %v3771
  %3955 = vst [vmem:[#allocation3 + $0x108] sm:$0xff] %v3773
  %3956 = vst [vmem:[#allocation3 + $0x110] sm:$0xff] %v3884
  %3957 = vst [vmem:[#allocation3 + $0x118] sm:$0xff] %v3886
  %3958 = vst [vmem:[#allocation3 + $0x120] sm:$0xff] %v3775
  %3959 = vst [vmem:[#allocation3 + $0x128] sm:$0xff] %v3777
  %3960 = vst [vmem:[#allocation3 + $0x130] sm:$0xff] %v3888
  %3961 = vst [vmem:[#allocation3 + $0x138] sm:$0xff] %v3890
  %3962 = vst [vmem:[#allocation3 + $0x140] sm:$0xff] %v3781
  %3963 = vst [vmem:[#allocation3 + $0x148] sm:$0xff] %v3783
  %3964 = vst [vmem:[#allocation3 + $0x150] sm:$0xff] %v3894
  %3965 = vst [vmem:[#allocation3 + $0x158] sm:$0xff] %v3896
  %3966 = vst [vmem:[#allocation3 + $0x160] sm:$0xff] %v3785
  %3967 = vst [vmem:[#allocation3 + $0x168] sm:$0xff] %v3787
  %3968 = vst [vmem:[#allocation3 + $0x170] sm:$0xff] %v3898
  %3969 = vst [vmem:[#allocation3 + $0x178] sm:$0xff] %v3900
  %3970 = vst [vmem:[#allocation3 + $0x180] sm:$0xff] %v3791
  %3971 = vst [vmem:[#allocation3 + $0x188] sm:$0xff] %v3793
  %3972 = vst [vmem:[#allocation3 + $0x190] sm:$0xff] %v3904
  %3973 = vst [vmem:[#allocation3 + $0x198] sm:$0xff] %v3906
  %3974 = vst [vmem:[#allocation3 + $0x1a0] sm:$0xff] %v3795
  %3975 = vst [vmem:[#allocation3 + $0x1a8] sm:$0xff] %v3797
  %3976 = vst [vmem:[#allocation3 + $0x1b0] sm:$0xff] %v3908
  %3977 = vst [vmem:[#allocation3 + $0x1b8] sm:$0xff] %v3910
  %3978 = vst [vmem:[#allocation3 + $0x1c0] sm:$0xff] %v3801
  %3979 = vst [vmem:[#allocation3 + $0x1c8] sm:$0xff] %v3803
  %3980 = vst [vmem:[#allocation3 + $0x1d0] sm:$0xff] %v3914
  %3981 = vst [vmem:[#allocation3 + $0x1d8] sm:$0xff] %v3916
  %3982 = vst [vmem:[#allocation3 + $0x1e0] sm:$0xff] %v3805
  %3983 = vst [vmem:[#allocation3 + $0x1e8] sm:$0xff] %v3807
  %3984 = vst [vmem:[#allocation3 + $0x1f0] sm:$0xff] %v3918
  %3985 = vst [vmem:[#allocation3 + $0x1f8] sm:$0xff] %v3920
  %s3986 = scalar_lea.vmem [#allocation4], 16
  %v3987 = vld [vmem:[%s3986] sm:$0xff]
  %v3988 = vld [vmem:[%s3986 + $0x8] sm:$0xff]
  %s3989 = scalar_lea.vmem [#allocation5], 16
  %v3990 = vld [vmem:[%s3989] sm:$0xff]
  %v3991 = vld [vmem:[%s3989 + $0x8] sm:$0xff]
  %v3992 = vld [vmem:[#allocation3] sm:$0xff]
  %v3993 = vld [vmem:[#allocation3 + $0x8] sm:$0xff]
  %v3994 = vld [vmem:[#allocation3 + $0x10] sm:$0xff]
  %v3995 = vld [vmem:[#allocation3 + $0x18] sm:$0xff]
  %v3996 = vld [vmem:[#allocation3 + $0x20] sm:$0xff]
  %v3997 = vld [vmem:[#allocation3 + $0x28] sm:$0xff]
  %v3998 = vld [vmem:[#allocation3 + $0x30] sm:$0xff]
  %v3999 = vld [vmem:[#allocation3 + $0x38] sm:$0xff]
  %v4000 = vpack.c.bf16 %v3988, %v3987
  %v4001 = vld [vmem:[%s4] sm:$0xff]
  %v4002 = vld [vmem:[%s4 + $0x8] sm:$0xff]
  %v4003 = vld [vmem:[%s4 + $0x10] sm:$0xff]
  %v4004 = vld [vmem:[%s4 + $0x18] sm:$0xff]
  %v4005 = vld [vmem:[%s4 + $0x20] sm:$0xff]
  %v4006 = vld [vmem:[%s4 + $0x28] sm:$0xff]
  %v4007 = vld [vmem:[%s4 + $0x30] sm:$0xff]
  %v4008 = vld [vmem:[%s4 + $0x38] sm:$0xff]
  %v4009 = vld [vmem:[%s4 + $0x40] sm:$0xff]
  %v4010 = vld [vmem:[%s4 + $0x48] sm:$0xff]
  %v4011 = vld [vmem:[%s4 + $0x50] sm:$0xff]
  %v4012 = vld [vmem:[%s4 + $0x58] sm:$0xff]
  %v4013 = vld [vmem:[%s4 + $0x60] sm:$0xff]
  %v4014 = vld [vmem:[%s4 + $0x68] sm:$0xff]
  %v4015 = vld [vmem:[%s4 + $0x70] sm:$0xff]
  %v4016 = vld [vmem:[%s4 + $0x78] sm:$0xff]
  %v4017 = vld [vmem:[%s4 + $0x80] sm:$0xff]
  %v4018 = vld [vmem:[%s4 + $0x88] sm:$0xff]
  %v4019 = vld [vmem:[%s4 + $0x90] sm:$0xff]
  %v4020 = vld [vmem:[%s4 + $0x98] sm:$0xff]
  %v4021 = vld [vmem:[%s4 + $0xa0] sm:$0xff]
  %v4022 = vld [vmem:[%s4 + $0xa8] sm:$0xff]
  %v4023 = vld [vmem:[%s4 + $0xb0] sm:$0xff]
  %v4024 = vld [vmem:[%s4 + $0xb8] sm:$0xff]
  %v4025 = vld [vmem:[%s4 + $0xc0] sm:$0xff]
  %v4026 = vld [vmem:[%s4 + $0xc8] sm:$0xff]
  %v4027 = vld [vmem:[%s4 + $0xd0] sm:$0xff]
  %v4028 = vld [vmem:[%s4 + $0xd8] sm:$0xff]
  %v4029 = vld [vmem:[%s4 + $0xe0] sm:$0xff]
  %v4030 = vld [vmem:[%s4 + $0xe8] sm:$0xff]
  %v4031 = vld [vmem:[%s4 + $0xf0] sm:$0xff]
  %v4032 = vld [vmem:[%s4 + $0xf8] sm:$0xff]
  %v4065 = vunpack.c.l.b16 %v4001
  %v4066 = vunpack.c.h.b16 %v4001
  %v4067 = vunpack.c.l.b16 %v4002
  %v4068 = vunpack.c.h.b16 %v4002
  %v4069 = vunpack.c.l.b16 %v4003
  %v4070 = vunpack.c.h.b16 %v4003
  %v4071 = vunpack.c.l.b16 %v4004
  %v4072 = vunpack.c.h.b16 %v4004
  %v4073 = vunpack.c.l.b16 %v4005
  %v4074 = vunpack.c.h.b16 %v4005
  %v4075 = vunpack.c.l.b16 %v4006
  %v4076 = vunpack.c.h.b16 %v4006
  %v4077 = vunpack.c.l.b16 %v4007
  %v4078 = vunpack.c.h.b16 %v4007
  %v4079 = vunpack.c.l.b16 %v4008
  %v4080 = vunpack.c.h.b16 %v4008
  %v4081 = vunpack.c.l.b16 %v4009
  %v4082 = vunpack.c.h.b16 %v4009
  %v4083 = vunpack.c.l.b16 %v4010
  %v4084 = vunpack.c.h.b16 %v4010
  %v4085 = vunpack.c.l.b16 %v4011
  %v4086 = vunpack.c.h.b16 %v4011
  %v4087 = vunpack.c.l.b16 %v4012
  %v4088 = vunpack.c.h.b16 %v4012
  %v4089 = vunpack.c.l.b16 %v4013
  %v4090 = vunpack.c.h.b16 %v4013
  %v4091 = vunpack.c.l.b16 %v4014
  %v4092 = vunpack.c.h.b16 %v4014
  %v4093 = vunpack.c.l.b16 %v4015
  %v4094 = vunpack.c.h.b16 %v4015
  %v4095 = vunpack.c.l.b16 %v4016
  %v4096 = vunpack.c.h.b16 %v4016
  %v4097 = vunpack.c.l.b16 %v4017
  %v4098 = vunpack.c.h.b16 %v4017
  %v4099 = vunpack.c.l.b16 %v4018
  %v4100 = vunpack.c.h.b16 %v4018
  %v4101 = vunpack.c.l.b16 %v4019
  %v4102 = vunpack.c.h.b16 %v4019
  %v4103 = vunpack.c.l.b16 %v4020
  %v4104 = vunpack.c.h.b16 %v4020
  %v4105 = vunpack.c.l.b16 %v4021
  %v4106 = vunpack.c.h.b16 %v4021
  %v4107 = vunpack.c.l.b16 %v4022
  %v4108 = vunpack.c.h.b16 %v4022
  %v4109 = vunpack.c.l.b16 %v4023
  %v4110 = vunpack.c.h.b16 %v4023
  %v4111 = vunpack.c.l.b16 %v4024
  %v4112 = vunpack.c.h.b16 %v4024
  %v4113 = vunpack.c.l.b16 %v4025
  %v4114 = vunpack.c.h.b16 %v4025
  %v4115 = vunpack.c.l.b16 %v4026
  %v4116 = vunpack.c.h.b16 %v4026
  %v4117 = vunpack.c.l.b16 %v4027
  %v4118 = vunpack.c.h.b16 %v4027
  %v4119 = vunpack.c.l.b16 %v4028
  %v4120 = vunpack.c.h.b16 %v4028
  %v4121 = vunpack.c.l.b16 %v4029
  %v4122 = vunpack.c.h.b16 %v4029
  %v4123 = vunpack.c.l.b16 %v4030
  %v4124 = vunpack.c.h.b16 %v4030
  %v4125 = vunpack.c.l.b16 %v4031
  %v4126 = vunpack.c.h.b16 %v4031
  %v4127 = vunpack.c.l.b16 %v4032
  %v4128 = vunpack.c.h.b16 %v4032
  %v4129 = vpack.c.b16 %v4069, %v4065
  %v4130 = vpack.c.b16 %v4070, %v4066
  %v4131 = vpack.c.b16 %v4071, %v4067
  %v4132 = vpack.c.b16 %v4072, %v4068
  %v4133 = vpack.c.b16 %v4077, %v4073
  %v4134 = vpack.c.b16 %v4078, %v4074
  %v4135 = vpack.c.b16 %v4079, %v4075
  %v4136 = vpack.c.b16 %v4080, %v4076
  %v4137 = vpack.c.b16 %v4085, %v4081
  %v4138 = vpack.c.b16 %v4086, %v4082
  %v4139 = vpack.c.b16 %v4087, %v4083
  %v4140 = vpack.c.b16 %v4088, %v4084
  %v4141 = vpack.c.b16 %v4093, %v4089
  %v4142 = vpack.c.b16 %v4094, %v4090
  %v4143 = vpack.c.b16 %v4095, %v4091
  %v4144 = vpack.c.b16 %v4096, %v4092
  %v4145 = vpack.c.b16 %v4101, %v4097
  %v4146 = vpack.c.b16 %v4102, %v4098
  %v4147 = vpack.c.b16 %v4103, %v4099
  %v4148 = vpack.c.b16 %v4104, %v4100
  %v4149 = vpack.c.b16 %v4109, %v4105
  %v4150 = vpack.c.b16 %v4110, %v4106
  %v4151 = vpack.c.b16 %v4111, %v4107
  %v4152 = vpack.c.b16 %v4112, %v4108
  %v4153 = vpack.c.b16 %v4117, %v4113
  %v4154 = vpack.c.b16 %v4118, %v4114
  %v4155 = vpack.c.b16 %v4119, %v4115
  %v4156 = vpack.c.b16 %v4120, %v4116
  %v4157 = vpack.c.b16 %v4125, %v4121
  %v4158 = vpack.c.b16 %v4126, %v4122
  %v4159 = vpack.c.b16 %v4127, %v4123
  %v4160 = vpack.c.b16 %v4128, %v4124
  %4193 = vmatprep.subr.bf16.mxu0 %v4130
  %4194 = vmatpush1.bf16.msra.mxu0 %v4129
  %4195 = vmatprep.subr.bf16.mxu0 %v4134
  %4196 = vmatpush1.bf16.msra.mxu0 %v4133
  %4197 = vmatprep.subr.bf16.mxu0 %v4138
  %4198 = vmatpush1.bf16.msra.mxu0 %v4137
  %4199 = vmatprep.subr.bf16.mxu0 %v4142
  %4200 = vmatpush1.bf16.msra.mxu0 %v4141
  %4201 = vmatprep.subr.bf16.mxu0 %v4146
  %4202 = vmatpush1.bf16.msra.mxu0 %v4145
  %4203 = vmatprep.subr.bf16.mxu0 %v4150
  %4204 = vmatpush1.bf16.msra.mxu0 %v4149
  %4205 = vmatprep.subr.bf16.mxu0 %v4154
  %4206 = vmatpush1.bf16.msra.mxu0 %v4153
  %4207 = vmatprep.subr.bf16.mxu0 %v4158
  %4208 = vmatpush1.bf16.msra.mxu0 %v4157
  %4209 = vmatprep.subr.bf16.mxu0 0
  %4210 = vmatpush1.bf16.msra.mxu0 0
  %4211 = vmatprep.subr.bf16.mxu0 0
  %4212 = vmatpush1.bf16.msra.mxu0 0
  %4213 = vmatprep.subr.bf16.mxu0 0
  %4214 = vmatpush1.bf16.msra.mxu0 0
  %4215 = vmatprep.subr.bf16.mxu0 0
  %4216 = vmatpush1.bf16.msra.mxu0 0
  %4217 = vmatprep.subr.bf16.mxu0 0
  %4218 = vmatpush1.bf16.msra.mxu0 0
  %4219 = vmatprep.subr.bf16.mxu0 0
  %4220 = vmatpush1.bf16.msra.mxu0 0
  %4221 = vmatprep.subr.bf16.mxu0 0
  %4222 = vmatpush1.bf16.msra.mxu0 0
  %4223 = vmatprep.subr.bf16.mxu0 0
  %4224 = vmatpush1.bf16.msra.mxu0 0
  %4225 = vmatprep.mubr.bf16.mxu0 0
  %4226 = vmatmul.mubr.bf16.gmra.mrb[0].mxu0 %v4000
  %v4227 = vpop.f32.mrb[0].mxu0
  %v4228 = vadd.f32 0.0, %v4227
  %v4229 = vpop.f32.mrb[0].mxu0
  %v4230 = vadd.f32 0.0, %v4229
  %v4231 = vpop.f32.mrb[0].mxu0
  %v4232 = vadd.f32 0.0, %v4231
  %v4233 = vpop.f32.mrb[0].mxu0
  %v4234 = vadd.f32 0.0, %v4233
  %4235 = vdwg.mxu0
  %4236 = vmatprep.subr.bf16.mxu0 %v4132
  %4237 = vmatpush1.bf16.msra.mxu0 %v4131
  %4238 = vmatprep.subr.bf16.mxu0 %v4136
  %4239 = vmatpush1.bf16.msra.mxu0 %v4135
  %4240 = vmatprep.subr.bf16.mxu0 %v4140
  %4241 = vmatpush1.bf16.msra.mxu0 %v4139
  %4242 = vmatprep.subr.bf16.mxu0 %v4144
  %4243 = vmatpush1.bf16.msra.mxu0 %v4143
  %4244 = vmatprep.subr.bf16.mxu0 %v4148
  %4245 = vmatpush1.bf16.msra.mxu0 %v4147
  %4246 = vmatprep.subr.bf16.mxu0 %v4152
  %4247 = vmatpush1.bf16.msra.mxu0 %v4151
  %4248 = vmatprep.subr.bf16.mxu0 %v4156
  %4249 = vmatpush1.bf16.msra.mxu0 %v4155
  %4250 = vmatprep.subr.bf16.mxu0 %v4160
  %4251 = vmatpush1.bf16.msra.mxu0 %v4159
  %4252 = vmatprep.subr.bf16.mxu0 0
  %4253 = vmatpush1.bf16.msra.mxu0 0
  %4254 = vmatprep.subr.bf16.mxu0 0
  %4255 = vmatpush1.bf16.msra.mxu0 0
  %4256 = vmatprep.subr.bf16.mxu0 0
  %4257 = vmatpush1.bf16.msra.mxu0 0
  %4258 = vmatprep.subr.bf16.mxu0 0
  %4259 = vmatpush1.bf16.msra.mxu0 0
  %4260 = vmatprep.subr.bf16.mxu0 0
  %4261 = vmatpush1.bf16.msra.mxu0 0
  %4262 = vmatprep.subr.bf16.mxu0 0
  %4263 = vmatpush1.bf16.msra.mxu0 0
  %4264 = vmatprep.subr.bf16.mxu0 0
  %4265 = vmatpush1.bf16.msra.mxu0 0
  %4266 = vmatprep.subr.bf16.mxu0 0
  %4267 = vmatpush1.bf16.msra.mxu0 0
  %4268 = vmatprep.mubr.bf16.mxu0 0
  %4269 = vmatmul.mubr.bf16.gmra.mrb[0].mxu0 %v4000
  %v4270 = vpop.f32.mrb[0].mxu0
  %v4271 = vadd.f32 0.0, %v4270
  %v4272 = vpop.f32.mrb[0].mxu0
  %v4273 = vadd.f32 0.0, %v4272
  %v4274 = vpop.f32.mrb[0].mxu0
  %v4275 = vadd.f32 0.0, %v4274
  %v4276 = vpop.f32.mrb[0].mxu0
  %v4277 = vadd.f32 0.0, %v4276
  %4278 = vdwg.mxu0
  %v4279 = vadd.f32 %v3992, %v4228
  %v4280 = vadd.f32 %v3993, %v4230
  %v4281 = vadd.f32 %v3994, %v4271
  %v4282 = vadd.f32 %v3995, %v4273
  %v4283 = vadd.f32 %v3996, %v4232
  %v4284 = vadd.f32 %v3997, %v4234
  %v4285 = vadd.f32 %v3998, %v4275
  %v4286 = vadd.f32 %v3999, %v4277
  %v4287 = vxor.u32 %v4279, 2147483648
  %v4288 = vxor.u32 %v4283, 2147483648
  %v4289 = vmul.f32 %v4287, 1.442695
  %v4290 = vpow.pop %v4289
  %v4291 = vmul.f32 %v4288, 1.442695
  %v4292 = vpow.pop %v4291
  %v4293 = vadd.f32 %v4290, 1.0
  %v4294 = vadd.f32 %v4292, 1.0
  %v4295 = vrcp.pop %v4293
  %v4296 = vmul.f32 1.0, %v4295
  %v4297 = vrcp.pop %v4294
  %v4298 = vmul.f32 1.0, %v4297
  %v4299 = vxor.u32 %v4280, 2147483648
  %v4300 = vxor.u32 %v4284, 2147483648
  %v4301 = vmul.f32 %v4299, 1.442695
  %v4302 = vpow.pop %v4301
  %v4303 = vmul.f32 %v4300, 1.442695
  %v4304 = vpow.pop %v4303
  %v4305 = vadd.f32 %v4302, 1.0
  %v4306 = vadd.f32 %v4304, 1.0
  %v4307 = vrcp.pop %v4305
  %v4308 = vmul.f32 1.0, %v4307
  %v4309 = vrcp.pop %v4306
  %v4310 = vmul.f32 1.0, %v4309
  %v4311 = vtanh.pop %v4281
  %v4312 = vtanh.pop %v4285
  %v4313 = vxor.u32 %v4282, 2147483648
  %v4314 = vxor.u32 %v4286, 2147483648
  %v4315 = vmul.f32 %v4313, 1.442695
  %v4316 = vpow.pop %v4315
  %v4317 = vmul.f32 %v4314, 1.442695
  %v4318 = vpow.pop %v4317
  %v4319 = vadd.f32 %v4316, 1.0
  %v4320 = vadd.f32 %v4318, 1.0
  %v4321 = vrcp.pop %v4319
  %v4322 = vmul.f32 1.0, %v4321
  %v4323 = vrcp.pop %v4320
  %v4324 = vmul.f32 1.0, %v4323
  %v4325 = vmul.f32 %v4308, %v3990
  %v4326 = vmul.f32 %v4310, %v3991
  %v4327 = vmul.f32 %v4296, %v4311
  %v4328 = vmul.f32 %v4298, %v4312
  %v4329 = vadd.f32 %v4325, %v4327
  %v4330 = vadd.f32 %v4326, %v4328
  %v4331 = vtanh.pop %v4329
  %v4332 = vtanh.pop %v4330
  %v4333 = vmul.f32 %v4322, %v4331
  %v4334 = vmul.f32 %v4324, %v4332
  %4335 = vst [vmem:[%s3986] sm:$0xff] %v4333
  %4336 = vst [vmem:[%s3986 + $0x8] sm:$0xff] %v4334
  %4337 = vst [vmem:[%s3989] sm:$0xff] %v4329
  %4338 = vst [vmem:[%s3989 + $0x8] sm:$0xff] %v4330
  %v4339 = vpack.c.bf16 %v4334, %v4333
  %4340 = vst [vmem:[#allocation2] sm:$0xff] %v4339
  %v4341 = vld [vmem:[%s3986] sm:$0xff]
  %v4342 = vld [vmem:[%s3986 + $0x8] sm:$0xff]
  %v4343 = vld [vmem:[%s3989] sm:$0xff]
  %v4344 = vld [vmem:[%s3989 + $0x8] sm:$0xff]
  %v4345 = vld [vmem:[%s993] sm:$0xff]
  %v4346 = vld [vmem:[%s993 + $0x8] sm:$0xff]
  %v4347 = vld [vmem:[%s993 + $0x10] sm:$0xff]
  %v4348 = vld [vmem:[%s993 + $0x18] sm:$0xff]
  %v4349 = vld [vmem:[%s993 + $0x20] sm:$0xff]
  %v4350 = vld [vmem:[%s993 + $0x28] sm:$0xff]
  %v4351 = vld [vmem:[%s993 + $0x30] sm:$0xff]
  %v4352 = vld [vmem:[%s993 + $0x38] sm:$0xff]
  %v4353 = vpack.c.bf16 %v4342, %v4341
  %v4354 = vld [vmem:[%s4] sm:$0xff]
  %v4355 = vld [vmem:[%s4 + $0x8] sm:$0xff]
  %v4356 = vld [vmem:[%s4 + $0x10] sm:$0xff]
  %v4357 = vld [vmem:[%s4 + $0x18] sm:$0xff]
  %v4358 = vld [vmem:[%s4 + $0x20] sm:$0xff]
  %v4359 = vld [vmem:[%s4 + $0x28] sm:$0xff]
  %v4360 = vld [vmem:[%s4 + $0x30] sm:$0xff]
  %v4361 = vld [vmem:[%s4 + $0x38] sm:$0xff]
  %v4362 = vld [vmem:[%s4 + $0x40] sm:$0xff]
  %v4363 = vld [vmem:[%s4 + $0x48] sm:$0xff]
  %v4364 = vld [vmem:[%s4 + $0x50] sm:$0xff]
  %v4365 = vld [vmem:[%s4 + $0x58] sm:$0xff]
  %v4366 = vld [vmem:[%s4 + $0x60] sm:$0xff]
  %v4367 = vld [vmem:[%s4 + $0x68] sm:$0xff]
  %v4368 = vld [vmem:[%s4 + $0x70] sm:$0xff]
  %v4369 = vld [vmem:[%s4 + $0x78] sm:$0xff]
  %v4370 = vld [vmem:[%s4 + $0x80] sm:$0xff]
  %v4371 = vld [vmem:[%s4 + $0x88] sm:$0xff]
  %v4372 = vld [vmem:[%s4 + $0x90] sm:$0xff]
  %v4373 = vld [vmem:[%s4 + $0x98] sm:$0xff]
  %v4374 = vld [vmem:[%s4 + $0xa0] sm:$0xff]
  %v4375 = vld [vmem:[%s4 + $0xa8] sm:$0xff]
  %v4376 = vld [vmem:[%s4 + $0xb0] sm:$0xff]
  %v4377 = vld [vmem:[%s4 + $0xb8] sm:$0xff]
  %v4378 = vld [vmem:[%s4 + $0xc0] sm:$0xff]
  %v4379 = vld [vmem:[%s4 + $0xc8] sm:$0xff]
  %v4380 = vld [vmem:[%s4 + $0xd0] sm:$0xff]
  %v4381 = vld [vmem:[%s4 + $0xd8] sm:$0xff]
  %v4382 = vld [vmem:[%s4 + $0xe0] sm:$0xff]
  %v4383 = vld [vmem:[%s4 + $0xe8] sm:$0xff]
  %v4384 = vld [vmem:[%s4 + $0xf0] sm:$0xff]
  %v4385 = vld [vmem:[%s4 + $0xf8] sm:$0xff]
  %v4418 = vunpack.c.l.b16 %v4354
  %v4419 = vunpack.c.h.b16 %v4354
  %v4420 = vunpack.c.l.b16 %v4355
  %v4421 = vunpack.c.h.b16 %v4355
  %v4422 = vunpack.c.l.b16 %v4356
  %v4423 = vunpack.c.h.b16 %v4356
  %v4424 = vunpack.c.l.b16 %v4357
  %v4425 = vunpack.c.h.b16 %v4357
  %v4426 = vunpack.c.l.b16 %v4358
  %v4427 = vunpack.c.h.b16 %v4358
  %v4428 = vunpack.c.l.b16 %v4359
  %v4429 = vunpack.c.h.b16 %v4359
  %v4430 = vunpack.c.l.b16 %v4360
  %v4431 = vunpack.c.h.b16 %v4360
  %v4432 = vunpack.c.l.b16 %v4361
  %v4433 = vunpack.c.h.b16 %v4361
  %v4434 = vunpack.c.l.b16 %v4362
  %v4435 = vunpack.c.h.b16 %v4362
  %v4436 = vunpack.c.l.b16 %v4363
  %v4437 = vunpack.c.h.b16 %v4363
  %v4438 = vunpack.c.l.b16 %v4364
  %v4439 = vunpack.c.h.b16 %v4364
  %v4440 = vunpack.c.l.b16 %v4365
  %v4441 = vunpack.c.h.b16 %v4365
  %v4442 = vunpack.c.l.b16 %v4366
  %v4443 = vunpack.c.h.b16 %v4366
  %v4444 = vunpack.c.l.b16 %v4367
  %v4445 = vunpack.c.h.b16 %v4367
  %v4446 = vunpack.c.l.b16 %v4368
  %v4447 = vunpack.c.h.b16 %v4368
  %v4448 = vunpack.c.l.b16 %v4369
  %v4449 = vunpack.c.h.b16 %v4369
  %v4450 = vunpack.c.l.b16 %v4370
  %v4451 = vunpack.c.h.b16 %v4370
  %v4452 = vunpack.c.l.b16 %v4371
  %v4453 = vunpack.c.h.b16 %v4371
  %v4454 = vunpack.c.l.b16 %v4372
  %v4455 = vunpack.c.h.b16 %v4372
  %v4456 = vunpack.c.l.b16 %v4373
  %v4457 = vunpack.c.h.b16 %v4373
  %v4458 = vunpack.c.l.b16 %v4374
  %v4459 = vunpack.c.h.b16 %v4374
  %v4460 = vunpack.c.l.b16 %v4375
  %v4461 = vunpack.c.h.b16 %v4375
  %v4462 = vunpack.c.l.b16 %v4376
  %v4463 = vunpack.c.h.b16 %v4376
  %v4464 = vunpack.c.l.b16 %v4377
  %v4465 = vunpack.c.h.b16 %v4377
  %v4466 = vunpack.c.l.b16 %v4378
  %v4467 = vunpack.c.h.b16 %v4378
  %v4468 = vunpack.c.l.b16 %v4379
  %v4469 = vunpack.c.h.b16 %v4379
  %v4470 = vunpack.c.l.b16 %v4380
  %v4471 = vunpack.c.h.b16 %v4380
  %v4472 = vunpack.c.l.b16 %v4381
  %v4473 = vunpack.c.h.b16 %v4381
  %v4474 = vunpack.c.l.b16 %v4382
  %v4475 = vunpack.c.h.b16 %v4382
  %v4476 = vunpack.c.l.b16 %v4383
  %v4477 = vunpack.c.h.b16 %v4383
  %v4478 = vunpack.c.l.b16 %v4384
  %v4479 = vunpack.c.h.b16 %v4384
  %v4480 = vunpack.c.l.b16 %v4385
  %v4481 = vunpack.c.h.b16 %v4385
  %v4482 = vpack.c.b16 %v4422, %v4418
  %v4483 = vpack.c.b16 %v4423, %v4419
  %v4484 = vpack.c.b16 %v4424, %v4420
  %v4485 = vpack.c.b16 %v4425, %v4421
  %v4486 = vpack.c.b16 %v4430, %v4426
  %v4487 = vpack.c.b16 %v4431, %v4427
  %v4488 = vpack.c.b16 %v4432, %v4428
  %v4489 = vpack.c.b16 %v4433, %v4429
  %v4490 = vpack.c.b16 %v4438, %v4434
  %v4491 = vpack.c.b16 %v4439, %v4435
  %v4492 = vpack.c.b16 %v4440, %v4436
  %v4493 = vpack.c.b16 %v4441, %v4437
  %v4494 = vpack.c.b16 %v4446, %v4442
  %v4495 = vpack.c.b16 %v4447, %v4443
  %v4496 = vpack.c.b16 %v4448, %v4444
  %v4497 = vpack.c.b16 %v4449, %v4445
  %v4498 = vpack.c.b16 %v4454, %v4450
  %v4499 = vpack.c.b16 %v4455, %v4451
  %v4500 = vpack.c.b16 %v4456, %v4452
  %v4501 = vpack.c.b16 %v4457, %v4453
  %v4502 = vpack.c.b16 %v4462, %v4458
  %v4503 = vpack.c.b16 %v4463, %v4459
  %v4504 = vpack.c.b16 %v4464, %v4460
  %v4505 = vpack.c.b16 %v4465, %v4461
  %v4506 = vpack.c.b16 %v4470, %v4466
  %v4507 = vpack.c.b16 %v4471, %v4467
  %v4508 = vpack.c.b16 %v4472, %v4468
  %v4509 = vpack.c.b16 %v4473, %v4469
  %v4510 = vpack.c.b16 %v4478, %v4474
  %v4511 = vpack.c.b16 %v4479, %v4475
  %v4512 = vpack.c.b16 %v4480, %v4476
  %v4513 = vpack.c.b16 %v4481, %v4477
  %4546 = vmatprep.subr.bf16.mxu0 %v4483
  %4547 = vmatpush1.bf16.msra.mxu0 %v4482
  %4548 = vmatprep.subr.bf16.mxu0 %v4487
  %4549 = vmatpush1.bf16.msra.mxu0 %v4486
  %4550 = vmatprep.subr.bf16.mxu0 %v4491
  %4551 = vmatpush1.bf16.msra.mxu0 %v4490
  %4552 = vmatprep.subr.bf16.mxu0 %v4495
  %4553 = vmatpush1.bf16.msra.mxu0 %v4494
  %4554 = vmatprep.subr.bf16.mxu0 %v4499
  %4555 = vmatpush1.bf16.msra.mxu0 %v4498
  %4556 = vmatprep.subr.bf16.mxu0 %v4503
  %4557 = vmatpush1.bf16.msra.mxu0 %v4502
  %4558 = vmatprep.subr.bf16.mxu0 %v4507
  %4559 = vmatpush1.bf16.msra.mxu0 %v4506
  %4560 = vmatprep.subr.bf16.mxu0 %v4511
  %4561 = vmatpush1.bf16.msra.mxu0 %v4510
  %4562 = vmatprep.subr.bf16.mxu0 0
  %4563 = vmatpush1.bf16.msra.mxu0 0
  %4564 = vmatprep.subr.bf16.mxu0 0
  %4565 = vmatpush1.bf16.msra.mxu0 0
  %4566 = vmatprep.subr.bf16.mxu0 0
  %4567 = vmatpush1.bf16.msra.mxu0 0
  %4568 = vmatprep.subr.bf16.mxu0 0
  %4569 = vmatpush1.bf16.msra.mxu0 0
  %4570 = vmatprep.subr.bf16.mxu0 0
  %4571 = vmatpush1.bf16.msra.mxu0 0
  %4572 = vmatprep.subr.bf16.mxu0 0
  %4573 = vmatpush1.bf16.msra.mxu0 0
  %4574 = vmatprep.subr.bf16.mxu0 0
  %4575 = vmatpush1.bf16.msra.mxu0 0
  %4576 = vmatprep.subr.bf16.mxu0 0
  %4577 = vmatpush1.bf16.msra.mxu0 0
  %4578 = vmatprep.mubr.bf16.mxu0 0
  %4579 = vmatmul.mubr.bf16.gmra.mrb[0].mxu0 %v4353
  %v4580 = vpop.f32.mrb[0].mxu0
  %v4581 = vadd.f32 0.0, %v4580
  %v4582 = vpop.f32.mrb[0].mxu0
  %v4583 = vadd.f32 0.0, %v4582
  %v4584 = vpop.f32.mrb[0].mxu0
  %v4585 = vadd.f32 0.0, %v4584
  %v4586 = vpop.f32.mrb[0].mxu0
  %v4587 = vadd.f32 0.0, %v4586
  %4588 = vdwg.mxu0
  %4589 = vmatprep.subr.bf16.mxu0 %v4485
  %4590 = vmatpush1.bf16.msra.mxu0 %v4484
  %4591 = vmatprep.subr.bf16.mxu0 %v4489
  %4592 = vmatpush1.bf16.msra.mxu0 %v4488
  %4593 = vmatprep.subr.bf16.mxu0 %v4493
  %4594 = vmatpush1.bf16.msra.mxu0 %v4492
  %4595 = vmatprep.subr.bf16.mxu0 %v4497
  %4596 = vmatpush1.bf16.msra.mxu0 %v4496
  %4597 = vmatprep.subr.bf16.mxu0 %v4501
  %4598 = vmatpush1.bf16.msra.mxu0 %v4500
  %4599 = vmatprep.subr.bf16.mxu0 %v4505
  %4600 = vmatpush1.bf16.msra.mxu0 %v4504
  %4601 = vmatprep.subr.bf16.mxu0 %v4509
  %4602 = vmatpush1.bf16.msra.mxu0 %v4508
  %4603 = vmatprep.subr.bf16.mxu0 %v4513
  %4604 = vmatpush1.bf16.msra.mxu0 %v4512
  %4605 = vmatprep.subr.bf16.mxu0 0
  %4606 = vmatpush1.bf16.msra.mxu0 0
  %4607 = vmatprep.subr.bf16.mxu0 0
  %4608 = vmatpush1.bf16.msra.mxu0 0
  %4609 = vmatprep.subr.bf16.mxu0 0
  %4610 = vmatpush1.bf16.msra.mxu0 0
  %4611 = vmatprep.subr.bf16.mxu0 0
  %4612 = vmatpush1.bf16.msra.mxu0 0
  %4613 = vmatprep.subr.bf16.mxu0 0
  %4614 = vmatpush1.bf16.msra.mxu0 0
  %4615 = vmatprep.subr.bf16.mxu0 0
  %4616 = vmatpush1.bf16.msra.mxu0 0
  %4617 = vmatprep.subr.bf16.mxu0 0
  %4618 = vmatpush1.bf16.msra.mxu0 0
  %4619 = vmatprep.subr.bf16.mxu0 0
  %4620 = vmatpush1.bf16.msra.mxu0 0
  %4621 = vmatprep.mubr.bf16.mxu0 0
  %4622 = vmatmul.mubr.bf16.gmra.mrb[0].mxu0 %v4353
  %v4623 = vpop.f32.mrb[0].mxu0
  %v4624 = vadd.f32 0.0, %v4623
  %v4625 = vpop.f32.mrb[0].mxu0
  %v4626 = vadd.f32 0.0, %v4625
  %v4627 = vpop.f32.mrb[0].mxu0
  %v4628 = vadd.f32 0.0, %v4627
  %v4629 = vpop.f32.mrb[0].mxu0
  %v4630 = vadd.f32 0.0, %v4629
  %4631 = vdwg.mxu0
  %v4632 = vadd.f32 %v4345, %v4581
  %v4633 = vadd.f32 %v4346, %v4583
  %v4634 = vadd.f32 %v4347, %v4624
  %v4635 = vadd.f32 %v4348, %v4626
  %v4636 = vadd.f32 %v4349, %v4585
  %v4637 = vadd.f32 %v4350, %v4587
  %v4638 = vadd.f32 %v4351, %v4628
  %v4639 = vadd.f32 %v4352, %v4630
  %v4640 = vxor.u32 %v4632, 2147483648
  %v4641 = vxor.u32 %v4636, 2147483648
  %v4642 = vmul.f32 %v4640, 1.442695
  %v4643 = vpow.pop %v4642
  %v4644 = vmul.f32 %v4641, 1.442695
  %v4645 = vpow.pop %v4644
  %v4646 = vadd.f32 %v4643, 1.0
  %v4647 = vadd.f32 %v4645, 1.0
  %v4648 = vrcp.pop %v4646
  %v4649 = vmul.f32 1.0, %v4648
  %v4650 = vrcp.pop %v4647
  %v4651 = vmul.f32 1.0, %v4650
  %v4652 = vxor.u32 %v4633, 2147483648
  %v4653 = vxor.u32 %v4637, 2147483648
  %v4654 = vmul.f32 %v4652, 1.442695
  %v4655 = vpow.pop %v4654
  %v4656 = vmul.f32 %v4653, 1.442695
  %v4657 = vpow.pop %v4656
  %v4658 = vadd.f32 %v4655, 1.0
  %v4659 = vadd.f32 %v4657, 1.0
  %v4660 = vrcp.pop %v4658
  %v4661 = vmul.f32 1.0, %v4660
  %v4662 = vrcp.pop %v4659
  %v4663 = vmul.f32 1.0, %v4662
  %v4664 = vtanh.pop %v4634
  %v4665 = vtanh.pop %v4638
  %v4666 = vxor.u32 %v4635, 2147483648
  %v4667 = vxor.u32 %v4639, 2147483648
  %v4668 = vmul.f32 %v4666, 1.442695
  %v4669 = vpow.pop %v4668
  %v4670 = vmul.f32 %v4667, 1.442695
  %v4671 = vpow.pop %v4670
  %v4672 = vadd.f32 %v4669, 1.0
  %v4673 = vadd.f32 %v4671, 1.0
  %v4674 = vrcp.pop %v4672
  %v4675 = vmul.f32 1.0, %v4674
  %v4676 = vrcp.pop %v4673
  %v4677 = vmul.f32 1.0, %v4676
  %v4678 = vmul.f32 %v4661, %v4343
  %v4679 = vmul.f32 %v4663, %v4344
  %v4680 = vmul.f32 %v4649, %v4664
  %v4681 = vmul.f32 %v4651, %v4665
  %v4682 = vadd.f32 %v4678, %v4680
  %v4683 = vadd.f32 %v4679, %v4681
  %v4684 = vtanh.pop %v4682
  %v4685 = vtanh.pop %v4683
  %v4686 = vmul.f32 %v4675, %v4684
  %v4687 = vmul.f32 %v4677, %v4685
  %4688 = vst [vmem:[%s3986] sm:$0xff] %v4686
  %4689 = vst [vmem:[%s3986 + $0x8] sm:$0xff] %v4687
  %4690 = vst [vmem:[%s3989] sm:$0xff] %v4682
  %4691 = vst [vmem:[%s3989 + $0x8] sm:$0xff] %v4683
  %v4692 = vpack.c.bf16 %v4687, %v4686
  %4693 = vst [vmem:[%s1342] sm:$0xff] %v4692
  %v4694 = vld [vmem:[%s3986] sm:$0xff]
  %v4695 = vld [vmem:[%s3986 + $0x8] sm:$0xff]
  %v4696 = vld [vmem:[%s3989] sm:$0xff]
  %v4697 = vld [vmem:[%s3989 + $0x8] sm:$0xff]
  %v4698 = vld [vmem:[%s1348] sm:$0xff]
  %v4699 = vld [vmem:[%s1348 + $0x8] sm:$0xff]
  %v4700 = vld [vmem:[%s1348 + $0x10] sm:$0xff]
  %v4701 = vld [vmem:[%s1348 + $0x18] sm:$0xff]
  %v4702 = vld [vmem:[%s1348 + $0x20] sm:$0xff]
  %v4703 = vld [vmem:[%s1348 + $0x28] sm:$0xff]
  %v4704 = vld [vmem:[%s1348 + $0x30] sm:$0xff]
  %v4705 = vld [vmem:[%s1348 + $0x38] sm:$0xff]
  %v4706 = vpack.c.bf16 %v4695, %v4694
  %v4707 = vld [vmem:[%s4] sm:$0xff]
  %v4708 = vld [vmem:[%s4 + $0x8] sm:$0xff]
  %v4709 = vld [vmem:[%s4 + $0x10] sm:$0xff]
  %v4710 = vld [vmem:[%s4 + $0x18] sm:$0xff]
  %v4711 = vld [vmem:[%s4 + $0x20] sm:$0xff]
  %v4712 = vld [vmem:[%s4 + $0x28] sm:$0xff]
  %v4713 = vld [vmem:[%s4 + $0x30] sm:$0xff]
  %v4714 = vld [vmem:[%s4 + $0x38] sm:$0xff]
  %v4715 = vld [vmem:[%s4 + $0x40] sm:$0xff]
  %v4716 = vld [vmem:[%s4 + $0x48] sm:$0xff]
  %v4717 = vld [vmem:[%s4 + $0x50] sm:$0xff]
  %v4718 = vld [vmem:[%s4 + $0x58] sm:$0xff]
  %v4719 = vld [vmem:[%s4 + $0x60] sm:$0xff]
  %v4720 = vld [vmem:[%s4 + $0x68] sm:$0xff]
  %v4721 = vld [vmem:[%s4 + $0x70] sm:$0xff]
  %v4722 = vld [vmem:[%s4 + $0x78] sm:$0xff]
  %v4723 = vld [vmem:[%s4 + $0x80] sm:$0xff]
  %v4724 = vld [vmem:[%s4 + $0x88] sm:$0xff]
  %v4725 = vld [vmem:[%s4 + $0x90] sm:$0xff]
  %v4726 = vld [vmem:[%s4 + $0x98] sm:$0xff]
  %v4727 = vld [vmem:[%s4 + $0xa0] sm:$0xff]
  %v4728 = vld [vmem:[%s4 + $0xa8] sm:$0xff]
  %v4729 = vld [vmem:[%s4 + $0xb0] sm:$0xff]
  %v4730 = vld [vmem:[%s4 + $0xb8] sm:$0xff]
  %v4731 = vld [vmem:[%s4 + $0xc0] sm:$0xff]
  %v4732 = vld [vmem:[%s4 + $0xc8] sm:$0xff]
  %v4733 = vld [vmem:[%s4 + $0xd0] sm:$0xff]
  %v4734 = vld [vmem:[%s4 + $0xd8] sm:$0xff]
  %v4735 = vld [vmem:[%s4 + $0xe0] sm:$0xff]
  %v4736 = vld [vmem:[%s4 + $0xe8] sm:$0xff]
  %v4737 = vld [vmem:[%s4 + $0xf0] sm:$0xff]
  %v4738 = vld [vmem:[%s4 + $0xf8] sm:$0xff]
  %v4771 = vunpack.c.l.b16 %v4707
  %v4772 = vunpack.c.h.b16 %v4707
  %v4773 = vunpack.c.l.b16 %v4708
  %v4774 = vunpack.c.h.b16 %v4708
  %v4775 = vunpack.c.l.b16 %v4709
  %v4776 = vunpack.c.h.b16 %v4709
  %v4777 = vunpack.c.l.b16 %v4710
  %v4778 = vunpack.c.h.b16 %v4710
  %v4779 = vunpack.c.l.b16 %v4711
  %v4780 = vunpack.c.h.b16 %v4711
  %v4781 = vunpack.c.l.b16 %v4712
  %v4782 = vunpack.c.h.b16 %v4712
  %v4783 = vunpack.c.l.b16 %v4713
  %v4784 = vunpack.c.h.b16 %v4713
  %v4785 = vunpack.c.l.b16 %v4714
  %v4786 = vunpack.c.h.b16 %v4714
  %v4787 = vunpack.c.l.b16 %v4715
  %v4788 = vunpack.c.h.b16 %v4715
  %v4789 = vunpack.c.l.b16 %v4716
  %v4790 = vunpack.c.h.b16 %v4716
  %v4791 = vunpack.c.l.b16 %v4717
  %v4792 = vunpack.c.h.b16 %v4717
  %v4793 = vunpack.c.l.b16 %v4718
  %v4794 = vunpack.c.h.b16 %v4718
  %v4795 = vunpack.c.l.b16 %v4719
  %v4796 = vunpack.c.h.b16 %v4719
  %v4797 = vunpack.c.l.b16 %v4720
  %v4798 = vunpack.c.h.b16 %v4720
  %v4799 = vunpack.c.l.b16 %v4721
  %v4800 = vunpack.c.h.b16 %v4721
  %v4801 = vunpack.c.l.b16 %v4722
  %v4802 = vunpack.c.h.b16 %v4722
  %v4803 = vunpack.c.l.b16 %v4723
  %v4804 = vunpack.c.h.b16 %v4723
  %v4805 = vunpack.c.l.b16 %v4724
  %v4806 = vunpack.c.h.b16 %v4724
  %v4807 = vunpack.c.l.b16 %v4725
  %v4808 = vunpack.c.h.b16 %v4725
  %v4809 = vunpack.c.l.b16 %v4726
  %v4810 = vunpack.c.h.b16 %v4726
  %v4811 = vunpack.c.l.b16 %v4727
  %v4812 = vunpack.c.h.b16 %v4727
  %v4813 = vunpack.c.l.b16 %v4728
  %v4814 = vunpack.c.h.b16 %v4728
  %v4815 = vunpack.c.l.b16 %v4729
  %v4816 = vunpack.c.h.b16 %v4729
  %v4817 = vunpack.c.l.b16 %v4730
  %v4818 = vunpack.c.h.b16 %v4730
  %v4819 = vunpack.c.l.b16 %v4731
  %v4820 = vunpack.c.h.b16 %v4731
  %v4821 = vunpack.c.l.b16 %v4732
  %v4822 = vunpack.c.h.b16 %v4732
  %v4823 = vunpack.c.l.b16 %v4733
  %v4824 = vunpack.c.h.b16 %v4733
  %v4825 = vunpack.c.l.b16 %v4734
  %v4826 = vunpack.c.h.b16 %v4734
  %v4827 = vunpack.c.l.b16 %v4735
  %v4828 = vunpack.c.h.b16 %v4735
  %v4829 = vunpack.c.l.b16 %v4736
  %v4830 = vunpack.c.h.b16 %v4736
  %v4831 = vunpack.c.l.b16 %v4737
  %v4832 = vunpack.c.h.b16 %v4737
  %v4833 = vunpack.c.l.b16 %v4738
  %v4834 = vunpack.c.h.b16 %v4738
  %v4835 = vpack.c.b16 %v4775, %v4771
  %v4836 = vpack.c.b16 %v4776, %v4772
  %v4837 = vpack.c.b16 %v4777, %v4773
  %v4838 = vpack.c.b16 %v4778, %v4774
  %v4839 = vpack.c.b16 %v4783, %v4779
  %v4840 = vpack.c.b16 %v4784, %v4780
  %v4841 = vpack.c.b16 %v4785, %v4781
  %v4842 = vpack.c.b16 %v4786, %v4782
  %v4843 = vpack.c.b16 %v4791, %v4787
  %v4844 = vpack.c.b16 %v4792, %v4788
  %v4845 = vpack.c.b16 %v4793, %v4789
  %v4846 = vpack.c.b16 %v4794, %v4790
  %v4847 = vpack.c.b16 %v4799, %v4795
  %v4848 = vpack.c.b16 %v4800, %v4796
  %v4849 = vpack.c.b16 %v4801, %v4797
  %v4850 = vpack.c.b16 %v4802, %v4798
  %v4851 = vpack.c.b16 %v4807, %v4803
  %v4852 = vpack.c.b16 %v4808, %v4804
  %v4853 = vpack.c.b16 %v4809, %v4805
  %v4854 = vpack.c.b16 %v4810, %v4806
  %v4855 = vpack.c.b16 %v4815, %v4811
  %v4856 = vpack.c.b16 %v4816, %v4812
  %v4857 = vpack.c.b16 %v4817, %v4813
  %v4858 = vpack.c.b16 %v4818, %v4814
  %v4859 = vpack.c.b16 %v4823, %v4819
  %v4860 = vpack.c.b16 %v4824, %v4820
  %v4861 = vpack.c.b16 %v4825, %v4821
  %v4862 = vpack.c.b16 %v4826, %v4822
  %v4863 = vpack.c.b16 %v4831, %v4827
  %v4864 = vpack.c.b16 %v4832, %v4828
  %v4865 = vpack.c.b16 %v4833, %v4829
  %v4866 = vpack.c.b16 %v4834, %v4830
  %4899 = vmatprep.subr.bf16.mxu0 %v4836
  %4900 = vmatpush1.bf16.msra.mxu0 %v4835
  %4901 = vmatprep.subr.bf16.mxu0 %v4840
  %4902 = vmatpush1.bf16.msra.mxu0 %v4839
  %4903 = vmatprep.subr.bf16.mxu0 %v4844
  %4904 = vmatpush1.bf16.msra.mxu0 %v4843
  %4905 = vmatprep.subr.bf16.mxu0 %v4848
  %4906 = vmatpush1.bf16.msra.mxu0 %v4847
  %4907 = vmatprep.subr.bf16.mxu0 %v4852
  %4908 = vmatpush1.bf16.msra.mxu0 %v4851
  %4909 = vmatprep.subr.bf16.mxu0 %v4856
  %4910 = vmatpush1.bf16.msra.mxu0 %v4855
  %4911 = vmatprep.subr.bf16.mxu0 %v4860
  %4912 = vmatpush1.bf16.msra.mxu0 %v4859
  %4913 = vmatprep.subr.bf16.mxu0 %v4864
  %4914 = vmatpush1.bf16.msra.mxu0 %v4863
  %4915 = vmatprep.subr.bf16.mxu0 0
  %4916 = vmatpush1.bf16.msra.mxu0 0
  %4917 = vmatprep.subr.bf16.mxu0 0
  %4918 = vmatpush1.bf16.msra.mxu0 0
  %4919 = vmatprep.subr.bf16.mxu0 0
  %4920 = vmatpush1.bf16.msra.mxu0 0
  %4921 = vmatprep.subr.bf16.mxu0 0
  %4922 = vmatpush1.bf16.msra.mxu0 0
  %4923 = vmatprep.subr.bf16.mxu0 0
  %4924 = vmatpush1.bf16.msra.mxu0 0
  %4925 = vmatprep.subr.bf16.mxu0 0
  %4926 = vmatpush1.bf16.msra.mxu0 0
  %4927 = vmatprep.subr.bf16.mxu0 0
  %4928 = vmatpush1.bf16.msra.mxu0 0
  %4929 = vmatprep.subr.bf16.mxu0 0
  %4930 = vmatpush1.bf16.msra.mxu0 0
  %4931 = vmatprep.mubr.bf16.mxu0 0
  %4932 = vmatmul.mubr.bf16.gmra.mrb[0].mxu0 %v4706
  %v4933 = vpop.f32.mrb[0].mxu0
  %v4934 = vadd.f32 0.0, %v4933
  %v4935 = vpop.f32.mrb[0].mxu0
  %v4936 = vadd.f32 0.0, %v4935
  %v4937 = vpop.f32.mrb[0].mxu0
  %v4938 = vadd.f32 0.0, %v4937
  %v4939 = vpop.f32.mrb[0].mxu0
  %v4940 = vadd.f32 0.0, %v4939
  %4941 = vdwg.mxu0
  %4942 = vmatprep.subr.bf16.mxu0 %v4838
  %4943 = vmatpush1.bf16.msra.mxu0 %v4837
  %4944 = vmatprep.subr.bf16.mxu0 %v4842
  %4945 = vmatpush1.bf16.msra.mxu0 %v4841
  %4946 = vmatprep.subr.bf16.mxu0 %v4846
  %4947 = vmatpush1.bf16.msra.mxu0 %v4845
  %4948 = vmatprep.subr.bf16.mxu0 %v4850
  %4949 = vmatpush1.bf16.msra.mxu0 %v4849
  %4950 = vmatprep.subr.bf16.mxu0 %v4854
  %4951 = vmatpush1.bf16.msra.mxu0 %v4853
  %4952 = vmatprep.subr.bf16.mxu0 %v4858
  %4953 = vmatpush1.bf16.msra.mxu0 %v4857
  %4954 = vmatprep.subr.bf16.mxu0 %v4862
  %4955 = vmatpush1.bf16.msra.mxu0 %v4861
  %4956 = vmatprep.subr.bf16.mxu0 %v4866
  %4957 = vmatpush1.bf16.msra.mxu0 %v4865
  %4958 = vmatprep.subr.bf16.mxu0 0
  %4959 = vmatpush1.bf16.msra.mxu0 0
  %4960 = vmatprep.subr.bf16.mxu0 0
  %4961 = vmatpush1.bf16.msra.mxu0 0
  %4962 = vmatprep.subr.bf16.mxu0 0
  %4963 = vmatpush1.bf16.msra.mxu0 0
  %4964 = vmatprep.subr.bf16.mxu0 0
  %4965 = vmatpush1.bf16.msra.mxu0 0
  %4966 = vmatprep.subr.bf16.mxu0 0
  %4967 = vmatpush1.bf16.msra.mxu0 0
  %4968 = vmatprep.subr.bf16.mxu0 0
  %4969 = vmatpush1.bf16.msra.mxu0 0
  %4970 = vmatprep.subr.bf16.mxu0 0
  %4971 = vmatpush1.bf16.msra.mxu0 0
  %4972 = vmatprep.subr.bf16.mxu0 0
  %4973 = vmatpush1.bf16.msra.mxu0 0
  %4974 = vmatprep.mubr.bf16.mxu0 0
  %4975 = vmatmul.mubr.bf16.gmra.mrb[0].mxu0 %v4706
  %v4976 = vpop.f32.mrb[0].mxu0
  %v4977 = vadd.f32 0.0, %v4976
  %v4978 = vpop.f32.mrb[0].mxu0
  %v4979 = vadd.f32 0.0, %v4978
  %v4980 = vpop.f32.mrb[0].mxu0
  %v4981 = vadd.f32 0.0, %v4980
  %v4982 = vpop.f32.mrb[0].mxu0
  %v4983 = vadd.f32 0.0, %v4982
  %4984 = vdwg.mxu0
  %v4985 = vadd.f32 %v4698, %v4934
  %v4986 = vadd.f32 %v4699, %v4936
  %v4987 = vadd.f32 %v4700, %v4977
  %v4988 = vadd.f32 %v4701, %v4979
  %v4989 = vadd.f32 %v4702, %v4938
  %v4990 = vadd.f32 %v4703, %v4940
  %v4991 = vadd.f32 %v4704, %v4981
  %v4992 = vadd.f32 %v4705, %v4983
  %v4993 = vxor.u32 %v4985, 2147483648
  %v4994 = vxor.u32 %v4989, 2147483648
  %v4995 = vmul.f32 %v4993, 1.442695
  %v4996 = vpow.pop %v4995
  %v4997 = vmul.f32 %v4994, 1.442695
  %v4998 = vpow.pop %v4997
  %v4999 = vadd.f32 %v4996, 1.0
  %v5000 = vadd.f32 %v4998, 1.0
  %v5001 = vrcp.pop %v4999
  %v5002 = vmul.f32 1.0, %v5001
  %v5003 = vrcp.pop %v5000
  %v5004 = vmul.f32 1.0, %v5003
  %v5005 = vxor.u32 %v4986, 2147483648
  %v5006 = vxor.u32 %v4990, 2147483648
  %v5007 = vmul.f32 %v5005, 1.442695
  %v5008 = vpow.pop %v5007
  %v5009 = vmul.f32 %v5006, 1.442695
  %v5010 = vpow.pop %v5009
  %v5011 = vadd.f32 %v5008, 1.0
  %v5012 = vadd.f32 %v5010, 1.0
  %v5013 = vrcp.pop %v5011
  %v5014 = vmul.f32 1.0, %v5013
  %v5015 = vrcp.pop %v5012
  %v5016 = vmul.f32 1.0, %v5015
  %v5017 = vtanh.pop %v4987
  %v5018 = vtanh.pop %v4991
  %v5019 = vxor.u32 %v4988, 2147483648
  %v5020 = vxor.u32 %v4992, 2147483648
  %v5021 = vmul.f32 %v5019, 1.442695
  %v5022 = vpow.pop %v5021
  %v5023 = vmul.f32 %v5020, 1.442695
  %v5024 = vpow.pop %v5023
  %v5025 = vadd.f32 %v5022, 1.0
  %v5026 = vadd.f32 %v5024, 1.0
  %v5027 = vrcp.pop %v5025
  %v5028 = vmul.f32 1.0, %v5027
  %v5029 = vrcp.pop %v5026
  %v5030 = vmul.f32 1.0, %v5029
  %v5031 = vmul.f32 %v5014, %v4696
  %v5032 = vmul.f32 %v5016, %v4697
  %v5033 = vmul.f32 %v5002, %v5017
  %v5034 = vmul.f32 %v5004, %v5018
  %v5035 = vadd.f32 %v5031, %v5033
  %v5036 = vadd.f32 %v5032, %v5034
  %v5037 = vtanh.pop %v5035
  %v5038 = vtanh.pop %v5036
  %v5039 = vmul.f32 %v5028, %v5037
  %v5040 = vmul.f32 %v5030, %v5038
  %5041 = vst [vmem:[%s3986] sm:$0xff] %v5039
  %5042 = vst [vmem:[%s3986 + $0x8] sm:$0xff] %v5040
  %5043 = vst [vmem:[%s3989] sm:$0xff] %v5035
  %5044 = vst [vmem:[%s3989 + $0x8] sm:$0xff] %v5036
  %v5045 = vpack.c.bf16 %v5040, %v5039
  %5046 = vst [vmem:[%s1697] sm:$0xff] %v5045
  %v5047 = vld [vmem:[%s3986] sm:$0xff]
  %v5048 = vld [vmem:[%s3986 + $0x8] sm:$0xff]
  %v5049 = vld [vmem:[%s3989] sm:$0xff]
  %v5050 = vld [vmem:[%s3989 + $0x8] sm:$0xff]
  %v5051 = vld [vmem:[%s1703] sm:$0xff]
  %v5052 = vld [vmem:[%s1703 + $0x8] sm:$0xff]
  %v5053 = vld [vmem:[%s1703 + $0x10] sm:$0xff]
  %v5054 = vld [vmem:[%s1703 + $0x18] sm:$0xff]
  %v5055 = vld [vmem:[%s1703 + $0x20] sm:$0xff]
  %v5056 = vld [vmem:[%s1703 + $0x28] sm:$0xff]
  %v5057 = vld [vmem:[%s1703 + $0x30] sm:$0xff]
  %v5058 = vld [vmem:[%s1703 + $0x38] sm:$0xff]
  %v5059 = vpack.c.bf16 %v5048, %v5047
  %v5060 = vld [vmem:[%s4] sm:$0xff]
  %v5061 = vld [vmem:[%s4 + $0x8] sm:$0xff]
  %v5062 = vld [vmem:[%s4 + $0x10] sm:$0xff]
  %v5063 = vld [vmem:[%s4 + $0x18] sm:$0xff]
  %v5064 = vld [vmem:[%s4 + $0x20] sm:$0xff]
  %v5065 = vld [vmem:[%s4 + $0x28] sm:$0xff]
  %v5066 = vld [vmem:[%s4 + $0x30] sm:$0xff]
  %v5067 = vld [vmem:[%s4 + $0x38] sm:$0xff]
  %v5068 = vld [vmem:[%s4 + $0x40] sm:$0xff]
  %v5069 = vld [vmem:[%s4 + $0x48] sm:$0xff]
  %v5070 = vld [vmem:[%s4 + $0x50] sm:$0xff]
  %v5071 = vld [vmem:[%s4 + $0x58] sm:$0xff]
  %v5072 = vld [vmem:[%s4 + $0x60] sm:$0xff]
  %v5073 = vld [vmem:[%s4 + $0x68] sm:$0xff]
  %v5074 = vld [vmem:[%s4 + $0x70] sm:$0xff]
  %v5075 = vld [vmem:[%s4 + $0x78] sm:$0xff]
  %v5076 = vld [vmem:[%s4 + $0x80] sm:$0xff]
  %v5077 = vld [vmem:[%s4 + $0x88] sm:$0xff]
  %v5078 = vld [vmem:[%s4 + $0x90] sm:$0xff]
  %v5079 = vld [vmem:[%s4 + $0x98] sm:$0xff]
  %v5080 = vld [vmem:[%s4 + $0xa0] sm:$0xff]
  %v5081 = vld [vmem:[%s4 + $0xa8] sm:$0xff]
  %v5082 = vld [vmem:[%s4 + $0xb0] sm:$0xff]
  %v5083 = vld [vmem:[%s4 + $0xb8] sm:$0xff]
  %v5084 = vld [vmem:[%s4 + $0xc0] sm:$0xff]
  %v5085 = vld [vmem:[%s4 + $0xc8] sm:$0xff]
  %v5086 = vld [vmem:[%s4 + $0xd0] sm:$0xff]
  %v5087 = vld [vmem:[%s4 + $0xd8] sm:$0xff]
  %v5088 = vld [vmem:[%s4 + $0xe0] sm:$0xff]
  %v5089 = vld [vmem:[%s4 + $0xe8] sm:$0xff]
  %v5090 = vld [vmem:[%s4 + $0xf0] sm:$0xff]
  %v5091 = vld [vmem:[%s4 + $0xf8] sm:$0xff]
  %v5124 = vunpack.c.l.b16 %v5060
  %v5125 = vunpack.c.h.b16 %v5060
  %v5126 = vunpack.c.l.b16 %v5061
  %v5127 = vunpack.c.h.b16 %v5061
  %v5128 = vunpack.c.l.b16 %v5062
  %v5129 = vunpack.c.h.b16 %v5062
  %v5130 = vunpack.c.l.b16 %v5063
  %v5131 = vunpack.c.h.b16 %v5063
  %v5132 = vunpack.c.l.b16 %v5064
  %v5133 = vunpack.c.h.b16 %v5064
  %v5134 = vunpack.c.l.b16 %v5065
  %v5135 = vunpack.c.h.b16 %v5065
  %v5136 = vunpack.c.l.b16 %v5066
  %v5137 = vunpack.c.h.b16 %v5066
  %v5138 = vunpack.c.l.b16 %v5067
  %v5139 = vunpack.c.h.b16 %v5067
  %v5140 = vunpack.c.l.b16 %v5068
  %v5141 = vunpack.c.h.b16 %v5068
  %v5142 = vunpack.c.l.b16 %v5069
  %v5143 = vunpack.c.h.b16 %v5069
  %v5144 = vunpack.c.l.b16 %v5070
  %v5145 = vunpack.c.h.b16 %v5070
  %v5146 = vunpack.c.l.b16 %v5071
  %v5147 = vunpack.c.h.b16 %v5071
  %v5148 = vunpack.c.l.b16 %v5072
  %v5149 = vunpack.c.h.b16 %v5072
  %v5150 = vunpack.c.l.b16 %v5073
  %v5151 = vunpack.c.h.b16 %v5073
  %v5152 = vunpack.c.l.b16 %v5074
  %v5153 = vunpack.c.h.b16 %v5074
  %v5154 = vunpack.c.l.b16 %v5075
  %v5155 = vunpack.c.h.b16 %v5075
  %v5156 = vunpack.c.l.b16 %v5076
  %v5157 = vunpack.c.h.b16 %v5076
  %v5158 = vunpack.c.l.b16 %v5077
  %v5159 = vunpack.c.h.b16 %v5077
  %v5160 = vunpack.c.l.b16 %v5078
  %v5161 = vunpack.c.h.b16 %v5078
  %v5162 = vunpack.c.l.b16 %v5079
  %v5163 = vunpack.c.h.b16 %v5079
  %v5164 = vunpack.c.l.b16 %v5080
  %v5165 = vunpack.c.h.b16 %v5080
  %v5166 = vunpack.c.l.b16 %v5081
  %v5167 = vunpack.c.h.b16 %v5081
  %v5168 = vunpack.c.l.b16 %v5082
  %v5169 = vunpack.c.h.b16 %v5082
  %v5170 = vunpack.c.l.b16 %v5083
  %v5171 = vunpack.c.h.b16 %v5083
  %v5172 = vunpack.c.l.b16 %v5084
  %v5173 = vunpack.c.h.b16 %v5084
  %v5174 = vunpack.c.l.b16 %v5085
  %v5175 = vunpack.c.h.b16 %v5085
  %v5176 = vunpack.c.l.b16 %v5086
  %v5177 = vunpack.c.h.b16 %v5086
  %v5178 = vunpack.c.l.b16 %v5087
  %v5179 = vunpack.c.h.b16 %v5087
  %v5180 = vunpack.c.l.b16 %v5088
  %v5181 = vunpack.c.h.b16 %v5088
  %v5182 = vunpack.c.l.b16 %v5089
  %v5183 = vunpack.c.h.b16 %v5089
  %v5184 = vunpack.c.l.b16 %v5090
  %v5185 = vunpack.c.h.b16 %v5090
  %v5186 = vunpack.c.l.b16 %v5091
  %v5187 = vunpack.c.h.b16 %v5091
  %v5188 = vpack.c.b16 %v5128, %v5124
  %v5189 = vpack.c.b16 %v5129, %v5125
  %v5190 = vpack.c.b16 %v5130, %v5126
  %v5191 = vpack.c.b16 %v5131, %v5127
  %v5192 = vpack.c.b16 %v5136, %v5132
  %v5193 = vpack.c.b16 %v5137, %v5133
  %v5194 = vpack.c.b16 %v5138, %v5134
  %v5195 = vpack.c.b16 %v5139, %v5135
  %v5196 = vpack.c.b16 %v5144, %v5140
  %v5197 = vpack.c.b16 %v5145, %v5141
  %v5198 = vpack.c.b16 %v5146, %v5142
  %v5199 = vpack.c.b16 %v5147, %v5143
  %v5200 = vpack.c.b16 %v5152, %v5148
  %v5201 = vpack.c.b16 %v5153, %v5149
  %v5202 = vpack.c.b16 %v5154, %v5150
  %v5203 = vpack.c.b16 %v5155, %v5151
  %v5204 = vpack.c.b16 %v5160, %v5156
  %v5205 = vpack.c.b16 %v5161, %v5157
  %v5206 = vpack.c.b16 %v5162, %v5158
  %v5207 = vpack.c.b16 %v5163, %v5159
  %v5208 = vpack.c.b16 %v5168, %v5164
  %v5209 = vpack.c.b16 %v5169, %v5165
  %v5210 = vpack.c.b16 %v5170, %v5166
  %v5211 = vpack.c.b16 %v5171, %v5167
  %v5212 = vpack.c.b16 %v5176, %v5172
  %v5213 = vpack.c.b16 %v5177, %v5173
  %v5214 = vpack.c.b16 %v5178, %v5174
  %v5215 = vpack.c.b16 %v5179, %v5175
  %v5216 = vpack.c.b16 %v5184, %v5180
  %v5217 = vpack.c.b16 %v5185, %v5181
  %v5218 = vpack.c.b16 %v5186, %v5182
  %v5219 = vpack.c.b16 %v5187, %v5183
  %5252 = vmatprep.subr.bf16.mxu0 %v5189
  %5253 = vmatpush1.bf16.msra.mxu0 %v5188
  %5254 = vmatprep.subr.bf16.mxu0 %v5193
  %5255 = vmatpush1.bf16.msra.mxu0 %v5192
  %5256 = vmatprep.subr.bf16.mxu0 %v5197
  %5257 = vmatpush1.bf16.msra.mxu0 %v5196
  %5258 = vmatprep.subr.bf16.mxu0 %v5201
  %5259 = vmatpush1.bf16.msra.mxu0 %v5200
  %5260 = vmatprep.subr.bf16.mxu0 %v5205
  %5261 = vmatpush1.bf16.msra.mxu0 %v5204
  %5262 = vmatprep.subr.bf16.mxu0 %v5209
  %5263 = vmatpush1.bf16.msra.mxu0 %v5208
  %5264 = vmatprep.subr.bf16.mxu0 %v5213
  %5265 = vmatpush1.bf16.msra.mxu0 %v5212
  %5266 = vmatprep.subr.bf16.mxu0 %v5217
  %5267 = vmatpush1.bf16.msra.mxu0 %v5216
  %5268 = vmatprep.subr.bf16.mxu0 0
  %5269 = vmatpush1.bf16.msra.mxu0 0
  %5270 = vmatprep.subr.bf16.mxu0 0
  %5271 = vmatpush1.bf16.msra.mxu0 0
  %5272 = vmatprep.subr.bf16.mxu0 0
  %5273 = vmatpush1.bf16.msra.mxu0 0
  %5274 = vmatprep.subr.bf16.mxu0 0
  %5275 = vmatpush1.bf16.msra.mxu0 0
  %5276 = vmatprep.subr.bf16.mxu0 0
  %5277 = vmatpush1.bf16.msra.mxu0 0
  %5278 = vmatprep.subr.bf16.mxu0 0
  %5279 = vmatpush1.bf16.msra.mxu0 0
  %5280 = vmatprep.subr.bf16.mxu0 0
  %5281 = vmatpush1.bf16.msra.mxu0 0
  %5282 = vmatprep.subr.bf16.mxu0 0
  %5283 = vmatpush1.bf16.msra.mxu0 0
  %5284 = vmatprep.mubr.bf16.mxu0 0
  %5285 = vmatmul.mubr.bf16.gmra.mrb[0].mxu0 %v5059
  %v5286 = vpop.f32.mrb[0].mxu0
  %v5287 = vadd.f32 0.0, %v5286
  %v5288 = vpop.f32.mrb[0].mxu0
  %v5289 = vadd.f32 0.0, %v5288
  %v5290 = vpop.f32.mrb[0].mxu0
  %v5291 = vadd.f32 0.0, %v5290
  %v5292 = vpop.f32.mrb[0].mxu0
  %v5293 = vadd.f32 0.0, %v5292
  %5294 = vdwg.mxu0
  %5295 = vmatprep.subr.bf16.mxu0 %v5191
  %5296 = vmatpush1.bf16.msra.mxu0 %v5190
  %5297 = vmatprep.subr.bf16.mxu0 %v5195
  %5298 = vmatpush1.bf16.msra.mxu0 %v5194
  %5299 = vmatprep.subr.bf16.mxu0 %v5199
  %5300 = vmatpush1.bf16.msra.mxu0 %v5198
  %5301 = vmatprep.subr.bf16.mxu0 %v5203
  %5302 = vmatpush1.bf16.msra.mxu0 %v5202
  %5303 = vmatprep.subr.bf16.mxu0 %v5207
  %5304 = vmatpush1.bf16.msra.mxu0 %v5206
  %5305 = vmatprep.subr.bf16.mxu0 %v5211
  %5306 = vmatpush1.bf16.msra.mxu0 %v5210
  %5307 = vmatprep.subr.bf16.mxu0 %v5215
  %5308 = vmatpush1.bf16.msra.mxu0 %v5214
  %5309 = vmatprep.subr.bf16.mxu0 %v5219
  %5310 = vmatpush1.bf16.msra.mxu0 %v5218
  %5311 = vmatprep.subr.bf16.mxu0 0
  %5312 = vmatpush1.bf16.msra.mxu0 0
  %5313 = vmatprep.subr.bf16.mxu0 0
  %5314 = vmatpush1.bf16.msra.mxu0 0
  %5315 = vmatprep.subr.bf16.mxu0 0
  %5316 = vmatpush1.bf16.msra.mxu0 0
  %5317 = vmatprep.subr.bf16.mxu0 0
  %5318 = vmatpush1.bf16.msra.mxu0 0
  %5319 = vmatprep.subr.bf16.mxu0 0
  %5320 = vmatpush1.bf16.msra.mxu0 0
  %5321 = vmatprep.subr.bf16.mxu0 0
  %5322 = vmatpush1.bf16.msra.mxu0 0
  %5323 = vmatprep.subr.bf16.mxu0 0
  %5324 = vmatpush1.bf16.msra.mxu0 0
  %5325 = vmatprep.subr.bf16.mxu0 0
  %5326 = vmatpush1.bf16.msra.mxu0 0
  %5327 = vmatprep.mubr.bf16.mxu0 0
  %5328 = vmatmul.mubr.bf16.gmra.mrb[0].mxu0 %v5059
  %v5329 = vpop.f32.mrb[0].mxu0
  %v5330 = vadd.f32 0.0, %v5329
  %v5331 = vpop.f32.mrb[0].mxu0
  %v5332 = vadd.f32 0.0, %v5331
  %v5333 = vpop.f32.mrb[0].mxu0
  %v5334 = vadd.f32 0.0, %v5333
  %v5335 = vpop.f32.mrb[0].mxu0
  %v5336 = vadd.f32 0.0, %v5335
  %5337 = vdwg.mxu0
  %v5338 = vadd.f32 %v5051, %v5287
  %v5339 = vadd.f32 %v5052, %v5289
  %v5340 = vadd.f32 %v5053, %v5330
  %v5341 = vadd.f32 %v5054, %v5332
  %v5342 = vadd.f32 %v5055, %v5291
  %v5343 = vadd.f32 %v5056, %v5293
  %v5344 = vadd.f32 %v5057, %v5334
  %v5345 = vadd.f32 %v5058, %v5336
  %v5346 = vxor.u32 %v5338, 2147483648
  %v5347 = vxor.u32 %v5342, 2147483648
  %v5348 = vmul.f32 %v5346, 1.442695
  %v5349 = vpow.pop %v5348
  %v5350 = vmul.f32 %v5347, 1.442695
  %v5351 = vpow.pop %v5350
  %v5352 = vadd.f32 %v5349, 1.0
  %v5353 = vadd.f32 %v5351, 1.0
  %v5354 = vrcp.pop %v5352
  %v5355 = vmul.f32 1.0, %v5354
  %v5356 = vrcp.pop %v5353
  %v5357 = vmul.f32 1.0, %v5356
  %v5358 = vxor.u32 %v5339, 2147483648
  %v5359 = vxor.u32 %v5343, 2147483648
  %v5360 = vmul.f32 %v5358, 1.442695
  %v5361 = vpow.pop %v5360
  %v5362 = vmul.f32 %v5359, 1.442695
  %v5363 = vpow.pop %v5362
  %v5364 = vadd.f32 %v5361, 1.0
  %v5365 = vadd.f32 %v5363, 1.0
  %v5366 = vrcp.pop %v5364
  %v5367 = vmul.f32 1.0, %v5366
  %v5368 = vrcp.pop %v5365
  %v5369 = vmul.f32 1.0, %v5368
  %v5370 = vtanh.pop %v5340
  %v5371 = vtanh.pop %v5344
  %v5372 = vxor.u32 %v5341, 2147483648
  %v5373 = vxor.u32 %v5345, 2147483648
  %v5374 = vmul.f32 %v5372, 1.442695
  %v5375 = vpow.pop %v5374
  %v5376 = vmul.f32 %v5373, 1.442695
  %v5377 = vpow.pop %v5376
  %v5378 = vadd.f32 %v5375, 1.0
  %v5379 = vadd.f32 %v5377, 1.0
  %v5380 = vrcp.pop %v5378
  %v5381 = vmul.f32 1.0, %v5380
  %v5382 = vrcp.pop %v5379
  %v5383 = vmul.f32 1.0, %v5382
  %v5384 = vmul.f32 %v5367, %v5049
  %v5385 = vmul.f32 %v5369, %v5050
  %v5386 = vmul.f32 %v5355, %v5370
  %v5387 = vmul.f32 %v5357, %v5371
  %v5388 = vadd.f32 %v5384, %v5386
  %v5389 = vadd.f32 %v5385, %v5387
  %v5390 = vtanh.pop %v5388
  %v5391 = vtanh.pop %v5389
  %v5392 = vmul.f32 %v5381, %v5390
  %v5393 = vmul.f32 %v5383, %v5391
  %5394 = vst [vmem:[%s3986] sm:$0xff] %v5392
  %5395 = vst [vmem:[%s3986 + $0x8] sm:$0xff] %v5393
  %5396 = vst [vmem:[%s3989] sm:$0xff] %v5388
  %5397 = vst [vmem:[%s3989 + $0x8] sm:$0xff] %v5389
  %v5398 = vpack.c.bf16 %v5393, %v5392
  %5399 = vst [vmem:[%s2052] sm:$0xff] %v5398
  %v5400 = vld [vmem:[%s3986] sm:$0xff]
  %v5401 = vld [vmem:[%s3986 + $0x8] sm:$0xff]
  %v5402 = vld [vmem:[%s3989] sm:$0xff]
  %v5403 = vld [vmem:[%s3989 + $0x8] sm:$0xff]
  %v5404 = vld [vmem:[%s2058] sm:$0xff]
  %v5405 = vld [vmem:[%s2058 + $0x8] sm:$0xff]
  %v5406 = vld [vmem:[%s2058 + $0x10] sm:$0xff]
  %v5407 = vld [vmem:[%s2058 + $0x18] sm:$0xff]
  %v5408 = vld [vmem:[%s2058 + $0x20] sm:$0xff]
  %v5409 = vld [vmem:[%s2058 + $0x28] sm:$0xff]
  %v5410 = vld [vmem:[%s2058 + $0x30] sm:$0xff]
  %v5411 = vld [vmem:[%s2058 + $0x38] sm:$0xff]
  %v5412 = vpack.c.bf16 %v5401, %v5400
  %v5413 = vld [vmem:[%s4] sm:$0xff]
  %v5414 = vld [vmem:[%s4 + $0x8] sm:$0xff]
  %v5415 = vld [vmem:[%s4 + $0x10] sm:$0xff]
  %v5416 = vld [vmem:[%s4 + $0x18] sm:$0xff]
  %v5417 = vld [vmem:[%s4 + $0x20] sm:$0xff]
  %v5418 = vld [vmem:[%s4 + $0x28] sm:$0xff]
  %v5419 = vld [vmem:[%s4 + $0x30] sm:$0xff]
  %v5420 = vld [vmem:[%s4 + $0x38] sm:$0xff]
  %v5421 = vld [vmem:[%s4 + $0x40] sm:$0xff]
  %v5422 = vld [vmem:[%s4 + $0x48] sm:$0xff]
  %v5423 = vld [vmem:[%s4 + $0x50] sm:$0xff]
  %v5424 = vld [vmem:[%s4 + $0x58] sm:$0xff]
  %v5425 = vld [vmem:[%s4 + $0x60] sm:$0xff]
  %v5426 = vld [vmem:[%s4 + $0x68] sm:$0xff]
  %v5427 = vld [vmem:[%s4 + $0x70] sm:$0xff]
  %v5428 = vld [vmem:[%s4 + $0x78] sm:$0xff]
  %v5429 = vld [vmem:[%s4 + $0x80] sm:$0xff]
  %v5430 = vld [vmem:[%s4 + $0x88] sm:$0xff]
  %v5431 = vld [vmem:[%s4 + $0x90] sm:$0xff]
  %v5432 = vld [vmem:[%s4 + $0x98] sm:$0xff]
  %v5433 = vld [vmem:[%s4 + $0xa0] sm:$0xff]
  %v5434 = vld [vmem:[%s4 + $0xa8] sm:$0xff]
  %v5435 = vld [vmem:[%s4 + $0xb0] sm:$0xff]
  %v5436 = vld [vmem:[%s4 + $0xb8] sm:$0xff]
  %v5437 = vld [vmem:[%s4 + $0xc0] sm:$0xff]
  %v5438 = vld [vmem:[%s4 + $0xc8] sm:$0xff]
  %v5439 = vld [vmem:[%s4 + $0xd0] sm:$0xff]
  %v5440 = vld [vmem:[%s4 + $0xd8] sm:$0xff]
  %v5441 = vld [vmem:[%s4 + $0xe0] sm:$0xff]
  %v5442 = vld [vmem:[%s4 + $0xe8] sm:$0xff]
  %v5443 = vld [vmem:[%s4 + $0xf0] sm:$0xff]
  %v5444 = vld [vmem:[%s4 + $0xf8] sm:$0xff]
  %v5477 = vunpack.c.l.b16 %v5413
  %v5478 = vunpack.c.h.b16 %v5413
  %v5479 = vunpack.c.l.b16 %v5414
  %v5480 = vunpack.c.h.b16 %v5414
  %v5481 = vunpack.c.l.b16 %v5415
  %v5482 = vunpack.c.h.b16 %v5415
  %v5483 = vunpack.c.l.b16 %v5416
  %v5484 = vunpack.c.h.b16 %v5416
  %v5485 = vunpack.c.l.b16 %v5417
  %v5486 = vunpack.c.h.b16 %v5417
  %v5487 = vunpack.c.l.b16 %v5418
  %v5488 = vunpack.c.h.b16 %v5418
  %v5489 = vunpack.c.l.b16 %v5419
  %v5490 = vunpack.c.h.b16 %v5419
  %v5491 = vunpack.c.l.b16 %v5420
  %v5492 = vunpack.c.h.b16 %v5420
  %v5493 = vunpack.c.l.b16 %v5421
  %v5494 = vunpack.c.h.b16 %v5421
  %v5495 = vunpack.c.l.b16 %v5422
  %v5496 = vunpack.c.h.b16 %v5422
  %v5497 = vunpack.c.l.b16 %v5423
  %v5498 = vunpack.c.h.b16 %v5423
  %v5499 = vunpack.c.l.b16 %v5424
  %v5500 = vunpack.c.h.b16 %v5424
  %v5501 = vunpack.c.l.b16 %v5425
  %v5502 = vunpack.c.h.b16 %v5425
  %v5503 = vunpack.c.l.b16 %v5426
  %v5504 = vunpack.c.h.b16 %v5426
  %v5505 = vunpack.c.l.b16 %v5427
  %v5506 = vunpack.c.h.b16 %v5427
  %v5507 = vunpack.c.l.b16 %v5428
  %v5508 = vunpack.c.h.b16 %v5428
  %v5509 = vunpack.c.l.b16 %v5429
  %v5510 = vunpack.c.h.b16 %v5429
  %v5511 = vunpack.c.l.b16 %v5430
  %v5512 = vunpack.c.h.b16 %v5430
  %v5513 = vunpack.c.l.b16 %v5431
  %v5514 = vunpack.c.h.b16 %v5431
  %v5515 = vunpack.c.l.b16 %v5432
  %v5516 = vunpack.c.h.b16 %v5432
  %v5517 = vunpack.c.l.b16 %v5433
  %v5518 = vunpack.c.h.b16 %v5433
  %v5519 = vunpack.c.l.b16 %v5434
  %v5520 = vunpack.c.h.b16 %v5434
  %v5521 = vunpack.c.l.b16 %v5435
  %v5522 = vunpack.c.h.b16 %v5435
  %v5523 = vunpack.c.l.b16 %v5436
  %v5524 = vunpack.c.h.b16 %v5436
  %v5525 = vunpack.c.l.b16 %v5437
  %v5526 = vunpack.c.h.b16 %v5437
  %v5527 = vunpack.c.l.b16 %v5438
  %v5528 = vunpack.c.h.b16 %v5438
  %v5529 = vunpack.c.l.b16 %v5439
  %v5530 = vunpack.c.h.b16 %v5439
  %v5531 = vunpack.c.l.b16 %v5440
  %v5532 = vunpack.c.h.b16 %v5440
  %v5533 = vunpack.c.l.b16 %v5441
  %v5534 = vunpack.c.h.b16 %v5441
  %v5535 = vunpack.c.l.b16 %v5442
  %v5536 = vunpack.c.h.b16 %v5442
  %v5537 = vunpack.c.l.b16 %v5443
  %v5538 = vunpack.c.h.b16 %v5443
  %v5539 = vunpack.c.l.b16 %v5444
  %v5540 = vunpack.c.h.b16 %v5444
  %v5541 = vpack.c.b16 %v5481, %v5477
  %v5542 = vpack.c.b16 %v5482, %v5478
  %v5543 = vpack.c.b16 %v5483, %v5479
  %v5544 = vpack.c.b16 %v5484, %v5480
  %v5545 = vpack.c.b16 %v5489, %v5485
  %v5546 = vpack.c.b16 %v5490, %v5486
  %v5547 = vpack.c.b16 %v5491, %v5487
  %v5548 = vpack.c.b16 %v5492, %v5488
  %v5549 = vpack.c.b16 %v5497, %v5493
  %v5550 = vpack.c.b16 %v5498, %v5494
  %v5551 = vpack.c.b16 %v5499, %v5495
  %v5552 = vpack.c.b16 %v5500, %v5496
  %v5553 = vpack.c.b16 %v5505, %v5501
  %v5554 = vpack.c.b16 %v5506, %v5502
  %v5555 = vpack.c.b16 %v5507, %v5503
  %v5556 = vpack.c.b16 %v5508, %v5504
  %v5557 = vpack.c.b16 %v5513, %v5509
  %v5558 = vpack.c.b16 %v5514, %v5510
  %v5559 = vpack.c.b16 %v5515, %v5511
  %v5560 = vpack.c.b16 %v5516, %v5512
  %v5561 = vpack.c.b16 %v5521, %v5517
  %v5562 = vpack.c.b16 %v5522, %v5518
  %v5563 = vpack.c.b16 %v5523, %v5519
  %v5564 = vpack.c.b16 %v5524, %v5520
  %v5565 = vpack.c.b16 %v5529, %v5525
  %v5566 = vpack.c.b16 %v5530, %v5526
  %v5567 = vpack.c.b16 %v5531, %v5527
  %v5568 = vpack.c.b16 %v5532, %v5528
  %v5569 = vpack.c.b16 %v5537, %v5533
  %v5570 = vpack.c.b16 %v5538, %v5534
  %v5571 = vpack.c.b16 %v5539, %v5535
  %v5572 = vpack.c.b16 %v5540, %v5536
  %5605 = vmatprep.subr.bf16.mxu0 %v5542
  %5606 = vmatpush1.bf16.msra.mxu0 %v5541
  %5607 = vmatprep.subr.bf16.mxu0 %v5546
  %5608 = vmatpush1.bf16.msra.mxu0 %v5545
  %5609 = vmatprep.subr.bf16.mxu0 %v5550
  %5610 = vmatpush1.bf16.msra.mxu0 %v5549
  %5611 = vmatprep.subr.bf16.mxu0 %v5554
  %5612 = vmatpush1.bf16.msra.mxu0 %v5553
  %5613 = vmatprep.subr.bf16.mxu0 %v5558
  %5614 = vmatpush1.bf16.msra.mxu0 %v5557
  %5615 = vmatprep.subr.bf16.mxu0 %v5562
  %5616 = vmatpush1.bf16.msra.mxu0 %v5561
  %5617 = vmatprep.subr.bf16.mxu0 %v5566
  %5618 = vmatpush1.bf16.msra.mxu0 %v5565
  %5619 = vmatprep.subr.bf16.mxu0 %v5570
  %5620 = vmatpush1.bf16.msra.mxu0 %v5569
  %5621 = vmatprep.subr.bf16.mxu0 0
  %5622 = vmatpush1.bf16.msra.mxu0 0
  %5623 = vmatprep.subr.bf16.mxu0 0
  %5624 = vmatpush1.bf16.msra.mxu0 0
  %5625 = vmatprep.subr.bf16.mxu0 0
  %5626 = vmatpush1.bf16.msra.mxu0 0
  %5627 = vmatprep.subr.bf16.mxu0 0
  %5628 = vmatpush1.bf16.msra.mxu0 0
  %5629 = vmatprep.subr.bf16.mxu0 0
  %5630 = vmatpush1.bf16.msra.mxu0 0
  %5631 = vmatprep.subr.bf16.mxu0 0
  %5632 = vmatpush1.bf16.msra.mxu0 0
  %5633 = vmatprep.subr.bf16.mxu0 0
  %5634 = vmatpush1.bf16.msra.mxu0 0
  %5635 = vmatprep.subr.bf16.mxu0 0
  %5636 = vmatpush1.bf16.msra.mxu0 0
  %5637 = vmatprep.mubr.bf16.mxu0 0
  %5638 = vmatmul.mubr.bf16.gmra.mrb[0].mxu0 %v5412
  %v5639 = vpop.f32.mrb[0].mxu0
  %v5640 = vadd.f32 0.0, %v5639
  %v5641 = vpop.f32.mrb[0].mxu0
  %v5642 = vadd.f32 0.0, %v5641
  %v5643 = vpop.f32.mrb[0].mxu0
  %v5644 = vadd.f32 0.0, %v5643
  %v5645 = vpop.f32.mrb[0].mxu0
  %v5646 = vadd.f32 0.0, %v5645
  %5647 = vdwg.mxu0
  %5648 = vmatprep.subr.bf16.mxu0 %v5544
  %5649 = vmatpush1.bf16.msra.mxu0 %v5543
  %5650 = vmatprep.subr.bf16.mxu0 %v5548
  %5651 = vmatpush1.bf16.msra.mxu0 %v5547
  %5652 = vmatprep.subr.bf16.mxu0 %v5552
  %5653 = vmatpush1.bf16.msra.mxu0 %v5551
  %5654 = vmatprep.subr.bf16.mxu0 %v5556
  %5655 = vmatpush1.bf16.msra.mxu0 %v5555
  %5656 = vmatprep.subr.bf16.mxu0 %v5560
  %5657 = vmatpush1.bf16.msra.mxu0 %v5559
  %5658 = vmatprep.subr.bf16.mxu0 %v5564
  %5659 = vmatpush1.bf16.msra.mxu0 %v5563
  %5660 = vmatprep.subr.bf16.mxu0 %v5568
  %5661 = vmatpush1.bf16.msra.mxu0 %v5567
  %5662 = vmatprep.subr.bf16.mxu0 %v5572
  %5663 = vmatpush1.bf16.msra.mxu0 %v5571
  %5664 = vmatprep.subr.bf16.mxu0 0
  %5665 = vmatpush1.bf16.msra.mxu0 0
  %5666 = vmatprep.subr.bf16.mxu0 0
  %5667 = vmatpush1.bf16.msra.mxu0 0
  %5668 = vmatprep.subr.bf16.mxu0 0
  %5669 = vmatpush1.bf16.msra.mxu0 0
  %5670 = vmatprep.subr.bf16.mxu0 0
  %5671 = vmatpush1.bf16.msra.mxu0 0
  %5672 = vmatprep.subr.bf16.mxu0 0
  %5673 = vmatpush1.bf16.msra.mxu0 0
  %5674 = vmatprep.subr.bf16.mxu0 0
  %5675 = vmatpush1.bf16.msra.mxu0 0
  %5676 = vmatprep.subr.bf16.mxu0 0
  %5677 = vmatpush1.bf16.msra.mxu0 0
  %5678 = vmatprep.subr.bf16.mxu0 0
  %5679 = vmatpush1.bf16.msra.mxu0 0
  %5680 = vmatprep.mubr.bf16.mxu0 0
  %5681 = vmatmul.mubr.bf16.gmra.mrb[0].mxu0 %v5412
  %v5682 = vpop.f32.mrb[0].mxu0
  %v5683 = vadd.f32 0.0, %v5682
  %v5684 = vpop.f32.mrb[0].mxu0
  %v5685 = vadd.f32 0.0, %v5684
  %v5686 = vpop.f32.mrb[0].mxu0
  %v5687 = vadd.f32 0.0, %v5686
  %v5688 = vpop.f32.mrb[0].mxu0
  %v5689 = vadd.f32 0.0, %v5688
  %5690 = vdwg.mxu0
  %v5691 = vadd.f32 %v5404, %v5640
  %v5692 = vadd.f32 %v5405, %v5642
  %v5693 = vadd.f32 %v5406, %v5683
  %v5694 = vadd.f32 %v5407, %v5685
  %v5695 = vadd.f32 %v5408, %v5644
  %v5696 = vadd.f32 %v5409, %v5646
  %v5697 = vadd.f32 %v5410, %v5687
  %v5698 = vadd.f32 %v5411, %v5689
  %v5699 = vxor.u32 %v5691, 2147483648
  %v5700 = vxor.u32 %v5695, 2147483648
  %v5701 = vmul.f32 %v5699, 1.442695
  %v5702 = vpow.pop %v5701
  %v5703 = vmul.f32 %v5700, 1.442695
  %v5704 = vpow.pop %v5703
  %v5705 = vadd.f32 %v5702, 1.0
  %v5706 = vadd.f32 %v5704, 1.0
  %v5707 = vrcp.pop %v5705
  %v5708 = vmul.f32 1.0, %v5707
  %v5709 = vrcp.pop %v5706
  %v5710 = vmul.f32 1.0, %v5709
  %v5711 = vxor.u32 %v5692, 2147483648
  %v5712 = vxor.u32 %v5696, 2147483648
  %v5713 = vmul.f32 %v5711, 1.442695
  %v5714 = vpow.pop %v5713
  %v5715 = vmul.f32 %v5712, 1.442695
  %v5716 = vpow.pop %v5715
  %v5717 = vadd.f32 %v5714, 1.0
  %v5718 = vadd.f32 %v5716, 1.0
  %v5719 = vrcp.pop %v5717
  %v5720 = vmul.f32 1.0, %v5719
  %v5721 = vrcp.pop %v5718
  %v5722 = vmul.f32 1.0, %v5721
  %v5723 = vtanh.pop %v5693
  %v5724 = vtanh.pop %v5697
  %v5725 = vxor.u32 %v5694, 2147483648
  %v5726 = vxor.u32 %v5698, 2147483648
  %v5727 = vmul.f32 %v5725, 1.442695
  %v5728 = vpow.pop %v5727
  %v5729 = vmul.f32 %v5726, 1.442695
  %v5730 = vpow.pop %v5729
  %v5731 = vadd.f32 %v5728, 1.0
  %v5732 = vadd.f32 %v5730, 1.0
  %v5733 = vrcp.pop %v5731
  %v5734 = vmul.f32 1.0, %v5733
  %v5735 = vrcp.pop %v5732
  %v5736 = vmul.f32 1.0, %v5735
  %v5737 = vmul.f32 %v5720, %v5402
  %v5738 = vmul.f32 %v5722, %v5403
  %v5739 = vmul.f32 %v5708, %v5723
  %v5740 = vmul.f32 %v5710, %v5724
  %v5741 = vadd.f32 %v5737, %v5739
  %v5742 = vadd.f32 %v5738, %v5740
  %v5743 = vtanh.pop %v5741
  %v5744 = vtanh.pop %v5742
  %v5745 = vmul.f32 %v5734, %v5743
  %v5746 = vmul.f32 %v5736, %v5744
  %5747 = vst [vmem:[%s3986] sm:$0xff] %v5745
  %5748 = vst [vmem:[%s3986 + $0x8] sm:$0xff] %v5746
  %5749 = vst [vmem:[%s3989] sm:$0xff] %v5741
  %5750 = vst [vmem:[%s3989 + $0x8] sm:$0xff] %v5742
  %v5751 = vpack.c.bf16 %v5746, %v5745
  %5752 = vst [vmem:[%s2407] sm:$0xff] %v5751
  %v5753 = vld [vmem:[%s3986] sm:$0xff]
  %v5754 = vld [vmem:[%s3986 + $0x8] sm:$0xff]
  %v5755 = vld [vmem:[%s3989] sm:$0xff]
  %v5756 = vld [vmem:[%s3989 + $0x8] sm:$0xff]
  %v5757 = vld [vmem:[%s2413] sm:$0xff]
  %v5758 = vld [vmem:[%s2413 + $0x8] sm:$0xff]
  %v5759 = vld [vmem:[%s2413 + $0x10] sm:$0xff]
  %v5760 = vld [vmem:[%s2413 + $0x18] sm:$0xff]
  %v5761 = vld [vmem:[%s2413 + $0x20] sm:$0xff]
  %v5762 = vld [vmem:[%s2413 + $0x28] sm:$0xff]
  %v5763 = vld [vmem:[%s2413 + $0x30] sm:$0xff]
  %v5764 = vld [vmem:[%s2413 + $0x38] sm:$0xff]
  %v5765 = vpack.c.bf16 %v5754, %v5753
  %v5766 = vld [vmem:[%s4] sm:$0xff]
  %v5767 = vld [vmem:[%s4 + $0x8] sm:$0xff]
  %v5768 = vld [vmem:[%s4 + $0x10] sm:$0xff]
  %v5769 = vld [vmem:[%s4 + $0x18] sm:$0xff]
  %v5770 = vld [vmem:[%s4 + $0x20] sm:$0xff]
  %v5771 = vld [vmem:[%s4 + $0x28] sm:$0xff]
  %v5772 = vld [vmem:[%s4 + $0x30] sm:$0xff]
  %v5773 = vld [vmem:[%s4 + $0x38] sm:$0xff]
  %v5774 = vld [vmem:[%s4 + $0x40] sm:$0xff]
  %v5775 = vld [vmem:[%s4 + $0x48] sm:$0xff]
  %v5776 = vld [vmem:[%s4 + $0x50] sm:$0xff]
  %v5777 = vld [vmem:[%s4 + $0x58] sm:$0xff]
  %v5778 = vld [vmem:[%s4 + $0x60] sm:$0xff]
  %v5779 = vld [vmem:[%s4 + $0x68] sm:$0xff]
  %v5780 = vld [vmem:[%s4 + $0x70] sm:$0xff]
  %v5781 = vld [vmem:[%s4 + $0x78] sm:$0xff]
  %v5782 = vld [vmem:[%s4 + $0x80] sm:$0xff]
  %v5783 = vld [vmem:[%s4 + $0x88] sm:$0xff]
  %v5784 = vld [vmem:[%s4 + $0x90] sm:$0xff]
  %v5785 = vld [vmem:[%s4 + $0x98] sm:$0xff]
  %v5786 = vld [vmem:[%s4 + $0xa0] sm:$0xff]
  %v5787 = vld [vmem:[%s4 + $0xa8] sm:$0xff]
  %v5788 = vld [vmem:[%s4 + $0xb0] sm:$0xff]
  %v5789 = vld [vmem:[%s4 + $0xb8] sm:$0xff]
  %v5790 = vld [vmem:[%s4 + $0xc0] sm:$0xff]
  %v5791 = vld [vmem:[%s4 + $0xc8] sm:$0xff]
  %v5792 = vld [vmem:[%s4 + $0xd0] sm:$0xff]
  %v5793 = vld [vmem:[%s4 + $0xd8] sm:$0xff]
  %v5794 = vld [vmem:[%s4 + $0xe0] sm:$0xff]
  %v5795 = vld [vmem:[%s4 + $0xe8] sm:$0xff]
  %v5796 = vld [vmem:[%s4 + $0xf0] sm:$0xff]
  %v5797 = vld [vmem:[%s4 + $0xf8] sm:$0xff]
  %v5830 = vunpack.c.l.b16 %v5766
  %v5831 = vunpack.c.h.b16 %v5766
  %v5832 = vunpack.c.l.b16 %v5767
  %v5833 = vunpack.c.h.b16 %v5767
  %v5834 = vunpack.c.l.b16 %v5768
  %v5835 = vunpack.c.h.b16 %v5768
  %v5836 = vunpack.c.l.b16 %v5769
  %v5837 = vunpack.c.h.b16 %v5769
  %v5838 = vunpack.c.l.b16 %v5770
  %v5839 = vunpack.c.h.b16 %v5770
  %v5840 = vunpack.c.l.b16 %v5771
  %v5841 = vunpack.c.h.b16 %v5771
  %v5842 = vunpack.c.l.b16 %v5772
  %v5843 = vunpack.c.h.b16 %v5772
  %v5844 = vunpack.c.l.b16 %v5773
  %v5845 = vunpack.c.h.b16 %v5773
  %v5846 = vunpack.c.l.b16 %v5774
  %v5847 = vunpack.c.h.b16 %v5774
  %v5848 = vunpack.c.l.b16 %v5775
  %v5849 = vunpack.c.h.b16 %v5775
  %v5850 = vunpack.c.l.b16 %v5776
  %v5851 = vunpack.c.h.b16 %v5776
  %v5852 = vunpack.c.l.b16 %v5777
  %v5853 = vunpack.c.h.b16 %v5777
  %v5854 = vunpack.c.l.b16 %v5778
  %v5855 = vunpack.c.h.b16 %v5778
  %v5856 = vunpack.c.l.b16 %v5779
  %v5857 = vunpack.c.h.b16 %v5779
  %v5858 = vunpack.c.l.b16 %v5780
  %v5859 = vunpack.c.h.b16 %v5780
  %v5860 = vunpack.c.l.b16 %v5781
  %v5861 = vunpack.c.h.b16 %v5781
  %v5862 = vunpack.c.l.b16 %v5782
  %v5863 = vunpack.c.h.b16 %v5782
  %v5864 = vunpack.c.l.b16 %v5783
  %v5865 = vunpack.c.h.b16 %v5783
  %v5866 = vunpack.c.l.b16 %v5784
  %v5867 = vunpack.c.h.b16 %v5784
  %v5868 = vunpack.c.l.b16 %v5785
  %v5869 = vunpack.c.h.b16 %v5785
  %v5870 = vunpack.c.l.b16 %v5786
  %v5871 = vunpack.c.h.b16 %v5786
  %v5872 = vunpack.c.l.b16 %v5787
  %v5873 = vunpack.c.h.b16 %v5787
  %v5874 = vunpack.c.l.b16 %v5788
  %v5875 = vunpack.c.h.b16 %v5788
  %v5876 = vunpack.c.l.b16 %v5789
  %v5877 = vunpack.c.h.b16 %v5789
  %v5878 = vunpack.c.l.b16 %v5790
  %v5879 = vunpack.c.h.b16 %v5790
  %v5880 = vunpack.c.l.b16 %v5791
  %v5881 = vunpack.c.h.b16 %v5791
  %v5882 = vunpack.c.l.b16 %v5792
  %v5883 = vunpack.c.h.b16 %v5792
  %v5884 = vunpack.c.l.b16 %v5793
  %v5885 = vunpack.c.h.b16 %v5793
  %v5886 = vunpack.c.l.b16 %v5794
  %v5887 = vunpack.c.h.b16 %v5794
  %v5888 = vunpack.c.l.b16 %v5795
  %v5889 = vunpack.c.h.b16 %v5795
  %v5890 = vunpack.c.l.b16 %v5796
  %v5891 = vunpack.c.h.b16 %v5796
  %v5892 = vunpack.c.l.b16 %v5797
  %v5893 = vunpack.c.h.b16 %v5797
  %v5894 = vpack.c.b16 %v5834, %v5830
  %v5895 = vpack.c.b16 %v5835, %v5831
  %v5896 = vpack.c.b16 %v5836, %v5832
  %v5897 = vpack.c.b16 %v5837, %v5833
  %v5898 = vpack.c.b16 %v5842, %v5838
  %v5899 = vpack.c.b16 %v5843, %v5839
  %v5900 = vpack.c.b16 %v5844, %v5840
  %v5901 = vpack.c.b16 %v5845, %v5841
  %v5902 = vpack.c.b16 %v5850, %v5846
  %v5903 = vpack.c.b16 %v5851, %v5847
  %v5904 = vpack.c.b16 %v5852, %v5848
  %v5905 = vpack.c.b16 %v5853, %v5849
  %v5906 = vpack.c.b16 %v5858, %v5854
  %v5907 = vpack.c.b16 %v5859, %v5855
  %v5908 = vpack.c.b16 %v5860, %v5856
  %v5909 = vpack.c.b16 %v5861, %v5857
  %v5910 = vpack.c.b16 %v5866, %v5862
  %v5911 = vpack.c.b16 %v5867, %v5863
  %v5912 = vpack.c.b16 %v5868, %v5864
  %v5913 = vpack.c.b16 %v5869, %v5865
  %v5914 = vpack.c.b16 %v5874, %v5870
  %v5915 = vpack.c.b16 %v5875, %v5871
  %v5916 = vpack.c.b16 %v5876, %v5872
  %v5917 = vpack.c.b16 %v5877, %v5873
  %v5918 = vpack.c.b16 %v5882, %v5878
  %v5919 = vpack.c.b16 %v5883, %v5879
  %v5920 = vpack.c.b16 %v5884, %v5880
  %v5921 = vpack.c.b16 %v5885, %v5881
  %v5922 = vpack.c.b16 %v5890, %v5886
  %v5923 = vpack.c.b16 %v5891, %v5887
  %v5924 = vpack.c.b16 %v5892, %v5888
  %v5925 = vpack.c.b16 %v5893, %v5889
  %5958 = vmatprep.subr.bf16.mxu0 %v5895
  %5959 = vmatpush1.bf16.msra.mxu0 %v5894
  %5960 = vmatprep.subr.bf16.mxu0 %v5899
  %5961 = vmatpush1.bf16.msra.mxu0 %v5898
  %5962 = vmatprep.subr.bf16.mxu0 %v5903
  %5963 = vmatpush1.bf16.msra.mxu0 %v5902
  %5964 = vmatprep.subr.bf16.mxu0 %v5907
  %5965 = vmatpush1.bf16.msra.mxu0 %v5906
  %5966 = vmatprep.subr.bf16.mxu0 %v5911
  %5967 = vmatpush1.bf16.msra.mxu0 %v5910
  %5968 = vmatprep.subr.bf16.mxu0 %v5915
  %5969 = vmatpush1.bf16.msra.mxu0 %v5914
  %5970 = vmatprep.subr.bf16.mxu0 %v5919
  %5971 = vmatpush1.bf16.msra.mxu0 %v5918
  %5972 = vmatprep.subr.bf16.mxu0 %v5923
  %5973 = vmatpush1.bf16.msra.mxu0 %v5922
  %5974 = vmatprep.subr.bf16.mxu0 0
  %5975 = vmatpush1.bf16.msra.mxu0 0
  %5976 = vmatprep.subr.bf16.mxu0 0
  %5977 = vmatpush1.bf16.msra.mxu0 0
  %5978 = vmatprep.subr.bf16.mxu0 0
  %5979 = vmatpush1.bf16.msra.mxu0 0
  %5980 = vmatprep.subr.bf16.mxu0 0
  %5981 = vmatpush1.bf16.msra.mxu0 0
  %5982 = vmatprep.subr.bf16.mxu0 0
  %5983 = vmatpush1.bf16.msra.mxu0 0
  %5984 = vmatprep.subr.bf16.mxu0 0
  %5985 = vmatpush1.bf16.msra.mxu0 0
  %5986 = vmatprep.subr.bf16.mxu0 0
  %5987 = vmatpush1.bf16.msra.mxu0 0
  %5988 = vmatprep.subr.bf16.mxu0 0
  %5989 = vmatpush1.bf16.msra.mxu0 0
  %5990 = vmatprep.mubr.bf16.mxu0 0
  %5991 = vmatmul.mubr.bf16.gmra.mrb[0].mxu0 %v5765
  %v5992 = vpop.f32.mrb[0].mxu0
  %v5993 = vadd.f32 0.0, %v5992
  %v5994 = vpop.f32.mrb[0].mxu0
  %v5995 = vadd.f32 0.0, %v5994
  %v5996 = vpop.f32.mrb[0].mxu0
  %v5997 = vadd.f32 0.0, %v5996
  %v5998 = vpop.f32.mrb[0].mxu0
  %v5999 = vadd.f32 0.0, %v5998
  %6000 = vdwg.mxu0
  %6001 = vmatprep.subr.bf16.mxu0 %v5897
  %6002 = vmatpush1.bf16.msra.mxu0 %v5896
  %6003 = vmatprep.subr.bf16.mxu0 %v5901
  %6004 = vmatpush1.bf16.msra.mxu0 %v5900
  %6005 = vmatprep.subr.bf16.mxu0 %v5905
  %6006 = vmatpush1.bf16.msra.mxu0 %v5904
  %6007 = vmatprep.subr.bf16.mxu0 %v5909
  %6008 = vmatpush1.bf16.msra.mxu0 %v5908
  %6009 = vmatprep.subr.bf16.mxu0 %v5913
  %6010 = vmatpush1.bf16.msra.mxu0 %v5912
  %6011 = vmatprep.subr.bf16.mxu0 %v5917
  %6012 = vmatpush1.bf16.msra.mxu0 %v5916
  %6013 = vmatprep.subr.bf16.mxu0 %v5921
  %6014 = vmatpush1.bf16.msra.mxu0 %v5920
  %6015 = vmatprep.subr.bf16.mxu0 %v5925
  %6016 = vmatpush1.bf16.msra.mxu0 %v5924
  %6017 = vmatprep.subr.bf16.mxu0 0
  %6018 = vmatpush1.bf16.msra.mxu0 0
  %6019 = vmatprep.subr.bf16.mxu0 0
  %6020 = vmatpush1.bf16.msra.mxu0 0
  %6021 = vmatprep.subr.bf16.mxu0 0
  %6022 = vmatpush1.bf16.msra.mxu0 0
  %6023 = vmatprep.subr.bf16.mxu0 0
  %6024 = vmatpush1.bf16.msra.mxu0 0
  %6025 = vmatprep.subr.bf16.mxu0 0
  %6026 = vmatpush1.bf16.msra.mxu0 0
  %6027 = vmatprep.subr.bf16.mxu0 0
  %6028 = vmatpush1.bf16.msra.mxu0 0
  %6029 = vmatprep.subr.bf16.mxu0 0
  %6030 = vmatpush1.bf16.msra.mxu0 0
  %6031 = vmatprep.subr.bf16.mxu0 0
  %6032 = vmatpush1.bf16.msra.mxu0 0
  %6033 = vmatprep.mubr.bf16.mxu0 0
  %6034 = vmatmul.mubr.bf16.gmra.mrb[0].mxu0 %v5765
  %v6035 = vpop.f32.mrb[0].mxu0
  %v6036 = vadd.f32 0.0, %v6035
  %v6037 = vpop.f32.mrb[0].mxu0
  %v6038 = vadd.f32 0.0, %v6037
  %v6039 = vpop.f32.mrb[0].mxu0
  %v6040 = vadd.f32 0.0, %v6039
  %v6041 = vpop.f32.mrb[0].mxu0
  %v6042 = vadd.f32 0.0, %v6041
  %6043 = vdwg.mxu0
  %v6044 = vadd.f32 %v5757, %v5993
  %v6045 = vadd.f32 %v5758, %v5995
  %v6046 = vadd.f32 %v5759, %v6036
  %v6047 = vadd.f32 %v5760, %v6038
  %v6048 = vadd.f32 %v5761, %v5997
  %v6049 = vadd.f32 %v5762, %v5999
  %v6050 = vadd.f32 %v5763, %v6040
  %v6051 = vadd.f32 %v5764, %v6042
  %v6052 = vxor.u32 %v6044, 2147483648
  %v6053 = vxor.u32 %v6048, 2147483648
  %v6054 = vmul.f32 %v6052, 1.442695
  %v6055 = vpow.pop %v6054
  %v6056 = vmul.f32 %v6053, 1.442695
  %v6057 = vpow.pop %v6056
  %v6058 = vadd.f32 %v6055, 1.0
  %v6059 = vadd.f32 %v6057, 1.0
  %v6060 = vrcp.pop %v6058
  %v6061 = vmul.f32 1.0, %v6060
  %v6062 = vrcp.pop %v6059
  %v6063 = vmul.f32 1.0, %v6062
  %v6064 = vxor.u32 %v6045, 2147483648
  %v6065 = vxor.u32 %v6049, 2147483648
  %v6066 = vmul.f32 %v6064, 1.442695
  %v6067 = vpow.pop %v6066
  %v6068 = vmul.f32 %v6065, 1.442695
  %v6069 = vpow.pop %v6068
  %v6070 = vadd.f32 %v6067, 1.0
  %v6071 = vadd.f32 %v6069, 1.0
  %v6072 = vrcp.pop %v6070
  %v6073 = vmul.f32 1.0, %v6072
  %v6074 = vrcp.pop %v6071
  %v6075 = vmul.f32 1.0, %v6074
  %v6076 = vtanh.pop %v6046
  %v6077 = vtanh.pop %v6050
  %v6078 = vxor.u32 %v6047, 2147483648
  %v6079 = vxor.u32 %v6051, 2147483648
  %v6080 = vmul.f32 %v6078, 1.442695
  %v6081 = vpow.pop %v6080
  %v6082 = vmul.f32 %v6079, 1.442695
  %v6083 = vpow.pop %v6082
  %v6084 = vadd.f32 %v6081, 1.0
  %v6085 = vadd.f32 %v6083, 1.0
  %v6086 = vrcp.pop %v6084
  %v6087 = vmul.f32 1.0, %v6086
  %v6088 = vrcp.pop %v6085
  %v6089 = vmul.f32 1.0, %v6088
  %v6090 = vmul.f32 %v6073, %v5755
  %v6091 = vmul.f32 %v6075, %v5756
  %v6092 = vmul.f32 %v6061, %v6076
  %v6093 = vmul.f32 %v6063, %v6077
  %v6094 = vadd.f32 %v6090, %v6092
  %v6095 = vadd.f32 %v6091, %v6093
  %v6096 = vtanh.pop %v6094
  %v6097 = vtanh.pop %v6095
  %v6098 = vmul.f32 %v6087, %v6096
  %v6099 = vmul.f32 %v6089, %v6097
  %6100 = vst [vmem:[%s3986] sm:$0xff] %v6098
  %6101 = vst [vmem:[%s3986 + $0x8] sm:$0xff] %v6099
  %6102 = vst [vmem:[%s3989] sm:$0xff] %v6094
  %6103 = vst [vmem:[%s3989 + $0x8] sm:$0xff] %v6095
  %v6104 = vpack.c.bf16 %v6099, %v6098
  %6105 = vst [vmem:[%s2762] sm:$0xff] %v6104
  %v6106 = vld [vmem:[%s3986] sm:$0xff]
  %v6107 = vld [vmem:[%s3986 + $0x8] sm:$0xff]
  %v6108 = vld [vmem:[%s3989] sm:$0xff]
  %v6109 = vld [vmem:[%s3989 + $0x8] sm:$0xff]
  %v6110 = vld [vmem:[%s2768] sm:$0xff]
  %v6111 = vld [vmem:[%s2768 + $0x8] sm:$0xff]
  %v6112 = vld [vmem:[%s2768 + $0x10] sm:$0xff]
  %v6113 = vld [vmem:[%s2768 + $0x18] sm:$0xff]
  %v6114 = vld [vmem:[%s2768 + $0x20] sm:$0xff]
  %v6115 = vld [vmem:[%s2768 + $0x28] sm:$0xff]
  %v6116 = vld [vmem:[%s2768 + $0x30] sm:$0xff]
  %v6117 = vld [vmem:[%s2768 + $0x38] sm:$0xff]
  %v6118 = vpack.c.bf16 %v6107, %v6106
  %v6119 = vld [vmem:[%s4] sm:$0xff]
  %v6120 = vld [vmem:[%s4 + $0x8] sm:$0xff]
  %v6121 = vld [vmem:[%s4 + $0x10] sm:$0xff]
  %v6122 = vld [vmem:[%s4 + $0x18] sm:$0xff]
  %v6123 = vld [vmem:[%s4 + $0x20] sm:$0xff]
  %v6124 = vld [vmem:[%s4 + $0x28] sm:$0xff]
  %v6125 = vld [vmem:[%s4 + $0x30] sm:$0xff]
  %v6126 = vld [vmem:[%s4 + $0x38] sm:$0xff]
  %v6127 = vld [vmem:[%s4 + $0x40] sm:$0xff]
  %v6128 = vld [vmem:[%s4 + $0x48] sm:$0xff]
  %v6129 = vld [vmem:[%s4 + $0x50] sm:$0xff]
  %v6130 = vld [vmem:[%s4 + $0x58] sm:$0xff]
  %v6131 = vld [vmem:[%s4 + $0x60] sm:$0xff]
  %v6132 = vld [vmem:[%s4 + $0x68] sm:$0xff]
  %v6133 = vld [vmem:[%s4 + $0x70] sm:$0xff]
  %v6134 = vld [vmem:[%s4 + $0x78] sm:$0xff]
  %v6135 = vld [vmem:[%s4 + $0x80] sm:$0xff]
  %v6136 = vld [vmem:[%s4 + $0x88] sm:$0xff]
  %v6137 = vld [vmem:[%s4 + $0x90] sm:$0xff]
  %v6138 = vld [vmem:[%s4 + $0x98] sm:$0xff]
  %v6139 = vld [vmem:[%s4 + $0xa0] sm:$0xff]
  %v6140 = vld [vmem:[%s4 + $0xa8] sm:$0xff]
  %v6141 = vld [vmem:[%s4 + $0xb0] sm:$0xff]
  %v6142 = vld [vmem:[%s4 + $0xb8] sm:$0xff]
  %v6143 = vld [vmem:[%s4 + $0xc0] sm:$0xff]
  %v6144 = vld [vmem:[%s4 + $0xc8] sm:$0xff]
  %v6145 = vld [vmem:[%s4 + $0xd0] sm:$0xff]
  %v6146 = vld [vmem:[%s4 + $0xd8] sm:$0xff]
  %v6147 = vld [vmem:[%s4 + $0xe0] sm:$0xff]
  %v6148 = vld [vmem:[%s4 + $0xe8] sm:$0xff]
  %v6149 = vld [vmem:[%s4 + $0xf0] sm:$0xff]
  %v6150 = vld [vmem:[%s4 + $0xf8] sm:$0xff]
  %v6183 = vunpack.c.l.b16 %v6119
  %v6184 = vunpack.c.h.b16 %v6119
  %v6185 = vunpack.c.l.b16 %v6120
  %v6186 = vunpack.c.h.b16 %v6120
  %v6187 = vunpack.c.l.b16 %v6121
  %v6188 = vunpack.c.h.b16 %v6121
  %v6189 = vunpack.c.l.b16 %v6122
  %v6190 = vunpack.c.h.b16 %v6122
  %v6191 = vunpack.c.l.b16 %v6123
  %v6192 = vunpack.c.h.b16 %v6123
  %v6193 = vunpack.c.l.b16 %v6124
  %v6194 = vunpack.c.h.b16 %v6124
  %v6195 = vunpack.c.l.b16 %v6125
  %v6196 = vunpack.c.h.b16 %v6125
  %v6197 = vunpack.c.l.b16 %v6126
  %v6198 = vunpack.c.h.b16 %v6126
  %v6199 = vunpack.c.l.b16 %v6127
  %v6200 = vunpack.c.h.b16 %v6127
  %v6201 = vunpack.c.l.b16 %v6128
  %v6202 = vunpack.c.h.b16 %v6128
  %v6203 = vunpack.c.l.b16 %v6129
  %v6204 = vunpack.c.h.b16 %v6129
  %v6205 = vunpack.c.l.b16 %v6130
  %v6206 = vunpack.c.h.b16 %v6130
  %v6207 = vunpack.c.l.b16 %v6131
  %v6208 = vunpack.c.h.b16 %v6131
  %v6209 = vunpack.c.l.b16 %v6132
  %v6210 = vunpack.c.h.b16 %v6132
  %v6211 = vunpack.c.l.b16 %v6133
  %v6212 = vunpack.c.h.b16 %v6133
  %v6213 = vunpack.c.l.b16 %v6134
  %v6214 = vunpack.c.h.b16 %v6134
  %v6215 = vunpack.c.l.b16 %v6135
  %v6216 = vunpack.c.h.b16 %v6135
  %v6217 = vunpack.c.l.b16 %v6136
  %v6218 = vunpack.c.h.b16 %v6136
  %v6219 = vunpack.c.l.b16 %v6137
  %v6220 = vunpack.c.h.b16 %v6137
  %v6221 = vunpack.c.l.b16 %v6138
  %v6222 = vunpack.c.h.b16 %v6138
  %v6223 = vunpack.c.l.b16 %v6139
  %v6224 = vunpack.c.h.b16 %v6139
  %v6225 = vunpack.c.l.b16 %v6140
  %v6226 = vunpack.c.h.b16 %v6140
  %v6227 = vunpack.c.l.b16 %v6141
  %v6228 = vunpack.c.h.b16 %v6141
  %v6229 = vunpack.c.l.b16 %v6142
  %v6230 = vunpack.c.h.b16 %v6142
  %v6231 = vunpack.c.l.b16 %v6143
  %v6232 = vunpack.c.h.b16 %v6143
  %v6233 = vunpack.c.l.b16 %v6144
  %v6234 = vunpack.c.h.b16 %v6144
  %v6235 = vunpack.c.l.b16 %v6145
  %v6236 = vunpack.c.h.b16 %v6145
  %v6237 = vunpack.c.l.b16 %v6146
  %v6238 = vunpack.c.h.b16 %v6146
  %v6239 = vunpack.c.l.b16 %v6147
  %v6240 = vunpack.c.h.b16 %v6147
  %v6241 = vunpack.c.l.b16 %v6148
  %v6242 = vunpack.c.h.b16 %v6148
  %v6243 = vunpack.c.l.b16 %v6149
  %v6244 = vunpack.c.h.b16 %v6149
  %v6245 = vunpack.c.l.b16 %v6150
  %v6246 = vunpack.c.h.b16 %v6150
  %v6247 = vpack.c.b16 %v6187, %v6183
  %v6248 = vpack.c.b16 %v6188, %v6184
  %v6249 = vpack.c.b16 %v6189, %v6185
  %v6250 = vpack.c.b16 %v6190, %v6186
  %v6251 = vpack.c.b16 %v6195, %v6191
  %v6252 = vpack.c.b16 %v6196, %v6192
  %v6253 = vpack.c.b16 %v6197, %v6193
  %v6254 = vpack.c.b16 %v6198, %v6194
  %v6255 = vpack.c.b16 %v6203, %v6199
  %v6256 = vpack.c.b16 %v6204, %v6200
  %v6257 = vpack.c.b16 %v6205, %v6201
  %v6258 = vpack.c.b16 %v6206, %v6202
  %v6259 = vpack.c.b16 %v6211, %v6207
  %v6260 = vpack.c.b16 %v6212, %v6208
  %v6261 = vpack.c.b16 %v6213, %v6209
  %v6262 = vpack.c.b16 %v6214, %v6210
  %v6263 = vpack.c.b16 %v6219, %v6215
  %v6264 = vpack.c.b16 %v6220, %v6216
  %v6265 = vpack.c.b16 %v6221, %v6217
  %v6266 = vpack.c.b16 %v6222, %v6218
  %v6267 = vpack.c.b16 %v6227, %v6223
  %v6268 = vpack.c.b16 %v6228, %v6224
  %v6269 = vpack.c.b16 %v6229, %v6225
  %v6270 = vpack.c.b16 %v6230, %v6226
  %v6271 = vpack.c.b16 %v6235, %v6231
  %v6272 = vpack.c.b16 %v6236, %v6232
  %v6273 = vpack.c.b16 %v6237, %v6233
  %v6274 = vpack.c.b16 %v6238, %v6234
  %v6275 = vpack.c.b16 %v6243, %v6239
  %v6276 = vpack.c.b16 %v6244, %v6240
  %v6277 = vpack.c.b16 %v6245, %v6241
  %v6278 = vpack.c.b16 %v6246, %v6242
  %6311 = vmatprep.subr.bf16.mxu0 %v6248
  %6312 = vmatpush1.bf16.msra.mxu0 %v6247
  %6313 = vmatprep.subr.bf16.mxu0 %v6252
  %6314 = vmatpush1.bf16.msra.mxu0 %v6251
  %6315 = vmatprep.subr.bf16.mxu0 %v6256
  %6316 = vmatpush1.bf16.msra.mxu0 %v6255
  %6317 = vmatprep.subr.bf16.mxu0 %v6260
  %6318 = vmatpush1.bf16.msra.mxu0 %v6259
  %6319 = vmatprep.subr.bf16.mxu0 %v6264
  %6320 = vmatpush1.bf16.msra.mxu0 %v6263
  %6321 = vmatprep.subr.bf16.mxu0 %v6268
  %6322 = vmatpush1.bf16.msra.mxu0 %v6267
  %6323 = vmatprep.subr.bf16.mxu0 %v6272
  %6324 = vmatpush1.bf16.msra.mxu0 %v6271
  %6325 = vmatprep.subr.bf16.mxu0 %v6276
  %6326 = vmatpush1.bf16.msra.mxu0 %v6275
  %6327 = vmatprep.subr.bf16.mxu0 0
  %6328 = vmatpush1.bf16.msra.mxu0 0
  %6329 = vmatprep.subr.bf16.mxu0 0
  %6330 = vmatpush1.bf16.msra.mxu0 0
  %6331 = vmatprep.subr.bf16.mxu0 0
  %6332 = vmatpush1.bf16.msra.mxu0 0
  %6333 = vmatprep.subr.bf16.mxu0 0
  %6334 = vmatpush1.bf16.msra.mxu0 0
  %6335 = vmatprep.subr.bf16.mxu0 0
  %6336 = vmatpush1.bf16.msra.mxu0 0
  %6337 = vmatprep.subr.bf16.mxu0 0
  %6338 = vmatpush1.bf16.msra.mxu0 0
  %6339 = vmatprep.subr.bf16.mxu0 0
  %6340 = vmatpush1.bf16.msra.mxu0 0
  %6341 = vmatprep.subr.bf16.mxu0 0
  %6342 = vmatpush1.bf16.msra.mxu0 0
  %6343 = vmatprep.mubr.bf16.mxu0 0
  %6344 = vmatmul.mubr.bf16.gmra.mrb[0].mxu0 %v6118
  %v6345 = vpop.f32.mrb[0].mxu0
  %v6346 = vadd.f32 0.0, %v6345
  %v6347 = vpop.f32.mrb[0].mxu0
  %v6348 = vadd.f32 0.0, %v6347
  %v6349 = vpop.f32.mrb[0].mxu0
  %v6350 = vadd.f32 0.0, %v6349
  %v6351 = vpop.f32.mrb[0].mxu0
  %v6352 = vadd.f32 0.0, %v6351
  %6353 = vdwg.mxu0
  %6354 = vmatprep.subr.bf16.mxu0 %v6250
  %6355 = vmatpush1.bf16.msra.mxu0 %v6249
  %6356 = vmatprep.subr.bf16.mxu0 %v6254
  %6357 = vmatpush1.bf16.msra.mxu0 %v6253
  %6358 = vmatprep.subr.bf16.mxu0 %v6258
  %6359 = vmatpush1.bf16.msra.mxu0 %v6257
  %6360 = vmatprep.subr.bf16.mxu0 %v6262
  %6361 = vmatpush1.bf16.msra.mxu0 %v6261
  %6362 = vmatprep.subr.bf16.mxu0 %v6266
  %6363 = vmatpush1.bf16.msra.mxu0 %v6265
  %6364 = vmatprep.subr.bf16.mxu0 %v6270
  %6365 = vmatpush1.bf16.msra.mxu0 %v6269
  %6366 = vmatprep.subr.bf16.mxu0 %v6274
  %6367 = vmatpush1.bf16.msra.mxu0 %v6273
  %6368 = vmatprep.subr.bf16.mxu0 %v6278
  %6369 = vmatpush1.bf16.msra.mxu0 %v6277
  %6370 = vmatprep.subr.bf16.mxu0 0
  %6371 = vmatpush1.bf16.msra.mxu0 0
  %6372 = vmatprep.subr.bf16.mxu0 0
  %6373 = vmatpush1.bf16.msra.mxu0 0
  %6374 = vmatprep.subr.bf16.mxu0 0
  %6375 = vmatpush1.bf16.msra.mxu0 0
  %6376 = vmatprep.subr.bf16.mxu0 0
  %6377 = vmatpush1.bf16.msra.mxu0 0
  %6378 = vmatprep.subr.bf16.mxu0 0
  %6379 = vmatpush1.bf16.msra.mxu0 0
  %6380 = vmatprep.subr.bf16.mxu0 0
  %6381 = vmatpush1.bf16.msra.mxu0 0
  %6382 = vmatprep.subr.bf16.mxu0 0
  %6383 = vmatpush1.bf16.msra.mxu0 0
  %6384 = vmatprep.subr.bf16.mxu0 0
  %6385 = vmatpush1.bf16.msra.mxu0 0
  %6386 = vmatprep.mubr.bf16.mxu0 0
  %6387 = vmatmul.mubr.bf16.gmra.mrb[0].mxu0 %v6118
  %v6388 = vpop.f32.mrb[0].mxu0
  %v6389 = vadd.f32 0.0, %v6388
  %v6390 = vpop.f32.mrb[0].mxu0
  %v6391 = vadd.f32 0.0, %v6390
  %v6392 = vpop.f32.mrb[0].mxu0
  %v6393 = vadd.f32 0.0, %v6392
  %v6394 = vpop.f32.mrb[0].mxu0
  %v6395 = vadd.f32 0.0, %v6394
  %6396 = vdwg.mxu0
  %v6397 = vadd.f32 %v6110, %v6346
  %v6398 = vadd.f32 %v6111, %v6348
  %v6399 = vadd.f32 %v6112, %v6389
  %v6400 = vadd.f32 %v6113, %v6391
  %v6401 = vadd.f32 %v6114, %v6350
  %v6402 = vadd.f32 %v6115, %v6352
  %v6403 = vadd.f32 %v6116, %v6393
  %v6404 = vadd.f32 %v6117, %v6395
  %v6405 = vxor.u32 %v6397, 2147483648
  %v6406 = vxor.u32 %v6401, 2147483648
  %v6407 = vmul.f32 %v6405, 1.442695
  %v6408 = vpow.pop %v6407
  %v6409 = vmul.f32 %v6406, 1.442695
  %v6410 = vpow.pop %v6409
  %v6411 = vadd.f32 %v6408, 1.0
  %v6412 = vadd.f32 %v6410, 1.0
  %v6413 = vrcp.pop %v6411
  %v6414 = vmul.f32 1.0, %v6413
  %v6415 = vrcp.pop %v6412
  %v6416 = vmul.f32 1.0, %v6415
  %v6417 = vxor.u32 %v6398, 2147483648
  %v6418 = vxor.u32 %v6402, 2147483648
  %v6419 = vmul.f32 %v6417, 1.442695
  %v6420 = vpow.pop %v6419
  %v6421 = vmul.f32 %v6418, 1.442695
  %v6422 = vpow.pop %v6421
  %v6423 = vadd.f32 %v6420, 1.0
  %v6424 = vadd.f32 %v6422, 1.0
  %v6425 = vrcp.pop %v6423
  %v6426 = vmul.f32 1.0, %v6425
  %v6427 = vrcp.pop %v6424
  %v6428 = vmul.f32 1.0, %v6427
  %v6429 = vtanh.pop %v6399
  %v6430 = vtanh.pop %v6403
  %v6431 = vxor.u32 %v6400, 2147483648
  %v6432 = vxor.u32 %v6404, 2147483648
  %v6433 = vmul.f32 %v6431, 1.442695
  %v6434 = vpow.pop %v6433
  %v6435 = vmul.f32 %v6432, 1.442695
  %v6436 = vpow.pop %v6435
  %v6437 = vadd.f32 %v6434, 1.0
  %v6438 = vadd.f32 %v6436, 1.0
  %v6439 = vrcp.pop %v6437
  %v6440 = vmul.f32 1.0, %v6439
  %v6441 = vrcp.pop %v6438
  %v6442 = vmul.f32 1.0, %v6441
  %v6443 = vmul.f32 %v6426, %v6108
  %v6444 = vmul.f32 %v6428, %v6109
  %v6445 = vmul.f32 %v6414, %v6429
  %v6446 = vmul.f32 %v6416, %v6430
  %v6447 = vadd.f32 %v6443, %v6445
  %v6448 = vadd.f32 %v6444, %v6446
  %v6449 = vtanh.pop %v6447
  %v6450 = vtanh.pop %v6448
  %v6451 = vmul.f32 %v6440, %v6449
  %v6452 = vmul.f32 %v6442, %v6450
  %6453 = vst [vmem:[%s3986] sm:$0xff] %v6451
  %6454 = vst [vmem:[%s3986 + $0x8] sm:$0xff] %v6452
  %6455 = vst [vmem:[%s3989] sm:$0xff] %v6447
  %6456 = vst [vmem:[%s3989 + $0x8] sm:$0xff] %v6448
  %v6457 = vpack.c.bf16 %v6452, %v6451
  %6458 = vst [vmem:[%s3117] sm:$0xff] %v6457
  %v6459 = vld [vmem:[%s3986] sm:$0xff]
  %v6460 = vld [vmem:[%s3986 + $0x8] sm:$0xff]
  %v6461 = vld [vmem:[%s3989] sm:$0xff]
  %v6462 = vld [vmem:[%s3989 + $0x8] sm:$0xff]
  %v6463 = vld [vmem:[%s3123] sm:$0xff]
  %v6464 = vld [vmem:[%s3123 + $0x8] sm:$0xff]
  %v6465 = vld [vmem:[%s3123 + $0x10] sm:$0xff]
  %v6466 = vld [vmem:[%s3123 + $0x18] sm:$0xff]
  %v6467 = vld [vmem:[%s3123 + $0x20] sm:$0xff]
  %v6468 = vld [vmem:[%s3123 + $0x28] sm:$0xff]
  %v6469 = vld [vmem:[%s3123 + $0x30] sm:$0xff]
  %v6470 = vld [vmem:[%s3123 + $0x38] sm:$0xff]
  %v6471 = vpack.c.bf16 %v6460, %v6459
  %v6472 = vld [vmem:[%s4] sm:$0xff]
  %v6473 = vld [vmem:[%s4 + $0x8] sm:$0xff]
  %v6474 = vld [vmem:[%s4 + $0x10] sm:$0xff]
  %v6475 = vld [vmem:[%s4 + $0x18] sm:$0xff]
  %v6476 = vld [vmem:[%s4 + $0x20] sm:$0xff]
  %v6477 = vld [vmem:[%s4 + $0x28] sm:$0xff]
  %v6478 = vld [vmem:[%s4 + $0x30] sm:$0xff]
  %v6479 = vld [vmem:[%s4 + $0x38] sm:$0xff]
  %v6480 = vld [vmem:[%s4 + $0x40] sm:$0xff]
  %v6481 = vld [vmem:[%s4 + $0x48] sm:$0xff]
  %v6482 = vld [vmem:[%s4 + $0x50] sm:$0xff]
  %v6483 = vld [vmem:[%s4 + $0x58] sm:$0xff]
  %v6484 = vld [vmem:[%s4 + $0x60] sm:$0xff]
  %v6485 = vld [vmem:[%s4 + $0x68] sm:$0xff]
  %v6486 = vld [vmem:[%s4 + $0x70] sm:$0xff]
  %v6487 = vld [vmem:[%s4 + $0x78] sm:$0xff]
  %v6488 = vld [vmem:[%s4 + $0x80] sm:$0xff]
  %v6489 = vld [vmem:[%s4 + $0x88] sm:$0xff]
  %v6490 = vld [vmem:[%s4 + $0x90] sm:$0xff]
  %v6491 = vld [vmem:[%s4 + $0x98] sm:$0xff]
  %v6492 = vld [vmem:[%s4 + $0xa0] sm:$0xff]
  %v6493 = vld [vmem:[%s4 + $0xa8] sm:$0xff]
  %v6494 = vld [vmem:[%s4 + $0xb0] sm:$0xff]
  %v6495 = vld [vmem:[%s4 + $0xb8] sm:$0xff]
  %v6496 = vld [vmem:[%s4 + $0xc0] sm:$0xff]
  %v6497 = vld [vmem:[%s4 + $0xc8] sm:$0xff]
  %v6498 = vld [vmem:[%s4 + $0xd0] sm:$0xff]
  %v6499 = vld [vmem:[%s4 + $0xd8] sm:$0xff]
  %v6500 = vld [vmem:[%s4 + $0xe0] sm:$0xff]
  %v6501 = vld [vmem:[%s4 + $0xe8] sm:$0xff]
  %v6502 = vld [vmem:[%s4 + $0xf0] sm:$0xff]
  %v6503 = vld [vmem:[%s4 + $0xf8] sm:$0xff]
  %v6536 = vunpack.c.l.b16 %v6472
  %v6537 = vunpack.c.h.b16 %v6472
  %v6538 = vunpack.c.l.b16 %v6473
  %v6539 = vunpack.c.h.b16 %v6473
  %v6540 = vunpack.c.l.b16 %v6474
  %v6541 = vunpack.c.h.b16 %v6474
  %v6542 = vunpack.c.l.b16 %v6475
  %v6543 = vunpack.c.h.b16 %v6475
  %v6544 = vunpack.c.l.b16 %v6476
  %v6545 = vunpack.c.h.b16 %v6476
  %v6546 = vunpack.c.l.b16 %v6477
  %v6547 = vunpack.c.h.b16 %v6477
  %v6548 = vunpack.c.l.b16 %v6478
  %v6549 = vunpack.c.h.b16 %v6478
  %v6550 = vunpack.c.l.b16 %v6479
  %v6551 = vunpack.c.h.b16 %v6479
  %v6552 = vunpack.c.l.b16 %v6480
  %v6553 = vunpack.c.h.b16 %v6480
  %v6554 = vunpack.c.l.b16 %v6481
  %v6555 = vunpack.c.h.b16 %v6481
  %v6556 = vunpack.c.l.b16 %v6482
  %v6557 = vunpack.c.h.b16 %v6482
  %v6558 = vunpack.c.l.b16 %v6483
  %v6559 = vunpack.c.h.b16 %v6483
  %v6560 = vunpack.c.l.b16 %v6484
  %v6561 = vunpack.c.h.b16 %v6484
  %v6562 = vunpack.c.l.b16 %v6485
  %v6563 = vunpack.c.h.b16 %v6485
  %v6564 = vunpack.c.l.b16 %v6486
  %v6565 = vunpack.c.h.b16 %v6486
  %v6566 = vunpack.c.l.b16 %v6487
  %v6567 = vunpack.c.h.b16 %v6487
  %v6568 = vunpack.c.l.b16 %v6488
  %v6569 = vunpack.c.h.b16 %v6488
  %v6570 = vunpack.c.l.b16 %v6489
  %v6571 = vunpack.c.h.b16 %v6489
  %v6572 = vunpack.c.l.b16 %v6490
  %v6573 = vunpack.c.h.b16 %v6490
  %v6574 = vunpack.c.l.b16 %v6491
  %v6575 = vunpack.c.h.b16 %v6491
  %v6576 = vunpack.c.l.b16 %v6492
  %v6577 = vunpack.c.h.b16 %v6492
  %v6578 = vunpack.c.l.b16 %v6493
  %v6579 = vunpack.c.h.b16 %v6493
  %v6580 = vunpack.c.l.b16 %v6494
  %v6581 = vunpack.c.h.b16 %v6494
  %v6582 = vunpack.c.l.b16 %v6495
  %v6583 = vunpack.c.h.b16 %v6495
  %v6584 = vunpack.c.l.b16 %v6496
  %v6585 = vunpack.c.h.b16 %v6496
  %v6586 = vunpack.c.l.b16 %v6497
  %v6587 = vunpack.c.h.b16 %v6497
  %v6588 = vunpack.c.l.b16 %v6498
  %v6589 = vunpack.c.h.b16 %v6498
  %v6590 = vunpack.c.l.b16 %v6499
  %v6591 = vunpack.c.h.b16 %v6499
  %v6592 = vunpack.c.l.b16 %v6500
  %v6593 = vunpack.c.h.b16 %v6500
  %v6594 = vunpack.c.l.b16 %v6501
  %v6595 = vunpack.c.h.b16 %v6501
  %v6596 = vunpack.c.l.b16 %v6502
  %v6597 = vunpack.c.h.b16 %v6502
  %v6598 = vunpack.c.l.b16 %v6503
  %v6599 = vunpack.c.h.b16 %v6503
  %v6600 = vpack.c.b16 %v6540, %v6536
  %v6601 = vpack.c.b16 %v6541, %v6537
  %v6602 = vpack.c.b16 %v6542, %v6538
  %v6603 = vpack.c.b16 %v6543, %v6539
  %v6604 = vpack.c.b16 %v6548, %v6544
  %v6605 = vpack.c.b16 %v6549, %v6545
  %v6606 = vpack.c.b16 %v6550, %v6546
  %v6607 = vpack.c.b16 %v6551, %v6547
  %v6608 = vpack.c.b16 %v6556, %v6552
  %v6609 = vpack.c.b16 %v6557, %v6553
  %v6610 = vpack.c.b16 %v6558, %v6554
  %v6611 = vpack.c.b16 %v6559, %v6555
  %v6612 = vpack.c.b16 %v6564, %v6560
  %v6613 = vpack.c.b16 %v6565, %v6561
  %v6614 = vpack.c.b16 %v6566, %v6562
  %v6615 = vpack.c.b16 %v6567, %v6563
  %v6616 = vpack.c.b16 %v6572, %v6568
  %v6617 = vpack.c.b16 %v6573, %v6569
  %v6618 = vpack.c.b16 %v6574, %v6570
  %v6619 = vpack.c.b16 %v6575, %v6571
  %v6620 = vpack.c.b16 %v6580, %v6576
  %v6621 = vpack.c.b16 %v6581, %v6577
  %v6622 = vpack.c.b16 %v6582, %v6578
  %v6623 = vpack.c.b16 %v6583, %v6579
  %v6624 = vpack.c.b16 %v6588, %v6584
  %v6625 = vpack.c.b16 %v6589, %v6585
  %v6626 = vpack.c.b16 %v6590, %v6586
  %v6627 = vpack.c.b16 %v6591, %v6587
  %v6628 = vpack.c.b16 %v6596, %v6592
  %v6629 = vpack.c.b16 %v6597, %v6593
  %v6630 = vpack.c.b16 %v6598, %v6594
  %v6631 = vpack.c.b16 %v6599, %v6595
  %6664 = vmatprep.subr.bf16.mxu0 %v6601
  %6665 = vmatpush1.bf16.msra.mxu0 %v6600
  %6666 = vmatprep.subr.bf16.mxu0 %v6605
  %6667 = vmatpush1.bf16.msra.mxu0 %v6604
  %6668 = vmatprep.subr.bf16.mxu0 %v6609
  %6669 = vmatpush1.bf16.msra.mxu0 %v6608
  %6670 = vmatprep.subr.bf16.mxu0 %v6613
  %6671 = vmatpush1.bf16.msra.mxu0 %v6612
  %6672 = vmatprep.subr.bf16.mxu0 %v6617
  %6673 = vmatpush1.bf16.msra.mxu0 %v6616
  %6674 = vmatprep.subr.bf16.mxu0 %v6621
  %6675 = vmatpush1.bf16.msra.mxu0 %v6620
  %6676 = vmatprep.subr.bf16.mxu0 %v6625
  %6677 = vmatpush1.bf16.msra.mxu0 %v6624
  %6678 = vmatprep.subr.bf16.mxu0 %v6629
  %6679 = vmatpush1.bf16.msra.mxu0 %v6628
  %6680 = vmatprep.subr.bf16.mxu0 0
  %6681 = vmatpush1.bf16.msra.mxu0 0
  %6682 = vmatprep.subr.bf16.mxu0 0
  %6683 = vmatpush1.bf16.msra.mxu0 0
  %6684 = vmatprep.subr.bf16.mxu0 0
  %6685 = vmatpush1.bf16.msra.mxu0 0
  %6686 = vmatprep.subr.bf16.mxu0 0
  %6687 = vmatpush1.bf16.msra.mxu0 0
  %6688 = vmatprep.subr.bf16.mxu0 0
  %6689 = vmatpush1.bf16.msra.mxu0 0
  %6690 = vmatprep.subr.bf16.mxu0 0
  %6691 = vmatpush1.bf16.msra.mxu0 0
  %6692 = vmatprep.subr.bf16.mxu0 0
  %6693 = vmatpush1.bf16.msra.mxu0 0
  %6694 = vmatprep.subr.bf16.mxu0 0
  %6695 = vmatpush1.bf16.msra.mxu0 0
  %6696 = vmatprep.mubr.bf16.mxu0 0
  %6697 = vmatmul.mubr.bf16.gmra.mrb[0].mxu0 %v6471
  %v6698 = vpop.f32.mrb[0].mxu0
  %v6699 = vadd.f32 0.0, %v6698
  %v6700 = vpop.f32.mrb[0].mxu0
  %v6701 = vadd.f32 0.0, %v6700
  %v6702 = vpop.f32.mrb[0].mxu0
  %v6703 = vadd.f32 0.0, %v6702
  %v6704 = vpop.f32.mrb[0].mxu0
  %v6705 = vadd.f32 0.0, %v6704
  %6706 = vdwg.mxu0
  %6707 = vmatprep.subr.bf16.mxu0 %v6603
  %6708 = vmatpush1.bf16.msra.mxu0 %v6602
  %6709 = vmatprep.subr.bf16.mxu0 %v6607
  %6710 = vmatpush1.bf16.msra.mxu0 %v6606
  %6711 = vmatprep.subr.bf16.mxu0 %v6611
  %6712 = vmatpush1.bf16.msra.mxu0 %v6610
  %6713 = vmatprep.subr.bf16.mxu0 %v6615
  %6714 = vmatpush1.bf16.msra.mxu0 %v6614
  %6715 = vmatprep.subr.bf16.mxu0 %v6619
  %6716 = vmatpush1.bf16.msra.mxu0 %v6618
  %6717 = vmatprep.subr.bf16.mxu0 %v6623
  %6718 = vmatpush1.bf16.msra.mxu0 %v6622
  %6719 = vmatprep.subr.bf16.mxu0 %v6627
  %6720 = vmatpush1.bf16.msra.mxu0 %v6626
  %6721 = vmatprep.subr.bf16.mxu0 %v6631
  %6722 = vmatpush1.bf16.msra.mxu0 %v6630
  %6723 = vmatprep.subr.bf16.mxu0 0
  %6724 = vmatpush1.bf16.msra.mxu0 0
  %6725 = vmatprep.subr.bf16.mxu0 0
  %6726 = vmatpush1.bf16.msra.mxu0 0
  %6727 = vmatprep.subr.bf16.mxu0 0
  %6728 = vmatpush1.bf16.msra.mxu0 0
  %6729 = vmatprep.subr.bf16.mxu0 0
  %6730 = vmatpush1.bf16.msra.mxu0 0
  %6731 = vmatprep.subr.bf16.mxu0 0
  %6732 = vmatpush1.bf16.msra.mxu0 0
  %6733 = vmatprep.subr.bf16.mxu0 0
  %6734 = vmatpush1.bf16.msra.mxu0 0
  %6735 = vmatprep.subr.bf16.mxu0 0
  %6736 = vmatpush1.bf16.msra.mxu0 0
  %6737 = vmatprep.subr.bf16.mxu0 0
  %6738 = vmatpush1.bf16.msra.mxu0 0
  %6739 = vmatprep.mubr.bf16.mxu0 0
  %6740 = vmatmul.mubr.bf16.gmra.mrb[0].mxu0 %v6471
  %v6741 = vpop.f32.mrb[0].mxu0
  %v6742 = vadd.f32 0.0, %v6741
  %v6743 = vpop.f32.mrb[0].mxu0
  %v6744 = vadd.f32 0.0, %v6743
  %v6745 = vpop.f32.mrb[0].mxu0
  %v6746 = vadd.f32 0.0, %v6745
  %v6747 = vpop.f32.mrb[0].mxu0
  %v6748 = vadd.f32 0.0, %v6747
  %6749 = vdwg.mxu0
  %v6750 = vadd.f32 %v6463, %v6699
  %v6751 = vadd.f32 %v6464, %v6701
  %v6752 = vadd.f32 %v6465, %v6742
  %v6753 = vadd.f32 %v6466, %v6744
  %v6754 = vadd.f32 %v6467, %v6703
  %v6755 = vadd.f32 %v6468, %v6705
  %v6756 = vadd.f32 %v6469, %v6746
  %v6757 = vadd.f32 %v6470, %v6748
  %v6758 = vxor.u32 %v6750, 2147483648
  %v6759 = vxor.u32 %v6754, 2147483648
  %v6760 = vmul.f32 %v6758, 1.442695
  %v6761 = vpow.pop %v6760
  %v6762 = vmul.f32 %v6759, 1.442695
  %v6763 = vpow.pop %v6762
  %v6764 = vadd.f32 %v6761, 1.0
  %v6765 = vadd.f32 %v6763, 1.0
  %v6766 = vrcp.pop %v6764
  %v6767 = vmul.f32 1.0, %v6766
  %v6768 = vrcp.pop %v6765
  %v6769 = vmul.f32 1.0, %v6768
  %v6770 = vxor.u32 %v6751, 2147483648
  %v6771 = vxor.u32 %v6755, 2147483648
  %v6772 = vmul.f32 %v6770, 1.442695
  %v6773 = vpow.pop %v6772
  %v6774 = vmul.f32 %v6771, 1.442695
  %v6775 = vpow.pop %v6774
  %v6776 = vadd.f32 %v6773, 1.0
  %v6777 = vadd.f32 %v6775, 1.0
  %v6778 = vrcp.pop %v6776
  %v6779 = vmul.f32 1.0, %v6778
  %v6780 = vrcp.pop %v6777
  %v6781 = vmul.f32 1.0, %v6780
  %v6782 = vtanh.pop %v6752
  %v6783 = vtanh.pop %v6756
  %v6784 = vxor.u32 %v6753, 2147483648
  %v6785 = vxor.u32 %v6757, 2147483648
  %v6786 = vmul.f32 %v6784, 1.442695
  %v6787 = vpow.pop %v6786
  %v6788 = vmul.f32 %v6785, 1.442695
  %v6789 = vpow.pop %v6788
  %v6790 = vadd.f32 %v6787, 1.0
  %v6791 = vadd.f32 %v6789, 1.0
  %v6792 = vrcp.pop %v6790
  %v6793 = vmul.f32 1.0, %v6792
  %v6794 = vrcp.pop %v6791
  %v6795 = vmul.f32 1.0, %v6794
  %v6796 = vmul.f32 %v6779, %v6461
  %v6797 = vmul.f32 %v6781, %v6462
  %v6798 = vmul.f32 %v6767, %v6782
  %v6799 = vmul.f32 %v6769, %v6783
  %v6800 = vadd.f32 %v6796, %v6798
  %v6801 = vadd.f32 %v6797, %v6799
  %v6802 = vtanh.pop %v6800
  %v6803 = vtanh.pop %v6801
  %v6804 = vmul.f32 %v6793, %v6802
  %v6805 = vmul.f32 %v6795, %v6803
  %6806 = vst [vmem:[%s3986] sm:$0xff] %v6804
  %6807 = vst [vmem:[%s3986 + $0x8] sm:$0xff] %v6805
  %6808 = vst [vmem:[%s3989] sm:$0xff] %v6800
  %6809 = vst [vmem:[%s3989 + $0x8] sm:$0xff] %v6801
  %v6810 = vpack.c.bf16 %v6805, %v6804
  %6811 = vst [vmem:[%s3472] sm:$0xff] %v6810
  %v6812 = vld [vmem:[#allocation2] sm:$0xff]
  %v6813 = vld [vmem:[#allocation2 + $0x8] sm:$0xff]
  %v6814 = vld [vmem:[#allocation2 + $0x10] sm:$0xff]
  %v6815 = vld [vmem:[#allocation2 + $0x18] sm:$0xff]
  %v6816 = vld [vmem:[#allocation2 + $0x20] sm:$0xff]
  %v6817 = vld [vmem:[#allocation2 + $0x28] sm:$0xff]
  %v6818 = vld [vmem:[#allocation2 + $0x30] sm:$0xff]
  %v6819 = vld [vmem:[#allocation2 + $0x38] sm:$0xff]
  %v6820 = vld [vmem:[%s9] sm:$0xf]
  %v6821 = vld [vmem:[%s9 + $0x4] sm:$0xf]
  %v6822 = vld [vmem:[%s9 + $0x8] sm:$0xf]
  %v6823 = vld [vmem:[%s9 + $0xc] sm:$0xf]
  %v6824 = vld [vmem:[%s9 + $0x10] sm:$0xf]
  %v6825 = vld [vmem:[%s9 + $0x14] sm:$0xf]
  %v6826 = vld [vmem:[%s9 + $0x18] sm:$0xf]
  %v6827 = vld [vmem:[%s9 + $0x1c] sm:$0xf]
  %v6828 = vld [vmem:[%s9 + $0x20] sm:$0xf]
  %v6829 = vld [vmem:[%s9 + $0x24] sm:$0xf]
  %v6830 = vld [vmem:[%s9 + $0x28] sm:$0xf]
  %v6831 = vld [vmem:[%s9 + $0x2c] sm:$0xf]
  %v6832 = vld [vmem:[%s9 + $0x30] sm:$0xf]
  %v6833 = vld [vmem:[%s9 + $0x34] sm:$0xf]
  %v6834 = vld [vmem:[%s9 + $0x38] sm:$0xf]
  %v6835 = vld [vmem:[%s9 + $0x3c] sm:$0xf]
  %v6836 = vld [vmem:[%s10] sm:$0x1]
  %v6838 = vlaneseq
  %v6839 = vshrl.u32 %v6838, 7
  %v6840 = vsub.s32 0, %v6839
  %v6841 = vrot.slane %v6836, %v6840
  %v6859 = vunpack.c.l.b16 %v6820
  %v6860 = vunpack.c.l.b16 %v6821
  %v6861 = vunpack.c.l.b16 %v6822
  %v6862 = vunpack.c.l.b16 %v6823
  %v6863 = vunpack.c.l.b16 %v6824
  %v6864 = vunpack.c.l.b16 %v6825
  %v6865 = vunpack.c.l.b16 %v6826
  %v6866 = vunpack.c.l.b16 %v6827
  %v6867 = vunpack.c.l.b16 %v6828
  %v6868 = vunpack.c.l.b16 %v6829
  %v6869 = vunpack.c.l.b16 %v6830
  %v6870 = vunpack.c.l.b16 %v6831
  %v6871 = vunpack.c.l.b16 %v6832
  %v6872 = vunpack.c.l.b16 %v6833
  %v6873 = vunpack.c.l.b16 %v6834
  %v6874 = vunpack.c.l.b16 %v6835
  %v6875 = vpack.c.b16 %v6860, %v6859
  %v6876 = vpack.c.b16 %v6862, %v6861
  %v6877 = vpack.c.b16 %v6864, %v6863
  %v6878 = vpack.c.b16 %v6866, %v6865
  %v6879 = vpack.c.b16 %v6868, %v6867
  %v6880 = vpack.c.b16 %v6870, %v6869
  %v6881 = vpack.c.b16 %v6872, %v6871
  %v6882 = vpack.c.b16 %v6874, %v6873
  %6891 = vmatprep.subr.bf16.mxu0 0
  %6892 = vmatpush1.bf16.msra.mxu0 %v6875
  %6893 = vmatprep.subr.bf16.mxu0 0
  %6894 = vmatpush1.bf16.msra.mxu0 %v6876
  %6895 = vmatprep.subr.bf16.mxu0 0
  %6896 = vmatpush1.bf16.msra.mxu0 %v6877
  %6897 = vmatprep.subr.bf16.mxu0 0
  %6898 = vmatpush1.bf16.msra.mxu0 %v6878
  %6899 = vmatprep.subr.bf16.mxu0 0
  %6900 = vmatpush1.bf16.msra.mxu0 %v6879
  %6901 = vmatprep.subr.bf16.mxu0 0
  %6902 = vmatpush1.bf16.msra.mxu0 %v6880
  %6903 = vmatprep.subr.bf16.mxu0 0
  %6904 = vmatpush1.bf16.msra.mxu0 %v6881
  %6905 = vmatprep.subr.bf16.mxu0 0
  %6906 = vmatpush1.bf16.msra.mxu0 %v6882
  %6907 = vmatprep.subr.bf16.mxu0 0
  %6908 = vmatpush1.bf16.msra.mxu0 0
  %6909 = vmatprep.subr.bf16.mxu0 0
  %6910 = vmatpush1.bf16.msra.mxu0 0
  %6911 = vmatprep.subr.bf16.mxu0 0
  %6912 = vmatpush1.bf16.msra.mxu0 0
  %6913 = vmatprep.subr.bf16.mxu0 0
  %6914 = vmatpush1.bf16.msra.mxu0 0
  %6915 = vmatprep.subr.bf16.mxu0 0
  %6916 = vmatpush1.bf16.msra.mxu0 0
  %6917 = vmatprep.subr.bf16.mxu0 0
  %6918 = vmatpush1.bf16.msra.mxu0 0
  %6919 = vmatprep.subr.bf16.mxu0 0
  %6920 = vmatpush1.bf16.msra.mxu0 0
  %6921 = vmatprep.subr.bf16.mxu0 0
  %6922 = vmatpush1.bf16.msra.mxu0 0
  %6923 = vmatprep.mubr.bf16.mxu0 0
  %6924 = vmatmul.mubr.bf16.gmra.mrb[0].mxu0 %v6812
  %v6925 = vpop.f32.mrb[0].mxu0
  %v6926 = vadd.f32 %v6841, %v6925
  %v6927 = vpop.f32.mrb[0].mxu0
  %v6928 = vpop.f32.mrb[0].mxu0
  %v6929 = vadd.f32 %v6841, %v6928
  %v6930 = vpop.f32.mrb[0].mxu0
  %6931 = vmatprep.mubr.bf16.mxu0 0
  %6932 = vmatmul.mubr.bf16.gmra.mrb[0].mxu0 %v6813
  %v6933 = vpop.f32.mrb[0].mxu0
  %v6934 = vadd.f32 %v6841, %v6933
  %v6935 = vpop.f32.mrb[0].mxu0
  %v6936 = vpop.f32.mrb[0].mxu0
  %v6937 = vadd.f32 %v6841, %v6936
  %v6938 = vpop.f32.mrb[0].mxu0
  %6939 = vmatprep.mubr.bf16.mxu0 0
  %6940 = vmatmul.mubr.bf16.gmra.mrb[0].mxu0 %v6814
  %v6941 = vpop.f32.mrb[0].mxu0
  %v6942 = vadd.f32 %v6841, %v6941
  %v6943 = vpop.f32.mrb[0].mxu0
  %v6944 = vpop.f32.mrb[0].mxu0
  %v6945 = vadd.f32 %v6841, %v6944
  %v6946 = vpop.f32.mrb[0].mxu0
  %6947 = vmatprep.mubr.bf16.mxu0 0
  %6948 = vmatmul.mubr.bf16.gmra.mrb[0].mxu0 %v6815
  %v6949 = vpop.f32.mrb[0].mxu0
  %v6950 = vadd.f32 %v6841, %v6949
  %v6951 = vpop.f32.mrb[0].mxu0
  %v6952 = vpop.f32.mrb[0].mxu0
  %v6953 = vadd.f32 %v6841, %v6952
  %v6954 = vpop.f32.mrb[0].mxu0
  %6955 = vmatprep.mubr.bf16.mxu0 0
  %6956 = vmatmul.mubr.bf16.gmra.mrb[0].mxu0 %v6816
  %v6957 = vpop.f32.mrb[0].mxu0
  %v6958 = vadd.f32 %v6841, %v6957
  %v6959 = vpop.f32.mrb[0].mxu0
  %v6960 = vpop.f32.mrb[0].mxu0
  %v6961 = vadd.f32 %v6841, %v6960
  %v6962 = vpop.f32.mrb[0].mxu0
  %6963 = vmatprep.mubr.bf16.mxu0 0
  %6964 = vmatmul.mubr.bf16.gmra.mrb[0].mxu0 %v6817
  %v6965 = vpop.f32.mrb[0].mxu0
  %v6966 = vadd.f32 %v6841, %v6965
  %v6967 = vpop.f32.mrb[0].mxu0
  %v6968 = vpop.f32.mrb[0].mxu0
  %v6969 = vadd.f32 %v6841, %v6968
  %v6970 = vpop.f32.mrb[0].mxu0
  %6971 = vmatprep.mubr.bf16.mxu0 0
  %6972 = vmatmul.mubr.bf16.gmra.mrb[0].mxu0 %v6818
  %v6973 = vpop.f32.mrb[0].mxu0
  %v6974 = vadd.f32 %v6841, %v6973
  %v6975 = vpop.f32.mrb[0].mxu0
  %v6976 = vpop.f32.mrb[0].mxu0
  %v6977 = vadd.f32 %v6841, %v6976
  %v6978 = vpop.f32.mrb[0].mxu0
  %6979 = vmatprep.mubr.bf16.mxu0 0
  %6980 = vmatmul.mubr.bf16.gmra.mrb[0].mxu0 %v6819
  %v6981 = vpop.f32.mrb[0].mxu0
  %v6982 = vadd.f32 %v6841, %v6981
  %v6983 = vpop.f32.mrb[0].mxu0
  %v6984 = vpop.f32.mrb[0].mxu0
  %v6985 = vadd.f32 %v6841, %v6984
  %v6986 = vpop.f32.mrb[0].mxu0
  %6987 = vdwg.mxu0
  %v6988 = vmax.f32 %v6926, 0.0
  %v6989 = vmax.f32 %v6929, 0.0
  %v6990 = vmax.f32 %v6934, 0.0
  %v6991 = vmax.f32 %v6937, 0.0
  %v6992 = vmax.f32 %v6942, 0.0
  %v6993 = vmax.f32 %v6945, 0.0
  %v6994 = vmax.f32 %v6950, 0.0
  %v6995 = vmax.f32 %v6953, 0.0
  %v6996 = vmax.f32 %v6958, 0.0
  %v6997 = vmax.f32 %v6961, 0.0
  %v6998 = vmax.f32 %v6966, 0.0
  %v6999 = vmax.f32 %v6969, 0.0
  %v7000 = vmax.f32 %v6974, 0.0
  %v7001 = vmax.f32 %v6977, 0.0
  %v7002 = vmax.f32 %v6982, 0.0
  %v7003 = vmax.f32 %v6985, 0.0
  %v7004 = vpack.c.bf16 %v6989, %v6988
  %v7005 = vpack.c.bf16 %v6991, %v6990
  %v7006 = vpack.c.bf16 %v6993, %v6992
  %v7007 = vpack.c.bf16 %v6995, %v6994
  %v7008 = vpack.c.bf16 %v6997, %v6996
  %v7009 = vpack.c.bf16 %v6999, %v6998
  %v7010 = vpack.c.bf16 %v7001, %v7000
  %v7011 = vpack.c.bf16 %v7003, %v7002
  %v7012 = vld [vmem:[%s11] sm:$0xf]
  %v7013 = vld [vmem:[%s11 + $0x4] sm:$0xf]
  %v7014 = vld [vmem:[%s11 + $0x8] sm:$0xf]
  %v7015 = vld [vmem:[%s11 + $0xc] sm:$0xf]
  %v7016 = vld [vmem:[%s11 + $0x10] sm:$0xf]
  %v7017 = vld [vmem:[%s11 + $0x14] sm:$0xf]
  %v7018 = vld [vmem:[%s11 + $0x18] sm:$0xf]
  %v7019 = vld [vmem:[%s11 + $0x1c] sm:$0xf]
  %v7020 = vld [vmem:[%s11 + $0x20] sm:$0xf]
  %v7021 = vld [vmem:[%s11 + $0x24] sm:$0xf]
  %v7022 = vld [vmem:[%s11 + $0x28] sm:$0xf]
  %v7023 = vld [vmem:[%s11 + $0x2c] sm:$0xf]
  %v7024 = vld [vmem:[%s11 + $0x30] sm:$0xf]
  %v7025 = vld [vmem:[%s11 + $0x34] sm:$0xf]
  %v7026 = vld [vmem:[%s11 + $0x38] sm:$0xf]
  %v7027 = vld [vmem:[%s11 + $0x3c] sm:$0xf]
  %v7028 = vld [vmem:[%s12] sm:$0x1]
  %v7030 = vlaneseq
  %v7031 = vshrl.u32 %v7030, 7
  %v7032 = vsub.s32 0, %v7031
  %v7033 = vrot.slane %v7028, %v7032
  %v7051 = vunpack.c.l.b16 %v7012
  %v7052 = vunpack.c.l.b16 %v7013
  %v7053 = vunpack.c.l.b16 %v7014
  %v7054 = vunpack.c.l.b16 %v7015
  %v7055 = vunpack.c.l.b16 %v7016
  %v7056 = vunpack.c.l.b16 %v7017
  %v7057 = vunpack.c.l.b16 %v7018
  %v7058 = vunpack.c.l.b16 %v7019
  %v7059 = vunpack.c.l.b16 %v7020
  %v7060 = vunpack.c.l.b16 %v7021
  %v7061 = vunpack.c.l.b16 %v7022
  %v7062 = vunpack.c.l.b16 %v7023
  %v7063 = vunpack.c.l.b16 %v7024
  %v7064 = vunpack.c.l.b16 %v7025
  %v7065 = vunpack.c.l.b16 %v7026
  %v7066 = vunpack.c.l.b16 %v7027
  %v7067 = vpack.c.b16 %v7052, %v7051
  %v7068 = vpack.c.b16 %v7054, %v7053
  %v7069 = vpack.c.b16 %v7056, %v7055
  %v7070 = vpack.c.b16 %v7058, %v7057
  %v7071 = vpack.c.b16 %v7060, %v7059
  %v7072 = vpack.c.b16 %v7062, %v7061
  %v7073 = vpack.c.b16 %v7064, %v7063
  %v7074 = vpack.c.b16 %v7066, %v7065
  %7083 = vmatprep.subr.bf16.mxu0 0
  %7084 = vmatpush1.bf16.msra.mxu0 %v7067
  %7085 = vmatprep.subr.bf16.mxu0 0
  %7086 = vmatpush1.bf16.msra.mxu0 %v7068
  %7087 = vmatprep.subr.bf16.mxu0 0
  %7088 = vmatpush1.bf16.msra.mxu0 %v7069
  %7089 = vmatprep.subr.bf16.mxu0 0
  %7090 = vmatpush1.bf16.msra.mxu0 %v7070
  %7091 = vmatprep.subr.bf16.mxu0 0
  %7092 = vmatpush1.bf16.msra.mxu0 %v7071
  %7093 = vmatprep.subr.bf16.mxu0 0
  %7094 = vmatpush1.bf16.msra.mxu0 %v7072
  %7095 = vmatprep.subr.bf16.mxu0 0
  %7096 = vmatpush1.bf16.msra.mxu0 %v7073
  %7097 = vmatprep.subr.bf16.mxu0 0
  %7098 = vmatpush1.bf16.msra.mxu0 %v7074
  %7099 = vmatprep.subr.bf16.mxu0 0
  %7100 = vmatpush1.bf16.msra.mxu0 0
  %7101 = vmatprep.subr.bf16.mxu0 0
  %7102 = vmatpush1.bf16.msra.mxu0 0
  %7103 = vmatprep.subr.bf16.mxu0 0
  %7104 = vmatpush1.bf16.msra.mxu0 0
  %7105 = vmatprep.subr.bf16.mxu0 0
  %7106 = vmatpush1.bf16.msra.mxu0 0
  %7107 = vmatprep.subr.bf16.mxu0 0
  %7108 = vmatpush1.bf16.msra.mxu0 0
  %7109 = vmatprep.subr.bf16.mxu0 0
  %7110 = vmatpush1.bf16.msra.mxu0 0
  %7111 = vmatprep.subr.bf16.mxu0 0
  %7112 = vmatpush1.bf16.msra.mxu0 0
  %7113 = vmatprep.subr.bf16.mxu0 0
  %7114 = vmatpush1.bf16.msra.mxu0 0
  %7115 = vmatprep.mubr.bf16.mxu0 0
  %7116 = vmatmul.mubr.bf16.gmra.mrb[0].mxu0 %v7004
  %v7117 = vpop.f32.mrb[0].mxu0
  %v7118 = vadd.f32 %v7033, %v7117
  %v7119 = vpop.f32.mrb[0].mxu0
  %v7120 = vpop.f32.mrb[0].mxu0
  %v7121 = vadd.f32 %v7033, %v7120
  %v7122 = vpop.f32.mrb[0].mxu0
  %7123 = vmatprep.mubr.bf16.mxu0 0
  %7124 = vmatmul.mubr.bf16.gmra.mrb[0].mxu0 %v7005
  %v7125 = vpop.f32.mrb[0].mxu0
  %v7126 = vadd.f32 %v7033, %v7125
  %v7127 = vpop.f32.mrb[0].mxu0
  %v7128 = vpop.f32.mrb[0].mxu0
  %v7129 = vadd.f32 %v7033, %v7128
  %v7130 = vpop.f32.mrb[0].mxu0
  %7131 = vmatprep.mubr.bf16.mxu0 0
  %7132 = vmatmul.mubr.bf16.gmra.mrb[0].mxu0 %v7006
  %v7133 = vpop.f32.mrb[0].mxu0
  %v7134 = vadd.f32 %v7033, %v7133
  %v7135 = vpop.f32.mrb[0].mxu0
  %v7136 = vpop.f32.mrb[0].mxu0
  %v7137 = vadd.f32 %v7033, %v7136
  %v7138 = vpop.f32.mrb[0].mxu0
  %7139 = vmatprep.mubr.bf16.mxu0 0
  %7140 = vmatmul.mubr.bf16.gmra.mrb[0].mxu0 %v7007
  %v7141 = vpop.f32.mrb[0].mxu0
  %v7142 = vadd.f32 %v7033, %v7141
  %v7143 = vpop.f32.mrb[0].mxu0
  %v7144 = vpop.f32.mrb[0].mxu0
  %v7145 = vadd.f32 %v7033, %v7144
  %v7146 = vpop.f32.mrb[0].mxu0
  %7147 = vmatprep.mubr.bf16.mxu0 0
  %7148 = vmatmul.mubr.bf16.gmra.mrb[0].mxu0 %v7008
  %v7149 = vpop.f32.mrb[0].mxu0
  %v7150 = vadd.f32 %v7033, %v7149
  %v7151 = vpop.f32.mrb[0].mxu0
  %v7152 = vpop.f32.mrb[0].mxu0
  %v7153 = vadd.f32 %v7033, %v7152
  %v7154 = vpop.f32.mrb[0].mxu0
  %7155 = vmatprep.mubr.bf16.mxu0 0
  %7156 = vmatmul.mubr.bf16.gmra.mrb[0].mxu0 %v7009
  %v7157 = vpop.f32.mrb[0].mxu0
  %v7158 = vadd.f32 %v7033, %v7157
  %v7159 = vpop.f32.mrb[0].mxu0
  %v7160 = vpop.f32.mrb[0].mxu0
  %v7161 = vadd.f32 %v7033, %v7160
  %v7162 = vpop.f32.mrb[0].mxu0
  %7163 = vmatprep.mubr.bf16.mxu0 0
  %7164 = vmatmul.mubr.bf16.gmra.mrb[0].mxu0 %v7010
  %v7165 = vpop.f32.mrb[0].mxu0
  %v7166 = vadd.f32 %v7033, %v7165
  %v7167 = vpop.f32.mrb[0].mxu0
  %v7168 = vpop.f32.mrb[0].mxu0
  %v7169 = vadd.f32 %v7033, %v7168
  %v7170 = vpop.f32.mrb[0].mxu0
  %7171 = vmatprep.mubr.bf16.mxu0 0
  %7172 = vmatmul.mubr.bf16.gmra.mrb[0].mxu0 %v7011
  %v7173 = vpop.f32.mrb[0].mxu0
  %v7174 = vadd.f32 %v7033, %v7173
  %v7175 = vpop.f32.mrb[0].mxu0
  %v7176 = vpop.f32.mrb[0].mxu0
  %v7177 = vadd.f32 %v7033, %v7176
  %v7178 = vpop.f32.mrb[0].mxu0
  %7179 = vdwg.mxu0
  %7180 = vst [vmem:[%s13] sm:$0xff] %v7118
  %7181 = vst [vmem:[%s13 + $0x8] sm:$0xff] %v7121
  %7182 = vst [vmem:[%s13 + $0x10] sm:$0xff] %v7126
  %7183 = vst [vmem:[%s13 + $0x18] sm:$0xff] %v7129
  %7184 = vst [vmem:[%s13 + $0x20] sm:$0xff] %v7134
  %7185 = vst [vmem:[%s13 + $0x28] sm:$0xff] %v7137
  %7186 = vst [vmem:[%s13 + $0x30] sm:$0xff] %v7142
  %7187 = vst [vmem:[%s13 + $0x38] sm:$0xff] %v7145
  %7188 = vst [vmem:[%s13 + $0x40] sm:$0xff] %v7150
  %7189 = vst [vmem:[%s13 + $0x48] sm:$0xff] %v7153
  %7190 = vst [vmem:[%s13 + $0x50] sm:$0xff] %v7158
  %7191 = vst [vmem:[%s13 + $0x58] sm:$0xff] %v7161
  %7192 = vst [vmem:[%s13 + $0x60] sm:$0xff] %v7166
  %7193 = vst [vmem:[%s13 + $0x68] sm:$0xff] %v7169
  %7194 = vst [vmem:[%s13 + $0x70] sm:$0xff] %v7174
  %7195 = vst [vmem:[%s13 + $0x78] sm:$0xff] %v7177
  // Predicated region
  $region58: #{char_lstm_forward.1} parent=0 // pred_check
    %p7196 = pneg %p48
  $region59: #{char_lstm_forward.1} parent=0 // pred_check_branch
    %7198 = sbr.rel (%p7196) target = $region61
  $region60: #{char_lstm_forward.1} parent=0 // pred_region
    %v7199 = vld [vmem:[#allocation4] sm:$0xff]
    %v7200 = vld [vmem:[#allocation4 + $0x8] sm:$0xff]
    %v7201 = vld [vmem:[#allocation4 + $0x10] sm:$0xff]
    %v7202 = vld [vmem:[#allocation4 + $0x18] sm:$0xff]
    %7203 = vst [vmem:[%s14] sm:$0xff] %v7199
    %7204 = vst [vmem:[%s14 + $0x8] sm:$0xff] %v7200
    %7205 = vst [vmem:[%s14 + $0x10] sm:$0xff] %v7201
    %7206 = vst [vmem:[%s14 + $0x18] sm:$0xff] %v7202
    %v7207 = vld [vmem:[#allocation5] sm:$0xff]
    %v7208 = vld [vmem:[#allocation5 + $0x8] sm:$0xff]
    %v7209 = vld [vmem:[#allocation5 + $0x10] sm:$0xff]
    %v7210 = vld [vmem:[#allocation5 + $0x18] sm:$0xff]
    %7211 = vst [vmem:[%s15] sm:$0xff] %v7207
    %7212 = vst [vmem:[%s15 + $0x8] sm:$0xff] %v7208
    %7213 = vst [vmem:[%s15 + $0x10] sm:$0xff] %v7209
    %7214 = vst [vmem:[%s15 + $0x18] sm:$0xff] %v7210
  $region61: #{char_lstm_forward.1} parent=0 // pred_fallthru
    _
  // Predicated region
  $region62: #{char_lstm_forward.1} parent=0 // pred_check
    _
  $region63: #{char_lstm_forward.1} parent=0 // pred_check_branch
    %7216 = sbr.rel (0) target = $region65
  $region64: #{char_lstm_forward.1} parent=0 // pred_region
    _
  $region65: #{char_lstm_forward.1} parent=0 // pred_fallthru
    _
  // Predicated region
  $region66: #{char_lstm_forward.1} parent=0 // pred_check
    _
  $region67: #{char_lstm_forward.1} parent=0 // pred_check_branch
    %7218 = sbr.rel (0) target = $region69
  $region68: #{char_lstm_forward.1} parent=0 // pred_region
    _
  $region69: #{char_lstm_forward.1} parent=0 // pred_fallthru
    _
  // Predicated region
  $region70: #{char_lstm_forward.1} parent=0 // pred_check
    _
  $region71: #{char_lstm_forward.1} parent=0 // pred_check_branch
    %7220 = sbr.rel (0) target = $region73
  $region72: #{char_lstm_forward.1} parent=0 // pred_region
    _
  $region73: #{char_lstm_forward.1} parent=0 // pred_fallthru
    _
  // Predicated region
  $region74: #{char_lstm_forward.1} parent=0 // pred_check
    _
  $region75: #{char_lstm_forward.1} parent=0 // pred_check_branch
    %7222 = sbr.rel (0) target = $region77
  $region76: #{char_lstm_forward.1} parent=0 // pred_region
    _
  $region77: #{char_lstm_forward.1} parent=0 // pred_fallthru
    _
  // Predicated region
  $region78: #{char_lstm_forward.1} parent=0 // pred_check
    _
  $region79: #{char_lstm_forward.1} parent=0 // pred_check_branch
    %7224 = sbr.rel (0) target = $region81
  $region80: #{char_lstm_forward.1} parent=0 // pred_region
    _
  $region81: #{char_lstm_forward.1} parent=0 // pred_fallthru
    _
  // Predicated region
  $region82: #{char_lstm_forward.1} parent=0 // pred_check
    _
  $region83: #{char_lstm_forward.1} parent=0 // pred_check_branch
    %7226 = sbr.rel (0) target = $region85
  $region84: #{char_lstm_forward.1} parent=0 // pred_region
    _
  $region85: #{char_lstm_forward.1} parent=0 // pred_fallthru
    _

</llo_original>
